<compile_context>
chip_gen: v5e
topology: v5e:2x2
jax: 0.10.0
libtpu: 0.0.40
codegen_flags: <defaults>
</compile_context>

<pallas_src>
import jax
import jax.numpy as jnp
import numpy as np
from jax import lax
from jax.experimental import pallas as pl
from jax.experimental.pallas import tpu as pltpu


def fused_block_kernel(xf_ref, wb1_ref, wb2_ref, b1_ref, g1_ref, b2_ref, g2_ref,
                       out_ref, st_ref):
    """Both ConvLeaky cells for a strip of NB batch elements, resident in VMEM.

    xf_ref : (NB, H, WC)      input, lane-flattened NHWC (WC = padded W*C)
    wb*_ref: (WC, 3*WC)       banded conv weights, bf16 (see _band_weight)
    b*_ref : (1, WC)          bias, tiled per flattened output column (f32)
    g*_ref : (1, WC)          gate = 1 - sigmoid(leak), precomputed (f32)
    out_ref: (NB, H, WC)      x2 = relu(state2)
    st_ref : (2, NB, H, WC)   [state1, state2]
    """
    NB, H, WC = out_ref.shape
    M = NB * H

    # Fold batch into the matmul M dimension (free reshape: leading dims merge,
    # lanes unchanged, H is a multiple of 8).
    xf = xf_ref[...].reshape(M, WC).astype(jnp.float32)

    # Mask implementing the conv's vertical zero padding AND the image boundary
    # inside the folded batch: row h==0 of each image gets no "above" contribution,
    # row h==H-1 gets no "below" contribution.  O(M*WC) VPU work, a few vregs.
    row = lax.broadcasted_iota(jnp.int32, (M, WC), 0)
    not_top = (row % H) != 0
    not_bot = (row % H) != (H - 1)

    def conv_leaky(a, wb_ref, b_ref, g_ref, residual):
        # One banded bf16 matmul covers all horizontal taps of the 3 kernel rows.
        y = jnp.dot(a.astype(jnp.bfloat16), wb_ref[...],
                    preferred_element_type=jnp.float32)          # (M, 3*WC) f32
        y0 = y[:, 0:WC]              # ky = 0: needs input row h-1
        y1 = y[:, WC:2 * WC]         # ky = 1: input row h
        y2 = y[:, 2 * WC:3 * WC]     # ky = 2: input row h+1
        # Vertical halo via XLU sublane rotate + mask (no MXU, no padded scratch).
        y0s = jnp.where(not_top, pltpu.roll(y0, shift=1, axis=0), 0.0)
        y2s = jnp.where(not_bot, pltpu.roll(y2, shift=M - 1, axis=0), 0.0)
        ff = y0s + y1 + y2s + b_ref[...]
        state = g_ref[...] * (ff + residual)         # prev_state == 0; gate precomputed
        return jnp.maximum(state, 0.0), state        # relu activation

    x1, state1 = conv_leaky(xf, wb1_ref, b1_ref, g1_ref, 0.0)   # conv1, residual = 0
    x2, state2 = conv_leaky(x1, wb2_ref, b2_ref, g2_ref, xf)    # conv2, residual = x

    out_ref[...] = x2.reshape(NB, H, WC).astype(out_ref.dtype)
    st_ref[0, :, :, :] = state1.reshape(NB, H, WC).astype(st_ref.dtype)
    st_ref[1, :, :, :] = state2.reshape(NB, H, WC).astype(st_ref.dtype)


def _band_weight(w_hwio, width, wcp):
    """(3, 3, Cin, Cout) HWIO -> (wcp, 3*wcp) banded matrix (zero-padded to wcp).

    For kernel row ky:  band[ky][wp*Cin + ci, w*Cout + co] = w_hwio[ky, kx, ci, co]
    where wp = w + kx - 1; entries whose source column falls outside [0, W-1] stay
    zero -- this reproduces the conv's horizontal zero padding, so the kernel never
    pads the activation.  The three ky blocks (each padded to wcp columns so the
    in-kernel slices stay lane-aligned) are concatenated along the output axis so a
    single matmul evaluates the whole 3x3 stencil.
    """
    kh, kw, cin, cout = w_hwio.shape
    assert kh == 3 and kw == 3, "kernel is specialized for 3x3 convs (padding=1)"
    wc_in, wc_out = width * cin, width * cout
    wp = jnp.arange(width)[:, None, None]                # source column
    wo = jnp.arange(width)[None, :, None]                # output column
    kx = jnp.arange(kw)[None, None, :]
    sel = (wp == wo + kx - 1).astype(w_hwio.dtype)       # (W, W, 3)
    band = jnp.einsum('pwx,yxic->ypiwc', sel, w_hwio)    # (3, W, Cin, W, Cout)
    band = band.reshape(3, wc_in, wc_out)
    band = jnp.pad(band, ((0, 0), (0, wcp - wc_in), (0, wcp - wc_out)))
    return jnp.concatenate([band[0], band[1], band[2]], axis=1)   # (wcp, 3*wcp)


@jax.jit
def leaky_residual_block(x, w1, b1, leak1, w2, b2, leak2):
    """Full LeakyResidualBlock forward (prev_state = None).

    x: (N, H, W, C) NHWC; w*: (3, 3, Cin, Cout) HWIO; b*, leak*: (Cout,).
    Returns (x2, states) with states shaped (2, N, H, W, Cout).
    """
    N, H, W, C = x.shape
    Cout = w1.shape[-1]
    assert Cout == C, "residual add requires in_channels == out_channels (as in the module)"
    WC = W * C
    WCp = ((WC + 127) // 128) * 128              # lane-align the flattened width

    # Fold as many images per grid step as evenly divides N (cap at 8) so the
    # matmul M = NB*H is large and the per-step overhead is amortized.
    NB = max(d for d in range(1, min(N, 8) + 1) if N % d == 0)

    # One-time parameter preprocessing (done once by XLA, reused every call).
    wb1 = _band_weight(w1, W, WCp).astype(jnp.bfloat16)   # bf16 MXU operands
    wb2 = _band_weight(w2, W, WCp).astype(jnp.bfloat16)

    def flat_param(p):                                    # (C,) -> (1, WCp) f32
        f = jnp.tile(p.astype(jnp.float32), W)
        return jnp.pad(f, (0, WCp - WC)).reshape(1, WCp)

    b1f = flat_param(b1)
    b2f = flat_param(b2)
    g1f = flat_param(1.0 - jax.nn.sigmoid(leak1))         # gate precomputed host-side
    g2f = flat_param(1.0 - jax.nn.sigmoid(leak2))

    xf = x.reshape(N, H, WC)                              # lane-dense layout
    if WCp != WC:
        xf = jnp.pad(xf, ((0, 0), (0, 0), (0, WCp - WC)))

    out_shapes = (jax.ShapeDtypeStruct((N, H, WCp), x.dtype),
                  jax.ShapeDtypeStruct((2, N, H, WCp), x.dtype))

    # TODO(synk): for large H or large W*C (esp. on v7x's 64 MiB VMEM) tile H into
    # row strips with a 1-row halo, tile the band along W in 128-256-lane column
    # strips, stage wb1/wb2 once via memory_space=pl.ANY + a one-time DMA instead of
    # double-buffered constant-index blocks, and set vmem_limit_bytes explicitly.
    grid_spec = pltpu.PrefetchScalarGridSpec(
        num_scalar_prefetch=0,
        grid=(N // NB,),
        in_specs=[
            pl.BlockSpec((NB, H, WCp), lambda n: (n, 0, 0)),        # x (flattened)
            pl.BlockSpec((WCp, 3 * WCp), lambda n: (0, 0)),         # banded W1 (bf16)
            pl.BlockSpec((WCp, 3 * WCp), lambda n: (0, 0)),         # banded W2 (bf16)
            pl.BlockSpec((1, WCp), lambda n: (0, 0)),               # b1
            pl.BlockSpec((1, WCp), lambda n: (0, 0)),               # gate1
            pl.BlockSpec((1, WCp), lambda n: (0, 0)),               # b2
            pl.BlockSpec((1, WCp), lambda n: (0, 0)),               # gate2
        ],
        out_specs=[
            pl.BlockSpec((NB, H, WCp), lambda n: (n, 0, 0)),        # x2
            pl.BlockSpec((2, NB, H, WCp), lambda n: (0, n, 0, 0)),  # stacked states
        ],
    )

    out_f, st_f = pl.pallas_call(
        fused_block_kernel,
        out_shape=out_shapes,
        grid_spec=grid_spec,
        compiler_params=pltpu.CompilerParams(
            dimension_semantics=("parallel",)),
    )(xf, wb1, wb2, b1f, g1f, b2f, g2f)

    out = out_f[..., :WC].reshape(N, H, W, Cout)
    st = st_f[..., :WC].reshape(2, N, H, W, Cout)
    return out, st


# --------------------------- pure-JAX reference ---------------------------
def _reference(x, w1, b1, leak1, w2, b2, leak2):
    def conv(x_, w_, b_):
        y = lax.conv_general_dilated(
            x_, w_, window_strides=(1, 1), padding="SAME",
            dimension_numbers=("NHWC", "HWIO", "NHWC"))
        return y + b_.reshape(1, 1, 1, -1)

    ff1 = conv(x, w1, b1)
    g1 = jax.nn.sigmoid(leak1).reshape(1, 1, 1, -1)
    s1 = (1.0 - g1) * ff1
    x1 = jnp.maximum(s1, 0.0)

    ff2 = conv(x1, w2, b2)
    g2 = jax.nn.sigmoid(leak2).reshape(1, 1, 1, -1)
    s2 = (1.0 - g2) * (ff2 + x)
    x2 = jnp.maximum(s2, 0.0)
    return x2, jnp.stack([s1, s2])


if __name__ == "__main__":
    # Small shapes: batch=2, channels=8 (in == out, stride=1 so the residual add is
    # valid, as the PyTorch module implicitly requires), spatial=16x16.
    # W * C = 128 -> fully lane-dense; batch is folded so one grid step does M=32 rows.
    N, H, W, C = 2, 16, 16, 8

    key = jax.random.PRNGKey(0)
    kx_, kw1, kb1, kl1, kw2, kb2, kl2 = jax.random.split(key, 7)

    x = jax.random.normal(kx_, (N, H, W, C), jnp.float32)

    # Deterministic synthetic parameters (shapes match nn.Conv2d(C, C, 3) + leak (C,1,1)).
    w1 = jax.random.normal(kw1, (3, 3, C, C), jnp.float32) * 0.1
    b1 = jax.random.normal(kb1, (C,), jnp.float32) * 0.1
    leak1 = jax.random.normal(kl1, (C,), jnp.float32) * 0.1 + (-4.0)
    w2 = jax.random.normal(kw2, (3, 3, C, C), jnp.float32) * 0.1
    b2 = jax.random.normal(kb2, (C,), jnp.float32) * 0.1
    leak2 = jax.random.normal(kl2, (C,), jnp.float32) * 0.1 + (-4.0)

    out, states = leaky_residual_block(x, w1, b1, leak1, w2, b2, leak2)
    jax.block_until_ready((out, states))

    ref_out, ref_states = _reference(x, w1, b1, leak1, w2, b2, leak2)
    # Tolerance loosened vs. the pure-f32 version: the matmul operands are rounded
    # to bf16 (f32 accumulation / f32 epilogue), per the performance review.
    np.testing.assert_allclose(np.asarray(out), np.asarray(ref_out),
                               rtol=2e-2, atol=2e-2)
    np.testing.assert_allclose(np.asarray(states), np.asarray(ref_states),
                               rtol=2e-2, atol=2e-2)

    print("KERNEL_OK")
</pallas_src>

<mosaic_0001>
module attributes {stable_mosaic.version = 11 : i64} {
  func.func @fused_block_kernel(%arg0: i32, %arg1: memref<2x16x128xf32, #tpu.memory_space<vmem>>, %arg2: memref<128x384xbf16, #tpu.memory_space<vmem>>, %arg3: memref<128x384xbf16, #tpu.memory_space<vmem>>, %arg4: memref<1x128xf32, #tpu.memory_space<vmem>>, %arg5: memref<1x128xf32, #tpu.memory_space<vmem>>, %arg6: memref<1x128xf32, #tpu.memory_space<vmem>>, %arg7: memref<1x128xf32, #tpu.memory_space<vmem>>, %arg8: memref<2x16x128xf32, #tpu.memory_space<vmem>>, %arg9: memref<2x2x16x128xf32, #tpu.memory_space<vmem>>) attributes {dimension_semantics = [#tpu.dimension_semantics<parallel>], iteration_bounds = array<i64: 1>, scalar_prefetch = 0 : i64, scratch_operands = 0 : i64, tpu.core_type = #tpu.core_type<tc>, window_params = [{transform_indices = @transform_0, window_bounds = array<i64: 2, 16, 128>}, {pipeline_mode = #tpu.pipeline_mode<synchronous>, transform_indices = @transform_1, window_bounds = array<i64: 128, 384>}, {pipeline_mode = #tpu.pipeline_mode<synchronous>, transform_indices = @transform_2, window_bounds = array<i64: 128, 384>}, {pipeline_mode = #tpu.pipeline_mode<synchronous>, transform_indices = @transform_3, window_bounds = array<i64: 1, 128>}, {pipeline_mode = #tpu.pipeline_mode<synchronous>, transform_indices = @transform_4, window_bounds = array<i64: 1, 128>}, {pipeline_mode = #tpu.pipeline_mode<synchronous>, transform_indices = @transform_5, window_bounds = array<i64: 1, 128>}, {pipeline_mode = #tpu.pipeline_mode<synchronous>, transform_indices = @transform_6, window_bounds = array<i64: 1, 128>}, {transform_indices = @transform_7, window_bounds = array<i64: 2, 16, 128>}, {transform_indices = @transform_8, window_bounds = array<i64: 2, 2, 16, 128>}]} {
    %c0 = arith.constant 0 : index
    %c0_0 = arith.constant 0 : index
    %c0_1 = arith.constant 0 : index
    %0 = vector.load %arg1[%c0, %c0_0, %c0_1] : memref<2x16x128xf32, #tpu.memory_space<vmem>>, vector<2x16x128xf32>
    %1 = vector.shape_cast %0 : vector<2x16x128xf32> to vector<32x128xf32>
    %2 = tpu.iota {dimensions = array<i32: 0>} : vector<32x128xi32>
    %c16_i32 = arith.constant 16 : i32
    %c0_i32 = arith.constant 0 : i32
    %3 = arith.cmpi eq, %c16_i32, %c0_i32 : i32
    %c1_i32 = arith.constant 1 : i32
    %4 = arith.select %3, %c1_i32, %c16_i32 : i32
    %5 = vector.broadcast %4 : i32 to vector<32x128xi32>
    %6 = arith.remsi %2, %5 : vector<32x128xi32>
    %c0_i32_2 = arith.constant 0 : i32
    %7 = vector.broadcast %c0_i32_2 : i32 to vector<32x128xi32>
    %8 = arith.cmpi ne, %6, %7 : vector<32x128xi32>
    %c0_i32_3 = arith.constant 0 : i32
    %9 = vector.broadcast %c0_i32_3 : i32 to vector<32x128xi32>
    %10 = arith.cmpi slt, %6, %9 : vector<32x128xi32>
    %c0_i32_4 = arith.constant 0 : i32
    %11 = arith.cmpi slt, %4, %c0_i32_4 : i32
    %12 = vector.broadcast %11 : i1 to vector<32x128xi1>
    %13 = vector.broadcast %12 : vector<32x128xi1> to vector<32x128xi1>
    %14 = arith.xori %10, %13 : vector<32x128xi1>
    %15 = arith.andi %14, %8 : vector<32x128xi1>
    %16 = vector.broadcast %4 : i32 to vector<32x128xi32>
    %17 = arith.addi %6, %16 : vector<32x128xi32>
    %18 = arith.select %15, %17, %6 : vector<32x128xi1>, vector<32x128xi32>
    %c0_i32_5 = arith.constant 0 : i32
    %19 = vector.broadcast %c0_i32_5 : i32 to vector<32x128xi32>
    %20 = arith.cmpi ne, %18, %19 : vector<32x128xi32>
    %c16_i32_6 = arith.constant 16 : i32
    %c0_i32_7 = arith.constant 0 : i32
    %21 = arith.cmpi eq, %c16_i32_6, %c0_i32_7 : i32
    %c1_i32_8 = arith.constant 1 : i32
    %22 = arith.select %21, %c1_i32_8, %c16_i32_6 : i32
    %23 = vector.broadcast %22 : i32 to vector<32x128xi32>
    %24 = arith.remsi %2, %23 : vector<32x128xi32>
    %c0_i32_9 = arith.constant 0 : i32
    %25 = vector.broadcast %c0_i32_9 : i32 to vector<32x128xi32>
    %26 = arith.cmpi ne, %24, %25 : vector<32x128xi32>
    %c0_i32_10 = arith.constant 0 : i32
    %27 = vector.broadcast %c0_i32_10 : i32 to vector<32x128xi32>
    %28 = arith.cmpi slt, %24, %27 : vector<32x128xi32>
    %c0_i32_11 = arith.constant 0 : i32
    %29 = arith.cmpi slt, %22, %c0_i32_11 : i32
    %30 = vector.broadcast %29 : i1 to vector<32x128xi1>
    %31 = vector.broadcast %30 : vector<32x128xi1> to vector<32x128xi1>
    %32 = arith.xori %28, %31 : vector<32x128xi1>
    %33 = arith.andi %32, %26 : vector<32x128xi1>
    %34 = vector.broadcast %22 : i32 to vector<32x128xi32>
    %35 = arith.addi %24, %34 : vector<32x128xi32>
    %36 = arith.select %33, %35, %24 : vector<32x128xi1>, vector<32x128xi32>
    %c15_i32 = arith.constant 15 : i32
    %37 = vector.broadcast %c15_i32 : i32 to vector<32x128xi32>
    %38 = arith.cmpi ne, %36, %37 : vector<32x128xi32>
    %39 = arith.truncf %1 : vector<32x128xf32> to vector<32x128xbf16>
    %c0_12 = arith.constant 0 : index
    %c0_13 = arith.constant 0 : index
    %40 = vector.load %arg2[%c0_12, %c0_13] : memref<128x384xbf16, #tpu.memory_space<vmem>>, vector<128x384xbf16>
    %cst = arith.constant dense<0.000000e+00> : vector<32x384xf32>
    %41 = tpu.matmul %39, %40, %cst {dimension_numbers = #tpu.dot_dimension_numbers<[1], [0], [0], [1], [0, 0, 1, 1], [], []>} : vector<32x128xbf16>, vector<128x384xbf16>, vector<32x384xf32> -> vector<32x384xf32>
    %42 = vector.extract_strided_slice %41 {offsets = [0, 0], sizes = [32, 128], strides = [1, 1]} : vector<32x384xf32> to vector<32x128xf32>
    %43 = vector.extract_strided_slice %41 {offsets = [0, 128], sizes = [32, 128], strides = [1, 1]} : vector<32x384xf32> to vector<32x128xf32>
    %44 = vector.extract_strided_slice %41 {offsets = [0, 256], sizes = [32, 128], strides = [1, 1]} : vector<32x384xf32> to vector<32x128xf32>
    %c1_i32_14 = arith.constant 1 : i32
    %45 = tpu.dynamic_rotate %42 by %c1_i32_14 dim 0 : vector<32x128xf32>, i32 -> vector<32x128xf32>
    %cst_15 = arith.constant 0.000000e+00 : f32
    %46 = vector.broadcast %cst_15 : f32 to vector<32x128xf32>
    %47 = arith.select %20, %45, %46 : vector<32x128xi1>, vector<32x128xf32>
    %c31_i32 = arith.constant 31 : i32
    %48 = tpu.dynamic_rotate %44 by %c31_i32 dim 0 : vector<32x128xf32>, i32 -> vector<32x128xf32>
    %cst_16 = arith.constant 0.000000e+00 : f32
    %49 = vector.broadcast %cst_16 : f32 to vector<32x128xf32>
    %50 = arith.select %38, %48, %49 : vector<32x128xi1>, vector<32x128xf32>
    %51 = arith.addf %47, %43 : vector<32x128xf32>
    %52 = arith.addf %51, %50 : vector<32x128xf32>
    %c0_17 = arith.constant 0 : index
    %c0_18 = arith.constant 0 : index
    %53 = vector.load %arg4[%c0_17, %c0_18] : memref<1x128xf32, #tpu.memory_space<vmem>>, vector<1x128xf32>
    %54 = vector.broadcast %53 : vector<1x128xf32> to vector<32x128xf32>
    %55 = arith.addf %52, %54 : vector<32x128xf32>
    %c0_19 = arith.constant 0 : index
    %c0_20 = arith.constant 0 : index
    %56 = vector.load %arg5[%c0_19, %c0_20] : memref<1x128xf32, #tpu.memory_space<vmem>>, vector<1x128xf32>
    %cst_21 = arith.constant 0.000000e+00 : f32
    %57 = vector.broadcast %cst_21 : f32 to vector<32x128xf32>
    %58 = arith.addf %55, %57 : vector<32x128xf32>
    %59 = vector.broadcast %56 : vector<1x128xf32> to vector<32x128xf32>
    %60 = arith.mulf %59, %58 : vector<32x128xf32>
    %cst_22 = arith.constant 0.000000e+00 : f32
    %61 = vector.broadcast %cst_22 : f32 to vector<32x128xf32>
    %62 = arith.maximumf %60, %61 : vector<32x128xf32>
    %63 = arith.truncf %62 : vector<32x128xf32> to vector<32x128xbf16>
    %c0_23 = arith.constant 0 : index
    %c0_24 = arith.constant 0 : index
    %64 = vector.load %arg3[%c0_23, %c0_24] : memref<128x384xbf16, #tpu.memory_space<vmem>>, vector<128x384xbf16>
    %cst_25 = arith.constant dense<0.000000e+00> : vector<32x384xf32>
    %65 = tpu.matmul %63, %64, %cst_25 {dimension_numbers = #tpu.dot_dimension_numbers<[1], [0], [0], [1], [0, 0, 1, 1], [], []>} : vector<32x128xbf16>, vector<128x384xbf16>, vector<32x384xf32> -> vector<32x384xf32>
    %66 = vector.extract_strided_slice %65 {offsets = [0, 0], sizes = [32, 128], strides = [1, 1]} : vector<32x384xf32> to vector<32x128xf32>
    %67 = vector.extract_strided_slice %65 {offsets = [0, 128], sizes = [32, 128], strides = [1, 1]} : vector<32x384xf32> to vector<32x128xf32>
    %68 = vector.extract_strided_slice %65 {offsets = [0, 256], sizes = [32, 128], strides = [1, 1]} : vector<32x384xf32> to vector<32x128xf32>
    %c1_i32_26 = arith.constant 1 : i32
    %69 = tpu.dynamic_rotate %66 by %c1_i32_26 dim 0 : vector<32x128xf32>, i32 -> vector<32x128xf32>
    %cst_27 = arith.constant 0.000000e+00 : f32
    %70 = vector.broadcast %cst_27 : f32 to vector<32x128xf32>
    %71 = arith.select %20, %69, %70 : vector<32x128xi1>, vector<32x128xf32>
    %c31_i32_28 = arith.constant 31 : i32
    %72 = tpu.dynamic_rotate %68 by %c31_i32_28 dim 0 : vector<32x128xf32>, i32 -> vector<32x128xf32>
    %cst_29 = arith.constant 0.000000e+00 : f32
    %73 = vector.broadcast %cst_29 : f32 to vector<32x128xf32>
    %74 = arith.select %38, %72, %73 : vector<32x128xi1>, vector<32x128xf32>
    %75 = arith.addf %71, %67 : vector<32x128xf32>
    %76 = arith.addf %75, %74 : vector<32x128xf32>
    %c0_30 = arith.constant 0 : index
    %c0_31 = arith.constant 0 : index
    %77 = vector.load %arg6[%c0_30, %c0_31] : memref<1x128xf32, #tpu.memory_space<vmem>>, vector<1x128xf32>
    %78 = vector.broadcast %77 : vector<1x128xf32> to vector<32x128xf32>
    %79 = arith.addf %76, %78 : vector<32x128xf32>
    %c0_32 = arith.constant 0 : index
    %c0_33 = arith.constant 0 : index
    %80 = vector.load %arg7[%c0_32, %c0_33] : memref<1x128xf32, #tpu.memory_space<vmem>>, vector<1x128xf32>
    %81 = arith.addf %79, %1 : vector<32x128xf32>
    %82 = vector.broadcast %80 : vector<1x128xf32> to vector<32x128xf32>
    %83 = arith.mulf %82, %81 : vector<32x128xf32>
    %cst_34 = arith.constant 0.000000e+00 : f32
    %84 = vector.broadcast %cst_34 : f32 to vector<32x128xf32>
    %85 = arith.maximumf %83, %84 : vector<32x128xf32>
    %86 = vector.shape_cast %85 : vector<32x128xf32> to vector<2x16x128xf32>
    %c0_35 = arith.constant 0 : index
    %c0_36 = arith.constant 0 : index
    %c0_37 = arith.constant 0 : index
    %87 = vector.load %arg8[%c0_35, %c0_36, %c0_37] : memref<2x16x128xf32, #tpu.memory_space<vmem>>, vector<2x16x128xf32>
    tpu.vector_store %arg8[%c0_35, %c0_36, %c0_37], %86 {strides = array<i32>} : memref<2x16x128xf32, #tpu.memory_space<vmem>>, vector<2x16x128xf32>,
    %88 = vector.shape_cast %60 : vector<32x128xf32> to vector<2x16x128xf32>
    %c0_38 = arith.constant 0 : index
    %c0_39 = arith.constant 0 : index
    %c0_40 = arith.constant 0 : index
    %c0_41 = arith.constant 0 : index
    %89 = vector.load %arg9[%c0_38, %c0_39, %c0_40, %c0_41] : memref<2x2x16x128xf32, #tpu.memory_space<vmem>>, vector<1x2x16x128xf32>
    %90 = vector.shape_cast %89 : vector<1x2x16x128xf32> to vector<2x16x128xf32>
    %91 = vector.shape_cast %88 : vector<2x16x128xf32> to vector<1x2x16x128xf32>
    tpu.vector_store %arg9[%c0_38, %c0_39, %c0_40, %c0_41], %91 {strides = array<i32>} : memref<2x2x16x128xf32, #tpu.memory_space<vmem>>, vector<1x2x16x128xf32>,
    %92 = vector.shape_cast %83 : vector<32x128xf32> to vector<2x16x128xf32>
    %c1 = arith.constant 1 : index
    %c0_42 = arith.constant 0 : index
    %c0_43 = arith.constant 0 : index
    %c0_44 = arith.constant 0 : index
    %93 = vector.load %arg9[%c1, %c0_42, %c0_43, %c0_44] : memref<2x2x16x128xf32, #tpu.memory_space<vmem>>, vector<1x2x16x128xf32>
    %94 = vector.shape_cast %93 : vector<1x2x16x128xf32> to vector<2x16x128xf32>
    %95 = vector.shape_cast %92 : vector<2x16x128xf32> to vector<1x2x16x128xf32>
    tpu.vector_store %arg9[%c1, %c0_42, %c0_43, %c0_44], %95 {strides = array<i32>} : memref<2x2x16x128xf32, #tpu.memory_space<vmem>>, vector<1x2x16x128xf32>,
    return
  }
  func.func @transform_0(%arg0: i32) -> (i32, i32, i32) {
    %c0_i32 = arith.constant 0 : i32
    %c0_i32_0 = arith.constant 0 : i32
    %c0_i32_1 = arith.constant 0 : i32
    return %arg0, %c0_i32, %c0_i32_0 : i32, i32, i32
  }
  func.func @transform_1(%arg0: i32) -> (i32, i32) {
    %c0_i32 = arith.constant 0 : i32
    %c0_i32_0 = arith.constant 0 : i32
    %c0_i32_1 = arith.constant 0 : i32
    return %c0_i32, %c0_i32_0 : i32, i32
  }
  func.func @transform_2(%arg0: i32) -> (i32, i32) {
    %c0_i32 = arith.constant 0 : i32
    %c0_i32_0 = arith.constant 0 : i32
    %c0_i32_1 = arith.constant 0 : i32
    return %c0_i32, %c0_i32_0 : i32, i32
  }
  func.func @transform_3(%arg0: i32) -> (i32, i32) {
    %c0_i32 = arith.constant 0 : i32
    %c0_i32_0 = arith.constant 0 : i32
    %c0_i32_1 = arith.constant 0 : i32
    return %c0_i32, %c0_i32_0 : i32, i32
  }
  func.func @transform_4(%arg0: i32) -> (i32, i32) {
    %c0_i32 = arith.constant 0 : i32
    %c0_i32_0 = arith.constant 0 : i32
    %c0_i32_1 = arith.constant 0 : i32
    return %c0_i32, %c0_i32_0 : i32, i32
  }
  func.func @transform_5(%arg0: i32) -> (i32, i32) {
    %c0_i32 = arith.constant 0 : i32
    %c0_i32_0 = arith.constant 0 : i32
    %c0_i32_1 = arith.constant 0 : i32
    return %c0_i32, %c0_i32_0 : i32, i32
  }
  func.func @transform_6(%arg0: i32) -> (i32, i32) {
    %c0_i32 = arith.constant 0 : i32
    %c0_i32_0 = arith.constant 0 : i32
    %c0_i32_1 = arith.constant 0 : i32
    return %c0_i32, %c0_i32_0 : i32, i32
  }
  func.func @transform_7(%arg0: i32) -> (i32, i32, i32) {
    %c0_i32 = arith.constant 0 : i32
    %c0_i32_0 = arith.constant 0 : i32
    %c0_i32_1 = arith.constant 0 : i32
    return %arg0, %c0_i32, %c0_i32_0 : i32, i32, i32
  }
  func.func @transform_8(%arg0: i32) -> (i32, i32, i32, i32) {
    %c0_i32 = arith.constant 0 : i32
    %c0_i32_0 = arith.constant 0 : i32
    %c0_i32_1 = arith.constant 0 : i32
    %c0_i32_2 = arith.constant 0 : i32
    return %c0_i32, %arg0, %c0_i32_0, %c0_i32_1 : i32, i32, i32, i32
  }
}

</mosaic_0001>

<llo_original>
// kernel: squeeze.2
$region0: #{squeeze.2}
  %s0 = inlined_call_operand.vmem [shape: bf16[1,16,8,16,8], index: 0, kind: input, shape index: {}]
  %s1 = inlined_call_operand.vmem [shape: bf16[128,128], index: 1, kind: output, shape index: {}]
  $region1: #{squeeze.2} parent=0
    #allocation0 [shape = 'u8[65536]{0}', space=vmem, size = 0x10000, scoped, tag = 'scoped mem for output reshape']
    #allocation1 [shape = 'u8[1048576]{0}', space=vmem, size = 0x100000, scoped, tag = 'scoped mem for input reshape']
    %s3 = ssub.s32 256, 1
    %s4 = scalar_lea.vmem %s0, 1020
    %s5 = sshrl.u32 %s3, 1
    %s6 = sor.u32 %s3, %s5
    %s7 = sand.u32 %s6, 85
    %s8 = sshrl.u32 %s7, 1
    %s9 = sor.u32 %s7, %s8
    %s10 = sand.u32 51, %s9
    %s11 = sshrl.u32 %s10, 2
    %s12 = sor.u32 %s10, %s11
    %s13 = sand.u32 15, %s12
    %v14 = vld [vmem:[%s4] sm:%s13]
    %v15 = vunpack.c.l.bf16 %v14
    %v16 = vunpack.c.h.bf16 %v14
    %s17 = scalar_lea.vmem [#allocation1], 2040
    %18 = vst [vmem:[%s17] sm:%s3] %v15
    %s19 = scalar_lea.vmem %s0, 1016
    %s20 = sshrl.u32 %s3, 1
    %s21 = sor.u32 %s3, %s20
    %s22 = sand.u32 %s21, 85
    %s23 = sshrl.u32 %s22, 1
    %s24 = sor.u32 %s22, %s23
    %s25 = sand.u32 51, %s24
    %s26 = sshrl.u32 %s25, 2
    %s27 = sor.u32 %s25, %s26
    %s28 = sand.u32 15, %s27
    %v29 = vld [vmem:[%s19] sm:%s28]
    %v30 = vunpack.c.l.bf16 %v29
    %v31 = vunpack.c.h.bf16 %v29
    %s32 = scalar_lea.vmem [#allocation1], 2032
    %33 = vst [vmem:[%s32] sm:%s3] %v30
    %s34 = scalar_lea.vmem %s0, 1012
    %s35 = sshrl.u32 %s3, 1
    %s36 = sor.u32 %s3, %s35
    %s37 = sand.u32 %s36, 85
    %s38 = sshrl.u32 %s37, 1
    %s39 = sor.u32 %s37, %s38
    %s40 = sand.u32 51, %s39
    %s41 = sshrl.u32 %s40, 2
    %s42 = sor.u32 %s40, %s41
    %s43 = sand.u32 15, %s42
    %v44 = vld [vmem:[%s34] sm:%s43]
    %v45 = vunpack.c.l.bf16 %v44
    %v46 = vunpack.c.h.bf16 %v44
    %s47 = scalar_lea.vmem [#allocation1], 2024
    %48 = vst [vmem:[%s47] sm:%s3] %v45
    %s49 = scalar_lea.vmem %s0, 1008
    %s50 = sshrl.u32 %s3, 1
    %s51 = sor.u32 %s3, %s50
    %s52 = sand.u32 %s51, 85
    %s53 = sshrl.u32 %s52, 1
    %s54 = sor.u32 %s52, %s53
    %s55 = sand.u32 51, %s54
    %s56 = sshrl.u32 %s55, 2
    %s57 = sor.u32 %s55, %s56
    %s58 = sand.u32 15, %s57
    %v59 = vld [vmem:[%s49] sm:%s58]
    %v60 = vunpack.c.l.bf16 %v59
    %v61 = vunpack.c.h.bf16 %v59
    %s62 = scalar_lea.vmem [#allocation1], 2016
    %63 = vst [vmem:[%s62] sm:%s3] %v60
    %s64 = scalar_lea.vmem %s0, 1004
    %s65 = sshrl.u32 %s3, 1
    %s66 = sor.u32 %s3, %s65
    %s67 = sand.u32 %s66, 85
    %s68 = sshrl.u32 %s67, 1
    %s69 = sor.u32 %s67, %s68
    %s70 = sand.u32 51, %s69
    %s71 = sshrl.u32 %s70, 2
    %s72 = sor.u32 %s70, %s71
    %s73 = sand.u32 15, %s72
    %v74 = vld [vmem:[%s64] sm:%s73]
    %v75 = vunpack.c.l.bf16 %v74
    %v76 = vunpack.c.h.bf16 %v74
    %s77 = scalar_lea.vmem [#allocation1], 2008
    %78 = vst [vmem:[%s77] sm:%s3] %v75
    %s79 = scalar_lea.vmem %s0, 1000
    %s80 = sshrl.u32 %s3, 1
    %s81 = sor.u32 %s3, %s80
    %s82 = sand.u32 %s81, 85
    %s83 = sshrl.u32 %s82, 1
    %s84 = sor.u32 %s82, %s83
    %s85 = sand.u32 51, %s84
    %s86 = sshrl.u32 %s85, 2
    %s87 = sor.u32 %s85, %s86
    %s88 = sand.u32 15, %s87
    %v89 = vld [vmem:[%s79] sm:%s88]
    %v90 = vunpack.c.l.bf16 %v89
    %v91 = vunpack.c.h.bf16 %v89
    %s92 = scalar_lea.vmem [#allocation1], 2000
    %93 = vst [vmem:[%s92] sm:%s3] %v90
    %s94 = scalar_lea.vmem %s0, 996
    %s95 = sshrl.u32 %s3, 1
    %s96 = sor.u32 %s3, %s95
    %s97 = sand.u32 %s96, 85
    %s98 = sshrl.u32 %s97, 1
    %s99 = sor.u32 %s97, %s98
    %s100 = sand.u32 51, %s99
    %s101 = sshrl.u32 %s100, 2
    %s102 = sor.u32 %s100, %s101
    %s103 = sand.u32 15, %s102
    %v104 = vld [vmem:[%s94] sm:%s103]
    %v105 = vunpack.c.l.bf16 %v104
    %v106 = vunpack.c.h.bf16 %v104
    %s107 = scalar_lea.vmem [#allocation1], 1992
    %108 = vst [vmem:[%s107] sm:%s3] %v105
    %s109 = scalar_lea.vmem %s0, 992
    %s110 = sshrl.u32 %s3, 1
    %s111 = sor.u32 %s3, %s110
    %s112 = sand.u32 %s111, 85
    %s113 = sshrl.u32 %s112, 1
    %s114 = sor.u32 %s112, %s113
    %s115 = sand.u32 51, %s114
    %s116 = sshrl.u32 %s115, 2
    %s117 = sor.u32 %s115, %s116
    %s118 = sand.u32 15, %s117
    %v119 = vld [vmem:[%s109] sm:%s118]
    %v120 = vunpack.c.l.bf16 %v119
    %v121 = vunpack.c.h.bf16 %v119
    %s122 = scalar_lea.vmem [#allocation1], 1984
    %123 = vst [vmem:[%s122] sm:%s3] %v120
    %s124 = scalar_lea.vmem %s0, 988
    %s125 = sshrl.u32 %s3, 1
    %s126 = sor.u32 %s3, %s125
    %s127 = sand.u32 %s126, 85
    %s128 = sshrl.u32 %s127, 1
    %s129 = sor.u32 %s127, %s128
    %s130 = sand.u32 51, %s129
    %s131 = sshrl.u32 %s130, 2
    %s132 = sor.u32 %s130, %s131
    %s133 = sand.u32 15, %s132
    %v134 = vld [vmem:[%s124] sm:%s133]
    %v135 = vunpack.c.l.bf16 %v134
    %v136 = vunpack.c.h.bf16 %v134
    %s137 = scalar_lea.vmem [#allocation1], 1976
    %138 = vst [vmem:[%s137] sm:%s3] %v135
    %s139 = scalar_lea.vmem %s0, 984
    %s140 = sshrl.u32 %s3, 1
    %s141 = sor.u32 %s3, %s140
    %s142 = sand.u32 %s141, 85
    %s143 = sshrl.u32 %s142, 1
    %s144 = sor.u32 %s142, %s143
    %s145 = sand.u32 51, %s144
    %s146 = sshrl.u32 %s145, 2
    %s147 = sor.u32 %s145, %s146
    %s148 = sand.u32 15, %s147
    %v149 = vld [vmem:[%s139] sm:%s148]
    %v150 = vunpack.c.l.bf16 %v149
    %v151 = vunpack.c.h.bf16 %v149
    %s152 = scalar_lea.vmem [#allocation1], 1968
    %153 = vst [vmem:[%s152] sm:%s3] %v150
    %s154 = scalar_lea.vmem %s0, 980
    %s155 = sshrl.u32 %s3, 1
    %s156 = sor.u32 %s3, %s155
    %s157 = sand.u32 %s156, 85
    %s158 = sshrl.u32 %s157, 1
    %s159 = sor.u32 %s157, %s158
    %s160 = sand.u32 51, %s159
    %s161 = sshrl.u32 %s160, 2
    %s162 = sor.u32 %s160, %s161
    %s163 = sand.u32 15, %s162
    %v164 = vld [vmem:[%s154] sm:%s163]
    %v165 = vunpack.c.l.bf16 %v164
    %v166 = vunpack.c.h.bf16 %v164
    %s167 = scalar_lea.vmem [#allocation1], 1960
    %168 = vst [vmem:[%s167] sm:%s3] %v165
    %s169 = scalar_lea.vmem %s0, 976
    %s170 = sshrl.u32 %s3, 1
    %s171 = sor.u32 %s3, %s170
    %s172 = sand.u32 %s171, 85
    %s173 = sshrl.u32 %s172, 1
    %s174 = sor.u32 %s172, %s173
    %s175 = sand.u32 51, %s174
    %s176 = sshrl.u32 %s175, 2
    %s177 = sor.u32 %s175, %s176
    %s178 = sand.u32 15, %s177
    %v179 = vld [vmem:[%s169] sm:%s178]
    %v180 = vunpack.c.l.bf16 %v179
    %v181 = vunpack.c.h.bf16 %v179
    %s182 = scalar_lea.vmem [#allocation1], 1952
    %183 = vst [vmem:[%s182] sm:%s3] %v180
    %s184 = scalar_lea.vmem %s0, 972
    %s185 = sshrl.u32 %s3, 1
    %s186 = sor.u32 %s3, %s185
    %s187 = sand.u32 %s186, 85
    %s188 = sshrl.u32 %s187, 1
    %s189 = sor.u32 %s187, %s188
    %s190 = sand.u32 51, %s189
    %s191 = sshrl.u32 %s190, 2
    %s192 = sor.u32 %s190, %s191
    %s193 = sand.u32 15, %s192
    %v194 = vld [vmem:[%s184] sm:%s193]
    %v195 = vunpack.c.l.bf16 %v194
    %v196 = vunpack.c.h.bf16 %v194
    %s197 = scalar_lea.vmem [#allocation1], 1944
    %198 = vst [vmem:[%s197] sm:%s3] %v195
    %s199 = scalar_lea.vmem %s0, 968
    %s200 = sshrl.u32 %s3, 1
    %s201 = sor.u32 %s3, %s200
    %s202 = sand.u32 %s201, 85
    %s203 = sshrl.u32 %s202, 1
    %s204 = sor.u32 %s202, %s203
    %s205 = sand.u32 51, %s204
    %s206 = sshrl.u32 %s205, 2
    %s207 = sor.u32 %s205, %s206
    %s208 = sand.u32 15, %s207
    %v209 = vld [vmem:[%s199] sm:%s208]
    %v210 = vunpack.c.l.bf16 %v209
    %v211 = vunpack.c.h.bf16 %v209
    %s212 = scalar_lea.vmem [#allocation1], 1936
    %213 = vst [vmem:[%s212] sm:%s3] %v210
    %s214 = scalar_lea.vmem %s0, 964
    %s215 = sshrl.u32 %s3, 1
    %s216 = sor.u32 %s3, %s215
    %s217 = sand.u32 %s216, 85
    %s218 = sshrl.u32 %s217, 1
    %s219 = sor.u32 %s217, %s218
    %s220 = sand.u32 51, %s219
    %s221 = sshrl.u32 %s220, 2
    %s222 = sor.u32 %s220, %s221
    %s223 = sand.u32 15, %s222
    %v224 = vld [vmem:[%s214] sm:%s223]
    %v225 = vunpack.c.l.bf16 %v224
    %v226 = vunpack.c.h.bf16 %v224
    %s227 = scalar_lea.vmem [#allocation1], 1928
    %228 = vst [vmem:[%s227] sm:%s3] %v225
    %s229 = scalar_lea.vmem %s0, 960
    %s230 = sshrl.u32 %s3, 1
    %s231 = sor.u32 %s3, %s230
    %s232 = sand.u32 %s231, 85
    %s233 = sshrl.u32 %s232, 1
    %s234 = sor.u32 %s232, %s233
    %s235 = sand.u32 51, %s234
    %s236 = sshrl.u32 %s235, 2
    %s237 = sor.u32 %s235, %s236
    %s238 = sand.u32 15, %s237
    %v239 = vld [vmem:[%s229] sm:%s238]
    %v240 = vunpack.c.l.bf16 %v239
    %v241 = vunpack.c.h.bf16 %v239
    %s242 = scalar_lea.vmem [#allocation1], 1920
    %243 = vst [vmem:[%s242] sm:%s3] %v240
    %s244 = scalar_lea.vmem %s0, 956
    %s245 = sshrl.u32 %s3, 1
    %s246 = sor.u32 %s3, %s245
    %s247 = sand.u32 %s246, 85
    %s248 = sshrl.u32 %s247, 1
    %s249 = sor.u32 %s247, %s248
    %s250 = sand.u32 51, %s249
    %s251 = sshrl.u32 %s250, 2
    %s252 = sor.u32 %s250, %s251
    %s253 = sand.u32 15, %s252
    %v254 = vld [vmem:[%s244] sm:%s253]
    %v255 = vunpack.c.l.bf16 %v254
    %v256 = vunpack.c.h.bf16 %v254
    %s257 = scalar_lea.vmem [#allocation1], 1912
    %258 = vst [vmem:[%s257] sm:%s3] %v255
    %s259 = scalar_lea.vmem %s0, 952
    %s260 = sshrl.u32 %s3, 1
    %s261 = sor.u32 %s3, %s260
    %s262 = sand.u32 %s261, 85
    %s263 = sshrl.u32 %s262, 1
    %s264 = sor.u32 %s262, %s263
    %s265 = sand.u32 51, %s264
    %s266 = sshrl.u32 %s265, 2
    %s267 = sor.u32 %s265, %s266
    %s268 = sand.u32 15, %s267
    %v269 = vld [vmem:[%s259] sm:%s268]
    %v270 = vunpack.c.l.bf16 %v269
    %v271 = vunpack.c.h.bf16 %v269
    %s272 = scalar_lea.vmem [#allocation1], 1904
    %273 = vst [vmem:[%s272] sm:%s3] %v270
    %s274 = scalar_lea.vmem %s0, 948
    %s275 = sshrl.u32 %s3, 1
    %s276 = sor.u32 %s3, %s275
    %s277 = sand.u32 %s276, 85
    %s278 = sshrl.u32 %s277, 1
    %s279 = sor.u32 %s277, %s278
    %s280 = sand.u32 51, %s279
    %s281 = sshrl.u32 %s280, 2
    %s282 = sor.u32 %s280, %s281
    %s283 = sand.u32 15, %s282
    %v284 = vld [vmem:[%s274] sm:%s283]
    %v285 = vunpack.c.l.bf16 %v284
    %v286 = vunpack.c.h.bf16 %v284
    %s287 = scalar_lea.vmem [#allocation1], 1896
    %288 = vst [vmem:[%s287] sm:%s3] %v285
    %s289 = scalar_lea.vmem %s0, 944
    %s290 = sshrl.u32 %s3, 1
    %s291 = sor.u32 %s3, %s290
    %s292 = sand.u32 %s291, 85
    %s293 = sshrl.u32 %s292, 1
    %s294 = sor.u32 %s292, %s293
    %s295 = sand.u32 51, %s294
    %s296 = sshrl.u32 %s295, 2
    %s297 = sor.u32 %s295, %s296
    %s298 = sand.u32 15, %s297
    %v299 = vld [vmem:[%s289] sm:%s298]
    %v300 = vunpack.c.l.bf16 %v299
    %v301 = vunpack.c.h.bf16 %v299
    %s302 = scalar_lea.vmem [#allocation1], 1888
    %303 = vst [vmem:[%s302] sm:%s3] %v300
    %s304 = scalar_lea.vmem %s0, 940
    %s305 = sshrl.u32 %s3, 1
    %s306 = sor.u32 %s3, %s305
    %s307 = sand.u32 %s306, 85
    %s308 = sshrl.u32 %s307, 1
    %s309 = sor.u32 %s307, %s308
    %s310 = sand.u32 51, %s309
    %s311 = sshrl.u32 %s310, 2
    %s312 = sor.u32 %s310, %s311
    %s313 = sand.u32 15, %s312
    %v314 = vld [vmem:[%s304] sm:%s313]
    %v315 = vunpack.c.l.bf16 %v314
    %v316 = vunpack.c.h.bf16 %v314
    %s317 = scalar_lea.vmem [#allocation1], 1880
    %318 = vst [vmem:[%s317] sm:%s3] %v315
    %s319 = scalar_lea.vmem %s0, 936
    %s320 = sshrl.u32 %s3, 1
    %s321 = sor.u32 %s3, %s320
    %s322 = sand.u32 %s321, 85
    %s323 = sshrl.u32 %s322, 1
    %s324 = sor.u32 %s322, %s323
    %s325 = sand.u32 51, %s324
    %s326 = sshrl.u32 %s325, 2
    %s327 = sor.u32 %s325, %s326
    %s328 = sand.u32 15, %s327
    %v329 = vld [vmem:[%s319] sm:%s328]
    %v330 = vunpack.c.l.bf16 %v329
    %v331 = vunpack.c.h.bf16 %v329
    %s332 = scalar_lea.vmem [#allocation1], 1872
    %333 = vst [vmem:[%s332] sm:%s3] %v330
    %s334 = scalar_lea.vmem %s0, 932
    %s335 = sshrl.u32 %s3, 1
    %s336 = sor.u32 %s3, %s335
    %s337 = sand.u32 %s336, 85
    %s338 = sshrl.u32 %s337, 1
    %s339 = sor.u32 %s337, %s338
    %s340 = sand.u32 51, %s339
    %s341 = sshrl.u32 %s340, 2
    %s342 = sor.u32 %s340, %s341
    %s343 = sand.u32 15, %s342
    %v344 = vld [vmem:[%s334] sm:%s343]
    %v345 = vunpack.c.l.bf16 %v344
    %v346 = vunpack.c.h.bf16 %v344
    %s347 = scalar_lea.vmem [#allocation1], 1864
    %348 = vst [vmem:[%s347] sm:%s3] %v345
    %s349 = scalar_lea.vmem %s0, 928
    %s350 = sshrl.u32 %s3, 1
    %s351 = sor.u32 %s3, %s350
    %s352 = sand.u32 %s351, 85
    %s353 = sshrl.u32 %s352, 1
    %s354 = sor.u32 %s352, %s353
    %s355 = sand.u32 51, %s354
    %s356 = sshrl.u32 %s355, 2
    %s357 = sor.u32 %s355, %s356
    %s358 = sand.u32 15, %s357
    %v359 = vld [vmem:[%s349] sm:%s358]
    %v360 = vunpack.c.l.bf16 %v359
    %v361 = vunpack.c.h.bf16 %v359
    %s362 = scalar_lea.vmem [#allocation1], 1856
    %363 = vst [vmem:[%s362] sm:%s3] %v360
    %s364 = scalar_lea.vmem %s0, 924
    %s365 = sshrl.u32 %s3, 1
    %s366 = sor.u32 %s3, %s365
    %s367 = sand.u32 %s366, 85
    %s368 = sshrl.u32 %s367, 1
    %s369 = sor.u32 %s367, %s368
    %s370 = sand.u32 51, %s369
    %s371 = sshrl.u32 %s370, 2
    %s372 = sor.u32 %s370, %s371
    %s373 = sand.u32 15, %s372
    %v374 = vld [vmem:[%s364] sm:%s373]
    %v375 = vunpack.c.l.bf16 %v374
    %v376 = vunpack.c.h.bf16 %v374
    %s377 = scalar_lea.vmem [#allocation1], 1848
    %378 = vst [vmem:[%s377] sm:%s3] %v375
    %s379 = scalar_lea.vmem %s0, 920
    %s380 = sshrl.u32 %s3, 1
    %s381 = sor.u32 %s3, %s380
    %s382 = sand.u32 %s381, 85
    %s383 = sshrl.u32 %s382, 1
    %s384 = sor.u32 %s382, %s383
    %s385 = sand.u32 51, %s384
    %s386 = sshrl.u32 %s385, 2
    %s387 = sor.u32 %s385, %s386
    %s388 = sand.u32 15, %s387
    %v389 = vld [vmem:[%s379] sm:%s388]
    %v390 = vunpack.c.l.bf16 %v389
    %v391 = vunpack.c.h.bf16 %v389
    %s392 = scalar_lea.vmem [#allocation1], 1840
    %393 = vst [vmem:[%s392] sm:%s3] %v390
    %s394 = scalar_lea.vmem %s0, 916
    %s395 = sshrl.u32 %s3, 1
    %s396 = sor.u32 %s3, %s395
    %s397 = sand.u32 %s396, 85
    %s398 = sshrl.u32 %s397, 1
    %s399 = sor.u32 %s397, %s398
    %s400 = sand.u32 51, %s399
    %s401 = sshrl.u32 %s400, 2
    %s402 = sor.u32 %s400, %s401
    %s403 = sand.u32 15, %s402
    %v404 = vld [vmem:[%s394] sm:%s403]
    %v405 = vunpack.c.l.bf16 %v404
    %v406 = vunpack.c.h.bf16 %v404
    %s407 = scalar_lea.vmem [#allocation1], 1832
    %408 = vst [vmem:[%s407] sm:%s3] %v405
    %s409 = scalar_lea.vmem %s0, 912
    %s410 = sshrl.u32 %s3, 1
    %s411 = sor.u32 %s3, %s410
    %s412 = sand.u32 %s411, 85
    %s413 = sshrl.u32 %s412, 1
    %s414 = sor.u32 %s412, %s413
    %s415 = sand.u32 51, %s414
    %s416 = sshrl.u32 %s415, 2
    %s417 = sor.u32 %s415, %s416
    %s418 = sand.u32 15, %s417
    %v419 = vld [vmem:[%s409] sm:%s418]
    %v420 = vunpack.c.l.bf16 %v419
    %v421 = vunpack.c.h.bf16 %v419
    %s422 = scalar_lea.vmem [#allocation1], 1824
    %423 = vst [vmem:[%s422] sm:%s3] %v420
    %s424 = scalar_lea.vmem %s0, 908
    %s425 = sshrl.u32 %s3, 1
    %s426 = sor.u32 %s3, %s425
    %s427 = sand.u32 %s426, 85
    %s428 = sshrl.u32 %s427, 1
    %s429 = sor.u32 %s427, %s428
    %s430 = sand.u32 51, %s429
    %s431 = sshrl.u32 %s430, 2
    %s432 = sor.u32 %s430, %s431
    %s433 = sand.u32 15, %s432
    %v434 = vld [vmem:[%s424] sm:%s433]
    %v435 = vunpack.c.l.bf16 %v434
    %v436 = vunpack.c.h.bf16 %v434
    %s437 = scalar_lea.vmem [#allocation1], 1816
    %438 = vst [vmem:[%s437] sm:%s3] %v435
    %s439 = scalar_lea.vmem %s0, 904
    %s440 = sshrl.u32 %s3, 1
    %s441 = sor.u32 %s3, %s440
    %s442 = sand.u32 %s441, 85
    %s443 = sshrl.u32 %s442, 1
    %s444 = sor.u32 %s442, %s443
    %s445 = sand.u32 51, %s444
    %s446 = sshrl.u32 %s445, 2
    %s447 = sor.u32 %s445, %s446
    %s448 = sand.u32 15, %s447
    %v449 = vld [vmem:[%s439] sm:%s448]
    %v450 = vunpack.c.l.bf16 %v449
    %v451 = vunpack.c.h.bf16 %v449
    %s452 = scalar_lea.vmem [#allocation1], 1808
    %453 = vst [vmem:[%s452] sm:%s3] %v450
    %s454 = scalar_lea.vmem %s0, 900
    %s455 = sshrl.u32 %s3, 1
    %s456 = sor.u32 %s3, %s455
    %s457 = sand.u32 %s456, 85
    %s458 = sshrl.u32 %s457, 1
    %s459 = sor.u32 %s457, %s458
    %s460 = sand.u32 51, %s459
    %s461 = sshrl.u32 %s460, 2
    %s462 = sor.u32 %s460, %s461
    %s463 = sand.u32 15, %s462
    %v464 = vld [vmem:[%s454] sm:%s463]
    %v465 = vunpack.c.l.bf16 %v464
    %v466 = vunpack.c.h.bf16 %v464
    %s467 = scalar_lea.vmem [#allocation1], 1800
    %468 = vst [vmem:[%s467] sm:%s3] %v465
    %s469 = scalar_lea.vmem %s0, 896
    %s470 = sshrl.u32 %s3, 1
    %s471 = sor.u32 %s3, %s470
    %s472 = sand.u32 %s471, 85
    %s473 = sshrl.u32 %s472, 1
    %s474 = sor.u32 %s472, %s473
    %s475 = sand.u32 51, %s474
    %s476 = sshrl.u32 %s475, 2
    %s477 = sor.u32 %s475, %s476
    %s478 = sand.u32 15, %s477
    %v479 = vld [vmem:[%s469] sm:%s478]
    %v480 = vunpack.c.l.bf16 %v479
    %v481 = vunpack.c.h.bf16 %v479
    %s482 = scalar_lea.vmem [#allocation1], 1792
    %483 = vst [vmem:[%s482] sm:%s3] %v480
    %s484 = scalar_lea.vmem %s0, 892
    %s485 = sshrl.u32 %s3, 1
    %s486 = sor.u32 %s3, %s485
    %s487 = sand.u32 %s486, 85
    %s488 = sshrl.u32 %s487, 1
    %s489 = sor.u32 %s487, %s488
    %s490 = sand.u32 51, %s489
    %s491 = sshrl.u32 %s490, 2
    %s492 = sor.u32 %s490, %s491
    %s493 = sand.u32 15, %s492
    %v494 = vld [vmem:[%s484] sm:%s493]
    %v495 = vunpack.c.l.bf16 %v494
    %v496 = vunpack.c.h.bf16 %v494
    %s497 = scalar_lea.vmem [#allocation1], 1784
    %498 = vst [vmem:[%s497] sm:%s3] %v495
    %s499 = scalar_lea.vmem %s0, 888
    %s500 = sshrl.u32 %s3, 1
    %s501 = sor.u32 %s3, %s500
    %s502 = sand.u32 %s501, 85
    %s503 = sshrl.u32 %s502, 1
    %s504 = sor.u32 %s502, %s503
    %s505 = sand.u32 51, %s504
    %s506 = sshrl.u32 %s505, 2
    %s507 = sor.u32 %s505, %s506
    %s508 = sand.u32 15, %s507
    %v509 = vld [vmem:[%s499] sm:%s508]
    %v510 = vunpack.c.l.bf16 %v509
    %v511 = vunpack.c.h.bf16 %v509
    %s512 = scalar_lea.vmem [#allocation1], 1776
    %513 = vst [vmem:[%s512] sm:%s3] %v510
    %s514 = scalar_lea.vmem %s0, 884
    %s515 = sshrl.u32 %s3, 1
    %s516 = sor.u32 %s3, %s515
    %s517 = sand.u32 %s516, 85
    %s518 = sshrl.u32 %s517, 1
    %s519 = sor.u32 %s517, %s518
    %s520 = sand.u32 51, %s519
    %s521 = sshrl.u32 %s520, 2
    %s522 = sor.u32 %s520, %s521
    %s523 = sand.u32 15, %s522
    %v524 = vld [vmem:[%s514] sm:%s523]
    %v525 = vunpack.c.l.bf16 %v524
    %v526 = vunpack.c.h.bf16 %v524
    %s527 = scalar_lea.vmem [#allocation1], 1768
    %528 = vst [vmem:[%s527] sm:%s3] %v525
    %s529 = scalar_lea.vmem %s0, 880
    %s530 = sshrl.u32 %s3, 1
    %s531 = sor.u32 %s3, %s530
    %s532 = sand.u32 %s531, 85
    %s533 = sshrl.u32 %s532, 1
    %s534 = sor.u32 %s532, %s533
    %s535 = sand.u32 51, %s534
    %s536 = sshrl.u32 %s535, 2
    %s537 = sor.u32 %s535, %s536
    %s538 = sand.u32 15, %s537
    %v539 = vld [vmem:[%s529] sm:%s538]
    %v540 = vunpack.c.l.bf16 %v539
    %v541 = vunpack.c.h.bf16 %v539
    %s542 = scalar_lea.vmem [#allocation1], 1760
    %543 = vst [vmem:[%s542] sm:%s3] %v540
    %s544 = scalar_lea.vmem %s0, 876
    %s545 = sshrl.u32 %s3, 1
    %s546 = sor.u32 %s3, %s545
    %s547 = sand.u32 %s546, 85
    %s548 = sshrl.u32 %s547, 1
    %s549 = sor.u32 %s547, %s548
    %s550 = sand.u32 51, %s549
    %s551 = sshrl.u32 %s550, 2
    %s552 = sor.u32 %s550, %s551
    %s553 = sand.u32 15, %s552
    %v554 = vld [vmem:[%s544] sm:%s553]
    %v555 = vunpack.c.l.bf16 %v554
    %v556 = vunpack.c.h.bf16 %v554
    %s557 = scalar_lea.vmem [#allocation1], 1752
    %558 = vst [vmem:[%s557] sm:%s3] %v555
    %s559 = scalar_lea.vmem %s0, 872
    %s560 = sshrl.u32 %s3, 1
    %s561 = sor.u32 %s3, %s560
    %s562 = sand.u32 %s561, 85
    %s563 = sshrl.u32 %s562, 1
    %s564 = sor.u32 %s562, %s563
    %s565 = sand.u32 51, %s564
    %s566 = sshrl.u32 %s565, 2
    %s567 = sor.u32 %s565, %s566
    %s568 = sand.u32 15, %s567
    %v569 = vld [vmem:[%s559] sm:%s568]
    %v570 = vunpack.c.l.bf16 %v569
    %v571 = vunpack.c.h.bf16 %v569
    %s572 = scalar_lea.vmem [#allocation1], 1744
    %573 = vst [vmem:[%s572] sm:%s3] %v570
    %s574 = scalar_lea.vmem %s0, 868
    %s575 = sshrl.u32 %s3, 1
    %s576 = sor.u32 %s3, %s575
    %s577 = sand.u32 %s576, 85
    %s578 = sshrl.u32 %s577, 1
    %s579 = sor.u32 %s577, %s578
    %s580 = sand.u32 51, %s579
    %s581 = sshrl.u32 %s580, 2
    %s582 = sor.u32 %s580, %s581
    %s583 = sand.u32 15, %s582
    %v584 = vld [vmem:[%s574] sm:%s583]
    %v585 = vunpack.c.l.bf16 %v584
    %v586 = vunpack.c.h.bf16 %v584
    %s587 = scalar_lea.vmem [#allocation1], 1736
    %588 = vst [vmem:[%s587] sm:%s3] %v585
    %s589 = scalar_lea.vmem %s0, 864
    %s590 = sshrl.u32 %s3, 1
    %s591 = sor.u32 %s3, %s590
    %s592 = sand.u32 %s591, 85
    %s593 = sshrl.u32 %s592, 1
    %s594 = sor.u32 %s592, %s593
    %s595 = sand.u32 51, %s594
    %s596 = sshrl.u32 %s595, 2
    %s597 = sor.u32 %s595, %s596
    %s598 = sand.u32 15, %s597
    %v599 = vld [vmem:[%s589] sm:%s598]
    %v600 = vunpack.c.l.bf16 %v599
    %v601 = vunpack.c.h.bf16 %v599
    %s602 = scalar_lea.vmem [#allocation1], 1728
    %603 = vst [vmem:[%s602] sm:%s3] %v600
    %s604 = scalar_lea.vmem %s0, 860
    %s605 = sshrl.u32 %s3, 1
    %s606 = sor.u32 %s3, %s605
    %s607 = sand.u32 %s606, 85
    %s608 = sshrl.u32 %s607, 1
    %s609 = sor.u32 %s607, %s608
    %s610 = sand.u32 51, %s609
    %s611 = sshrl.u32 %s610, 2
    %s612 = sor.u32 %s610, %s611
    %s613 = sand.u32 15, %s612
    %v614 = vld [vmem:[%s604] sm:%s613]
    %v615 = vunpack.c.l.bf16 %v614
    %v616 = vunpack.c.h.bf16 %v614
    %s617 = scalar_lea.vmem [#allocation1], 1720
    %618 = vst [vmem:[%s617] sm:%s3] %v615
    %s619 = scalar_lea.vmem %s0, 856
    %s620 = sshrl.u32 %s3, 1
    %s621 = sor.u32 %s3, %s620
    %s622 = sand.u32 %s621, 85
    %s623 = sshrl.u32 %s622, 1
    %s624 = sor.u32 %s622, %s623
    %s625 = sand.u32 51, %s624
    %s626 = sshrl.u32 %s625, 2
    %s627 = sor.u32 %s625, %s626
    %s628 = sand.u32 15, %s627
    %v629 = vld [vmem:[%s619] sm:%s628]
    %v630 = vunpack.c.l.bf16 %v629
    %v631 = vunpack.c.h.bf16 %v629
    %s632 = scalar_lea.vmem [#allocation1], 1712
    %633 = vst [vmem:[%s632] sm:%s3] %v630
    %s634 = scalar_lea.vmem %s0, 852
    %s635 = sshrl.u32 %s3, 1
    %s636 = sor.u32 %s3, %s635
    %s637 = sand.u32 %s636, 85
    %s638 = sshrl.u32 %s637, 1
    %s639 = sor.u32 %s637, %s638
    %s640 = sand.u32 51, %s639
    %s641 = sshrl.u32 %s640, 2
    %s642 = sor.u32 %s640, %s641
    %s643 = sand.u32 15, %s642
    %v644 = vld [vmem:[%s634] sm:%s643]
    %v645 = vunpack.c.l.bf16 %v644
    %v646 = vunpack.c.h.bf16 %v644
    %s647 = scalar_lea.vmem [#allocation1], 1704
    %648 = vst [vmem:[%s647] sm:%s3] %v645
    %s649 = scalar_lea.vmem %s0, 848
    %s650 = sshrl.u32 %s3, 1
    %s651 = sor.u32 %s3, %s650
    %s652 = sand.u32 %s651, 85
    %s653 = sshrl.u32 %s652, 1
    %s654 = sor.u32 %s652, %s653
    %s655 = sand.u32 51, %s654
    %s656 = sshrl.u32 %s655, 2
    %s657 = sor.u32 %s655, %s656
    %s658 = sand.u32 15, %s657
    %v659 = vld [vmem:[%s649] sm:%s658]
    %v660 = vunpack.c.l.bf16 %v659
    %v661 = vunpack.c.h.bf16 %v659
    %s662 = scalar_lea.vmem [#allocation1], 1696
    %663 = vst [vmem:[%s662] sm:%s3] %v660
    %s664 = scalar_lea.vmem %s0, 844
    %s665 = sshrl.u32 %s3, 1
    %s666 = sor.u32 %s3, %s665
    %s667 = sand.u32 %s666, 85
    %s668 = sshrl.u32 %s667, 1
    %s669 = sor.u32 %s667, %s668
    %s670 = sand.u32 51, %s669
    %s671 = sshrl.u32 %s670, 2
    %s672 = sor.u32 %s670, %s671
    %s673 = sand.u32 15, %s672
    %v674 = vld [vmem:[%s664] sm:%s673]
    %v675 = vunpack.c.l.bf16 %v674
    %v676 = vunpack.c.h.bf16 %v674
    %s677 = scalar_lea.vmem [#allocation1], 1688
    %678 = vst [vmem:[%s677] sm:%s3] %v675
    %s679 = scalar_lea.vmem %s0, 840
    %s680 = sshrl.u32 %s3, 1
    %s681 = sor.u32 %s3, %s680
    %s682 = sand.u32 %s681, 85
    %s683 = sshrl.u32 %s682, 1
    %s684 = sor.u32 %s682, %s683
    %s685 = sand.u32 51, %s684
    %s686 = sshrl.u32 %s685, 2
    %s687 = sor.u32 %s685, %s686
    %s688 = sand.u32 15, %s687
    %v689 = vld [vmem:[%s679] sm:%s688]
    %v690 = vunpack.c.l.bf16 %v689
    %v691 = vunpack.c.h.bf16 %v689
    %s692 = scalar_lea.vmem [#allocation1], 1680
    %693 = vst [vmem:[%s692] sm:%s3] %v690
    %s694 = scalar_lea.vmem %s0, 836
    %s695 = sshrl.u32 %s3, 1
    %s696 = sor.u32 %s3, %s695
    %s697 = sand.u32 %s696, 85
    %s698 = sshrl.u32 %s697, 1
    %s699 = sor.u32 %s697, %s698
    %s700 = sand.u32 51, %s699
    %s701 = sshrl.u32 %s700, 2
    %s702 = sor.u32 %s700, %s701
    %s703 = sand.u32 15, %s702
    %v704 = vld [vmem:[%s694] sm:%s703]
    %v705 = vunpack.c.l.bf16 %v704
    %v706 = vunpack.c.h.bf16 %v704
    %s707 = scalar_lea.vmem [#allocation1], 1672
    %708 = vst [vmem:[%s707] sm:%s3] %v705
    %s709 = scalar_lea.vmem %s0, 832
    %s710 = sshrl.u32 %s3, 1
    %s711 = sor.u32 %s3, %s710
    %s712 = sand.u32 %s711, 85
    %s713 = sshrl.u32 %s712, 1
    %s714 = sor.u32 %s712, %s713
    %s715 = sand.u32 51, %s714
    %s716 = sshrl.u32 %s715, 2
    %s717 = sor.u32 %s715, %s716
    %s718 = sand.u32 15, %s717
    %v719 = vld [vmem:[%s709] sm:%s718]
    %v720 = vunpack.c.l.bf16 %v719
    %v721 = vunpack.c.h.bf16 %v719
    %s722 = scalar_lea.vmem [#allocation1], 1664
    %723 = vst [vmem:[%s722] sm:%s3] %v720
    %s724 = scalar_lea.vmem %s0, 828
    %s725 = sshrl.u32 %s3, 1
    %s726 = sor.u32 %s3, %s725
    %s727 = sand.u32 %s726, 85
    %s728 = sshrl.u32 %s727, 1
    %s729 = sor.u32 %s727, %s728
    %s730 = sand.u32 51, %s729
    %s731 = sshrl.u32 %s730, 2
    %s732 = sor.u32 %s730, %s731
    %s733 = sand.u32 15, %s732
    %v734 = vld [vmem:[%s724] sm:%s733]
    %v735 = vunpack.c.l.bf16 %v734
    %v736 = vunpack.c.h.bf16 %v734
    %s737 = scalar_lea.vmem [#allocation1], 1656
    %738 = vst [vmem:[%s737] sm:%s3] %v735
    %s739 = scalar_lea.vmem %s0, 824
    %s740 = sshrl.u32 %s3, 1
    %s741 = sor.u32 %s3, %s740
    %s742 = sand.u32 %s741, 85
    %s743 = sshrl.u32 %s742, 1
    %s744 = sor.u32 %s742, %s743
    %s745 = sand.u32 51, %s744
    %s746 = sshrl.u32 %s745, 2
    %s747 = sor.u32 %s745, %s746
    %s748 = sand.u32 15, %s747
    %v749 = vld [vmem:[%s739] sm:%s748]
    %v750 = vunpack.c.l.bf16 %v749
    %v751 = vunpack.c.h.bf16 %v749
    %s752 = scalar_lea.vmem [#allocation1], 1648
    %753 = vst [vmem:[%s752] sm:%s3] %v750
    %s754 = scalar_lea.vmem %s0, 820
    %s755 = sshrl.u32 %s3, 1
    %s756 = sor.u32 %s3, %s755
    %s757 = sand.u32 %s756, 85
    %s758 = sshrl.u32 %s757, 1
    %s759 = sor.u32 %s757, %s758
    %s760 = sand.u32 51, %s759
    %s761 = sshrl.u32 %s760, 2
    %s762 = sor.u32 %s760, %s761
    %s763 = sand.u32 15, %s762
    %v764 = vld [vmem:[%s754] sm:%s763]
    %v765 = vunpack.c.l.bf16 %v764
    %v766 = vunpack.c.h.bf16 %v764
    %s767 = scalar_lea.vmem [#allocation1], 1640
    %768 = vst [vmem:[%s767] sm:%s3] %v765
    %s769 = scalar_lea.vmem %s0, 816
    %s770 = sshrl.u32 %s3, 1
    %s771 = sor.u32 %s3, %s770
    %s772 = sand.u32 %s771, 85
    %s773 = sshrl.u32 %s772, 1
    %s774 = sor.u32 %s772, %s773
    %s775 = sand.u32 51, %s774
    %s776 = sshrl.u32 %s775, 2
    %s777 = sor.u32 %s775, %s776
    %s778 = sand.u32 15, %s777
    %v779 = vld [vmem:[%s769] sm:%s778]
    %v780 = vunpack.c.l.bf16 %v779
    %v781 = vunpack.c.h.bf16 %v779
    %s782 = scalar_lea.vmem [#allocation1], 1632
    %783 = vst [vmem:[%s782] sm:%s3] %v780
    %s784 = scalar_lea.vmem %s0, 812
    %s785 = sshrl.u32 %s3, 1
    %s786 = sor.u32 %s3, %s785
    %s787 = sand.u32 %s786, 85
    %s788 = sshrl.u32 %s787, 1
    %s789 = sor.u32 %s787, %s788
    %s790 = sand.u32 51, %s789
    %s791 = sshrl.u32 %s790, 2
    %s792 = sor.u32 %s790, %s791
    %s793 = sand.u32 15, %s792
    %v794 = vld [vmem:[%s784] sm:%s793]
    %v795 = vunpack.c.l.bf16 %v794
    %v796 = vunpack.c.h.bf16 %v794
    %s797 = scalar_lea.vmem [#allocation1], 1624
    %798 = vst [vmem:[%s797] sm:%s3] %v795
    %s799 = scalar_lea.vmem %s0, 808
    %s800 = sshrl.u32 %s3, 1
    %s801 = sor.u32 %s3, %s800
    %s802 = sand.u32 %s801, 85
    %s803 = sshrl.u32 %s802, 1
    %s804 = sor.u32 %s802, %s803
    %s805 = sand.u32 51, %s804
    %s806 = sshrl.u32 %s805, 2
    %s807 = sor.u32 %s805, %s806
    %s808 = sand.u32 15, %s807
    %v809 = vld [vmem:[%s799] sm:%s808]
    %v810 = vunpack.c.l.bf16 %v809
    %v811 = vunpack.c.h.bf16 %v809
    %s812 = scalar_lea.vmem [#allocation1], 1616
    %813 = vst [vmem:[%s812] sm:%s3] %v810
    %s814 = scalar_lea.vmem %s0, 804
    %s815 = sshrl.u32 %s3, 1
    %s816 = sor.u32 %s3, %s815
    %s817 = sand.u32 %s816, 85
    %s818 = sshrl.u32 %s817, 1
    %s819 = sor.u32 %s817, %s818
    %s820 = sand.u32 51, %s819
    %s821 = sshrl.u32 %s820, 2
    %s822 = sor.u32 %s820, %s821
    %s823 = sand.u32 15, %s822
    %v824 = vld [vmem:[%s814] sm:%s823]
    %v825 = vunpack.c.l.bf16 %v824
    %v826 = vunpack.c.h.bf16 %v824
    %s827 = scalar_lea.vmem [#allocation1], 1608
    %828 = vst [vmem:[%s827] sm:%s3] %v825
    %s829 = scalar_lea.vmem %s0, 800
    %s830 = sshrl.u32 %s3, 1
    %s831 = sor.u32 %s3, %s830
    %s832 = sand.u32 %s831, 85
    %s833 = sshrl.u32 %s832, 1
    %s834 = sor.u32 %s832, %s833
    %s835 = sand.u32 51, %s834
    %s836 = sshrl.u32 %s835, 2
    %s837 = sor.u32 %s835, %s836
    %s838 = sand.u32 15, %s837
    %v839 = vld [vmem:[%s829] sm:%s838]
    %v840 = vunpack.c.l.bf16 %v839
    %v841 = vunpack.c.h.bf16 %v839
    %s842 = scalar_lea.vmem [#allocation1], 1600
    %843 = vst [vmem:[%s842] sm:%s3] %v840
    %s844 = scalar_lea.vmem %s0, 796
    %s845 = sshrl.u32 %s3, 1
    %s846 = sor.u32 %s3, %s845
    %s847 = sand.u32 %s846, 85
    %s848 = sshrl.u32 %s847, 1
    %s849 = sor.u32 %s847, %s848
    %s850 = sand.u32 51, %s849
    %s851 = sshrl.u32 %s850, 2
    %s852 = sor.u32 %s850, %s851
    %s853 = sand.u32 15, %s852
    %v854 = vld [vmem:[%s844] sm:%s853]
    %v855 = vunpack.c.l.bf16 %v854
    %v856 = vunpack.c.h.bf16 %v854
    %s857 = scalar_lea.vmem [#allocation1], 1592
    %858 = vst [vmem:[%s857] sm:%s3] %v855
    %s859 = scalar_lea.vmem %s0, 792
    %s860 = sshrl.u32 %s3, 1
    %s861 = sor.u32 %s3, %s860
    %s862 = sand.u32 %s861, 85
    %s863 = sshrl.u32 %s862, 1
    %s864 = sor.u32 %s862, %s863
    %s865 = sand.u32 51, %s864
    %s866 = sshrl.u32 %s865, 2
    %s867 = sor.u32 %s865, %s866
    %s868 = sand.u32 15, %s867
    %v869 = vld [vmem:[%s859] sm:%s868]
    %v870 = vunpack.c.l.bf16 %v869
    %v871 = vunpack.c.h.bf16 %v869
    %s872 = scalar_lea.vmem [#allocation1], 1584
    %873 = vst [vmem:[%s872] sm:%s3] %v870
    %s874 = scalar_lea.vmem %s0, 788
    %s875 = sshrl.u32 %s3, 1
    %s876 = sor.u32 %s3, %s875
    %s877 = sand.u32 %s876, 85
    %s878 = sshrl.u32 %s877, 1
    %s879 = sor.u32 %s877, %s878
    %s880 = sand.u32 51, %s879
    %s881 = sshrl.u32 %s880, 2
    %s882 = sor.u32 %s880, %s881
    %s883 = sand.u32 15, %s882
    %v884 = vld [vmem:[%s874] sm:%s883]
    %v885 = vunpack.c.l.bf16 %v884
    %v886 = vunpack.c.h.bf16 %v884
    %s887 = scalar_lea.vmem [#allocation1], 1576
    %888 = vst [vmem:[%s887] sm:%s3] %v885
    %s889 = scalar_lea.vmem %s0, 784
    %s890 = sshrl.u32 %s3, 1
    %s891 = sor.u32 %s3, %s890
    %s892 = sand.u32 %s891, 85
    %s893 = sshrl.u32 %s892, 1
    %s894 = sor.u32 %s892, %s893
    %s895 = sand.u32 51, %s894
    %s896 = sshrl.u32 %s895, 2
    %s897 = sor.u32 %s895, %s896
    %s898 = sand.u32 15, %s897
    %v899 = vld [vmem:[%s889] sm:%s898]
    %v900 = vunpack.c.l.bf16 %v899
    %v901 = vunpack.c.h.bf16 %v899
    %s902 = scalar_lea.vmem [#allocation1], 1568
    %903 = vst [vmem:[%s902] sm:%s3] %v900
    %s904 = scalar_lea.vmem %s0, 780
    %s905 = sshrl.u32 %s3, 1
    %s906 = sor.u32 %s3, %s905
    %s907 = sand.u32 %s906, 85
    %s908 = sshrl.u32 %s907, 1
    %s909 = sor.u32 %s907, %s908
    %s910 = sand.u32 51, %s909
    %s911 = sshrl.u32 %s910, 2
    %s912 = sor.u32 %s910, %s911
    %s913 = sand.u32 15, %s912
    %v914 = vld [vmem:[%s904] sm:%s913]
    %v915 = vunpack.c.l.bf16 %v914
    %v916 = vunpack.c.h.bf16 %v914
    %s917 = scalar_lea.vmem [#allocation1], 1560
    %918 = vst [vmem:[%s917] sm:%s3] %v915
    %s919 = scalar_lea.vmem %s0, 776
    %s920 = sshrl.u32 %s3, 1
    %s921 = sor.u32 %s3, %s920
    %s922 = sand.u32 %s921, 85
    %s923 = sshrl.u32 %s922, 1
    %s924 = sor.u32 %s922, %s923
    %s925 = sand.u32 51, %s924
    %s926 = sshrl.u32 %s925, 2
    %s927 = sor.u32 %s925, %s926
    %s928 = sand.u32 15, %s927
    %v929 = vld [vmem:[%s919] sm:%s928]
    %v930 = vunpack.c.l.bf16 %v929
    %v931 = vunpack.c.h.bf16 %v929
    %s932 = scalar_lea.vmem [#allocation1], 1552
    %933 = vst [vmem:[%s932] sm:%s3] %v930
    %s934 = scalar_lea.vmem %s0, 772
    %s935 = sshrl.u32 %s3, 1
    %s936 = sor.u32 %s3, %s935
    %s937 = sand.u32 %s936, 85
    %s938 = sshrl.u32 %s937, 1
    %s939 = sor.u32 %s937, %s938
    %s940 = sand.u32 51, %s939
    %s941 = sshrl.u32 %s940, 2
    %s942 = sor.u32 %s940, %s941
    %s943 = sand.u32 15, %s942
    %v944 = vld [vmem:[%s934] sm:%s943]
    %v945 = vunpack.c.l.bf16 %v944
    %v946 = vunpack.c.h.bf16 %v944
    %s947 = scalar_lea.vmem [#allocation1], 1544
    %948 = vst [vmem:[%s947] sm:%s3] %v945
    %s949 = scalar_lea.vmem %s0, 768
    %s950 = sshrl.u32 %s3, 1
    %s951 = sor.u32 %s3, %s950
    %s952 = sand.u32 %s951, 85
    %s953 = sshrl.u32 %s952, 1
    %s954 = sor.u32 %s952, %s953
    %s955 = sand.u32 51, %s954
    %s956 = sshrl.u32 %s955, 2
    %s957 = sor.u32 %s955, %s956
    %s958 = sand.u32 15, %s957
    %v959 = vld [vmem:[%s949] sm:%s958]
    %v960 = vunpack.c.l.bf16 %v959
    %v961 = vunpack.c.h.bf16 %v959
    %s962 = scalar_lea.vmem [#allocation1], 1536
    %963 = vst [vmem:[%s962] sm:%s3] %v960
    %s964 = scalar_lea.vmem %s0, 764
    %s965 = sshrl.u32 %s3, 1
    %s966 = sor.u32 %s3, %s965
    %s967 = sand.u32 %s966, 85
    %s968 = sshrl.u32 %s967, 1
    %s969 = sor.u32 %s967, %s968
    %s970 = sand.u32 51, %s969
    %s971 = sshrl.u32 %s970, 2
    %s972 = sor.u32 %s970, %s971
    %s973 = sand.u32 15, %s972
    %v974 = vld [vmem:[%s964] sm:%s973]
    %v975 = vunpack.c.l.bf16 %v974
    %v976 = vunpack.c.h.bf16 %v974
    %s977 = scalar_lea.vmem [#allocation1], 1528
    %978 = vst [vmem:[%s977] sm:%s3] %v975
    %s979 = scalar_lea.vmem %s0, 760
    %s980 = sshrl.u32 %s3, 1
    %s981 = sor.u32 %s3, %s980
    %s982 = sand.u32 %s981, 85
    %s983 = sshrl.u32 %s982, 1
    %s984 = sor.u32 %s982, %s983
    %s985 = sand.u32 51, %s984
    %s986 = sshrl.u32 %s985, 2
    %s987 = sor.u32 %s985, %s986
    %s988 = sand.u32 15, %s987
    %v989 = vld [vmem:[%s979] sm:%s988]
    %v990 = vunpack.c.l.bf16 %v989
    %v991 = vunpack.c.h.bf16 %v989
    %s992 = scalar_lea.vmem [#allocation1], 1520
    %993 = vst [vmem:[%s992] sm:%s3] %v990
    %s994 = scalar_lea.vmem %s0, 756
    %s995 = sshrl.u32 %s3, 1
    %s996 = sor.u32 %s3, %s995
    %s997 = sand.u32 %s996, 85
    %s998 = sshrl.u32 %s997, 1
    %s999 = sor.u32 %s997, %s998
    %s1000 = sand.u32 51, %s999
    %s1001 = sshrl.u32 %s1000, 2
    %s1002 = sor.u32 %s1000, %s1001
    %s1003 = sand.u32 15, %s1002
    %v1004 = vld [vmem:[%s994] sm:%s1003]
    %v1005 = vunpack.c.l.bf16 %v1004
    %v1006 = vunpack.c.h.bf16 %v1004
    %s1007 = scalar_lea.vmem [#allocation1], 1512
    %1008 = vst [vmem:[%s1007] sm:%s3] %v1005
    %s1009 = scalar_lea.vmem %s0, 752
    %s1010 = sshrl.u32 %s3, 1
    %s1011 = sor.u32 %s3, %s1010
    %s1012 = sand.u32 %s1011, 85
    %s1013 = sshrl.u32 %s1012, 1
    %s1014 = sor.u32 %s1012, %s1013
    %s1015 = sand.u32 51, %s1014
    %s1016 = sshrl.u32 %s1015, 2
    %s1017 = sor.u32 %s1015, %s1016
    %s1018 = sand.u32 15, %s1017
    %v1019 = vld [vmem:[%s1009] sm:%s1018]
    %v1020 = vunpack.c.l.bf16 %v1019
    %v1021 = vunpack.c.h.bf16 %v1019
    %s1022 = scalar_lea.vmem [#allocation1], 1504
    %1023 = vst [vmem:[%s1022] sm:%s3] %v1020
    %s1024 = scalar_lea.vmem %s0, 748
    %s1025 = sshrl.u32 %s3, 1
    %s1026 = sor.u32 %s3, %s1025
    %s1027 = sand.u32 %s1026, 85
    %s1028 = sshrl.u32 %s1027, 1
    %s1029 = sor.u32 %s1027, %s1028
    %s1030 = sand.u32 51, %s1029
    %s1031 = sshrl.u32 %s1030, 2
    %s1032 = sor.u32 %s1030, %s1031
    %s1033 = sand.u32 15, %s1032
    %v1034 = vld [vmem:[%s1024] sm:%s1033]
    %v1035 = vunpack.c.l.bf16 %v1034
    %v1036 = vunpack.c.h.bf16 %v1034
    %s1037 = scalar_lea.vmem [#allocation1], 1496
    %1038 = vst [vmem:[%s1037] sm:%s3] %v1035
    %s1039 = scalar_lea.vmem %s0, 744
    %s1040 = sshrl.u32 %s3, 1
    %s1041 = sor.u32 %s3, %s1040
    %s1042 = sand.u32 %s1041, 85
    %s1043 = sshrl.u32 %s1042, 1
    %s1044 = sor.u32 %s1042, %s1043
    %s1045 = sand.u32 51, %s1044
    %s1046 = sshrl.u32 %s1045, 2
    %s1047 = sor.u32 %s1045, %s1046
    %s1048 = sand.u32 15, %s1047
    %v1049 = vld [vmem:[%s1039] sm:%s1048]
    %v1050 = vunpack.c.l.bf16 %v1049
    %v1051 = vunpack.c.h.bf16 %v1049
    %s1052 = scalar_lea.vmem [#allocation1], 1488
    %1053 = vst [vmem:[%s1052] sm:%s3] %v1050
    %s1054 = scalar_lea.vmem %s0, 740
    %s1055 = sshrl.u32 %s3, 1
    %s1056 = sor.u32 %s3, %s1055
    %s1057 = sand.u32 %s1056, 85
    %s1058 = sshrl.u32 %s1057, 1
    %s1059 = sor.u32 %s1057, %s1058
    %s1060 = sand.u32 51, %s1059
    %s1061 = sshrl.u32 %s1060, 2
    %s1062 = sor.u32 %s1060, %s1061
    %s1063 = sand.u32 15, %s1062
    %v1064 = vld [vmem:[%s1054] sm:%s1063]
    %v1065 = vunpack.c.l.bf16 %v1064
    %v1066 = vunpack.c.h.bf16 %v1064
    %s1067 = scalar_lea.vmem [#allocation1], 1480
    %1068 = vst [vmem:[%s1067] sm:%s3] %v1065
    %s1069 = scalar_lea.vmem %s0, 736
    %s1070 = sshrl.u32 %s3, 1
    %s1071 = sor.u32 %s3, %s1070
    %s1072 = sand.u32 %s1071, 85
    %s1073 = sshrl.u32 %s1072, 1
    %s1074 = sor.u32 %s1072, %s1073
    %s1075 = sand.u32 51, %s1074
    %s1076 = sshrl.u32 %s1075, 2
    %s1077 = sor.u32 %s1075, %s1076
    %s1078 = sand.u32 15, %s1077
    %v1079 = vld [vmem:[%s1069] sm:%s1078]
    %v1080 = vunpack.c.l.bf16 %v1079
    %v1081 = vunpack.c.h.bf16 %v1079
    %s1082 = scalar_lea.vmem [#allocation1], 1472
    %1083 = vst [vmem:[%s1082] sm:%s3] %v1080
    %s1084 = scalar_lea.vmem %s0, 732
    %s1085 = sshrl.u32 %s3, 1
    %s1086 = sor.u32 %s3, %s1085
    %s1087 = sand.u32 %s1086, 85
    %s1088 = sshrl.u32 %s1087, 1
    %s1089 = sor.u32 %s1087, %s1088
    %s1090 = sand.u32 51, %s1089
    %s1091 = sshrl.u32 %s1090, 2
    %s1092 = sor.u32 %s1090, %s1091
    %s1093 = sand.u32 15, %s1092
    %v1094 = vld [vmem:[%s1084] sm:%s1093]
    %v1095 = vunpack.c.l.bf16 %v1094
    %v1096 = vunpack.c.h.bf16 %v1094
    %s1097 = scalar_lea.vmem [#allocation1], 1464
    %1098 = vst [vmem:[%s1097] sm:%s3] %v1095
    %s1099 = scalar_lea.vmem %s0, 728
    %s1100 = sshrl.u32 %s3, 1
    %s1101 = sor.u32 %s3, %s1100
    %s1102 = sand.u32 %s1101, 85
    %s1103 = sshrl.u32 %s1102, 1
    %s1104 = sor.u32 %s1102, %s1103
    %s1105 = sand.u32 51, %s1104
    %s1106 = sshrl.u32 %s1105, 2
    %s1107 = sor.u32 %s1105, %s1106
    %s1108 = sand.u32 15, %s1107
    %v1109 = vld [vmem:[%s1099] sm:%s1108]
    %v1110 = vunpack.c.l.bf16 %v1109
    %v1111 = vunpack.c.h.bf16 %v1109
    %s1112 = scalar_lea.vmem [#allocation1], 1456
    %1113 = vst [vmem:[%s1112] sm:%s3] %v1110
    %s1114 = scalar_lea.vmem %s0, 724
    %s1115 = sshrl.u32 %s3, 1
    %s1116 = sor.u32 %s3, %s1115
    %s1117 = sand.u32 %s1116, 85
    %s1118 = sshrl.u32 %s1117, 1
    %s1119 = sor.u32 %s1117, %s1118
    %s1120 = sand.u32 51, %s1119
    %s1121 = sshrl.u32 %s1120, 2
    %s1122 = sor.u32 %s1120, %s1121
    %s1123 = sand.u32 15, %s1122
    %v1124 = vld [vmem:[%s1114] sm:%s1123]
    %v1125 = vunpack.c.l.bf16 %v1124
    %v1126 = vunpack.c.h.bf16 %v1124
    %s1127 = scalar_lea.vmem [#allocation1], 1448
    %1128 = vst [vmem:[%s1127] sm:%s3] %v1125
    %s1129 = scalar_lea.vmem %s0, 720
    %s1130 = sshrl.u32 %s3, 1
    %s1131 = sor.u32 %s3, %s1130
    %s1132 = sand.u32 %s1131, 85
    %s1133 = sshrl.u32 %s1132, 1
    %s1134 = sor.u32 %s1132, %s1133
    %s1135 = sand.u32 51, %s1134
    %s1136 = sshrl.u32 %s1135, 2
    %s1137 = sor.u32 %s1135, %s1136
    %s1138 = sand.u32 15, %s1137
    %v1139 = vld [vmem:[%s1129] sm:%s1138]
    %v1140 = vunpack.c.l.bf16 %v1139
    %v1141 = vunpack.c.h.bf16 %v1139
    %s1142 = scalar_lea.vmem [#allocation1], 1440
    %1143 = vst [vmem:[%s1142] sm:%s3] %v1140
    %s1144 = scalar_lea.vmem %s0, 716
    %s1145 = sshrl.u32 %s3, 1
    %s1146 = sor.u32 %s3, %s1145
    %s1147 = sand.u32 %s1146, 85
    %s1148 = sshrl.u32 %s1147, 1
    %s1149 = sor.u32 %s1147, %s1148
    %s1150 = sand.u32 51, %s1149
    %s1151 = sshrl.u32 %s1150, 2
    %s1152 = sor.u32 %s1150, %s1151
    %s1153 = sand.u32 15, %s1152
    %v1154 = vld [vmem:[%s1144] sm:%s1153]
    %v1155 = vunpack.c.l.bf16 %v1154
    %v1156 = vunpack.c.h.bf16 %v1154
    %s1157 = scalar_lea.vmem [#allocation1], 1432
    %1158 = vst [vmem:[%s1157] sm:%s3] %v1155
    %s1159 = scalar_lea.vmem %s0, 712
    %s1160 = sshrl.u32 %s3, 1
    %s1161 = sor.u32 %s3, %s1160
    %s1162 = sand.u32 %s1161, 85
    %s1163 = sshrl.u32 %s1162, 1
    %s1164 = sor.u32 %s1162, %s1163
    %s1165 = sand.u32 51, %s1164
    %s1166 = sshrl.u32 %s1165, 2
    %s1167 = sor.u32 %s1165, %s1166
    %s1168 = sand.u32 15, %s1167
    %v1169 = vld [vmem:[%s1159] sm:%s1168]
    %v1170 = vunpack.c.l.bf16 %v1169
    %v1171 = vunpack.c.h.bf16 %v1169
    %s1172 = scalar_lea.vmem [#allocation1], 1424
    %1173 = vst [vmem:[%s1172] sm:%s3] %v1170
    %s1174 = scalar_lea.vmem %s0, 708
    %s1175 = sshrl.u32 %s3, 1
    %s1176 = sor.u32 %s3, %s1175
    %s1177 = sand.u32 %s1176, 85
    %s1178 = sshrl.u32 %s1177, 1
    %s1179 = sor.u32 %s1177, %s1178
    %s1180 = sand.u32 51, %s1179
    %s1181 = sshrl.u32 %s1180, 2
    %s1182 = sor.u32 %s1180, %s1181
    %s1183 = sand.u32 15, %s1182
    %v1184 = vld [vmem:[%s1174] sm:%s1183]
    %v1185 = vunpack.c.l.bf16 %v1184
    %v1186 = vunpack.c.h.bf16 %v1184
    %s1187 = scalar_lea.vmem [#allocation1], 1416
    %1188 = vst [vmem:[%s1187] sm:%s3] %v1185
    %s1189 = scalar_lea.vmem %s0, 704
    %s1190 = sshrl.u32 %s3, 1
    %s1191 = sor.u32 %s3, %s1190
    %s1192 = sand.u32 %s1191, 85
    %s1193 = sshrl.u32 %s1192, 1
    %s1194 = sor.u32 %s1192, %s1193
    %s1195 = sand.u32 51, %s1194
    %s1196 = sshrl.u32 %s1195, 2
    %s1197 = sor.u32 %s1195, %s1196
    %s1198 = sand.u32 15, %s1197
    %v1199 = vld [vmem:[%s1189] sm:%s1198]
    %v1200 = vunpack.c.l.bf16 %v1199
    %v1201 = vunpack.c.h.bf16 %v1199
    %s1202 = scalar_lea.vmem [#allocation1], 1408
    %1203 = vst [vmem:[%s1202] sm:%s3] %v1200
    %s1204 = scalar_lea.vmem %s0, 700
    %s1205 = sshrl.u32 %s3, 1
    %s1206 = sor.u32 %s3, %s1205
    %s1207 = sand.u32 %s1206, 85
    %s1208 = sshrl.u32 %s1207, 1
    %s1209 = sor.u32 %s1207, %s1208
    %s1210 = sand.u32 51, %s1209
    %s1211 = sshrl.u32 %s1210, 2
    %s1212 = sor.u32 %s1210, %s1211
    %s1213 = sand.u32 15, %s1212
    %v1214 = vld [vmem:[%s1204] sm:%s1213]
    %v1215 = vunpack.c.l.bf16 %v1214
    %v1216 = vunpack.c.h.bf16 %v1214
    %s1217 = scalar_lea.vmem [#allocation1], 1400
    %1218 = vst [vmem:[%s1217] sm:%s3] %v1215
    %s1219 = scalar_lea.vmem %s0, 696
    %s1220 = sshrl.u32 %s3, 1
    %s1221 = sor.u32 %s3, %s1220
    %s1222 = sand.u32 %s1221, 85
    %s1223 = sshrl.u32 %s1222, 1
    %s1224 = sor.u32 %s1222, %s1223
    %s1225 = sand.u32 51, %s1224
    %s1226 = sshrl.u32 %s1225, 2
    %s1227 = sor.u32 %s1225, %s1226
    %s1228 = sand.u32 15, %s1227
    %v1229 = vld [vmem:[%s1219] sm:%s1228]
    %v1230 = vunpack.c.l.bf16 %v1229
    %v1231 = vunpack.c.h.bf16 %v1229
    %s1232 = scalar_lea.vmem [#allocation1], 1392
    %1233 = vst [vmem:[%s1232] sm:%s3] %v1230
    %s1234 = scalar_lea.vmem %s0, 692
    %s1235 = sshrl.u32 %s3, 1
    %s1236 = sor.u32 %s3, %s1235
    %s1237 = sand.u32 %s1236, 85
    %s1238 = sshrl.u32 %s1237, 1
    %s1239 = sor.u32 %s1237, %s1238
    %s1240 = sand.u32 51, %s1239
    %s1241 = sshrl.u32 %s1240, 2
    %s1242 = sor.u32 %s1240, %s1241
    %s1243 = sand.u32 15, %s1242
    %v1244 = vld [vmem:[%s1234] sm:%s1243]
    %v1245 = vunpack.c.l.bf16 %v1244
    %v1246 = vunpack.c.h.bf16 %v1244
    %s1247 = scalar_lea.vmem [#allocation1], 1384
    %1248 = vst [vmem:[%s1247] sm:%s3] %v1245
    %s1249 = scalar_lea.vmem %s0, 688
    %s1250 = sshrl.u32 %s3, 1
    %s1251 = sor.u32 %s3, %s1250
    %s1252 = sand.u32 %s1251, 85
    %s1253 = sshrl.u32 %s1252, 1
    %s1254 = sor.u32 %s1252, %s1253
    %s1255 = sand.u32 51, %s1254
    %s1256 = sshrl.u32 %s1255, 2
    %s1257 = sor.u32 %s1255, %s1256
    %s1258 = sand.u32 15, %s1257
    %v1259 = vld [vmem:[%s1249] sm:%s1258]
    %v1260 = vunpack.c.l.bf16 %v1259
    %v1261 = vunpack.c.h.bf16 %v1259
    %s1262 = scalar_lea.vmem [#allocation1], 1376
    %1263 = vst [vmem:[%s1262] sm:%s3] %v1260
    %s1264 = scalar_lea.vmem %s0, 684
    %s1265 = sshrl.u32 %s3, 1
    %s1266 = sor.u32 %s3, %s1265
    %s1267 = sand.u32 %s1266, 85
    %s1268 = sshrl.u32 %s1267, 1
    %s1269 = sor.u32 %s1267, %s1268
    %s1270 = sand.u32 51, %s1269
    %s1271 = sshrl.u32 %s1270, 2
    %s1272 = sor.u32 %s1270, %s1271
    %s1273 = sand.u32 15, %s1272
    %v1274 = vld [vmem:[%s1264] sm:%s1273]
    %v1275 = vunpack.c.l.bf16 %v1274
    %v1276 = vunpack.c.h.bf16 %v1274
    %s1277 = scalar_lea.vmem [#allocation1], 1368
    %1278 = vst [vmem:[%s1277] sm:%s3] %v1275
    %s1279 = scalar_lea.vmem %s0, 680
    %s1280 = sshrl.u32 %s3, 1
    %s1281 = sor.u32 %s3, %s1280
    %s1282 = sand.u32 %s1281, 85
    %s1283 = sshrl.u32 %s1282, 1
    %s1284 = sor.u32 %s1282, %s1283
    %s1285 = sand.u32 51, %s1284
    %s1286 = sshrl.u32 %s1285, 2
    %s1287 = sor.u32 %s1285, %s1286
    %s1288 = sand.u32 15, %s1287
    %v1289 = vld [vmem:[%s1279] sm:%s1288]
    %v1290 = vunpack.c.l.bf16 %v1289
    %v1291 = vunpack.c.h.bf16 %v1289
    %s1292 = scalar_lea.vmem [#allocation1], 1360
    %1293 = vst [vmem:[%s1292] sm:%s3] %v1290
    %s1294 = scalar_lea.vmem %s0, 676
    %s1295 = sshrl.u32 %s3, 1
    %s1296 = sor.u32 %s3, %s1295
    %s1297 = sand.u32 %s1296, 85
    %s1298 = sshrl.u32 %s1297, 1
    %s1299 = sor.u32 %s1297, %s1298
    %s1300 = sand.u32 51, %s1299
    %s1301 = sshrl.u32 %s1300, 2
    %s1302 = sor.u32 %s1300, %s1301
    %s1303 = sand.u32 15, %s1302
    %v1304 = vld [vmem:[%s1294] sm:%s1303]
    %v1305 = vunpack.c.l.bf16 %v1304
    %v1306 = vunpack.c.h.bf16 %v1304
    %s1307 = scalar_lea.vmem [#allocation1], 1352
    %1308 = vst [vmem:[%s1307] sm:%s3] %v1305
    %s1309 = scalar_lea.vmem %s0, 672
    %s1310 = sshrl.u32 %s3, 1
    %s1311 = sor.u32 %s3, %s1310
    %s1312 = sand.u32 %s1311, 85
    %s1313 = sshrl.u32 %s1312, 1
    %s1314 = sor.u32 %s1312, %s1313
    %s1315 = sand.u32 51, %s1314
    %s1316 = sshrl.u32 %s1315, 2
    %s1317 = sor.u32 %s1315, %s1316
    %s1318 = sand.u32 15, %s1317
    %v1319 = vld [vmem:[%s1309] sm:%s1318]
    %v1320 = vunpack.c.l.bf16 %v1319
    %v1321 = vunpack.c.h.bf16 %v1319
    %s1322 = scalar_lea.vmem [#allocation1], 1344
    %1323 = vst [vmem:[%s1322] sm:%s3] %v1320
    %s1324 = scalar_lea.vmem %s0, 668
    %s1325 = sshrl.u32 %s3, 1
    %s1326 = sor.u32 %s3, %s1325
    %s1327 = sand.u32 %s1326, 85
    %s1328 = sshrl.u32 %s1327, 1
    %s1329 = sor.u32 %s1327, %s1328
    %s1330 = sand.u32 51, %s1329
    %s1331 = sshrl.u32 %s1330, 2
    %s1332 = sor.u32 %s1330, %s1331
    %s1333 = sand.u32 15, %s1332
    %v1334 = vld [vmem:[%s1324] sm:%s1333]
    %v1335 = vunpack.c.l.bf16 %v1334
    %v1336 = vunpack.c.h.bf16 %v1334
    %s1337 = scalar_lea.vmem [#allocation1], 1336
    %1338 = vst [vmem:[%s1337] sm:%s3] %v1335
    %s1339 = scalar_lea.vmem %s0, 664
    %s1340 = sshrl.u32 %s3, 1
    %s1341 = sor.u32 %s3, %s1340
    %s1342 = sand.u32 %s1341, 85
    %s1343 = sshrl.u32 %s1342, 1
    %s1344 = sor.u32 %s1342, %s1343
    %s1345 = sand.u32 51, %s1344
    %s1346 = sshrl.u32 %s1345, 2
    %s1347 = sor.u32 %s1345, %s1346
    %s1348 = sand.u32 15, %s1347
    %v1349 = vld [vmem:[%s1339] sm:%s1348]
    %v1350 = vunpack.c.l.bf16 %v1349
    %v1351 = vunpack.c.h.bf16 %v1349
    %s1352 = scalar_lea.vmem [#allocation1], 1328
    %1353 = vst [vmem:[%s1352] sm:%s3] %v1350
    %s1354 = scalar_lea.vmem %s0, 660
    %s1355 = sshrl.u32 %s3, 1
    %s1356 = sor.u32 %s3, %s1355
    %s1357 = sand.u32 %s1356, 85
    %s1358 = sshrl.u32 %s1357, 1
    %s1359 = sor.u32 %s1357, %s1358
    %s1360 = sand.u32 51, %s1359
    %s1361 = sshrl.u32 %s1360, 2
    %s1362 = sor.u32 %s1360, %s1361
    %s1363 = sand.u32 15, %s1362
    %v1364 = vld [vmem:[%s1354] sm:%s1363]
    %v1365 = vunpack.c.l.bf16 %v1364
    %v1366 = vunpack.c.h.bf16 %v1364
    %s1367 = scalar_lea.vmem [#allocation1], 1320
    %1368 = vst [vmem:[%s1367] sm:%s3] %v1365
    %s1369 = scalar_lea.vmem %s0, 656
    %s1370 = sshrl.u32 %s3, 1
    %s1371 = sor.u32 %s3, %s1370
    %s1372 = sand.u32 %s1371, 85
    %s1373 = sshrl.u32 %s1372, 1
    %s1374 = sor.u32 %s1372, %s1373
    %s1375 = sand.u32 51, %s1374
    %s1376 = sshrl.u32 %s1375, 2
    %s1377 = sor.u32 %s1375, %s1376
    %s1378 = sand.u32 15, %s1377
    %v1379 = vld [vmem:[%s1369] sm:%s1378]
    %v1380 = vunpack.c.l.bf16 %v1379
    %v1381 = vunpack.c.h.bf16 %v1379
    %s1382 = scalar_lea.vmem [#allocation1], 1312
    %1383 = vst [vmem:[%s1382] sm:%s3] %v1380
    %s1384 = scalar_lea.vmem %s0, 652
    %s1385 = sshrl.u32 %s3, 1
    %s1386 = sor.u32 %s3, %s1385
    %s1387 = sand.u32 %s1386, 85
    %s1388 = sshrl.u32 %s1387, 1
    %s1389 = sor.u32 %s1387, %s1388
    %s1390 = sand.u32 51, %s1389
    %s1391 = sshrl.u32 %s1390, 2
    %s1392 = sor.u32 %s1390, %s1391
    %s1393 = sand.u32 15, %s1392
    %v1394 = vld [vmem:[%s1384] sm:%s1393]
    %v1395 = vunpack.c.l.bf16 %v1394
    %v1396 = vunpack.c.h.bf16 %v1394
    %s1397 = scalar_lea.vmem [#allocation1], 1304
    %1398 = vst [vmem:[%s1397] sm:%s3] %v1395
    %s1399 = scalar_lea.vmem %s0, 648
    %s1400 = sshrl.u32 %s3, 1
    %s1401 = sor.u32 %s3, %s1400
    %s1402 = sand.u32 %s1401, 85
    %s1403 = sshrl.u32 %s1402, 1
    %s1404 = sor.u32 %s1402, %s1403
    %s1405 = sand.u32 51, %s1404
    %s1406 = sshrl.u32 %s1405, 2
    %s1407 = sor.u32 %s1405, %s1406
    %s1408 = sand.u32 15, %s1407
    %v1409 = vld [vmem:[%s1399] sm:%s1408]
    %v1410 = vunpack.c.l.bf16 %v1409
    %v1411 = vunpack.c.h.bf16 %v1409
    %s1412 = scalar_lea.vmem [#allocation1], 1296
    %1413 = vst [vmem:[%s1412] sm:%s3] %v1410
    %s1414 = scalar_lea.vmem %s0, 644
    %s1415 = sshrl.u32 %s3, 1
    %s1416 = sor.u32 %s3, %s1415
    %s1417 = sand.u32 %s1416, 85
    %s1418 = sshrl.u32 %s1417, 1
    %s1419 = sor.u32 %s1417, %s1418
    %s1420 = sand.u32 51, %s1419
    %s1421 = sshrl.u32 %s1420, 2
    %s1422 = sor.u32 %s1420, %s1421
    %s1423 = sand.u32 15, %s1422
    %v1424 = vld [vmem:[%s1414] sm:%s1423]
    %v1425 = vunpack.c.l.bf16 %v1424
    %v1426 = vunpack.c.h.bf16 %v1424
    %s1427 = scalar_lea.vmem [#allocation1], 1288
    %1428 = vst [vmem:[%s1427] sm:%s3] %v1425
    %s1429 = scalar_lea.vmem %s0, 640
    %s1430 = sshrl.u32 %s3, 1
    %s1431 = sor.u32 %s3, %s1430
    %s1432 = sand.u32 %s1431, 85
    %s1433 = sshrl.u32 %s1432, 1
    %s1434 = sor.u32 %s1432, %s1433
    %s1435 = sand.u32 51, %s1434
    %s1436 = sshrl.u32 %s1435, 2
    %s1437 = sor.u32 %s1435, %s1436
    %s1438 = sand.u32 15, %s1437
    %v1439 = vld [vmem:[%s1429] sm:%s1438]
    %v1440 = vunpack.c.l.bf16 %v1439
    %v1441 = vunpack.c.h.bf16 %v1439
    %s1442 = scalar_lea.vmem [#allocation1], 1280
    %1443 = vst [vmem:[%s1442] sm:%s3] %v1440
    %s1444 = scalar_lea.vmem %s0, 636
    %s1445 = sshrl.u32 %s3, 1
    %s1446 = sor.u32 %s3, %s1445
    %s1447 = sand.u32 %s1446, 85
    %s1448 = sshrl.u32 %s1447, 1
    %s1449 = sor.u32 %s1447, %s1448
    %s1450 = sand.u32 51, %s1449
    %s1451 = sshrl.u32 %s1450, 2
    %s1452 = sor.u32 %s1450, %s1451
    %s1453 = sand.u32 15, %s1452
    %v1454 = vld [vmem:[%s1444] sm:%s1453]
    %v1455 = vunpack.c.l.bf16 %v1454
    %v1456 = vunpack.c.h.bf16 %v1454
    %s1457 = scalar_lea.vmem [#allocation1], 1272
    %1458 = vst [vmem:[%s1457] sm:%s3] %v1455
    %s1459 = scalar_lea.vmem %s0, 632
    %s1460 = sshrl.u32 %s3, 1
    %s1461 = sor.u32 %s3, %s1460
    %s1462 = sand.u32 %s1461, 85
    %s1463 = sshrl.u32 %s1462, 1
    %s1464 = sor.u32 %s1462, %s1463
    %s1465 = sand.u32 51, %s1464
    %s1466 = sshrl.u32 %s1465, 2
    %s1467 = sor.u32 %s1465, %s1466
    %s1468 = sand.u32 15, %s1467
    %v1469 = vld [vmem:[%s1459] sm:%s1468]
    %v1470 = vunpack.c.l.bf16 %v1469
    %v1471 = vunpack.c.h.bf16 %v1469
    %s1472 = scalar_lea.vmem [#allocation1], 1264
    %1473 = vst [vmem:[%s1472] sm:%s3] %v1470
    %s1474 = scalar_lea.vmem %s0, 628
    %s1475 = sshrl.u32 %s3, 1
    %s1476 = sor.u32 %s3, %s1475
    %s1477 = sand.u32 %s1476, 85
    %s1478 = sshrl.u32 %s1477, 1
    %s1479 = sor.u32 %s1477, %s1478
    %s1480 = sand.u32 51, %s1479
    %s1481 = sshrl.u32 %s1480, 2
    %s1482 = sor.u32 %s1480, %s1481
    %s1483 = sand.u32 15, %s1482
    %v1484 = vld [vmem:[%s1474] sm:%s1483]
    %v1485 = vunpack.c.l.bf16 %v1484
    %v1486 = vunpack.c.h.bf16 %v1484
    %s1487 = scalar_lea.vmem [#allocation1], 1256
    %1488 = vst [vmem:[%s1487] sm:%s3] %v1485
    %s1489 = scalar_lea.vmem %s0, 624
    %s1490 = sshrl.u32 %s3, 1
    %s1491 = sor.u32 %s3, %s1490
    %s1492 = sand.u32 %s1491, 85
    %s1493 = sshrl.u32 %s1492, 1
    %s1494 = sor.u32 %s1492, %s1493
    %s1495 = sand.u32 51, %s1494
    %s1496 = sshrl.u32 %s1495, 2
    %s1497 = sor.u32 %s1495, %s1496
    %s1498 = sand.u32 15, %s1497
    %v1499 = vld [vmem:[%s1489] sm:%s1498]
    %v1500 = vunpack.c.l.bf16 %v1499
    %v1501 = vunpack.c.h.bf16 %v1499
    %s1502 = scalar_lea.vmem [#allocation1], 1248
    %1503 = vst [vmem:[%s1502] sm:%s3] %v1500
    %s1504 = scalar_lea.vmem %s0, 620
    %s1505 = sshrl.u32 %s3, 1
    %s1506 = sor.u32 %s3, %s1505
    %s1507 = sand.u32 %s1506, 85
    %s1508 = sshrl.u32 %s1507, 1
    %s1509 = sor.u32 %s1507, %s1508
    %s1510 = sand.u32 51, %s1509
    %s1511 = sshrl.u32 %s1510, 2
    %s1512 = sor.u32 %s1510, %s1511
    %s1513 = sand.u32 15, %s1512
    %v1514 = vld [vmem:[%s1504] sm:%s1513]
    %v1515 = vunpack.c.l.bf16 %v1514
    %v1516 = vunpack.c.h.bf16 %v1514
    %s1517 = scalar_lea.vmem [#allocation1], 1240
    %1518 = vst [vmem:[%s1517] sm:%s3] %v1515
    %s1519 = scalar_lea.vmem %s0, 616
    %s1520 = sshrl.u32 %s3, 1
    %s1521 = sor.u32 %s3, %s1520
    %s1522 = sand.u32 %s1521, 85
    %s1523 = sshrl.u32 %s1522, 1
    %s1524 = sor.u32 %s1522, %s1523
    %s1525 = sand.u32 51, %s1524
    %s1526 = sshrl.u32 %s1525, 2
    %s1527 = sor.u32 %s1525, %s1526
    %s1528 = sand.u32 15, %s1527
    %v1529 = vld [vmem:[%s1519] sm:%s1528]
    %v1530 = vunpack.c.l.bf16 %v1529
    %v1531 = vunpack.c.h.bf16 %v1529
    %s1532 = scalar_lea.vmem [#allocation1], 1232
    %1533 = vst [vmem:[%s1532] sm:%s3] %v1530
    %s1534 = scalar_lea.vmem %s0, 612
    %s1535 = sshrl.u32 %s3, 1
    %s1536 = sor.u32 %s3, %s1535
    %s1537 = sand.u32 %s1536, 85
    %s1538 = sshrl.u32 %s1537, 1
    %s1539 = sor.u32 %s1537, %s1538
    %s1540 = sand.u32 51, %s1539
    %s1541 = sshrl.u32 %s1540, 2
    %s1542 = sor.u32 %s1540, %s1541
    %s1543 = sand.u32 15, %s1542
    %v1544 = vld [vmem:[%s1534] sm:%s1543]
    %v1545 = vunpack.c.l.bf16 %v1544
    %v1546 = vunpack.c.h.bf16 %v1544
    %s1547 = scalar_lea.vmem [#allocation1], 1224
    %1548 = vst [vmem:[%s1547] sm:%s3] %v1545
    %s1549 = scalar_lea.vmem %s0, 608
    %s1550 = sshrl.u32 %s3, 1
    %s1551 = sor.u32 %s3, %s1550
    %s1552 = sand.u32 %s1551, 85
    %s1553 = sshrl.u32 %s1552, 1
    %s1554 = sor.u32 %s1552, %s1553
    %s1555 = sand.u32 51, %s1554
    %s1556 = sshrl.u32 %s1555, 2
    %s1557 = sor.u32 %s1555, %s1556
    %s1558 = sand.u32 15, %s1557
    %v1559 = vld [vmem:[%s1549] sm:%s1558]
    %v1560 = vunpack.c.l.bf16 %v1559
    %v1561 = vunpack.c.h.bf16 %v1559
    %s1562 = scalar_lea.vmem [#allocation1], 1216
    %1563 = vst [vmem:[%s1562] sm:%s3] %v1560
    %s1564 = scalar_lea.vmem %s0, 604
    %s1565 = sshrl.u32 %s3, 1
    %s1566 = sor.u32 %s3, %s1565
    %s1567 = sand.u32 %s1566, 85
    %s1568 = sshrl.u32 %s1567, 1
    %s1569 = sor.u32 %s1567, %s1568
    %s1570 = sand.u32 51, %s1569
    %s1571 = sshrl.u32 %s1570, 2
    %s1572 = sor.u32 %s1570, %s1571
    %s1573 = sand.u32 15, %s1572
    %v1574 = vld [vmem:[%s1564] sm:%s1573]
    %v1575 = vunpack.c.l.bf16 %v1574
    %v1576 = vunpack.c.h.bf16 %v1574
    %s1577 = scalar_lea.vmem [#allocation1], 1208
    %1578 = vst [vmem:[%s1577] sm:%s3] %v1575
    %s1579 = scalar_lea.vmem %s0, 600
    %s1580 = sshrl.u32 %s3, 1
    %s1581 = sor.u32 %s3, %s1580
    %s1582 = sand.u32 %s1581, 85
    %s1583 = sshrl.u32 %s1582, 1
    %s1584 = sor.u32 %s1582, %s1583
    %s1585 = sand.u32 51, %s1584
    %s1586 = sshrl.u32 %s1585, 2
    %s1587 = sor.u32 %s1585, %s1586
    %s1588 = sand.u32 15, %s1587
    %v1589 = vld [vmem:[%s1579] sm:%s1588]
    %v1590 = vunpack.c.l.bf16 %v1589
    %v1591 = vunpack.c.h.bf16 %v1589
    %s1592 = scalar_lea.vmem [#allocation1], 1200
    %1593 = vst [vmem:[%s1592] sm:%s3] %v1590
    %s1594 = scalar_lea.vmem %s0, 596
    %s1595 = sshrl.u32 %s3, 1
    %s1596 = sor.u32 %s3, %s1595
    %s1597 = sand.u32 %s1596, 85
    %s1598 = sshrl.u32 %s1597, 1
    %s1599 = sor.u32 %s1597, %s1598
    %s1600 = sand.u32 51, %s1599
    %s1601 = sshrl.u32 %s1600, 2
    %s1602 = sor.u32 %s1600, %s1601
    %s1603 = sand.u32 15, %s1602
    %v1604 = vld [vmem:[%s1594] sm:%s1603]
    %v1605 = vunpack.c.l.bf16 %v1604
    %v1606 = vunpack.c.h.bf16 %v1604
    %s1607 = scalar_lea.vmem [#allocation1], 1192
    %1608 = vst [vmem:[%s1607] sm:%s3] %v1605
    %s1609 = scalar_lea.vmem %s0, 592
    %s1610 = sshrl.u32 %s3, 1
    %s1611 = sor.u32 %s3, %s1610
    %s1612 = sand.u32 %s1611, 85
    %s1613 = sshrl.u32 %s1612, 1
    %s1614 = sor.u32 %s1612, %s1613
    %s1615 = sand.u32 51, %s1614
    %s1616 = sshrl.u32 %s1615, 2
    %s1617 = sor.u32 %s1615, %s1616
    %s1618 = sand.u32 15, %s1617
    %v1619 = vld [vmem:[%s1609] sm:%s1618]
    %v1620 = vunpack.c.l.bf16 %v1619
    %v1621 = vunpack.c.h.bf16 %v1619
    %s1622 = scalar_lea.vmem [#allocation1], 1184
    %1623 = vst [vmem:[%s1622] sm:%s3] %v1620
    %s1624 = scalar_lea.vmem %s0, 588
    %s1625 = sshrl.u32 %s3, 1
    %s1626 = sor.u32 %s3, %s1625
    %s1627 = sand.u32 %s1626, 85
    %s1628 = sshrl.u32 %s1627, 1
    %s1629 = sor.u32 %s1627, %s1628
    %s1630 = sand.u32 51, %s1629
    %s1631 = sshrl.u32 %s1630, 2
    %s1632 = sor.u32 %s1630, %s1631
    %s1633 = sand.u32 15, %s1632
    %v1634 = vld [vmem:[%s1624] sm:%s1633]
    %v1635 = vunpack.c.l.bf16 %v1634
    %v1636 = vunpack.c.h.bf16 %v1634
    %s1637 = scalar_lea.vmem [#allocation1], 1176
    %1638 = vst [vmem:[%s1637] sm:%s3] %v1635
    %s1639 = scalar_lea.vmem %s0, 584
    %s1640 = sshrl.u32 %s3, 1
    %s1641 = sor.u32 %s3, %s1640
    %s1642 = sand.u32 %s1641, 85
    %s1643 = sshrl.u32 %s1642, 1
    %s1644 = sor.u32 %s1642, %s1643
    %s1645 = sand.u32 51, %s1644
    %s1646 = sshrl.u32 %s1645, 2
    %s1647 = sor.u32 %s1645, %s1646
    %s1648 = sand.u32 15, %s1647
    %v1649 = vld [vmem:[%s1639] sm:%s1648]
    %v1650 = vunpack.c.l.bf16 %v1649
    %v1651 = vunpack.c.h.bf16 %v1649
    %s1652 = scalar_lea.vmem [#allocation1], 1168
    %1653 = vst [vmem:[%s1652] sm:%s3] %v1650
    %s1654 = scalar_lea.vmem %s0, 580
    %s1655 = sshrl.u32 %s3, 1
    %s1656 = sor.u32 %s3, %s1655
    %s1657 = sand.u32 %s1656, 85
    %s1658 = sshrl.u32 %s1657, 1
    %s1659 = sor.u32 %s1657, %s1658
    %s1660 = sand.u32 51, %s1659
    %s1661 = sshrl.u32 %s1660, 2
    %s1662 = sor.u32 %s1660, %s1661
    %s1663 = sand.u32 15, %s1662
    %v1664 = vld [vmem:[%s1654] sm:%s1663]
    %v1665 = vunpack.c.l.bf16 %v1664
    %v1666 = vunpack.c.h.bf16 %v1664
    %s1667 = scalar_lea.vmem [#allocation1], 1160
    %1668 = vst [vmem:[%s1667] sm:%s3] %v1665
    %s1669 = scalar_lea.vmem %s0, 576
    %s1670 = sshrl.u32 %s3, 1
    %s1671 = sor.u32 %s3, %s1670
    %s1672 = sand.u32 %s1671, 85
    %s1673 = sshrl.u32 %s1672, 1
    %s1674 = sor.u32 %s1672, %s1673
    %s1675 = sand.u32 51, %s1674
    %s1676 = sshrl.u32 %s1675, 2
    %s1677 = sor.u32 %s1675, %s1676
    %s1678 = sand.u32 15, %s1677
    %v1679 = vld [vmem:[%s1669] sm:%s1678]
    %v1680 = vunpack.c.l.bf16 %v1679
    %v1681 = vunpack.c.h.bf16 %v1679
    %s1682 = scalar_lea.vmem [#allocation1], 1152
    %1683 = vst [vmem:[%s1682] sm:%s3] %v1680
    %s1684 = scalar_lea.vmem %s0, 572
    %s1685 = sshrl.u32 %s3, 1
    %s1686 = sor.u32 %s3, %s1685
    %s1687 = sand.u32 %s1686, 85
    %s1688 = sshrl.u32 %s1687, 1
    %s1689 = sor.u32 %s1687, %s1688
    %s1690 = sand.u32 51, %s1689
    %s1691 = sshrl.u32 %s1690, 2
    %s1692 = sor.u32 %s1690, %s1691
    %s1693 = sand.u32 15, %s1692
    %v1694 = vld [vmem:[%s1684] sm:%s1693]
    %v1695 = vunpack.c.l.bf16 %v1694
    %v1696 = vunpack.c.h.bf16 %v1694
    %s1697 = scalar_lea.vmem [#allocation1], 1144
    %1698 = vst [vmem:[%s1697] sm:%s3] %v1695
    %s1699 = scalar_lea.vmem %s0, 568
    %s1700 = sshrl.u32 %s3, 1
    %s1701 = sor.u32 %s3, %s1700
    %s1702 = sand.u32 %s1701, 85
    %s1703 = sshrl.u32 %s1702, 1
    %s1704 = sor.u32 %s1702, %s1703
    %s1705 = sand.u32 51, %s1704
    %s1706 = sshrl.u32 %s1705, 2
    %s1707 = sor.u32 %s1705, %s1706
    %s1708 = sand.u32 15, %s1707
    %v1709 = vld [vmem:[%s1699] sm:%s1708]
    %v1710 = vunpack.c.l.bf16 %v1709
    %v1711 = vunpack.c.h.bf16 %v1709
    %s1712 = scalar_lea.vmem [#allocation1], 1136
    %1713 = vst [vmem:[%s1712] sm:%s3] %v1710
    %s1714 = scalar_lea.vmem %s0, 564
    %s1715 = sshrl.u32 %s3, 1
    %s1716 = sor.u32 %s3, %s1715
    %s1717 = sand.u32 %s1716, 85
    %s1718 = sshrl.u32 %s1717, 1
    %s1719 = sor.u32 %s1717, %s1718
    %s1720 = sand.u32 51, %s1719
    %s1721 = sshrl.u32 %s1720, 2
    %s1722 = sor.u32 %s1720, %s1721
    %s1723 = sand.u32 15, %s1722
    %v1724 = vld [vmem:[%s1714] sm:%s1723]
    %v1725 = vunpack.c.l.bf16 %v1724
    %v1726 = vunpack.c.h.bf16 %v1724
    %s1727 = scalar_lea.vmem [#allocation1], 1128
    %1728 = vst [vmem:[%s1727] sm:%s3] %v1725
    %s1729 = scalar_lea.vmem %s0, 560
    %s1730 = sshrl.u32 %s3, 1
    %s1731 = sor.u32 %s3, %s1730
    %s1732 = sand.u32 %s1731, 85
    %s1733 = sshrl.u32 %s1732, 1
    %s1734 = sor.u32 %s1732, %s1733
    %s1735 = sand.u32 51, %s1734
    %s1736 = sshrl.u32 %s1735, 2
    %s1737 = sor.u32 %s1735, %s1736
    %s1738 = sand.u32 15, %s1737
    %v1739 = vld [vmem:[%s1729] sm:%s1738]
    %v1740 = vunpack.c.l.bf16 %v1739
    %v1741 = vunpack.c.h.bf16 %v1739
    %s1742 = scalar_lea.vmem [#allocation1], 1120
    %1743 = vst [vmem:[%s1742] sm:%s3] %v1740
    %s1744 = scalar_lea.vmem %s0, 556
    %s1745 = sshrl.u32 %s3, 1
    %s1746 = sor.u32 %s3, %s1745
    %s1747 = sand.u32 %s1746, 85
    %s1748 = sshrl.u32 %s1747, 1
    %s1749 = sor.u32 %s1747, %s1748
    %s1750 = sand.u32 51, %s1749
    %s1751 = sshrl.u32 %s1750, 2
    %s1752 = sor.u32 %s1750, %s1751
    %s1753 = sand.u32 15, %s1752
    %v1754 = vld [vmem:[%s1744] sm:%s1753]
    %v1755 = vunpack.c.l.bf16 %v1754
    %v1756 = vunpack.c.h.bf16 %v1754
    %s1757 = scalar_lea.vmem [#allocation1], 1112
    %1758 = vst [vmem:[%s1757] sm:%s3] %v1755
    %s1759 = scalar_lea.vmem %s0, 552
    %s1760 = sshrl.u32 %s3, 1
    %s1761 = sor.u32 %s3, %s1760
    %s1762 = sand.u32 %s1761, 85
    %s1763 = sshrl.u32 %s1762, 1
    %s1764 = sor.u32 %s1762, %s1763
    %s1765 = sand.u32 51, %s1764
    %s1766 = sshrl.u32 %s1765, 2
    %s1767 = sor.u32 %s1765, %s1766
    %s1768 = sand.u32 15, %s1767
    %v1769 = vld [vmem:[%s1759] sm:%s1768]
    %v1770 = vunpack.c.l.bf16 %v1769
    %v1771 = vunpack.c.h.bf16 %v1769
    %s1772 = scalar_lea.vmem [#allocation1], 1104
    %1773 = vst [vmem:[%s1772] sm:%s3] %v1770
    %s1774 = scalar_lea.vmem %s0, 548
    %s1775 = sshrl.u32 %s3, 1
    %s1776 = sor.u32 %s3, %s1775
    %s1777 = sand.u32 %s1776, 85
    %s1778 = sshrl.u32 %s1777, 1
    %s1779 = sor.u32 %s1777, %s1778
    %s1780 = sand.u32 51, %s1779
    %s1781 = sshrl.u32 %s1780, 2
    %s1782 = sor.u32 %s1780, %s1781
    %s1783 = sand.u32 15, %s1782
    %v1784 = vld [vmem:[%s1774] sm:%s1783]
    %v1785 = vunpack.c.l.bf16 %v1784
    %v1786 = vunpack.c.h.bf16 %v1784
    %s1787 = scalar_lea.vmem [#allocation1], 1096
    %1788 = vst [vmem:[%s1787] sm:%s3] %v1785
    %s1789 = scalar_lea.vmem %s0, 544
    %s1790 = sshrl.u32 %s3, 1
    %s1791 = sor.u32 %s3, %s1790
    %s1792 = sand.u32 %s1791, 85
    %s1793 = sshrl.u32 %s1792, 1
    %s1794 = sor.u32 %s1792, %s1793
    %s1795 = sand.u32 51, %s1794
    %s1796 = sshrl.u32 %s1795, 2
    %s1797 = sor.u32 %s1795, %s1796
    %s1798 = sand.u32 15, %s1797
    %v1799 = vld [vmem:[%s1789] sm:%s1798]
    %v1800 = vunpack.c.l.bf16 %v1799
    %v1801 = vunpack.c.h.bf16 %v1799
    %s1802 = scalar_lea.vmem [#allocation1], 1088
    %1803 = vst [vmem:[%s1802] sm:%s3] %v1800
    %s1804 = scalar_lea.vmem %s0, 540
    %s1805 = sshrl.u32 %s3, 1
    %s1806 = sor.u32 %s3, %s1805
    %s1807 = sand.u32 %s1806, 85
    %s1808 = sshrl.u32 %s1807, 1
    %s1809 = sor.u32 %s1807, %s1808
    %s1810 = sand.u32 51, %s1809
    %s1811 = sshrl.u32 %s1810, 2
    %s1812 = sor.u32 %s1810, %s1811
    %s1813 = sand.u32 15, %s1812
    %v1814 = vld [vmem:[%s1804] sm:%s1813]
    %v1815 = vunpack.c.l.bf16 %v1814
    %v1816 = vunpack.c.h.bf16 %v1814
    %s1817 = scalar_lea.vmem [#allocation1], 1080
    %1818 = vst [vmem:[%s1817] sm:%s3] %v1815
    %s1819 = scalar_lea.vmem %s0, 536
    %s1820 = sshrl.u32 %s3, 1
    %s1821 = sor.u32 %s3, %s1820
    %s1822 = sand.u32 %s1821, 85
    %s1823 = sshrl.u32 %s1822, 1
    %s1824 = sor.u32 %s1822, %s1823
    %s1825 = sand.u32 51, %s1824
    %s1826 = sshrl.u32 %s1825, 2
    %s1827 = sor.u32 %s1825, %s1826
    %s1828 = sand.u32 15, %s1827
    %v1829 = vld [vmem:[%s1819] sm:%s1828]
    %v1830 = vunpack.c.l.bf16 %v1829
    %v1831 = vunpack.c.h.bf16 %v1829
    %s1832 = scalar_lea.vmem [#allocation1], 1072
    %1833 = vst [vmem:[%s1832] sm:%s3] %v1830
    %s1834 = scalar_lea.vmem %s0, 532
    %s1835 = sshrl.u32 %s3, 1
    %s1836 = sor.u32 %s3, %s1835
    %s1837 = sand.u32 %s1836, 85
    %s1838 = sshrl.u32 %s1837, 1
    %s1839 = sor.u32 %s1837, %s1838
    %s1840 = sand.u32 51, %s1839
    %s1841 = sshrl.u32 %s1840, 2
    %s1842 = sor.u32 %s1840, %s1841
    %s1843 = sand.u32 15, %s1842
    %v1844 = vld [vmem:[%s1834] sm:%s1843]
    %v1845 = vunpack.c.l.bf16 %v1844
    %v1846 = vunpack.c.h.bf16 %v1844
    %s1847 = scalar_lea.vmem [#allocation1], 1064
    %1848 = vst [vmem:[%s1847] sm:%s3] %v1845
    %s1849 = scalar_lea.vmem %s0, 528
    %s1850 = sshrl.u32 %s3, 1
    %s1851 = sor.u32 %s3, %s1850
    %s1852 = sand.u32 %s1851, 85
    %s1853 = sshrl.u32 %s1852, 1
    %s1854 = sor.u32 %s1852, %s1853
    %s1855 = sand.u32 51, %s1854
    %s1856 = sshrl.u32 %s1855, 2
    %s1857 = sor.u32 %s1855, %s1856
    %s1858 = sand.u32 15, %s1857
    %v1859 = vld [vmem:[%s1849] sm:%s1858]
    %v1860 = vunpack.c.l.bf16 %v1859
    %v1861 = vunpack.c.h.bf16 %v1859
    %s1862 = scalar_lea.vmem [#allocation1], 1056
    %1863 = vst [vmem:[%s1862] sm:%s3] %v1860
    %s1864 = scalar_lea.vmem %s0, 524
    %s1865 = sshrl.u32 %s3, 1
    %s1866 = sor.u32 %s3, %s1865
    %s1867 = sand.u32 %s1866, 85
    %s1868 = sshrl.u32 %s1867, 1
    %s1869 = sor.u32 %s1867, %s1868
    %s1870 = sand.u32 51, %s1869
    %s1871 = sshrl.u32 %s1870, 2
    %s1872 = sor.u32 %s1870, %s1871
    %s1873 = sand.u32 15, %s1872
    %v1874 = vld [vmem:[%s1864] sm:%s1873]
    %v1875 = vunpack.c.l.bf16 %v1874
    %v1876 = vunpack.c.h.bf16 %v1874
    %s1877 = scalar_lea.vmem [#allocation1], 1048
    %1878 = vst [vmem:[%s1877] sm:%s3] %v1875
    %s1879 = scalar_lea.vmem %s0, 520
    %s1880 = sshrl.u32 %s3, 1
    %s1881 = sor.u32 %s3, %s1880
    %s1882 = sand.u32 %s1881, 85
    %s1883 = sshrl.u32 %s1882, 1
    %s1884 = sor.u32 %s1882, %s1883
    %s1885 = sand.u32 51, %s1884
    %s1886 = sshrl.u32 %s1885, 2
    %s1887 = sor.u32 %s1885, %s1886
    %s1888 = sand.u32 15, %s1887
    %v1889 = vld [vmem:[%s1879] sm:%s1888]
    %v1890 = vunpack.c.l.bf16 %v1889
    %v1891 = vunpack.c.h.bf16 %v1889
    %s1892 = scalar_lea.vmem [#allocation1], 1040
    %1893 = vst [vmem:[%s1892] sm:%s3] %v1890
    %s1894 = scalar_lea.vmem %s0, 516
    %s1895 = sshrl.u32 %s3, 1
    %s1896 = sor.u32 %s3, %s1895
    %s1897 = sand.u32 %s1896, 85
    %s1898 = sshrl.u32 %s1897, 1
    %s1899 = sor.u32 %s1897, %s1898
    %s1900 = sand.u32 51, %s1899
    %s1901 = sshrl.u32 %s1900, 2
    %s1902 = sor.u32 %s1900, %s1901
    %s1903 = sand.u32 15, %s1902
    %v1904 = vld [vmem:[%s1894] sm:%s1903]
    %v1905 = vunpack.c.l.bf16 %v1904
    %v1906 = vunpack.c.h.bf16 %v1904
    %s1907 = scalar_lea.vmem [#allocation1], 1032
    %1908 = vst [vmem:[%s1907] sm:%s3] %v1905
    %s1909 = scalar_lea.vmem %s0, 512
    %s1910 = sshrl.u32 %s3, 1
    %s1911 = sor.u32 %s3, %s1910
    %s1912 = sand.u32 %s1911, 85
    %s1913 = sshrl.u32 %s1912, 1
    %s1914 = sor.u32 %s1912, %s1913
    %s1915 = sand.u32 51, %s1914
    %s1916 = sshrl.u32 %s1915, 2
    %s1917 = sor.u32 %s1915, %s1916
    %s1918 = sand.u32 15, %s1917
    %v1919 = vld [vmem:[%s1909] sm:%s1918]
    %v1920 = vunpack.c.l.bf16 %v1919
    %v1921 = vunpack.c.h.bf16 %v1919
    %s1922 = scalar_lea.vmem [#allocation1], 1024
    %1923 = vst [vmem:[%s1922] sm:%s3] %v1920
    %s1924 = scalar_lea.vmem %s0, 508
    %s1925 = sshrl.u32 %s3, 1
    %s1926 = sor.u32 %s3, %s1925
    %s1927 = sand.u32 %s1926, 85
    %s1928 = sshrl.u32 %s1927, 1
    %s1929 = sor.u32 %s1927, %s1928
    %s1930 = sand.u32 51, %s1929
    %s1931 = sshrl.u32 %s1930, 2
    %s1932 = sor.u32 %s1930, %s1931
    %s1933 = sand.u32 15, %s1932
    %v1934 = vld [vmem:[%s1924] sm:%s1933]
    %v1935 = vunpack.c.l.bf16 %v1934
    %v1936 = vunpack.c.h.bf16 %v1934
    %s1937 = scalar_lea.vmem [#allocation1], 1016
    %1938 = vst [vmem:[%s1937] sm:%s3] %v1935
    %s1939 = scalar_lea.vmem %s0, 504
    %s1940 = sshrl.u32 %s3, 1
    %s1941 = sor.u32 %s3, %s1940
    %s1942 = sand.u32 %s1941, 85
    %s1943 = sshrl.u32 %s1942, 1
    %s1944 = sor.u32 %s1942, %s1943
    %s1945 = sand.u32 51, %s1944
    %s1946 = sshrl.u32 %s1945, 2
    %s1947 = sor.u32 %s1945, %s1946
    %s1948 = sand.u32 15, %s1947
    %v1949 = vld [vmem:[%s1939] sm:%s1948]
    %v1950 = vunpack.c.l.bf16 %v1949
    %v1951 = vunpack.c.h.bf16 %v1949
    %s1952 = scalar_lea.vmem [#allocation1], 1008
    %1953 = vst [vmem:[%s1952] sm:%s3] %v1950
    %s1954 = scalar_lea.vmem %s0, 500
    %s1955 = sshrl.u32 %s3, 1
    %s1956 = sor.u32 %s3, %s1955
    %s1957 = sand.u32 %s1956, 85
    %s1958 = sshrl.u32 %s1957, 1
    %s1959 = sor.u32 %s1957, %s1958
    %s1960 = sand.u32 51, %s1959
    %s1961 = sshrl.u32 %s1960, 2
    %s1962 = sor.u32 %s1960, %s1961
    %s1963 = sand.u32 15, %s1962
    %v1964 = vld [vmem:[%s1954] sm:%s1963]
    %v1965 = vunpack.c.l.bf16 %v1964
    %v1966 = vunpack.c.h.bf16 %v1964
    %s1967 = scalar_lea.vmem [#allocation1], 1000
    %1968 = vst [vmem:[%s1967] sm:%s3] %v1965
    %s1969 = scalar_lea.vmem %s0, 496
    %s1970 = sshrl.u32 %s3, 1
    %s1971 = sor.u32 %s3, %s1970
    %s1972 = sand.u32 %s1971, 85
    %s1973 = sshrl.u32 %s1972, 1
    %s1974 = sor.u32 %s1972, %s1973
    %s1975 = sand.u32 51, %s1974
    %s1976 = sshrl.u32 %s1975, 2
    %s1977 = sor.u32 %s1975, %s1976
    %s1978 = sand.u32 15, %s1977
    %v1979 = vld [vmem:[%s1969] sm:%s1978]
    %v1980 = vunpack.c.l.bf16 %v1979
    %v1981 = vunpack.c.h.bf16 %v1979
    %s1982 = scalar_lea.vmem [#allocation1], 992
    %1983 = vst [vmem:[%s1982] sm:%s3] %v1980
    %s1984 = scalar_lea.vmem %s0, 492
    %s1985 = sshrl.u32 %s3, 1
    %s1986 = sor.u32 %s3, %s1985
    %s1987 = sand.u32 %s1986, 85
    %s1988 = sshrl.u32 %s1987, 1
    %s1989 = sor.u32 %s1987, %s1988
    %s1990 = sand.u32 51, %s1989
    %s1991 = sshrl.u32 %s1990, 2
    %s1992 = sor.u32 %s1990, %s1991
    %s1993 = sand.u32 15, %s1992
    %v1994 = vld [vmem:[%s1984] sm:%s1993]
    %v1995 = vunpack.c.l.bf16 %v1994
    %v1996 = vunpack.c.h.bf16 %v1994
    %s1997 = scalar_lea.vmem [#allocation1], 984
    %1998 = vst [vmem:[%s1997] sm:%s3] %v1995
    %s1999 = scalar_lea.vmem %s0, 488
    %s2000 = sshrl.u32 %s3, 1
    %s2001 = sor.u32 %s3, %s2000
    %s2002 = sand.u32 %s2001, 85
    %s2003 = sshrl.u32 %s2002, 1
    %s2004 = sor.u32 %s2002, %s2003
    %s2005 = sand.u32 51, %s2004
    %s2006 = sshrl.u32 %s2005, 2
    %s2007 = sor.u32 %s2005, %s2006
    %s2008 = sand.u32 15, %s2007
    %v2009 = vld [vmem:[%s1999] sm:%s2008]
    %v2010 = vunpack.c.l.bf16 %v2009
    %v2011 = vunpack.c.h.bf16 %v2009
    %s2012 = scalar_lea.vmem [#allocation1], 976
    %2013 = vst [vmem:[%s2012] sm:%s3] %v2010
    %s2014 = scalar_lea.vmem %s0, 484
    %s2015 = sshrl.u32 %s3, 1
    %s2016 = sor.u32 %s3, %s2015
    %s2017 = sand.u32 %s2016, 85
    %s2018 = sshrl.u32 %s2017, 1
    %s2019 = sor.u32 %s2017, %s2018
    %s2020 = sand.u32 51, %s2019
    %s2021 = sshrl.u32 %s2020, 2
    %s2022 = sor.u32 %s2020, %s2021
    %s2023 = sand.u32 15, %s2022
    %v2024 = vld [vmem:[%s2014] sm:%s2023]
    %v2025 = vunpack.c.l.bf16 %v2024
    %v2026 = vunpack.c.h.bf16 %v2024
    %s2027 = scalar_lea.vmem [#allocation1], 968
    %2028 = vst [vmem:[%s2027] sm:%s3] %v2025
    %s2029 = scalar_lea.vmem %s0, 480
    %s2030 = sshrl.u32 %s3, 1
    %s2031 = sor.u32 %s3, %s2030
    %s2032 = sand.u32 %s2031, 85
    %s2033 = sshrl.u32 %s2032, 1
    %s2034 = sor.u32 %s2032, %s2033
    %s2035 = sand.u32 51, %s2034
    %s2036 = sshrl.u32 %s2035, 2
    %s2037 = sor.u32 %s2035, %s2036
    %s2038 = sand.u32 15, %s2037
    %v2039 = vld [vmem:[%s2029] sm:%s2038]
    %v2040 = vunpack.c.l.bf16 %v2039
    %v2041 = vunpack.c.h.bf16 %v2039
    %s2042 = scalar_lea.vmem [#allocation1], 960
    %2043 = vst [vmem:[%s2042] sm:%s3] %v2040
    %s2044 = scalar_lea.vmem %s0, 476
    %s2045 = sshrl.u32 %s3, 1
    %s2046 = sor.u32 %s3, %s2045
    %s2047 = sand.u32 %s2046, 85
    %s2048 = sshrl.u32 %s2047, 1
    %s2049 = sor.u32 %s2047, %s2048
    %s2050 = sand.u32 51, %s2049
    %s2051 = sshrl.u32 %s2050, 2
    %s2052 = sor.u32 %s2050, %s2051
    %s2053 = sand.u32 15, %s2052
    %v2054 = vld [vmem:[%s2044] sm:%s2053]
    %v2055 = vunpack.c.l.bf16 %v2054
    %v2056 = vunpack.c.h.bf16 %v2054
    %s2057 = scalar_lea.vmem [#allocation1], 952
    %2058 = vst [vmem:[%s2057] sm:%s3] %v2055
    %s2059 = scalar_lea.vmem %s0, 472
    %s2060 = sshrl.u32 %s3, 1
    %s2061 = sor.u32 %s3, %s2060
    %s2062 = sand.u32 %s2061, 85
    %s2063 = sshrl.u32 %s2062, 1
    %s2064 = sor.u32 %s2062, %s2063
    %s2065 = sand.u32 51, %s2064
    %s2066 = sshrl.u32 %s2065, 2
    %s2067 = sor.u32 %s2065, %s2066
    %s2068 = sand.u32 15, %s2067
    %v2069 = vld [vmem:[%s2059] sm:%s2068]
    %v2070 = vunpack.c.l.bf16 %v2069
    %v2071 = vunpack.c.h.bf16 %v2069
    %s2072 = scalar_lea.vmem [#allocation1], 944
    %2073 = vst [vmem:[%s2072] sm:%s3] %v2070
    %s2074 = scalar_lea.vmem %s0, 468
    %s2075 = sshrl.u32 %s3, 1
    %s2076 = sor.u32 %s3, %s2075
    %s2077 = sand.u32 %s2076, 85
    %s2078 = sshrl.u32 %s2077, 1
    %s2079 = sor.u32 %s2077, %s2078
    %s2080 = sand.u32 51, %s2079
    %s2081 = sshrl.u32 %s2080, 2
    %s2082 = sor.u32 %s2080, %s2081
    %s2083 = sand.u32 15, %s2082
    %v2084 = vld [vmem:[%s2074] sm:%s2083]
    %v2085 = vunpack.c.l.bf16 %v2084
    %v2086 = vunpack.c.h.bf16 %v2084
    %s2087 = scalar_lea.vmem [#allocation1], 936
    %2088 = vst [vmem:[%s2087] sm:%s3] %v2085
    %s2089 = scalar_lea.vmem %s0, 464
    %s2090 = sshrl.u32 %s3, 1
    %s2091 = sor.u32 %s3, %s2090
    %s2092 = sand.u32 %s2091, 85
    %s2093 = sshrl.u32 %s2092, 1
    %s2094 = sor.u32 %s2092, %s2093
    %s2095 = sand.u32 51, %s2094
    %s2096 = sshrl.u32 %s2095, 2
    %s2097 = sor.u32 %s2095, %s2096
    %s2098 = sand.u32 15, %s2097
    %v2099 = vld [vmem:[%s2089] sm:%s2098]
    %v2100 = vunpack.c.l.bf16 %v2099
    %v2101 = vunpack.c.h.bf16 %v2099
    %s2102 = scalar_lea.vmem [#allocation1], 928
    %2103 = vst [vmem:[%s2102] sm:%s3] %v2100
    %s2104 = scalar_lea.vmem %s0, 460
    %s2105 = sshrl.u32 %s3, 1
    %s2106 = sor.u32 %s3, %s2105
    %s2107 = sand.u32 %s2106, 85
    %s2108 = sshrl.u32 %s2107, 1
    %s2109 = sor.u32 %s2107, %s2108
    %s2110 = sand.u32 51, %s2109
    %s2111 = sshrl.u32 %s2110, 2
    %s2112 = sor.u32 %s2110, %s2111
    %s2113 = sand.u32 15, %s2112
    %v2114 = vld [vmem:[%s2104] sm:%s2113]
    %v2115 = vunpack.c.l.bf16 %v2114
    %v2116 = vunpack.c.h.bf16 %v2114
    %s2117 = scalar_lea.vmem [#allocation1], 920
    %2118 = vst [vmem:[%s2117] sm:%s3] %v2115
    %s2119 = scalar_lea.vmem %s0, 456
    %s2120 = sshrl.u32 %s3, 1
    %s2121 = sor.u32 %s3, %s2120
    %s2122 = sand.u32 %s2121, 85
    %s2123 = sshrl.u32 %s2122, 1
    %s2124 = sor.u32 %s2122, %s2123
    %s2125 = sand.u32 51, %s2124
    %s2126 = sshrl.u32 %s2125, 2
    %s2127 = sor.u32 %s2125, %s2126
    %s2128 = sand.u32 15, %s2127
    %v2129 = vld [vmem:[%s2119] sm:%s2128]
    %v2130 = vunpack.c.l.bf16 %v2129
    %v2131 = vunpack.c.h.bf16 %v2129
    %s2132 = scalar_lea.vmem [#allocation1], 912
    %2133 = vst [vmem:[%s2132] sm:%s3] %v2130
    %s2134 = scalar_lea.vmem %s0, 452
    %s2135 = sshrl.u32 %s3, 1
    %s2136 = sor.u32 %s3, %s2135
    %s2137 = sand.u32 %s2136, 85
    %s2138 = sshrl.u32 %s2137, 1
    %s2139 = sor.u32 %s2137, %s2138
    %s2140 = sand.u32 51, %s2139
    %s2141 = sshrl.u32 %s2140, 2
    %s2142 = sor.u32 %s2140, %s2141
    %s2143 = sand.u32 15, %s2142
    %v2144 = vld [vmem:[%s2134] sm:%s2143]
    %v2145 = vunpack.c.l.bf16 %v2144
    %v2146 = vunpack.c.h.bf16 %v2144
    %s2147 = scalar_lea.vmem [#allocation1], 904
    %2148 = vst [vmem:[%s2147] sm:%s3] %v2145
    %s2149 = scalar_lea.vmem %s0, 448
    %s2150 = sshrl.u32 %s3, 1
    %s2151 = sor.u32 %s3, %s2150
    %s2152 = sand.u32 %s2151, 85
    %s2153 = sshrl.u32 %s2152, 1
    %s2154 = sor.u32 %s2152, %s2153
    %s2155 = sand.u32 51, %s2154
    %s2156 = sshrl.u32 %s2155, 2
    %s2157 = sor.u32 %s2155, %s2156
    %s2158 = sand.u32 15, %s2157
    %v2159 = vld [vmem:[%s2149] sm:%s2158]
    %v2160 = vunpack.c.l.bf16 %v2159
    %v2161 = vunpack.c.h.bf16 %v2159
    %s2162 = scalar_lea.vmem [#allocation1], 896
    %2163 = vst [vmem:[%s2162] sm:%s3] %v2160
    %s2164 = scalar_lea.vmem %s0, 444
    %s2165 = sshrl.u32 %s3, 1
    %s2166 = sor.u32 %s3, %s2165
    %s2167 = sand.u32 %s2166, 85
    %s2168 = sshrl.u32 %s2167, 1
    %s2169 = sor.u32 %s2167, %s2168
    %s2170 = sand.u32 51, %s2169
    %s2171 = sshrl.u32 %s2170, 2
    %s2172 = sor.u32 %s2170, %s2171
    %s2173 = sand.u32 15, %s2172
    %v2174 = vld [vmem:[%s2164] sm:%s2173]
    %v2175 = vunpack.c.l.bf16 %v2174
    %v2176 = vunpack.c.h.bf16 %v2174
    %s2177 = scalar_lea.vmem [#allocation1], 888
    %2178 = vst [vmem:[%s2177] sm:%s3] %v2175
    %s2179 = scalar_lea.vmem %s0, 440
    %s2180 = sshrl.u32 %s3, 1
    %s2181 = sor.u32 %s3, %s2180
    %s2182 = sand.u32 %s2181, 85
    %s2183 = sshrl.u32 %s2182, 1
    %s2184 = sor.u32 %s2182, %s2183
    %s2185 = sand.u32 51, %s2184
    %s2186 = sshrl.u32 %s2185, 2
    %s2187 = sor.u32 %s2185, %s2186
    %s2188 = sand.u32 15, %s2187
    %v2189 = vld [vmem:[%s2179] sm:%s2188]
    %v2190 = vunpack.c.l.bf16 %v2189
    %v2191 = vunpack.c.h.bf16 %v2189
    %s2192 = scalar_lea.vmem [#allocation1], 880
    %2193 = vst [vmem:[%s2192] sm:%s3] %v2190
    %s2194 = scalar_lea.vmem %s0, 436
    %s2195 = sshrl.u32 %s3, 1
    %s2196 = sor.u32 %s3, %s2195
    %s2197 = sand.u32 %s2196, 85
    %s2198 = sshrl.u32 %s2197, 1
    %s2199 = sor.u32 %s2197, %s2198
    %s2200 = sand.u32 51, %s2199
    %s2201 = sshrl.u32 %s2200, 2
    %s2202 = sor.u32 %s2200, %s2201
    %s2203 = sand.u32 15, %s2202
    %v2204 = vld [vmem:[%s2194] sm:%s2203]
    %v2205 = vunpack.c.l.bf16 %v2204
    %v2206 = vunpack.c.h.bf16 %v2204
    %s2207 = scalar_lea.vmem [#allocation1], 872
    %2208 = vst [vmem:[%s2207] sm:%s3] %v2205
    %s2209 = scalar_lea.vmem %s0, 432
    %s2210 = sshrl.u32 %s3, 1
    %s2211 = sor.u32 %s3, %s2210
    %s2212 = sand.u32 %s2211, 85
    %s2213 = sshrl.u32 %s2212, 1
    %s2214 = sor.u32 %s2212, %s2213
    %s2215 = sand.u32 51, %s2214
    %s2216 = sshrl.u32 %s2215, 2
    %s2217 = sor.u32 %s2215, %s2216
    %s2218 = sand.u32 15, %s2217
    %v2219 = vld [vmem:[%s2209] sm:%s2218]
    %v2220 = vunpack.c.l.bf16 %v2219
    %v2221 = vunpack.c.h.bf16 %v2219
    %s2222 = scalar_lea.vmem [#allocation1], 864
    %2223 = vst [vmem:[%s2222] sm:%s3] %v2220
    %s2224 = scalar_lea.vmem %s0, 428
    %s2225 = sshrl.u32 %s3, 1
    %s2226 = sor.u32 %s3, %s2225
    %s2227 = sand.u32 %s2226, 85
    %s2228 = sshrl.u32 %s2227, 1
    %s2229 = sor.u32 %s2227, %s2228
    %s2230 = sand.u32 51, %s2229
    %s2231 = sshrl.u32 %s2230, 2
    %s2232 = sor.u32 %s2230, %s2231
    %s2233 = sand.u32 15, %s2232
    %v2234 = vld [vmem:[%s2224] sm:%s2233]
    %v2235 = vunpack.c.l.bf16 %v2234
    %v2236 = vunpack.c.h.bf16 %v2234
    %s2237 = scalar_lea.vmem [#allocation1], 856
    %2238 = vst [vmem:[%s2237] sm:%s3] %v2235
    %s2239 = scalar_lea.vmem %s0, 424
    %s2240 = sshrl.u32 %s3, 1
    %s2241 = sor.u32 %s3, %s2240
    %s2242 = sand.u32 %s2241, 85
    %s2243 = sshrl.u32 %s2242, 1
    %s2244 = sor.u32 %s2242, %s2243
    %s2245 = sand.u32 51, %s2244
    %s2246 = sshrl.u32 %s2245, 2
    %s2247 = sor.u32 %s2245, %s2246
    %s2248 = sand.u32 15, %s2247
    %v2249 = vld [vmem:[%s2239] sm:%s2248]
    %v2250 = vunpack.c.l.bf16 %v2249
    %v2251 = vunpack.c.h.bf16 %v2249
    %s2252 = scalar_lea.vmem [#allocation1], 848
    %2253 = vst [vmem:[%s2252] sm:%s3] %v2250
    %s2254 = scalar_lea.vmem %s0, 420
    %s2255 = sshrl.u32 %s3, 1
    %s2256 = sor.u32 %s3, %s2255
    %s2257 = sand.u32 %s2256, 85
    %s2258 = sshrl.u32 %s2257, 1
    %s2259 = sor.u32 %s2257, %s2258
    %s2260 = sand.u32 51, %s2259
    %s2261 = sshrl.u32 %s2260, 2
    %s2262 = sor.u32 %s2260, %s2261
    %s2263 = sand.u32 15, %s2262
    %v2264 = vld [vmem:[%s2254] sm:%s2263]
    %v2265 = vunpack.c.l.bf16 %v2264
    %v2266 = vunpack.c.h.bf16 %v2264
    %s2267 = scalar_lea.vmem [#allocation1], 840
    %2268 = vst [vmem:[%s2267] sm:%s3] %v2265
    %s2269 = scalar_lea.vmem %s0, 416
    %s2270 = sshrl.u32 %s3, 1
    %s2271 = sor.u32 %s3, %s2270
    %s2272 = sand.u32 %s2271, 85
    %s2273 = sshrl.u32 %s2272, 1
    %s2274 = sor.u32 %s2272, %s2273
    %s2275 = sand.u32 51, %s2274
    %s2276 = sshrl.u32 %s2275, 2
    %s2277 = sor.u32 %s2275, %s2276
    %s2278 = sand.u32 15, %s2277
    %v2279 = vld [vmem:[%s2269] sm:%s2278]
    %v2280 = vunpack.c.l.bf16 %v2279
    %v2281 = vunpack.c.h.bf16 %v2279
    %s2282 = scalar_lea.vmem [#allocation1], 832
    %2283 = vst [vmem:[%s2282] sm:%s3] %v2280
    %s2284 = scalar_lea.vmem %s0, 412
    %s2285 = sshrl.u32 %s3, 1
    %s2286 = sor.u32 %s3, %s2285
    %s2287 = sand.u32 %s2286, 85
    %s2288 = sshrl.u32 %s2287, 1
    %s2289 = sor.u32 %s2287, %s2288
    %s2290 = sand.u32 51, %s2289
    %s2291 = sshrl.u32 %s2290, 2
    %s2292 = sor.u32 %s2290, %s2291
    %s2293 = sand.u32 15, %s2292
    %v2294 = vld [vmem:[%s2284] sm:%s2293]
    %v2295 = vunpack.c.l.bf16 %v2294
    %v2296 = vunpack.c.h.bf16 %v2294
    %s2297 = scalar_lea.vmem [#allocation1], 824
    %2298 = vst [vmem:[%s2297] sm:%s3] %v2295
    %s2299 = scalar_lea.vmem %s0, 408
    %s2300 = sshrl.u32 %s3, 1
    %s2301 = sor.u32 %s3, %s2300
    %s2302 = sand.u32 %s2301, 85
    %s2303 = sshrl.u32 %s2302, 1
    %s2304 = sor.u32 %s2302, %s2303
    %s2305 = sand.u32 51, %s2304
    %s2306 = sshrl.u32 %s2305, 2
    %s2307 = sor.u32 %s2305, %s2306
    %s2308 = sand.u32 15, %s2307
    %v2309 = vld [vmem:[%s2299] sm:%s2308]
    %v2310 = vunpack.c.l.bf16 %v2309
    %v2311 = vunpack.c.h.bf16 %v2309
    %s2312 = scalar_lea.vmem [#allocation1], 816
    %2313 = vst [vmem:[%s2312] sm:%s3] %v2310
    %s2314 = scalar_lea.vmem %s0, 404
    %s2315 = sshrl.u32 %s3, 1
    %s2316 = sor.u32 %s3, %s2315
    %s2317 = sand.u32 %s2316, 85
    %s2318 = sshrl.u32 %s2317, 1
    %s2319 = sor.u32 %s2317, %s2318
    %s2320 = sand.u32 51, %s2319
    %s2321 = sshrl.u32 %s2320, 2
    %s2322 = sor.u32 %s2320, %s2321
    %s2323 = sand.u32 15, %s2322
    %v2324 = vld [vmem:[%s2314] sm:%s2323]
    %v2325 = vunpack.c.l.bf16 %v2324
    %v2326 = vunpack.c.h.bf16 %v2324
    %s2327 = scalar_lea.vmem [#allocation1], 808
    %2328 = vst [vmem:[%s2327] sm:%s3] %v2325
    %s2329 = scalar_lea.vmem %s0, 400
    %s2330 = sshrl.u32 %s3, 1
    %s2331 = sor.u32 %s3, %s2330
    %s2332 = sand.u32 %s2331, 85
    %s2333 = sshrl.u32 %s2332, 1
    %s2334 = sor.u32 %s2332, %s2333
    %s2335 = sand.u32 51, %s2334
    %s2336 = sshrl.u32 %s2335, 2
    %s2337 = sor.u32 %s2335, %s2336
    %s2338 = sand.u32 15, %s2337
    %v2339 = vld [vmem:[%s2329] sm:%s2338]
    %v2340 = vunpack.c.l.bf16 %v2339
    %v2341 = vunpack.c.h.bf16 %v2339
    %s2342 = scalar_lea.vmem [#allocation1], 800
    %2343 = vst [vmem:[%s2342] sm:%s3] %v2340
    %s2344 = scalar_lea.vmem %s0, 396
    %s2345 = sshrl.u32 %s3, 1
    %s2346 = sor.u32 %s3, %s2345
    %s2347 = sand.u32 %s2346, 85
    %s2348 = sshrl.u32 %s2347, 1
    %s2349 = sor.u32 %s2347, %s2348
    %s2350 = sand.u32 51, %s2349
    %s2351 = sshrl.u32 %s2350, 2
    %s2352 = sor.u32 %s2350, %s2351
    %s2353 = sand.u32 15, %s2352
    %v2354 = vld [vmem:[%s2344] sm:%s2353]
    %v2355 = vunpack.c.l.bf16 %v2354
    %v2356 = vunpack.c.h.bf16 %v2354
    %s2357 = scalar_lea.vmem [#allocation1], 792
    %2358 = vst [vmem:[%s2357] sm:%s3] %v2355
    %s2359 = scalar_lea.vmem %s0, 392
    %s2360 = sshrl.u32 %s3, 1
    %s2361 = sor.u32 %s3, %s2360
    %s2362 = sand.u32 %s2361, 85
    %s2363 = sshrl.u32 %s2362, 1
    %s2364 = sor.u32 %s2362, %s2363
    %s2365 = sand.u32 51, %s2364
    %s2366 = sshrl.u32 %s2365, 2
    %s2367 = sor.u32 %s2365, %s2366
    %s2368 = sand.u32 15, %s2367
    %v2369 = vld [vmem:[%s2359] sm:%s2368]
    %v2370 = vunpack.c.l.bf16 %v2369
    %v2371 = vunpack.c.h.bf16 %v2369
    %s2372 = scalar_lea.vmem [#allocation1], 784
    %2373 = vst [vmem:[%s2372] sm:%s3] %v2370
    %s2374 = scalar_lea.vmem %s0, 388
    %s2375 = sshrl.u32 %s3, 1
    %s2376 = sor.u32 %s3, %s2375
    %s2377 = sand.u32 %s2376, 85
    %s2378 = sshrl.u32 %s2377, 1
    %s2379 = sor.u32 %s2377, %s2378
    %s2380 = sand.u32 51, %s2379
    %s2381 = sshrl.u32 %s2380, 2
    %s2382 = sor.u32 %s2380, %s2381
    %s2383 = sand.u32 15, %s2382
    %v2384 = vld [vmem:[%s2374] sm:%s2383]
    %v2385 = vunpack.c.l.bf16 %v2384
    %v2386 = vunpack.c.h.bf16 %v2384
    %s2387 = scalar_lea.vmem [#allocation1], 776
    %2388 = vst [vmem:[%s2387] sm:%s3] %v2385
    %s2389 = scalar_lea.vmem %s0, 384
    %s2390 = sshrl.u32 %s3, 1
    %s2391 = sor.u32 %s3, %s2390
    %s2392 = sand.u32 %s2391, 85
    %s2393 = sshrl.u32 %s2392, 1
    %s2394 = sor.u32 %s2392, %s2393
    %s2395 = sand.u32 51, %s2394
    %s2396 = sshrl.u32 %s2395, 2
    %s2397 = sor.u32 %s2395, %s2396
    %s2398 = sand.u32 15, %s2397
    %v2399 = vld [vmem:[%s2389] sm:%s2398]
    %v2400 = vunpack.c.l.bf16 %v2399
    %v2401 = vunpack.c.h.bf16 %v2399
    %s2402 = scalar_lea.vmem [#allocation1], 768
    %2403 = vst [vmem:[%s2402] sm:%s3] %v2400
    %s2404 = scalar_lea.vmem %s0, 380
    %s2405 = sshrl.u32 %s3, 1
    %s2406 = sor.u32 %s3, %s2405
    %s2407 = sand.u32 %s2406, 85
    %s2408 = sshrl.u32 %s2407, 1
    %s2409 = sor.u32 %s2407, %s2408
    %s2410 = sand.u32 51, %s2409
    %s2411 = sshrl.u32 %s2410, 2
    %s2412 = sor.u32 %s2410, %s2411
    %s2413 = sand.u32 15, %s2412
    %v2414 = vld [vmem:[%s2404] sm:%s2413]
    %v2415 = vunpack.c.l.bf16 %v2414
    %v2416 = vunpack.c.h.bf16 %v2414
    %s2417 = scalar_lea.vmem [#allocation1], 760
    %2418 = vst [vmem:[%s2417] sm:%s3] %v2415
    %s2419 = scalar_lea.vmem %s0, 376
    %s2420 = sshrl.u32 %s3, 1
    %s2421 = sor.u32 %s3, %s2420
    %s2422 = sand.u32 %s2421, 85
    %s2423 = sshrl.u32 %s2422, 1
    %s2424 = sor.u32 %s2422, %s2423
    %s2425 = sand.u32 51, %s2424
    %s2426 = sshrl.u32 %s2425, 2
    %s2427 = sor.u32 %s2425, %s2426
    %s2428 = sand.u32 15, %s2427
    %v2429 = vld [vmem:[%s2419] sm:%s2428]
    %v2430 = vunpack.c.l.bf16 %v2429
    %v2431 = vunpack.c.h.bf16 %v2429
    %s2432 = scalar_lea.vmem [#allocation1], 752
    %2433 = vst [vmem:[%s2432] sm:%s3] %v2430
    %s2434 = scalar_lea.vmem %s0, 372
    %s2435 = sshrl.u32 %s3, 1
    %s2436 = sor.u32 %s3, %s2435
    %s2437 = sand.u32 %s2436, 85
    %s2438 = sshrl.u32 %s2437, 1
    %s2439 = sor.u32 %s2437, %s2438
    %s2440 = sand.u32 51, %s2439
    %s2441 = sshrl.u32 %s2440, 2
    %s2442 = sor.u32 %s2440, %s2441
    %s2443 = sand.u32 15, %s2442
    %v2444 = vld [vmem:[%s2434] sm:%s2443]
    %v2445 = vunpack.c.l.bf16 %v2444
    %v2446 = vunpack.c.h.bf16 %v2444
    %s2447 = scalar_lea.vmem [#allocation1], 744
    %2448 = vst [vmem:[%s2447] sm:%s3] %v2445
    %s2449 = scalar_lea.vmem %s0, 368
    %s2450 = sshrl.u32 %s3, 1
    %s2451 = sor.u32 %s3, %s2450
    %s2452 = sand.u32 %s2451, 85
    %s2453 = sshrl.u32 %s2452, 1
    %s2454 = sor.u32 %s2452, %s2453
    %s2455 = sand.u32 51, %s2454
    %s2456 = sshrl.u32 %s2455, 2
    %s2457 = sor.u32 %s2455, %s2456
    %s2458 = sand.u32 15, %s2457
    %v2459 = vld [vmem:[%s2449] sm:%s2458]
    %v2460 = vunpack.c.l.bf16 %v2459
    %v2461 = vunpack.c.h.bf16 %v2459
    %s2462 = scalar_lea.vmem [#allocation1], 736
    %2463 = vst [vmem:[%s2462] sm:%s3] %v2460
    %s2464 = scalar_lea.vmem %s0, 364
    %s2465 = sshrl.u32 %s3, 1
    %s2466 = sor.u32 %s3, %s2465
    %s2467 = sand.u32 %s2466, 85
    %s2468 = sshrl.u32 %s2467, 1
    %s2469 = sor.u32 %s2467, %s2468
    %s2470 = sand.u32 51, %s2469
    %s2471 = sshrl.u32 %s2470, 2
    %s2472 = sor.u32 %s2470, %s2471
    %s2473 = sand.u32 15, %s2472
    %v2474 = vld [vmem:[%s2464] sm:%s2473]
    %v2475 = vunpack.c.l.bf16 %v2474
    %v2476 = vunpack.c.h.bf16 %v2474
    %s2477 = scalar_lea.vmem [#allocation1], 728
    %2478 = vst [vmem:[%s2477] sm:%s3] %v2475
    %s2479 = scalar_lea.vmem %s0, 360
    %s2480 = sshrl.u32 %s3, 1
    %s2481 = sor.u32 %s3, %s2480
    %s2482 = sand.u32 %s2481, 85
    %s2483 = sshrl.u32 %s2482, 1
    %s2484 = sor.u32 %s2482, %s2483
    %s2485 = sand.u32 51, %s2484
    %s2486 = sshrl.u32 %s2485, 2
    %s2487 = sor.u32 %s2485, %s2486
    %s2488 = sand.u32 15, %s2487
    %v2489 = vld [vmem:[%s2479] sm:%s2488]
    %v2490 = vunpack.c.l.bf16 %v2489
    %v2491 = vunpack.c.h.bf16 %v2489
    %s2492 = scalar_lea.vmem [#allocation1], 720
    %2493 = vst [vmem:[%s2492] sm:%s3] %v2490
    %s2494 = scalar_lea.vmem %s0, 356
    %s2495 = sshrl.u32 %s3, 1
    %s2496 = sor.u32 %s3, %s2495
    %s2497 = sand.u32 %s2496, 85
    %s2498 = sshrl.u32 %s2497, 1
    %s2499 = sor.u32 %s2497, %s2498
    %s2500 = sand.u32 51, %s2499
    %s2501 = sshrl.u32 %s2500, 2
    %s2502 = sor.u32 %s2500, %s2501
    %s2503 = sand.u32 15, %s2502
    %v2504 = vld [vmem:[%s2494] sm:%s2503]
    %v2505 = vunpack.c.l.bf16 %v2504
    %v2506 = vunpack.c.h.bf16 %v2504
    %s2507 = scalar_lea.vmem [#allocation1], 712
    %2508 = vst [vmem:[%s2507] sm:%s3] %v2505
    %s2509 = scalar_lea.vmem %s0, 352
    %s2510 = sshrl.u32 %s3, 1
    %s2511 = sor.u32 %s3, %s2510
    %s2512 = sand.u32 %s2511, 85
    %s2513 = sshrl.u32 %s2512, 1
    %s2514 = sor.u32 %s2512, %s2513
    %s2515 = sand.u32 51, %s2514
    %s2516 = sshrl.u32 %s2515, 2
    %s2517 = sor.u32 %s2515, %s2516
    %s2518 = sand.u32 15, %s2517
    %v2519 = vld [vmem:[%s2509] sm:%s2518]
    %v2520 = vunpack.c.l.bf16 %v2519
    %v2521 = vunpack.c.h.bf16 %v2519
    %s2522 = scalar_lea.vmem [#allocation1], 704
    %2523 = vst [vmem:[%s2522] sm:%s3] %v2520
    %s2524 = scalar_lea.vmem %s0, 348
    %s2525 = sshrl.u32 %s3, 1
    %s2526 = sor.u32 %s3, %s2525
    %s2527 = sand.u32 %s2526, 85
    %s2528 = sshrl.u32 %s2527, 1
    %s2529 = sor.u32 %s2527, %s2528
    %s2530 = sand.u32 51, %s2529
    %s2531 = sshrl.u32 %s2530, 2
    %s2532 = sor.u32 %s2530, %s2531
    %s2533 = sand.u32 15, %s2532
    %v2534 = vld [vmem:[%s2524] sm:%s2533]
    %v2535 = vunpack.c.l.bf16 %v2534
    %v2536 = vunpack.c.h.bf16 %v2534
    %s2537 = scalar_lea.vmem [#allocation1], 696
    %2538 = vst [vmem:[%s2537] sm:%s3] %v2535
    %s2539 = scalar_lea.vmem %s0, 344
    %s2540 = sshrl.u32 %s3, 1
    %s2541 = sor.u32 %s3, %s2540
    %s2542 = sand.u32 %s2541, 85
    %s2543 = sshrl.u32 %s2542, 1
    %s2544 = sor.u32 %s2542, %s2543
    %s2545 = sand.u32 51, %s2544
    %s2546 = sshrl.u32 %s2545, 2
    %s2547 = sor.u32 %s2545, %s2546
    %s2548 = sand.u32 15, %s2547
    %v2549 = vld [vmem:[%s2539] sm:%s2548]
    %v2550 = vunpack.c.l.bf16 %v2549
    %v2551 = vunpack.c.h.bf16 %v2549
    %s2552 = scalar_lea.vmem [#allocation1], 688
    %2553 = vst [vmem:[%s2552] sm:%s3] %v2550
    %s2554 = scalar_lea.vmem %s0, 340
    %s2555 = sshrl.u32 %s3, 1
    %s2556 = sor.u32 %s3, %s2555
    %s2557 = sand.u32 %s2556, 85
    %s2558 = sshrl.u32 %s2557, 1
    %s2559 = sor.u32 %s2557, %s2558
    %s2560 = sand.u32 51, %s2559
    %s2561 = sshrl.u32 %s2560, 2
    %s2562 = sor.u32 %s2560, %s2561
    %s2563 = sand.u32 15, %s2562
    %v2564 = vld [vmem:[%s2554] sm:%s2563]
    %v2565 = vunpack.c.l.bf16 %v2564
    %v2566 = vunpack.c.h.bf16 %v2564
    %s2567 = scalar_lea.vmem [#allocation1], 680
    %2568 = vst [vmem:[%s2567] sm:%s3] %v2565
    %s2569 = scalar_lea.vmem %s0, 336
    %s2570 = sshrl.u32 %s3, 1
    %s2571 = sor.u32 %s3, %s2570
    %s2572 = sand.u32 %s2571, 85
    %s2573 = sshrl.u32 %s2572, 1
    %s2574 = sor.u32 %s2572, %s2573
    %s2575 = sand.u32 51, %s2574
    %s2576 = sshrl.u32 %s2575, 2
    %s2577 = sor.u32 %s2575, %s2576
    %s2578 = sand.u32 15, %s2577
    %v2579 = vld [vmem:[%s2569] sm:%s2578]
    %v2580 = vunpack.c.l.bf16 %v2579
    %v2581 = vunpack.c.h.bf16 %v2579
    %s2582 = scalar_lea.vmem [#allocation1], 672
    %2583 = vst [vmem:[%s2582] sm:%s3] %v2580
    %s2584 = scalar_lea.vmem %s0, 332
    %s2585 = sshrl.u32 %s3, 1
    %s2586 = sor.u32 %s3, %s2585
    %s2587 = sand.u32 %s2586, 85
    %s2588 = sshrl.u32 %s2587, 1
    %s2589 = sor.u32 %s2587, %s2588
    %s2590 = sand.u32 51, %s2589
    %s2591 = sshrl.u32 %s2590, 2
    %s2592 = sor.u32 %s2590, %s2591
    %s2593 = sand.u32 15, %s2592
    %v2594 = vld [vmem:[%s2584] sm:%s2593]
    %v2595 = vunpack.c.l.bf16 %v2594
    %v2596 = vunpack.c.h.bf16 %v2594
    %s2597 = scalar_lea.vmem [#allocation1], 664
    %2598 = vst [vmem:[%s2597] sm:%s3] %v2595
    %s2599 = scalar_lea.vmem %s0, 328
    %s2600 = sshrl.u32 %s3, 1
    %s2601 = sor.u32 %s3, %s2600
    %s2602 = sand.u32 %s2601, 85
    %s2603 = sshrl.u32 %s2602, 1
    %s2604 = sor.u32 %s2602, %s2603
    %s2605 = sand.u32 51, %s2604
    %s2606 = sshrl.u32 %s2605, 2
    %s2607 = sor.u32 %s2605, %s2606
    %s2608 = sand.u32 15, %s2607
    %v2609 = vld [vmem:[%s2599] sm:%s2608]
    %v2610 = vunpack.c.l.bf16 %v2609
    %v2611 = vunpack.c.h.bf16 %v2609
    %s2612 = scalar_lea.vmem [#allocation1], 656
    %2613 = vst [vmem:[%s2612] sm:%s3] %v2610
    %s2614 = scalar_lea.vmem %s0, 324
    %s2615 = sshrl.u32 %s3, 1
    %s2616 = sor.u32 %s3, %s2615
    %s2617 = sand.u32 %s2616, 85
    %s2618 = sshrl.u32 %s2617, 1
    %s2619 = sor.u32 %s2617, %s2618
    %s2620 = sand.u32 51, %s2619
    %s2621 = sshrl.u32 %s2620, 2
    %s2622 = sor.u32 %s2620, %s2621
    %s2623 = sand.u32 15, %s2622
    %v2624 = vld [vmem:[%s2614] sm:%s2623]
    %v2625 = vunpack.c.l.bf16 %v2624
    %v2626 = vunpack.c.h.bf16 %v2624
    %s2627 = scalar_lea.vmem [#allocation1], 648
    %2628 = vst [vmem:[%s2627] sm:%s3] %v2625
    %s2629 = scalar_lea.vmem %s0, 320
    %s2630 = sshrl.u32 %s3, 1
    %s2631 = sor.u32 %s3, %s2630
    %s2632 = sand.u32 %s2631, 85
    %s2633 = sshrl.u32 %s2632, 1
    %s2634 = sor.u32 %s2632, %s2633
    %s2635 = sand.u32 51, %s2634
    %s2636 = sshrl.u32 %s2635, 2
    %s2637 = sor.u32 %s2635, %s2636
    %s2638 = sand.u32 15, %s2637
    %v2639 = vld [vmem:[%s2629] sm:%s2638]
    %v2640 = vunpack.c.l.bf16 %v2639
    %v2641 = vunpack.c.h.bf16 %v2639
    %s2642 = scalar_lea.vmem [#allocation1], 640
    %2643 = vst [vmem:[%s2642] sm:%s3] %v2640
    %s2644 = scalar_lea.vmem %s0, 316
    %s2645 = sshrl.u32 %s3, 1
    %s2646 = sor.u32 %s3, %s2645
    %s2647 = sand.u32 %s2646, 85
    %s2648 = sshrl.u32 %s2647, 1
    %s2649 = sor.u32 %s2647, %s2648
    %s2650 = sand.u32 51, %s2649
    %s2651 = sshrl.u32 %s2650, 2
    %s2652 = sor.u32 %s2650, %s2651
    %s2653 = sand.u32 15, %s2652
    %v2654 = vld [vmem:[%s2644] sm:%s2653]
    %v2655 = vunpack.c.l.bf16 %v2654
    %v2656 = vunpack.c.h.bf16 %v2654
    %s2657 = scalar_lea.vmem [#allocation1], 632
    %2658 = vst [vmem:[%s2657] sm:%s3] %v2655
    %s2659 = scalar_lea.vmem %s0, 312
    %s2660 = sshrl.u32 %s3, 1
    %s2661 = sor.u32 %s3, %s2660
    %s2662 = sand.u32 %s2661, 85
    %s2663 = sshrl.u32 %s2662, 1
    %s2664 = sor.u32 %s2662, %s2663
    %s2665 = sand.u32 51, %s2664
    %s2666 = sshrl.u32 %s2665, 2
    %s2667 = sor.u32 %s2665, %s2666
    %s2668 = sand.u32 15, %s2667
    %v2669 = vld [vmem:[%s2659] sm:%s2668]
    %v2670 = vunpack.c.l.bf16 %v2669
    %v2671 = vunpack.c.h.bf16 %v2669
    %s2672 = scalar_lea.vmem [#allocation1], 624
    %2673 = vst [vmem:[%s2672] sm:%s3] %v2670
    %s2674 = scalar_lea.vmem %s0, 308
    %s2675 = sshrl.u32 %s3, 1
    %s2676 = sor.u32 %s3, %s2675
    %s2677 = sand.u32 %s2676, 85
    %s2678 = sshrl.u32 %s2677, 1
    %s2679 = sor.u32 %s2677, %s2678
    %s2680 = sand.u32 51, %s2679
    %s2681 = sshrl.u32 %s2680, 2
    %s2682 = sor.u32 %s2680, %s2681
    %s2683 = sand.u32 15, %s2682
    %v2684 = vld [vmem:[%s2674] sm:%s2683]
    %v2685 = vunpack.c.l.bf16 %v2684
    %v2686 = vunpack.c.h.bf16 %v2684
    %s2687 = scalar_lea.vmem [#allocation1], 616
    %2688 = vst [vmem:[%s2687] sm:%s3] %v2685
    %s2689 = scalar_lea.vmem %s0, 304
    %s2690 = sshrl.u32 %s3, 1
    %s2691 = sor.u32 %s3, %s2690
    %s2692 = sand.u32 %s2691, 85
    %s2693 = sshrl.u32 %s2692, 1
    %s2694 = sor.u32 %s2692, %s2693
    %s2695 = sand.u32 51, %s2694
    %s2696 = sshrl.u32 %s2695, 2
    %s2697 = sor.u32 %s2695, %s2696
    %s2698 = sand.u32 15, %s2697
    %v2699 = vld [vmem:[%s2689] sm:%s2698]
    %v2700 = vunpack.c.l.bf16 %v2699
    %v2701 = vunpack.c.h.bf16 %v2699
    %s2702 = scalar_lea.vmem [#allocation1], 608
    %2703 = vst [vmem:[%s2702] sm:%s3] %v2700
    %s2704 = scalar_lea.vmem %s0, 300
    %s2705 = sshrl.u32 %s3, 1
    %s2706 = sor.u32 %s3, %s2705
    %s2707 = sand.u32 %s2706, 85
    %s2708 = sshrl.u32 %s2707, 1
    %s2709 = sor.u32 %s2707, %s2708
    %s2710 = sand.u32 51, %s2709
    %s2711 = sshrl.u32 %s2710, 2
    %s2712 = sor.u32 %s2710, %s2711
    %s2713 = sand.u32 15, %s2712
    %v2714 = vld [vmem:[%s2704] sm:%s2713]
    %v2715 = vunpack.c.l.bf16 %v2714
    %v2716 = vunpack.c.h.bf16 %v2714
    %s2717 = scalar_lea.vmem [#allocation1], 600
    %2718 = vst [vmem:[%s2717] sm:%s3] %v2715
    %s2719 = scalar_lea.vmem %s0, 296
    %s2720 = sshrl.u32 %s3, 1
    %s2721 = sor.u32 %s3, %s2720
    %s2722 = sand.u32 %s2721, 85
    %s2723 = sshrl.u32 %s2722, 1
    %s2724 = sor.u32 %s2722, %s2723
    %s2725 = sand.u32 51, %s2724
    %s2726 = sshrl.u32 %s2725, 2
    %s2727 = sor.u32 %s2725, %s2726
    %s2728 = sand.u32 15, %s2727
    %v2729 = vld [vmem:[%s2719] sm:%s2728]
    %v2730 = vunpack.c.l.bf16 %v2729
    %v2731 = vunpack.c.h.bf16 %v2729
    %s2732 = scalar_lea.vmem [#allocation1], 592
    %2733 = vst [vmem:[%s2732] sm:%s3] %v2730
    %s2734 = scalar_lea.vmem %s0, 292
    %s2735 = sshrl.u32 %s3, 1
    %s2736 = sor.u32 %s3, %s2735
    %s2737 = sand.u32 %s2736, 85
    %s2738 = sshrl.u32 %s2737, 1
    %s2739 = sor.u32 %s2737, %s2738
    %s2740 = sand.u32 51, %s2739
    %s2741 = sshrl.u32 %s2740, 2
    %s2742 = sor.u32 %s2740, %s2741
    %s2743 = sand.u32 15, %s2742
    %v2744 = vld [vmem:[%s2734] sm:%s2743]
    %v2745 = vunpack.c.l.bf16 %v2744
    %v2746 = vunpack.c.h.bf16 %v2744
    %s2747 = scalar_lea.vmem [#allocation1], 584
    %2748 = vst [vmem:[%s2747] sm:%s3] %v2745
    %s2749 = scalar_lea.vmem %s0, 288
    %s2750 = sshrl.u32 %s3, 1
    %s2751 = sor.u32 %s3, %s2750
    %s2752 = sand.u32 %s2751, 85
    %s2753 = sshrl.u32 %s2752, 1
    %s2754 = sor.u32 %s2752, %s2753
    %s2755 = sand.u32 51, %s2754
    %s2756 = sshrl.u32 %s2755, 2
    %s2757 = sor.u32 %s2755, %s2756
    %s2758 = sand.u32 15, %s2757
    %v2759 = vld [vmem:[%s2749] sm:%s2758]
    %v2760 = vunpack.c.l.bf16 %v2759
    %v2761 = vunpack.c.h.bf16 %v2759
    %s2762 = scalar_lea.vmem [#allocation1], 576
    %2763 = vst [vmem:[%s2762] sm:%s3] %v2760
    %s2764 = scalar_lea.vmem %s0, 284
    %s2765 = sshrl.u32 %s3, 1
    %s2766 = sor.u32 %s3, %s2765
    %s2767 = sand.u32 %s2766, 85
    %s2768 = sshrl.u32 %s2767, 1
    %s2769 = sor.u32 %s2767, %s2768
    %s2770 = sand.u32 51, %s2769
    %s2771 = sshrl.u32 %s2770, 2
    %s2772 = sor.u32 %s2770, %s2771
    %s2773 = sand.u32 15, %s2772
    %v2774 = vld [vmem:[%s2764] sm:%s2773]
    %v2775 = vunpack.c.l.bf16 %v2774
    %v2776 = vunpack.c.h.bf16 %v2774
    %s2777 = scalar_lea.vmem [#allocation1], 568
    %2778 = vst [vmem:[%s2777] sm:%s3] %v2775
    %s2779 = scalar_lea.vmem %s0, 280
    %s2780 = sshrl.u32 %s3, 1
    %s2781 = sor.u32 %s3, %s2780
    %s2782 = sand.u32 %s2781, 85
    %s2783 = sshrl.u32 %s2782, 1
    %s2784 = sor.u32 %s2782, %s2783
    %s2785 = sand.u32 51, %s2784
    %s2786 = sshrl.u32 %s2785, 2
    %s2787 = sor.u32 %s2785, %s2786
    %s2788 = sand.u32 15, %s2787
    %v2789 = vld [vmem:[%s2779] sm:%s2788]
    %v2790 = vunpack.c.l.bf16 %v2789
    %v2791 = vunpack.c.h.bf16 %v2789
    %s2792 = scalar_lea.vmem [#allocation1], 560
    %2793 = vst [vmem:[%s2792] sm:%s3] %v2790
    %s2794 = scalar_lea.vmem %s0, 276
    %s2795 = sshrl.u32 %s3, 1
    %s2796 = sor.u32 %s3, %s2795
    %s2797 = sand.u32 %s2796, 85
    %s2798 = sshrl.u32 %s2797, 1
    %s2799 = sor.u32 %s2797, %s2798
    %s2800 = sand.u32 51, %s2799
    %s2801 = sshrl.u32 %s2800, 2
    %s2802 = sor.u32 %s2800, %s2801
    %s2803 = sand.u32 15, %s2802
    %v2804 = vld [vmem:[%s2794] sm:%s2803]
    %v2805 = vunpack.c.l.bf16 %v2804
    %v2806 = vunpack.c.h.bf16 %v2804
    %s2807 = scalar_lea.vmem [#allocation1], 552
    %2808 = vst [vmem:[%s2807] sm:%s3] %v2805
    %s2809 = scalar_lea.vmem %s0, 272
    %s2810 = sshrl.u32 %s3, 1
    %s2811 = sor.u32 %s3, %s2810
    %s2812 = sand.u32 %s2811, 85
    %s2813 = sshrl.u32 %s2812, 1
    %s2814 = sor.u32 %s2812, %s2813
    %s2815 = sand.u32 51, %s2814
    %s2816 = sshrl.u32 %s2815, 2
    %s2817 = sor.u32 %s2815, %s2816
    %s2818 = sand.u32 15, %s2817
    %v2819 = vld [vmem:[%s2809] sm:%s2818]
    %v2820 = vunpack.c.l.bf16 %v2819
    %v2821 = vunpack.c.h.bf16 %v2819
    %s2822 = scalar_lea.vmem [#allocation1], 544
    %2823 = vst [vmem:[%s2822] sm:%s3] %v2820
    %s2824 = scalar_lea.vmem %s0, 268
    %s2825 = sshrl.u32 %s3, 1
    %s2826 = sor.u32 %s3, %s2825
    %s2827 = sand.u32 %s2826, 85
    %s2828 = sshrl.u32 %s2827, 1
    %s2829 = sor.u32 %s2827, %s2828
    %s2830 = sand.u32 51, %s2829
    %s2831 = sshrl.u32 %s2830, 2
    %s2832 = sor.u32 %s2830, %s2831
    %s2833 = sand.u32 15, %s2832
    %v2834 = vld [vmem:[%s2824] sm:%s2833]
    %v2835 = vunpack.c.l.bf16 %v2834
    %v2836 = vunpack.c.h.bf16 %v2834
    %s2837 = scalar_lea.vmem [#allocation1], 536
    %2838 = vst [vmem:[%s2837] sm:%s3] %v2835
    %s2839 = scalar_lea.vmem %s0, 264
    %s2840 = sshrl.u32 %s3, 1
    %s2841 = sor.u32 %s3, %s2840
    %s2842 = sand.u32 %s2841, 85
    %s2843 = sshrl.u32 %s2842, 1
    %s2844 = sor.u32 %s2842, %s2843
    %s2845 = sand.u32 51, %s2844
    %s2846 = sshrl.u32 %s2845, 2
    %s2847 = sor.u32 %s2845, %s2846
    %s2848 = sand.u32 15, %s2847
    %v2849 = vld [vmem:[%s2839] sm:%s2848]
    %v2850 = vunpack.c.l.bf16 %v2849
    %v2851 = vunpack.c.h.bf16 %v2849
    %s2852 = scalar_lea.vmem [#allocation1], 528
    %2853 = vst [vmem:[%s2852] sm:%s3] %v2850
    %s2854 = scalar_lea.vmem %s0, 260
    %s2855 = sshrl.u32 %s3, 1
    %s2856 = sor.u32 %s3, %s2855
    %s2857 = sand.u32 %s2856, 85
    %s2858 = sshrl.u32 %s2857, 1
    %s2859 = sor.u32 %s2857, %s2858
    %s2860 = sand.u32 51, %s2859
    %s2861 = sshrl.u32 %s2860, 2
    %s2862 = sor.u32 %s2860, %s2861
    %s2863 = sand.u32 15, %s2862
    %v2864 = vld [vmem:[%s2854] sm:%s2863]
    %v2865 = vunpack.c.l.bf16 %v2864
    %v2866 = vunpack.c.h.bf16 %v2864
    %s2867 = scalar_lea.vmem [#allocation1], 520
    %2868 = vst [vmem:[%s2867] sm:%s3] %v2865
    %s2869 = scalar_lea.vmem %s0, 256
    %s2870 = sshrl.u32 %s3, 1
    %s2871 = sor.u32 %s3, %s2870
    %s2872 = sand.u32 %s2871, 85
    %s2873 = sshrl.u32 %s2872, 1
    %s2874 = sor.u32 %s2872, %s2873
    %s2875 = sand.u32 51, %s2874
    %s2876 = sshrl.u32 %s2875, 2
    %s2877 = sor.u32 %s2875, %s2876
    %s2878 = sand.u32 15, %s2877
    %v2879 = vld [vmem:[%s2869] sm:%s2878]
    %v2880 = vunpack.c.l.bf16 %v2879
    %v2881 = vunpack.c.h.bf16 %v2879
    %s2882 = scalar_lea.vmem [#allocation1], 512
    %2883 = vst [vmem:[%s2882] sm:%s3] %v2880
    %s2884 = scalar_lea.vmem %s0, 252
    %s2885 = sshrl.u32 %s3, 1
    %s2886 = sor.u32 %s3, %s2885
    %s2887 = sand.u32 %s2886, 85
    %s2888 = sshrl.u32 %s2887, 1
    %s2889 = sor.u32 %s2887, %s2888
    %s2890 = sand.u32 51, %s2889
    %s2891 = sshrl.u32 %s2890, 2
    %s2892 = sor.u32 %s2890, %s2891
    %s2893 = sand.u32 15, %s2892
    %v2894 = vld [vmem:[%s2884] sm:%s2893]
    %v2895 = vunpack.c.l.bf16 %v2894
    %v2896 = vunpack.c.h.bf16 %v2894
    %s2897 = scalar_lea.vmem [#allocation1], 504
    %2898 = vst [vmem:[%s2897] sm:%s3] %v2895
    %s2899 = scalar_lea.vmem %s0, 248
    %s2900 = sshrl.u32 %s3, 1
    %s2901 = sor.u32 %s3, %s2900
    %s2902 = sand.u32 %s2901, 85
    %s2903 = sshrl.u32 %s2902, 1
    %s2904 = sor.u32 %s2902, %s2903
    %s2905 = sand.u32 51, %s2904
    %s2906 = sshrl.u32 %s2905, 2
    %s2907 = sor.u32 %s2905, %s2906
    %s2908 = sand.u32 15, %s2907
    %v2909 = vld [vmem:[%s2899] sm:%s2908]
    %v2910 = vunpack.c.l.bf16 %v2909
    %v2911 = vunpack.c.h.bf16 %v2909
    %s2912 = scalar_lea.vmem [#allocation1], 496
    %2913 = vst [vmem:[%s2912] sm:%s3] %v2910
    %s2914 = scalar_lea.vmem %s0, 244
    %s2915 = sshrl.u32 %s3, 1
    %s2916 = sor.u32 %s3, %s2915
    %s2917 = sand.u32 %s2916, 85
    %s2918 = sshrl.u32 %s2917, 1
    %s2919 = sor.u32 %s2917, %s2918
    %s2920 = sand.u32 51, %s2919
    %s2921 = sshrl.u32 %s2920, 2
    %s2922 = sor.u32 %s2920, %s2921
    %s2923 = sand.u32 15, %s2922
    %v2924 = vld [vmem:[%s2914] sm:%s2923]
    %v2925 = vunpack.c.l.bf16 %v2924
    %v2926 = vunpack.c.h.bf16 %v2924
    %s2927 = scalar_lea.vmem [#allocation1], 488
    %2928 = vst [vmem:[%s2927] sm:%s3] %v2925
    %s2929 = scalar_lea.vmem %s0, 240
    %s2930 = sshrl.u32 %s3, 1
    %s2931 = sor.u32 %s3, %s2930
    %s2932 = sand.u32 %s2931, 85
    %s2933 = sshrl.u32 %s2932, 1
    %s2934 = sor.u32 %s2932, %s2933
    %s2935 = sand.u32 51, %s2934
    %s2936 = sshrl.u32 %s2935, 2
    %s2937 = sor.u32 %s2935, %s2936
    %s2938 = sand.u32 15, %s2937
    %v2939 = vld [vmem:[%s2929] sm:%s2938]
    %v2940 = vunpack.c.l.bf16 %v2939
    %v2941 = vunpack.c.h.bf16 %v2939
    %s2942 = scalar_lea.vmem [#allocation1], 480
    %2943 = vst [vmem:[%s2942] sm:%s3] %v2940
    %s2944 = scalar_lea.vmem %s0, 236
    %s2945 = sshrl.u32 %s3, 1
    %s2946 = sor.u32 %s3, %s2945
    %s2947 = sand.u32 %s2946, 85
    %s2948 = sshrl.u32 %s2947, 1
    %s2949 = sor.u32 %s2947, %s2948
    %s2950 = sand.u32 51, %s2949
    %s2951 = sshrl.u32 %s2950, 2
    %s2952 = sor.u32 %s2950, %s2951
    %s2953 = sand.u32 15, %s2952
    %v2954 = vld [vmem:[%s2944] sm:%s2953]
    %v2955 = vunpack.c.l.bf16 %v2954
    %v2956 = vunpack.c.h.bf16 %v2954
    %s2957 = scalar_lea.vmem [#allocation1], 472
    %2958 = vst [vmem:[%s2957] sm:%s3] %v2955
    %s2959 = scalar_lea.vmem %s0, 232
    %s2960 = sshrl.u32 %s3, 1
    %s2961 = sor.u32 %s3, %s2960
    %s2962 = sand.u32 %s2961, 85
    %s2963 = sshrl.u32 %s2962, 1
    %s2964 = sor.u32 %s2962, %s2963
    %s2965 = sand.u32 51, %s2964
    %s2966 = sshrl.u32 %s2965, 2
    %s2967 = sor.u32 %s2965, %s2966
    %s2968 = sand.u32 15, %s2967
    %v2969 = vld [vmem:[%s2959] sm:%s2968]
    %v2970 = vunpack.c.l.bf16 %v2969
    %v2971 = vunpack.c.h.bf16 %v2969
    %s2972 = scalar_lea.vmem [#allocation1], 464
    %2973 = vst [vmem:[%s2972] sm:%s3] %v2970
    %s2974 = scalar_lea.vmem %s0, 228
    %s2975 = sshrl.u32 %s3, 1
    %s2976 = sor.u32 %s3, %s2975
    %s2977 = sand.u32 %s2976, 85
    %s2978 = sshrl.u32 %s2977, 1
    %s2979 = sor.u32 %s2977, %s2978
    %s2980 = sand.u32 51, %s2979
    %s2981 = sshrl.u32 %s2980, 2
    %s2982 = sor.u32 %s2980, %s2981
    %s2983 = sand.u32 15, %s2982
    %v2984 = vld [vmem:[%s2974] sm:%s2983]
    %v2985 = vunpack.c.l.bf16 %v2984
    %v2986 = vunpack.c.h.bf16 %v2984
    %s2987 = scalar_lea.vmem [#allocation1], 456
    %2988 = vst [vmem:[%s2987] sm:%s3] %v2985
    %s2989 = scalar_lea.vmem %s0, 224
    %s2990 = sshrl.u32 %s3, 1
    %s2991 = sor.u32 %s3, %s2990
    %s2992 = sand.u32 %s2991, 85
    %s2993 = sshrl.u32 %s2992, 1
    %s2994 = sor.u32 %s2992, %s2993
    %s2995 = sand.u32 51, %s2994
    %s2996 = sshrl.u32 %s2995, 2
    %s2997 = sor.u32 %s2995, %s2996
    %s2998 = sand.u32 15, %s2997
    %v2999 = vld [vmem:[%s2989] sm:%s2998]
    %v3000 = vunpack.c.l.bf16 %v2999
    %v3001 = vunpack.c.h.bf16 %v2999
    %s3002 = scalar_lea.vmem [#allocation1], 448
    %3003 = vst [vmem:[%s3002] sm:%s3] %v3000
    %s3004 = scalar_lea.vmem %s0, 220
    %s3005 = sshrl.u32 %s3, 1
    %s3006 = sor.u32 %s3, %s3005
    %s3007 = sand.u32 %s3006, 85
    %s3008 = sshrl.u32 %s3007, 1
    %s3009 = sor.u32 %s3007, %s3008
    %s3010 = sand.u32 51, %s3009
    %s3011 = sshrl.u32 %s3010, 2
    %s3012 = sor.u32 %s3010, %s3011
    %s3013 = sand.u32 15, %s3012
    %v3014 = vld [vmem:[%s3004] sm:%s3013]
    %v3015 = vunpack.c.l.bf16 %v3014
    %v3016 = vunpack.c.h.bf16 %v3014
    %s3017 = scalar_lea.vmem [#allocation1], 440
    %3018 = vst [vmem:[%s3017] sm:%s3] %v3015
    %s3019 = scalar_lea.vmem %s0, 216
    %s3020 = sshrl.u32 %s3, 1
    %s3021 = sor.u32 %s3, %s3020
    %s3022 = sand.u32 %s3021, 85
    %s3023 = sshrl.u32 %s3022, 1
    %s3024 = sor.u32 %s3022, %s3023
    %s3025 = sand.u32 51, %s3024
    %s3026 = sshrl.u32 %s3025, 2
    %s3027 = sor.u32 %s3025, %s3026
    %s3028 = sand.u32 15, %s3027
    %v3029 = vld [vmem:[%s3019] sm:%s3028]
    %v3030 = vunpack.c.l.bf16 %v3029
    %v3031 = vunpack.c.h.bf16 %v3029
    %s3032 = scalar_lea.vmem [#allocation1], 432
    %3033 = vst [vmem:[%s3032] sm:%s3] %v3030
    %s3034 = scalar_lea.vmem %s0, 212
    %s3035 = sshrl.u32 %s3, 1
    %s3036 = sor.u32 %s3, %s3035
    %s3037 = sand.u32 %s3036, 85
    %s3038 = sshrl.u32 %s3037, 1
    %s3039 = sor.u32 %s3037, %s3038
    %s3040 = sand.u32 51, %s3039
    %s3041 = sshrl.u32 %s3040, 2
    %s3042 = sor.u32 %s3040, %s3041
    %s3043 = sand.u32 15, %s3042
    %v3044 = vld [vmem:[%s3034] sm:%s3043]
    %v3045 = vunpack.c.l.bf16 %v3044
    %v3046 = vunpack.c.h.bf16 %v3044
    %s3047 = scalar_lea.vmem [#allocation1], 424
    %3048 = vst [vmem:[%s3047] sm:%s3] %v3045
    %s3049 = scalar_lea.vmem %s0, 208
    %s3050 = sshrl.u32 %s3, 1
    %s3051 = sor.u32 %s3, %s3050
    %s3052 = sand.u32 %s3051, 85
    %s3053 = sshrl.u32 %s3052, 1
    %s3054 = sor.u32 %s3052, %s3053
    %s3055 = sand.u32 51, %s3054
    %s3056 = sshrl.u32 %s3055, 2
    %s3057 = sor.u32 %s3055, %s3056
    %s3058 = sand.u32 15, %s3057
    %v3059 = vld [vmem:[%s3049] sm:%s3058]
    %v3060 = vunpack.c.l.bf16 %v3059
    %v3061 = vunpack.c.h.bf16 %v3059
    %s3062 = scalar_lea.vmem [#allocation1], 416
    %3063 = vst [vmem:[%s3062] sm:%s3] %v3060
    %s3064 = scalar_lea.vmem %s0, 204
    %s3065 = sshrl.u32 %s3, 1
    %s3066 = sor.u32 %s3, %s3065
    %s3067 = sand.u32 %s3066, 85
    %s3068 = sshrl.u32 %s3067, 1
    %s3069 = sor.u32 %s3067, %s3068
    %s3070 = sand.u32 51, %s3069
    %s3071 = sshrl.u32 %s3070, 2
    %s3072 = sor.u32 %s3070, %s3071
    %s3073 = sand.u32 15, %s3072
    %v3074 = vld [vmem:[%s3064] sm:%s3073]
    %v3075 = vunpack.c.l.bf16 %v3074
    %v3076 = vunpack.c.h.bf16 %v3074
    %s3077 = scalar_lea.vmem [#allocation1], 408
    %3078 = vst [vmem:[%s3077] sm:%s3] %v3075
    %s3079 = scalar_lea.vmem %s0, 200
    %s3080 = sshrl.u32 %s3, 1
    %s3081 = sor.u32 %s3, %s3080
    %s3082 = sand.u32 %s3081, 85
    %s3083 = sshrl.u32 %s3082, 1
    %s3084 = sor.u32 %s3082, %s3083
    %s3085 = sand.u32 51, %s3084
    %s3086 = sshrl.u32 %s3085, 2
    %s3087 = sor.u32 %s3085, %s3086
    %s3088 = sand.u32 15, %s3087
    %v3089 = vld [vmem:[%s3079] sm:%s3088]
    %v3090 = vunpack.c.l.bf16 %v3089
    %v3091 = vunpack.c.h.bf16 %v3089
    %s3092 = scalar_lea.vmem [#allocation1], 400
    %3093 = vst [vmem:[%s3092] sm:%s3] %v3090
    %s3094 = scalar_lea.vmem %s0, 196
    %s3095 = sshrl.u32 %s3, 1
    %s3096 = sor.u32 %s3, %s3095
    %s3097 = sand.u32 %s3096, 85
    %s3098 = sshrl.u32 %s3097, 1
    %s3099 = sor.u32 %s3097, %s3098
    %s3100 = sand.u32 51, %s3099
    %s3101 = sshrl.u32 %s3100, 2
    %s3102 = sor.u32 %s3100, %s3101
    %s3103 = sand.u32 15, %s3102
    %v3104 = vld [vmem:[%s3094] sm:%s3103]
    %v3105 = vunpack.c.l.bf16 %v3104
    %v3106 = vunpack.c.h.bf16 %v3104
    %s3107 = scalar_lea.vmem [#allocation1], 392
    %3108 = vst [vmem:[%s3107] sm:%s3] %v3105
    %s3109 = scalar_lea.vmem %s0, 192
    %s3110 = sshrl.u32 %s3, 1
    %s3111 = sor.u32 %s3, %s3110
    %s3112 = sand.u32 %s3111, 85
    %s3113 = sshrl.u32 %s3112, 1
    %s3114 = sor.u32 %s3112, %s3113
    %s3115 = sand.u32 51, %s3114
    %s3116 = sshrl.u32 %s3115, 2
    %s3117 = sor.u32 %s3115, %s3116
    %s3118 = sand.u32 15, %s3117
    %v3119 = vld [vmem:[%s3109] sm:%s3118]
    %v3120 = vunpack.c.l.bf16 %v3119
    %v3121 = vunpack.c.h.bf16 %v3119
    %s3122 = scalar_lea.vmem [#allocation1], 384
    %3123 = vst [vmem:[%s3122] sm:%s3] %v3120
    %s3124 = scalar_lea.vmem %s0, 188
    %s3125 = sshrl.u32 %s3, 1
    %s3126 = sor.u32 %s3, %s3125
    %s3127 = sand.u32 %s3126, 85
    %s3128 = sshrl.u32 %s3127, 1
    %s3129 = sor.u32 %s3127, %s3128
    %s3130 = sand.u32 51, %s3129
    %s3131 = sshrl.u32 %s3130, 2
    %s3132 = sor.u32 %s3130, %s3131
    %s3133 = sand.u32 15, %s3132
    %v3134 = vld [vmem:[%s3124] sm:%s3133]
    %v3135 = vunpack.c.l.bf16 %v3134
    %v3136 = vunpack.c.h.bf16 %v3134
    %s3137 = scalar_lea.vmem [#allocation1], 376
    %3138 = vst [vmem:[%s3137] sm:%s3] %v3135
    %s3139 = scalar_lea.vmem %s0, 184
    %s3140 = sshrl.u32 %s3, 1
    %s3141 = sor.u32 %s3, %s3140
    %s3142 = sand.u32 %s3141, 85
    %s3143 = sshrl.u32 %s3142, 1
    %s3144 = sor.u32 %s3142, %s3143
    %s3145 = sand.u32 51, %s3144
    %s3146 = sshrl.u32 %s3145, 2
    %s3147 = sor.u32 %s3145, %s3146
    %s3148 = sand.u32 15, %s3147
    %v3149 = vld [vmem:[%s3139] sm:%s3148]
    %v3150 = vunpack.c.l.bf16 %v3149
    %v3151 = vunpack.c.h.bf16 %v3149
    %s3152 = scalar_lea.vmem [#allocation1], 368
    %3153 = vst [vmem:[%s3152] sm:%s3] %v3150
    %s3154 = scalar_lea.vmem %s0, 180
    %s3155 = sshrl.u32 %s3, 1
    %s3156 = sor.u32 %s3, %s3155
    %s3157 = sand.u32 %s3156, 85
    %s3158 = sshrl.u32 %s3157, 1
    %s3159 = sor.u32 %s3157, %s3158
    %s3160 = sand.u32 51, %s3159
    %s3161 = sshrl.u32 %s3160, 2
    %s3162 = sor.u32 %s3160, %s3161
    %s3163 = sand.u32 15, %s3162
    %v3164 = vld [vmem:[%s3154] sm:%s3163]
    %v3165 = vunpack.c.l.bf16 %v3164
    %v3166 = vunpack.c.h.bf16 %v3164
    %s3167 = scalar_lea.vmem [#allocation1], 360
    %3168 = vst [vmem:[%s3167] sm:%s3] %v3165
    %s3169 = scalar_lea.vmem %s0, 176
    %s3170 = sshrl.u32 %s3, 1
    %s3171 = sor.u32 %s3, %s3170
    %s3172 = sand.u32 %s3171, 85
    %s3173 = sshrl.u32 %s3172, 1
    %s3174 = sor.u32 %s3172, %s3173
    %s3175 = sand.u32 51, %s3174
    %s3176 = sshrl.u32 %s3175, 2
    %s3177 = sor.u32 %s3175, %s3176
    %s3178 = sand.u32 15, %s3177
    %v3179 = vld [vmem:[%s3169] sm:%s3178]
    %v3180 = vunpack.c.l.bf16 %v3179
    %v3181 = vunpack.c.h.bf16 %v3179
    %s3182 = scalar_lea.vmem [#allocation1], 352
    %3183 = vst [vmem:[%s3182] sm:%s3] %v3180
    %s3184 = scalar_lea.vmem %s0, 172
    %s3185 = sshrl.u32 %s3, 1
    %s3186 = sor.u32 %s3, %s3185
    %s3187 = sand.u32 %s3186, 85
    %s3188 = sshrl.u32 %s3187, 1
    %s3189 = sor.u32 %s3187, %s3188
    %s3190 = sand.u32 51, %s3189
    %s3191 = sshrl.u32 %s3190, 2
    %s3192 = sor.u32 %s3190, %s3191
    %s3193 = sand.u32 15, %s3192
    %v3194 = vld [vmem:[%s3184] sm:%s3193]
    %v3195 = vunpack.c.l.bf16 %v3194
    %v3196 = vunpack.c.h.bf16 %v3194
    %s3197 = scalar_lea.vmem [#allocation1], 344
    %3198 = vst [vmem:[%s3197] sm:%s3] %v3195
    %s3199 = scalar_lea.vmem %s0, 168
    %s3200 = sshrl.u32 %s3, 1
    %s3201 = sor.u32 %s3, %s3200
    %s3202 = sand.u32 %s3201, 85
    %s3203 = sshrl.u32 %s3202, 1
    %s3204 = sor.u32 %s3202, %s3203
    %s3205 = sand.u32 51, %s3204
    %s3206 = sshrl.u32 %s3205, 2
    %s3207 = sor.u32 %s3205, %s3206
    %s3208 = sand.u32 15, %s3207
    %v3209 = vld [vmem:[%s3199] sm:%s3208]
    %v3210 = vunpack.c.l.bf16 %v3209
    %v3211 = vunpack.c.h.bf16 %v3209
    %s3212 = scalar_lea.vmem [#allocation1], 336
    %3213 = vst [vmem:[%s3212] sm:%s3] %v3210
    %s3214 = scalar_lea.vmem %s0, 164
    %s3215 = sshrl.u32 %s3, 1
    %s3216 = sor.u32 %s3, %s3215
    %s3217 = sand.u32 %s3216, 85
    %s3218 = sshrl.u32 %s3217, 1
    %s3219 = sor.u32 %s3217, %s3218
    %s3220 = sand.u32 51, %s3219
    %s3221 = sshrl.u32 %s3220, 2
    %s3222 = sor.u32 %s3220, %s3221
    %s3223 = sand.u32 15, %s3222
    %v3224 = vld [vmem:[%s3214] sm:%s3223]
    %v3225 = vunpack.c.l.bf16 %v3224
    %v3226 = vunpack.c.h.bf16 %v3224
    %s3227 = scalar_lea.vmem [#allocation1], 328
    %3228 = vst [vmem:[%s3227] sm:%s3] %v3225
    %s3229 = scalar_lea.vmem %s0, 160
    %s3230 = sshrl.u32 %s3, 1
    %s3231 = sor.u32 %s3, %s3230
    %s3232 = sand.u32 %s3231, 85
    %s3233 = sshrl.u32 %s3232, 1
    %s3234 = sor.u32 %s3232, %s3233
    %s3235 = sand.u32 51, %s3234
    %s3236 = sshrl.u32 %s3235, 2
    %s3237 = sor.u32 %s3235, %s3236
    %s3238 = sand.u32 15, %s3237
    %v3239 = vld [vmem:[%s3229] sm:%s3238]
    %v3240 = vunpack.c.l.bf16 %v3239
    %v3241 = vunpack.c.h.bf16 %v3239
    %s3242 = scalar_lea.vmem [#allocation1], 320
    %3243 = vst [vmem:[%s3242] sm:%s3] %v3240
    %s3244 = scalar_lea.vmem %s0, 156
    %s3245 = sshrl.u32 %s3, 1
    %s3246 = sor.u32 %s3, %s3245
    %s3247 = sand.u32 %s3246, 85
    %s3248 = sshrl.u32 %s3247, 1
    %s3249 = sor.u32 %s3247, %s3248
    %s3250 = sand.u32 51, %s3249
    %s3251 = sshrl.u32 %s3250, 2
    %s3252 = sor.u32 %s3250, %s3251
    %s3253 = sand.u32 15, %s3252
    %v3254 = vld [vmem:[%s3244] sm:%s3253]
    %v3255 = vunpack.c.l.bf16 %v3254
    %v3256 = vunpack.c.h.bf16 %v3254
    %s3257 = scalar_lea.vmem [#allocation1], 312
    %3258 = vst [vmem:[%s3257] sm:%s3] %v3255
    %s3259 = scalar_lea.vmem %s0, 152
    %s3260 = sshrl.u32 %s3, 1
    %s3261 = sor.u32 %s3, %s3260
    %s3262 = sand.u32 %s3261, 85
    %s3263 = sshrl.u32 %s3262, 1
    %s3264 = sor.u32 %s3262, %s3263
    %s3265 = sand.u32 51, %s3264
    %s3266 = sshrl.u32 %s3265, 2
    %s3267 = sor.u32 %s3265, %s3266
    %s3268 = sand.u32 15, %s3267
    %v3269 = vld [vmem:[%s3259] sm:%s3268]
    %v3270 = vunpack.c.l.bf16 %v3269
    %v3271 = vunpack.c.h.bf16 %v3269
    %s3272 = scalar_lea.vmem [#allocation1], 304
    %3273 = vst [vmem:[%s3272] sm:%s3] %v3270
    %s3274 = scalar_lea.vmem %s0, 148
    %s3275 = sshrl.u32 %s3, 1
    %s3276 = sor.u32 %s3, %s3275
    %s3277 = sand.u32 %s3276, 85
    %s3278 = sshrl.u32 %s3277, 1
    %s3279 = sor.u32 %s3277, %s3278
    %s3280 = sand.u32 51, %s3279
    %s3281 = sshrl.u32 %s3280, 2
    %s3282 = sor.u32 %s3280, %s3281
    %s3283 = sand.u32 15, %s3282
    %v3284 = vld [vmem:[%s3274] sm:%s3283]
    %v3285 = vunpack.c.l.bf16 %v3284
    %v3286 = vunpack.c.h.bf16 %v3284
    %s3287 = scalar_lea.vmem [#allocation1], 296
    %3288 = vst [vmem:[%s3287] sm:%s3] %v3285
    %s3289 = scalar_lea.vmem %s0, 144
    %s3290 = sshrl.u32 %s3, 1
    %s3291 = sor.u32 %s3, %s3290
    %s3292 = sand.u32 %s3291, 85
    %s3293 = sshrl.u32 %s3292, 1
    %s3294 = sor.u32 %s3292, %s3293
    %s3295 = sand.u32 51, %s3294
    %s3296 = sshrl.u32 %s3295, 2
    %s3297 = sor.u32 %s3295, %s3296
    %s3298 = sand.u32 15, %s3297
    %v3299 = vld [vmem:[%s3289] sm:%s3298]
    %v3300 = vunpack.c.l.bf16 %v3299
    %v3301 = vunpack.c.h.bf16 %v3299
    %s3302 = scalar_lea.vmem [#allocation1], 288
    %3303 = vst [vmem:[%s3302] sm:%s3] %v3300
    %s3304 = scalar_lea.vmem %s0, 140
    %s3305 = sshrl.u32 %s3, 1
    %s3306 = sor.u32 %s3, %s3305
    %s3307 = sand.u32 %s3306, 85
    %s3308 = sshrl.u32 %s3307, 1
    %s3309 = sor.u32 %s3307, %s3308
    %s3310 = sand.u32 51, %s3309
    %s3311 = sshrl.u32 %s3310, 2
    %s3312 = sor.u32 %s3310, %s3311
    %s3313 = sand.u32 15, %s3312
    %v3314 = vld [vmem:[%s3304] sm:%s3313]
    %v3315 = vunpack.c.l.bf16 %v3314
    %v3316 = vunpack.c.h.bf16 %v3314
    %s3317 = scalar_lea.vmem [#allocation1], 280
    %3318 = vst [vmem:[%s3317] sm:%s3] %v3315
    %s3319 = scalar_lea.vmem %s0, 136
    %s3320 = sshrl.u32 %s3, 1
    %s3321 = sor.u32 %s3, %s3320
    %s3322 = sand.u32 %s3321, 85
    %s3323 = sshrl.u32 %s3322, 1
    %s3324 = sor.u32 %s3322, %s3323
    %s3325 = sand.u32 51, %s3324
    %s3326 = sshrl.u32 %s3325, 2
    %s3327 = sor.u32 %s3325, %s3326
    %s3328 = sand.u32 15, %s3327
    %v3329 = vld [vmem:[%s3319] sm:%s3328]
    %v3330 = vunpack.c.l.bf16 %v3329
    %v3331 = vunpack.c.h.bf16 %v3329
    %s3332 = scalar_lea.vmem [#allocation1], 272
    %3333 = vst [vmem:[%s3332] sm:%s3] %v3330
    %s3334 = scalar_lea.vmem %s0, 132
    %s3335 = sshrl.u32 %s3, 1
    %s3336 = sor.u32 %s3, %s3335
    %s3337 = sand.u32 %s3336, 85
    %s3338 = sshrl.u32 %s3337, 1
    %s3339 = sor.u32 %s3337, %s3338
    %s3340 = sand.u32 51, %s3339
    %s3341 = sshrl.u32 %s3340, 2
    %s3342 = sor.u32 %s3340, %s3341
    %s3343 = sand.u32 15, %s3342
    %v3344 = vld [vmem:[%s3334] sm:%s3343]
    %v3345 = vunpack.c.l.bf16 %v3344
    %v3346 = vunpack.c.h.bf16 %v3344
    %s3347 = scalar_lea.vmem [#allocation1], 264
    %3348 = vst [vmem:[%s3347] sm:%s3] %v3345
    %s3349 = scalar_lea.vmem %s0, 128
    %s3350 = sshrl.u32 %s3, 1
    %s3351 = sor.u32 %s3, %s3350
    %s3352 = sand.u32 %s3351, 85
    %s3353 = sshrl.u32 %s3352, 1
    %s3354 = sor.u32 %s3352, %s3353
    %s3355 = sand.u32 51, %s3354
    %s3356 = sshrl.u32 %s3355, 2
    %s3357 = sor.u32 %s3355, %s3356
    %s3358 = sand.u32 15, %s3357
    %v3359 = vld [vmem:[%s3349] sm:%s3358]
    %v3360 = vunpack.c.l.bf16 %v3359
    %v3361 = vunpack.c.h.bf16 %v3359
    %s3362 = scalar_lea.vmem [#allocation1], 256
    %3363 = vst [vmem:[%s3362] sm:%s3] %v3360
    %s3364 = scalar_lea.vmem %s0, 124
    %s3365 = sshrl.u32 %s3, 1
    %s3366 = sor.u32 %s3, %s3365
    %s3367 = sand.u32 %s3366, 85
    %s3368 = sshrl.u32 %s3367, 1
    %s3369 = sor.u32 %s3367, %s3368
    %s3370 = sand.u32 51, %s3369
    %s3371 = sshrl.u32 %s3370, 2
    %s3372 = sor.u32 %s3370, %s3371
    %s3373 = sand.u32 15, %s3372
    %v3374 = vld [vmem:[%s3364] sm:%s3373]
    %v3375 = vunpack.c.l.bf16 %v3374
    %v3376 = vunpack.c.h.bf16 %v3374
    %s3377 = scalar_lea.vmem [#allocation1], 248
    %3378 = vst [vmem:[%s3377] sm:%s3] %v3375
    %s3379 = scalar_lea.vmem %s0, 120
    %s3380 = sshrl.u32 %s3, 1
    %s3381 = sor.u32 %s3, %s3380
    %s3382 = sand.u32 %s3381, 85
    %s3383 = sshrl.u32 %s3382, 1
    %s3384 = sor.u32 %s3382, %s3383
    %s3385 = sand.u32 51, %s3384
    %s3386 = sshrl.u32 %s3385, 2
    %s3387 = sor.u32 %s3385, %s3386
    %s3388 = sand.u32 15, %s3387
    %v3389 = vld [vmem:[%s3379] sm:%s3388]
    %v3390 = vunpack.c.l.bf16 %v3389
    %v3391 = vunpack.c.h.bf16 %v3389
    %s3392 = scalar_lea.vmem [#allocation1], 240
    %3393 = vst [vmem:[%s3392] sm:%s3] %v3390
    %s3394 = scalar_lea.vmem %s0, 116
    %s3395 = sshrl.u32 %s3, 1
    %s3396 = sor.u32 %s3, %s3395
    %s3397 = sand.u32 %s3396, 85
    %s3398 = sshrl.u32 %s3397, 1
    %s3399 = sor.u32 %s3397, %s3398
    %s3400 = sand.u32 51, %s3399
    %s3401 = sshrl.u32 %s3400, 2
    %s3402 = sor.u32 %s3400, %s3401
    %s3403 = sand.u32 15, %s3402
    %v3404 = vld [vmem:[%s3394] sm:%s3403]
    %v3405 = vunpack.c.l.bf16 %v3404
    %v3406 = vunpack.c.h.bf16 %v3404
    %s3407 = scalar_lea.vmem [#allocation1], 232
    %3408 = vst [vmem:[%s3407] sm:%s3] %v3405
    %s3409 = scalar_lea.vmem %s0, 112
    %s3410 = sshrl.u32 %s3, 1
    %s3411 = sor.u32 %s3, %s3410
    %s3412 = sand.u32 %s3411, 85
    %s3413 = sshrl.u32 %s3412, 1
    %s3414 = sor.u32 %s3412, %s3413
    %s3415 = sand.u32 51, %s3414
    %s3416 = sshrl.u32 %s3415, 2
    %s3417 = sor.u32 %s3415, %s3416
    %s3418 = sand.u32 15, %s3417
    %v3419 = vld [vmem:[%s3409] sm:%s3418]
    %v3420 = vunpack.c.l.bf16 %v3419
    %v3421 = vunpack.c.h.bf16 %v3419
    %s3422 = scalar_lea.vmem [#allocation1], 224
    %3423 = vst [vmem:[%s3422] sm:%s3] %v3420
    %s3424 = scalar_lea.vmem %s0, 108
    %s3425 = sshrl.u32 %s3, 1
    %s3426 = sor.u32 %s3, %s3425
    %s3427 = sand.u32 %s3426, 85
    %s3428 = sshrl.u32 %s3427, 1
    %s3429 = sor.u32 %s3427, %s3428
    %s3430 = sand.u32 51, %s3429
    %s3431 = sshrl.u32 %s3430, 2
    %s3432 = sor.u32 %s3430, %s3431
    %s3433 = sand.u32 15, %s3432
    %v3434 = vld [vmem:[%s3424] sm:%s3433]
    %v3435 = vunpack.c.l.bf16 %v3434
    %v3436 = vunpack.c.h.bf16 %v3434
    %s3437 = scalar_lea.vmem [#allocation1], 216
    %3438 = vst [vmem:[%s3437] sm:%s3] %v3435
    %s3439 = scalar_lea.vmem %s0, 104
    %s3440 = sshrl.u32 %s3, 1
    %s3441 = sor.u32 %s3, %s3440
    %s3442 = sand.u32 %s3441, 85
    %s3443 = sshrl.u32 %s3442, 1
    %s3444 = sor.u32 %s3442, %s3443
    %s3445 = sand.u32 51, %s3444
    %s3446 = sshrl.u32 %s3445, 2
    %s3447 = sor.u32 %s3445, %s3446
    %s3448 = sand.u32 15, %s3447
    %v3449 = vld [vmem:[%s3439] sm:%s3448]
    %v3450 = vunpack.c.l.bf16 %v3449
    %v3451 = vunpack.c.h.bf16 %v3449
    %s3452 = scalar_lea.vmem [#allocation1], 208
    %3453 = vst [vmem:[%s3452] sm:%s3] %v3450
    %s3454 = scalar_lea.vmem %s0, 100
    %s3455 = sshrl.u32 %s3, 1
    %s3456 = sor.u32 %s3, %s3455
    %s3457 = sand.u32 %s3456, 85
    %s3458 = sshrl.u32 %s3457, 1
    %s3459 = sor.u32 %s3457, %s3458
    %s3460 = sand.u32 51, %s3459
    %s3461 = sshrl.u32 %s3460, 2
    %s3462 = sor.u32 %s3460, %s3461
    %s3463 = sand.u32 15, %s3462
    %v3464 = vld [vmem:[%s3454] sm:%s3463]
    %v3465 = vunpack.c.l.bf16 %v3464
    %v3466 = vunpack.c.h.bf16 %v3464
    %s3467 = scalar_lea.vmem [#allocation1], 200
    %3468 = vst [vmem:[%s3467] sm:%s3] %v3465
    %s3469 = scalar_lea.vmem %s0, 96
    %s3470 = sshrl.u32 %s3, 1
    %s3471 = sor.u32 %s3, %s3470
    %s3472 = sand.u32 %s3471, 85
    %s3473 = sshrl.u32 %s3472, 1
    %s3474 = sor.u32 %s3472, %s3473
    %s3475 = sand.u32 51, %s3474
    %s3476 = sshrl.u32 %s3475, 2
    %s3477 = sor.u32 %s3475, %s3476
    %s3478 = sand.u32 15, %s3477
    %v3479 = vld [vmem:[%s3469] sm:%s3478]
    %v3480 = vunpack.c.l.bf16 %v3479
    %v3481 = vunpack.c.h.bf16 %v3479
    %s3482 = scalar_lea.vmem [#allocation1], 192
    %3483 = vst [vmem:[%s3482] sm:%s3] %v3480
    %s3484 = scalar_lea.vmem %s0, 92
    %s3485 = sshrl.u32 %s3, 1
    %s3486 = sor.u32 %s3, %s3485
    %s3487 = sand.u32 %s3486, 85
    %s3488 = sshrl.u32 %s3487, 1
    %s3489 = sor.u32 %s3487, %s3488
    %s3490 = sand.u32 51, %s3489
    %s3491 = sshrl.u32 %s3490, 2
    %s3492 = sor.u32 %s3490, %s3491
    %s3493 = sand.u32 15, %s3492
    %v3494 = vld [vmem:[%s3484] sm:%s3493]
    %v3495 = vunpack.c.l.bf16 %v3494
    %v3496 = vunpack.c.h.bf16 %v3494
    %s3497 = scalar_lea.vmem [#allocation1], 184
    %3498 = vst [vmem:[%s3497] sm:%s3] %v3495
    %s3499 = scalar_lea.vmem %s0, 88
    %s3500 = sshrl.u32 %s3, 1
    %s3501 = sor.u32 %s3, %s3500
    %s3502 = sand.u32 %s3501, 85
    %s3503 = sshrl.u32 %s3502, 1
    %s3504 = sor.u32 %s3502, %s3503
    %s3505 = sand.u32 51, %s3504
    %s3506 = sshrl.u32 %s3505, 2
    %s3507 = sor.u32 %s3505, %s3506
    %s3508 = sand.u32 15, %s3507
    %v3509 = vld [vmem:[%s3499] sm:%s3508]
    %v3510 = vunpack.c.l.bf16 %v3509
    %v3511 = vunpack.c.h.bf16 %v3509
    %s3512 = scalar_lea.vmem [#allocation1], 176
    %3513 = vst [vmem:[%s3512] sm:%s3] %v3510
    %s3514 = scalar_lea.vmem %s0, 84
    %s3515 = sshrl.u32 %s3, 1
    %s3516 = sor.u32 %s3, %s3515
    %s3517 = sand.u32 %s3516, 85
    %s3518 = sshrl.u32 %s3517, 1
    %s3519 = sor.u32 %s3517, %s3518
    %s3520 = sand.u32 51, %s3519
    %s3521 = sshrl.u32 %s3520, 2
    %s3522 = sor.u32 %s3520, %s3521
    %s3523 = sand.u32 15, %s3522
    %v3524 = vld [vmem:[%s3514] sm:%s3523]
    %v3525 = vunpack.c.l.bf16 %v3524
    %v3526 = vunpack.c.h.bf16 %v3524
    %s3527 = scalar_lea.vmem [#allocation1], 168
    %3528 = vst [vmem:[%s3527] sm:%s3] %v3525
    %s3529 = scalar_lea.vmem %s0, 80
    %s3530 = sshrl.u32 %s3, 1
    %s3531 = sor.u32 %s3, %s3530
    %s3532 = sand.u32 %s3531, 85
    %s3533 = sshrl.u32 %s3532, 1
    %s3534 = sor.u32 %s3532, %s3533
    %s3535 = sand.u32 51, %s3534
    %s3536 = sshrl.u32 %s3535, 2
    %s3537 = sor.u32 %s3535, %s3536
    %s3538 = sand.u32 15, %s3537
    %v3539 = vld [vmem:[%s3529] sm:%s3538]
    %v3540 = vunpack.c.l.bf16 %v3539
    %v3541 = vunpack.c.h.bf16 %v3539
    %s3542 = scalar_lea.vmem [#allocation1], 160
    %3543 = vst [vmem:[%s3542] sm:%s3] %v3540
    %s3544 = scalar_lea.vmem %s0, 76
    %s3545 = sshrl.u32 %s3, 1
    %s3546 = sor.u32 %s3, %s3545
    %s3547 = sand.u32 %s3546, 85
    %s3548 = sshrl.u32 %s3547, 1
    %s3549 = sor.u32 %s3547, %s3548
    %s3550 = sand.u32 51, %s3549
    %s3551 = sshrl.u32 %s3550, 2
    %s3552 = sor.u32 %s3550, %s3551
    %s3553 = sand.u32 15, %s3552
    %v3554 = vld [vmem:[%s3544] sm:%s3553]
    %v3555 = vunpack.c.l.bf16 %v3554
    %v3556 = vunpack.c.h.bf16 %v3554
    %s3557 = scalar_lea.vmem [#allocation1], 152
    %3558 = vst [vmem:[%s3557] sm:%s3] %v3555
    %s3559 = scalar_lea.vmem %s0, 72
    %s3560 = sshrl.u32 %s3, 1
    %s3561 = sor.u32 %s3, %s3560
    %s3562 = sand.u32 %s3561, 85
    %s3563 = sshrl.u32 %s3562, 1
    %s3564 = sor.u32 %s3562, %s3563
    %s3565 = sand.u32 51, %s3564
    %s3566 = sshrl.u32 %s3565, 2
    %s3567 = sor.u32 %s3565, %s3566
    %s3568 = sand.u32 15, %s3567
    %v3569 = vld [vmem:[%s3559] sm:%s3568]
    %v3570 = vunpack.c.l.bf16 %v3569
    %v3571 = vunpack.c.h.bf16 %v3569
    %s3572 = scalar_lea.vmem [#allocation1], 144
    %3573 = vst [vmem:[%s3572] sm:%s3] %v3570
    %s3574 = scalar_lea.vmem %s0, 68
    %s3575 = sshrl.u32 %s3, 1
    %s3576 = sor.u32 %s3, %s3575
    %s3577 = sand.u32 %s3576, 85
    %s3578 = sshrl.u32 %s3577, 1
    %s3579 = sor.u32 %s3577, %s3578
    %s3580 = sand.u32 51, %s3579
    %s3581 = sshrl.u32 %s3580, 2
    %s3582 = sor.u32 %s3580, %s3581
    %s3583 = sand.u32 15, %s3582
    %v3584 = vld [vmem:[%s3574] sm:%s3583]
    %v3585 = vunpack.c.l.bf16 %v3584
    %v3586 = vunpack.c.h.bf16 %v3584
    %s3587 = scalar_lea.vmem [#allocation1], 136
    %3588 = vst [vmem:[%s3587] sm:%s3] %v3585
    %s3589 = scalar_lea.vmem %s0, 64
    %s3590 = sshrl.u32 %s3, 1
    %s3591 = sor.u32 %s3, %s3590
    %s3592 = sand.u32 %s3591, 85
    %s3593 = sshrl.u32 %s3592, 1
    %s3594 = sor.u32 %s3592, %s3593
    %s3595 = sand.u32 51, %s3594
    %s3596 = sshrl.u32 %s3595, 2
    %s3597 = sor.u32 %s3595, %s3596
    %s3598 = sand.u32 15, %s3597
    %v3599 = vld [vmem:[%s3589] sm:%s3598]
    %v3600 = vunpack.c.l.bf16 %v3599
    %v3601 = vunpack.c.h.bf16 %v3599
    %s3602 = scalar_lea.vmem [#allocation1], 128
    %3603 = vst [vmem:[%s3602] sm:%s3] %v3600
    %s3604 = scalar_lea.vmem %s0, 60
    %s3605 = sshrl.u32 %s3, 1
    %s3606 = sor.u32 %s3, %s3605
    %s3607 = sand.u32 %s3606, 85
    %s3608 = sshrl.u32 %s3607, 1
    %s3609 = sor.u32 %s3607, %s3608
    %s3610 = sand.u32 51, %s3609
    %s3611 = sshrl.u32 %s3610, 2
    %s3612 = sor.u32 %s3610, %s3611
    %s3613 = sand.u32 15, %s3612
    %v3614 = vld [vmem:[%s3604] sm:%s3613]
    %v3615 = vunpack.c.l.bf16 %v3614
    %v3616 = vunpack.c.h.bf16 %v3614
    %s3617 = scalar_lea.vmem [#allocation1], 120
    %3618 = vst [vmem:[%s3617] sm:%s3] %v3615
    %s3619 = scalar_lea.vmem %s0, 56
    %s3620 = sshrl.u32 %s3, 1
    %s3621 = sor.u32 %s3, %s3620
    %s3622 = sand.u32 %s3621, 85
    %s3623 = sshrl.u32 %s3622, 1
    %s3624 = sor.u32 %s3622, %s3623
    %s3625 = sand.u32 51, %s3624
    %s3626 = sshrl.u32 %s3625, 2
    %s3627 = sor.u32 %s3625, %s3626
    %s3628 = sand.u32 15, %s3627
    %v3629 = vld [vmem:[%s3619] sm:%s3628]
    %v3630 = vunpack.c.l.bf16 %v3629
    %v3631 = vunpack.c.h.bf16 %v3629
    %s3632 = scalar_lea.vmem [#allocation1], 112
    %3633 = vst [vmem:[%s3632] sm:%s3] %v3630
    %s3634 = scalar_lea.vmem %s0, 52
    %s3635 = sshrl.u32 %s3, 1
    %s3636 = sor.u32 %s3, %s3635
    %s3637 = sand.u32 %s3636, 85
    %s3638 = sshrl.u32 %s3637, 1
    %s3639 = sor.u32 %s3637, %s3638
    %s3640 = sand.u32 51, %s3639
    %s3641 = sshrl.u32 %s3640, 2
    %s3642 = sor.u32 %s3640, %s3641
    %s3643 = sand.u32 15, %s3642
    %v3644 = vld [vmem:[%s3634] sm:%s3643]
    %v3645 = vunpack.c.l.bf16 %v3644
    %v3646 = vunpack.c.h.bf16 %v3644
    %s3647 = scalar_lea.vmem [#allocation1], 104
    %3648 = vst [vmem:[%s3647] sm:%s3] %v3645
    %s3649 = scalar_lea.vmem %s0, 48
    %s3650 = sshrl.u32 %s3, 1
    %s3651 = sor.u32 %s3, %s3650
    %s3652 = sand.u32 %s3651, 85
    %s3653 = sshrl.u32 %s3652, 1
    %s3654 = sor.u32 %s3652, %s3653
    %s3655 = sand.u32 51, %s3654
    %s3656 = sshrl.u32 %s3655, 2
    %s3657 = sor.u32 %s3655, %s3656
    %s3658 = sand.u32 15, %s3657
    %v3659 = vld [vmem:[%s3649] sm:%s3658]
    %v3660 = vunpack.c.l.bf16 %v3659
    %v3661 = vunpack.c.h.bf16 %v3659
    %s3662 = scalar_lea.vmem [#allocation1], 96
    %3663 = vst [vmem:[%s3662] sm:%s3] %v3660
    %s3664 = scalar_lea.vmem %s0, 44
    %s3665 = sshrl.u32 %s3, 1
    %s3666 = sor.u32 %s3, %s3665
    %s3667 = sand.u32 %s3666, 85
    %s3668 = sshrl.u32 %s3667, 1
    %s3669 = sor.u32 %s3667, %s3668
    %s3670 = sand.u32 51, %s3669
    %s3671 = sshrl.u32 %s3670, 2
    %s3672 = sor.u32 %s3670, %s3671
    %s3673 = sand.u32 15, %s3672
    %v3674 = vld [vmem:[%s3664] sm:%s3673]
    %v3675 = vunpack.c.l.bf16 %v3674
    %v3676 = vunpack.c.h.bf16 %v3674
    %s3677 = scalar_lea.vmem [#allocation1], 88
    %3678 = vst [vmem:[%s3677] sm:%s3] %v3675
    %s3679 = scalar_lea.vmem %s0, 40
    %s3680 = sshrl.u32 %s3, 1
    %s3681 = sor.u32 %s3, %s3680
    %s3682 = sand.u32 %s3681, 85
    %s3683 = sshrl.u32 %s3682, 1
    %s3684 = sor.u32 %s3682, %s3683
    %s3685 = sand.u32 51, %s3684
    %s3686 = sshrl.u32 %s3685, 2
    %s3687 = sor.u32 %s3685, %s3686
    %s3688 = sand.u32 15, %s3687
    %v3689 = vld [vmem:[%s3679] sm:%s3688]
    %v3690 = vunpack.c.l.bf16 %v3689
    %v3691 = vunpack.c.h.bf16 %v3689
    %s3692 = scalar_lea.vmem [#allocation1], 80
    %3693 = vst [vmem:[%s3692] sm:%s3] %v3690
    %s3694 = scalar_lea.vmem %s0, 36
    %s3695 = sshrl.u32 %s3, 1
    %s3696 = sor.u32 %s3, %s3695
    %s3697 = sand.u32 %s3696, 85
    %s3698 = sshrl.u32 %s3697, 1
    %s3699 = sor.u32 %s3697, %s3698
    %s3700 = sand.u32 51, %s3699
    %s3701 = sshrl.u32 %s3700, 2
    %s3702 = sor.u32 %s3700, %s3701
    %s3703 = sand.u32 15, %s3702
    %v3704 = vld [vmem:[%s3694] sm:%s3703]
    %v3705 = vunpack.c.l.bf16 %v3704
    %v3706 = vunpack.c.h.bf16 %v3704
    %s3707 = scalar_lea.vmem [#allocation1], 72
    %3708 = vst [vmem:[%s3707] sm:%s3] %v3705
    %s3709 = scalar_lea.vmem %s0, 32
    %s3710 = sshrl.u32 %s3, 1
    %s3711 = sor.u32 %s3, %s3710
    %s3712 = sand.u32 %s3711, 85
    %s3713 = sshrl.u32 %s3712, 1
    %s3714 = sor.u32 %s3712, %s3713
    %s3715 = sand.u32 51, %s3714
    %s3716 = sshrl.u32 %s3715, 2
    %s3717 = sor.u32 %s3715, %s3716
    %s3718 = sand.u32 15, %s3717
    %v3719 = vld [vmem:[%s3709] sm:%s3718]
    %v3720 = vunpack.c.l.bf16 %v3719
    %v3721 = vunpack.c.h.bf16 %v3719
    %s3722 = scalar_lea.vmem [#allocation1], 64
    %3723 = vst [vmem:[%s3722] sm:%s3] %v3720
    %s3724 = scalar_lea.vmem %s0, 28
    %s3725 = sshrl.u32 %s3, 1
    %s3726 = sor.u32 %s3, %s3725
    %s3727 = sand.u32 %s3726, 85
    %s3728 = sshrl.u32 %s3727, 1
    %s3729 = sor.u32 %s3727, %s3728
    %s3730 = sand.u32 51, %s3729
    %s3731 = sshrl.u32 %s3730, 2
    %s3732 = sor.u32 %s3730, %s3731
    %s3733 = sand.u32 15, %s3732
    %v3734 = vld [vmem:[%s3724] sm:%s3733]
    %v3735 = vunpack.c.l.bf16 %v3734
    %v3736 = vunpack.c.h.bf16 %v3734
    %s3737 = scalar_lea.vmem [#allocation1], 56
    %3738 = vst [vmem:[%s3737] sm:%s3] %v3735
    %s3739 = scalar_lea.vmem %s0, 24
    %s3740 = sshrl.u32 %s3, 1
    %s3741 = sor.u32 %s3, %s3740
    %s3742 = sand.u32 %s3741, 85
    %s3743 = sshrl.u32 %s3742, 1
    %s3744 = sor.u32 %s3742, %s3743
    %s3745 = sand.u32 51, %s3744
    %s3746 = sshrl.u32 %s3745, 2
    %s3747 = sor.u32 %s3745, %s3746
    %s3748 = sand.u32 15, %s3747
    %v3749 = vld [vmem:[%s3739] sm:%s3748]
    %v3750 = vunpack.c.l.bf16 %v3749
    %v3751 = vunpack.c.h.bf16 %v3749
    %s3752 = scalar_lea.vmem [#allocation1], 48
    %3753 = vst [vmem:[%s3752] sm:%s3] %v3750
    %s3754 = scalar_lea.vmem %s0, 20
    %s3755 = sshrl.u32 %s3, 1
    %s3756 = sor.u32 %s3, %s3755
    %s3757 = sand.u32 %s3756, 85
    %s3758 = sshrl.u32 %s3757, 1
    %s3759 = sor.u32 %s3757, %s3758
    %s3760 = sand.u32 51, %s3759
    %s3761 = sshrl.u32 %s3760, 2
    %s3762 = sor.u32 %s3760, %s3761
    %s3763 = sand.u32 15, %s3762
    %v3764 = vld [vmem:[%s3754] sm:%s3763]
    %v3765 = vunpack.c.l.bf16 %v3764
    %v3766 = vunpack.c.h.bf16 %v3764
    %s3767 = scalar_lea.vmem [#allocation1], 40
    %3768 = vst [vmem:[%s3767] sm:%s3] %v3765
    %s3769 = scalar_lea.vmem %s0, 16
    %s3770 = sshrl.u32 %s3, 1
    %s3771 = sor.u32 %s3, %s3770
    %s3772 = sand.u32 %s3771, 85
    %s3773 = sshrl.u32 %s3772, 1
    %s3774 = sor.u32 %s3772, %s3773
    %s3775 = sand.u32 51, %s3774
    %s3776 = sshrl.u32 %s3775, 2
    %s3777 = sor.u32 %s3775, %s3776
    %s3778 = sand.u32 15, %s3777
    %v3779 = vld [vmem:[%s3769] sm:%s3778]
    %v3780 = vunpack.c.l.bf16 %v3779
    %v3781 = vunpack.c.h.bf16 %v3779
    %s3782 = scalar_lea.vmem [#allocation1], 32
    %3783 = vst [vmem:[%s3782] sm:%s3] %v3780
    %s3784 = scalar_lea.vmem %s0, 12
    %s3785 = sshrl.u32 %s3, 1
    %s3786 = sor.u32 %s3, %s3785
    %s3787 = sand.u32 %s3786, 85
    %s3788 = sshrl.u32 %s3787, 1
    %s3789 = sor.u32 %s3787, %s3788
    %s3790 = sand.u32 51, %s3789
    %s3791 = sshrl.u32 %s3790, 2
    %s3792 = sor.u32 %s3790, %s3791
    %s3793 = sand.u32 15, %s3792
    %v3794 = vld [vmem:[%s3784] sm:%s3793]
    %v3795 = vunpack.c.l.bf16 %v3794
    %v3796 = vunpack.c.h.bf16 %v3794
    %s3797 = scalar_lea.vmem [#allocation1], 24
    %3798 = vst [vmem:[%s3797] sm:%s3] %v3795
    %s3799 = scalar_lea.vmem %s0, 8
    %s3800 = sshrl.u32 %s3, 1
    %s3801 = sor.u32 %s3, %s3800
    %s3802 = sand.u32 %s3801, 85
    %s3803 = sshrl.u32 %s3802, 1
    %s3804 = sor.u32 %s3802, %s3803
    %s3805 = sand.u32 51, %s3804
    %s3806 = sshrl.u32 %s3805, 2
    %s3807 = sor.u32 %s3805, %s3806
    %s3808 = sand.u32 15, %s3807
    %v3809 = vld [vmem:[%s3799] sm:%s3808]
    %v3810 = vunpack.c.l.bf16 %v3809
    %v3811 = vunpack.c.h.bf16 %v3809
    %s3812 = scalar_lea.vmem [#allocation1], 16
    %3813 = vst [vmem:[%s3812] sm:%s3] %v3810
    %s3814 = scalar_lea.vmem %s0, 4
    %s3815 = sshrl.u32 %s3, 1
    %s3816 = sor.u32 %s3, %s3815
    %s3817 = sand.u32 %s3816, 85
    %s3818 = sshrl.u32 %s3817, 1
    %s3819 = sor.u32 %s3817, %s3818
    %s3820 = sand.u32 51, %s3819
    %s3821 = sshrl.u32 %s3820, 2
    %s3822 = sor.u32 %s3820, %s3821
    %s3823 = sand.u32 15, %s3822
    %v3824 = vld [vmem:[%s3814] sm:%s3823]
    %v3825 = vunpack.c.l.bf16 %v3824
    %v3826 = vunpack.c.h.bf16 %v3824
    %s3827 = scalar_lea.vmem [#allocation1], 8
    %3828 = vst [vmem:[%s3827] sm:%s3] %v3825
    %s3829 = sshrl.u32 %s3, 1
    %s3830 = sor.u32 %s3, %s3829
    %s3831 = sand.u32 %s3830, 85
    %s3832 = sshrl.u32 %s3831, 1
    %s3833 = sor.u32 %s3831, %s3832
    %s3834 = sand.u32 51, %s3833
    %s3835 = sshrl.u32 %s3834, 2
    %s3836 = sor.u32 %s3834, %s3835
    %s3837 = sand.u32 15, %s3836
    %v3838 = vld [vmem:[%s0] sm:%s3837]
    %v3839 = vunpack.c.l.bf16 %v3838
    %v3840 = vunpack.c.h.bf16 %v3838
    %3841 = vst [vmem:[#allocation1] sm:%s3] %v3839
    %s3842 = smov 3
    %v3843 = vld [vmem:[#allocation1] ss:$16 sm:%s3842]
    %s3844 = smov 12
    %v3845 = vld [vmem:[#allocation1] ss:$16 sm:%s3844]
    %vm3846 = vcmask 1043458
    %v3847 = vsel %vm3846, %v3845, %v3843
    %s3848 = smov 48
    %v3849 = vld [vmem:[#allocation1] ss:$16 sm:%s3848]
    %vm3850 = vcmask 1045508
    %v3851 = vsel %vm3850, %v3849, %v3847
    %s3852 = smov 192
    %v3853 = vld [vmem:[#allocation1] ss:$16 sm:%s3852]
    %vm3854 = vcmask 1047558
    %v3855 = vsel %vm3854, %v3853, %v3851
    %vm3856 = vcmask 64512
    %3857 = vst.msk [vmem:[#allocation0] sm:$0xff] %vm3856, %v3855
    %s3858 = scalar_lea.vmem [#allocation1], 128
    %s3859 = smov 3
    %v3860 = vld [vmem:[%s3858] ss:$16 sm:%s3859]
    %s3861 = scalar_lea.vmem [#allocation1], 128
    %s3862 = smov 12
    %v3863 = vld [vmem:[%s3861] ss:$16 sm:%s3862]
    %vm3864 = vcmask 1043458
    %v3865 = vsel %vm3864, %v3863, %v3860
    %s3866 = scalar_lea.vmem [#allocation1], 128
    %s3867 = smov 48
    %v3868 = vld [vmem:[%s3866] ss:$16 sm:%s3867]
    %vm3869 = vcmask 1045508
    %v3870 = vsel %vm3869, %v3868, %v3865
    %s3871 = scalar_lea.vmem [#allocation1], 128
    %s3872 = smov 192
    %v3873 = vld [vmem:[%s3871] ss:$16 sm:%s3872]
    %vm3874 = vcmask 1047558
    %v3875 = vsel %vm3874, %v3873, %v3870
    %vm3876 = vcmask 64512
    %s3877 = scalar_lea.vmem [#allocation0], 8
    %3878 = vst.msk [vmem:[%s3877] sm:$0xff] %vm3876, %v3875
    %s3879 = scalar_lea.vmem [#allocation1], 256
    %s3880 = smov 3
    %v3881 = vld [vmem:[%s3879] ss:$16 sm:%s3880]
    %s3882 = scalar_lea.vmem [#allocation1], 256
    %s3883 = smov 12
    %v3884 = vld [vmem:[%s3882] ss:$16 sm:%s3883]
    %vm3885 = vcmask 1043458
    %v3886 = vsel %vm3885, %v3884, %v3881
    %s3887 = scalar_lea.vmem [#allocation1], 256
    %s3888 = smov 48
    %v3889 = vld [vmem:[%s3887] ss:$16 sm:%s3888]
    %vm3890 = vcmask 1045508
    %v3891 = vsel %vm3890, %v3889, %v3886
    %s3892 = scalar_lea.vmem [#allocation1], 256
    %s3893 = smov 192
    %v3894 = vld [vmem:[%s3892] ss:$16 sm:%s3893]
    %vm3895 = vcmask 1047558
    %v3896 = vsel %vm3895, %v3894, %v3891
    %vm3897 = vcmask 64512
    %s3898 = scalar_lea.vmem [#allocation0], 16
    %3899 = vst.msk [vmem:[%s3898] sm:$0xff] %vm3897, %v3896
    %s3900 = scalar_lea.vmem [#allocation1], 384
    %s3901 = smov 3
    %v3902 = vld [vmem:[%s3900] ss:$16 sm:%s3901]
    %s3903 = scalar_lea.vmem [#allocation1], 384
    %s3904 = smov 12
    %v3905 = vld [vmem:[%s3903] ss:$16 sm:%s3904]
    %vm3906 = vcmask 1043458
    %v3907 = vsel %vm3906, %v3905, %v3902
    %s3908 = scalar_lea.vmem [#allocation1], 384
    %s3909 = smov 48
    %v3910 = vld [vmem:[%s3908] ss:$16 sm:%s3909]
    %vm3911 = vcmask 1045508
    %v3912 = vsel %vm3911, %v3910, %v3907
    %s3913 = scalar_lea.vmem [#allocation1], 384
    %s3914 = smov 192
    %v3915 = vld [vmem:[%s3913] ss:$16 sm:%s3914]
    %vm3916 = vcmask 1047558
    %v3917 = vsel %vm3916, %v3915, %v3912
    %vm3918 = vcmask 64512
    %s3919 = scalar_lea.vmem [#allocation0], 24
    %3920 = vst.msk [vmem:[%s3919] sm:$0xff] %vm3918, %v3917
    %s3921 = scalar_lea.vmem [#allocation1], 512
    %s3922 = smov 3
    %v3923 = vld [vmem:[%s3921] ss:$16 sm:%s3922]
    %s3924 = scalar_lea.vmem [#allocation1], 512
    %s3925 = smov 12
    %v3926 = vld [vmem:[%s3924] ss:$16 sm:%s3925]
    %vm3927 = vcmask 1043458
    %v3928 = vsel %vm3927, %v3926, %v3923
    %s3929 = scalar_lea.vmem [#allocation1], 512
    %s3930 = smov 48
    %v3931 = vld [vmem:[%s3929] ss:$16 sm:%s3930]
    %vm3932 = vcmask 1045508
    %v3933 = vsel %vm3932, %v3931, %v3928
    %s3934 = scalar_lea.vmem [#allocation1], 512
    %s3935 = smov 192
    %v3936 = vld [vmem:[%s3934] ss:$16 sm:%s3935]
    %vm3937 = vcmask 1047558
    %v3938 = vsel %vm3937, %v3936, %v3933
    %vm3939 = vcmask 64512
    %s3940 = scalar_lea.vmem [#allocation0], 32
    %3941 = vst.msk [vmem:[%s3940] sm:$0xff] %vm3939, %v3938
    %s3942 = scalar_lea.vmem [#allocation1], 640
    %s3943 = smov 3
    %v3944 = vld [vmem:[%s3942] ss:$16 sm:%s3943]
    %s3945 = scalar_lea.vmem [#allocation1], 640
    %s3946 = smov 12
    %v3947 = vld [vmem:[%s3945] ss:$16 sm:%s3946]
    %vm3948 = vcmask 1043458
    %v3949 = vsel %vm3948, %v3947, %v3944
    %s3950 = scalar_lea.vmem [#allocation1], 640
    %s3951 = smov 48
    %v3952 = vld [vmem:[%s3950] ss:$16 sm:%s3951]
    %vm3953 = vcmask 1045508
    %v3954 = vsel %vm3953, %v3952, %v3949
    %s3955 = scalar_lea.vmem [#allocation1], 640
    %s3956 = smov 192
    %v3957 = vld [vmem:[%s3955] ss:$16 sm:%s3956]
    %vm3958 = vcmask 1047558
    %v3959 = vsel %vm3958, %v3957, %v3954
    %vm3960 = vcmask 64512
    %s3961 = scalar_lea.vmem [#allocation0], 40
    %3962 = vst.msk [vmem:[%s3961] sm:$0xff] %vm3960, %v3959
    %s3963 = scalar_lea.vmem [#allocation1], 768
    %s3964 = smov 3
    %v3965 = vld [vmem:[%s3963] ss:$16 sm:%s3964]
    %s3966 = scalar_lea.vmem [#allocation1], 768
    %s3967 = smov 12
    %v3968 = vld [vmem:[%s3966] ss:$16 sm:%s3967]
    %vm3969 = vcmask 1043458
    %v3970 = vsel %vm3969, %v3968, %v3965
    %s3971 = scalar_lea.vmem [#allocation1], 768
    %s3972 = smov 48
    %v3973 = vld [vmem:[%s3971] ss:$16 sm:%s3972]
    %vm3974 = vcmask 1045508
    %v3975 = vsel %vm3974, %v3973, %v3970
    %s3976 = scalar_lea.vmem [#allocation1], 768
    %s3977 = smov 192
    %v3978 = vld [vmem:[%s3976] ss:$16 sm:%s3977]
    %vm3979 = vcmask 1047558
    %v3980 = vsel %vm3979, %v3978, %v3975
    %vm3981 = vcmask 64512
    %s3982 = scalar_lea.vmem [#allocation0], 48
    %3983 = vst.msk [vmem:[%s3982] sm:$0xff] %vm3981, %v3980
    %s3984 = scalar_lea.vmem [#allocation1], 896
    %s3985 = smov 3
    %v3986 = vld [vmem:[%s3984] ss:$16 sm:%s3985]
    %s3987 = scalar_lea.vmem [#allocation1], 896
    %s3988 = smov 12
    %v3989 = vld [vmem:[%s3987] ss:$16 sm:%s3988]
    %vm3990 = vcmask 1043458
    %v3991 = vsel %vm3990, %v3989, %v3986
    %s3992 = scalar_lea.vmem [#allocation1], 896
    %s3993 = smov 48
    %v3994 = vld [vmem:[%s3992] ss:$16 sm:%s3993]
    %vm3995 = vcmask 1045508
    %v3996 = vsel %vm3995, %v3994, %v3991
    %s3997 = scalar_lea.vmem [#allocation1], 896
    %s3998 = smov 192
    %v3999 = vld [vmem:[%s3997] ss:$16 sm:%s3998]
    %vm4000 = vcmask 1047558
    %v4001 = vsel %vm4000, %v3999, %v3996
    %vm4002 = vcmask 64512
    %s4003 = scalar_lea.vmem [#allocation0], 56
    %4004 = vst.msk [vmem:[%s4003] sm:$0xff] %vm4002, %v4001
    %s4005 = scalar_lea.vmem [#allocation1], 1024
    %s4006 = smov 3
    %v4007 = vld [vmem:[%s4005] ss:$16 sm:%s4006]
    %s4008 = scalar_lea.vmem [#allocation1], 1024
    %s4009 = smov 12
    %v4010 = vld [vmem:[%s4008] ss:$16 sm:%s4009]
    %vm4011 = vcmask 1043458
    %v4012 = vsel %vm4011, %v4010, %v4007
    %s4013 = scalar_lea.vmem [#allocation1], 1024
    %s4014 = smov 48
    %v4015 = vld [vmem:[%s4013] ss:$16 sm:%s4014]
    %vm4016 = vcmask 1045508
    %v4017 = vsel %vm4016, %v4015, %v4012
    %s4018 = scalar_lea.vmem [#allocation1], 1024
    %s4019 = smov 192
    %v4020 = vld [vmem:[%s4018] ss:$16 sm:%s4019]
    %vm4021 = vcmask 1047558
    %v4022 = vsel %vm4021, %v4020, %v4017
    %vm4023 = vcmask 64512
    %s4024 = scalar_lea.vmem [#allocation0], 64
    %4025 = vst.msk [vmem:[%s4024] sm:$0xff] %vm4023, %v4022
    %s4026 = scalar_lea.vmem [#allocation1], 1152
    %s4027 = smov 3
    %v4028 = vld [vmem:[%s4026] ss:$16 sm:%s4027]
    %s4029 = scalar_lea.vmem [#allocation1], 1152
    %s4030 = smov 12
    %v4031 = vld [vmem:[%s4029] ss:$16 sm:%s4030]
    %vm4032 = vcmask 1043458
    %v4033 = vsel %vm4032, %v4031, %v4028
    %s4034 = scalar_lea.vmem [#allocation1], 1152
    %s4035 = smov 48
    %v4036 = vld [vmem:[%s4034] ss:$16 sm:%s4035]
    %vm4037 = vcmask 1045508
    %v4038 = vsel %vm4037, %v4036, %v4033
    %s4039 = scalar_lea.vmem [#allocation1], 1152
    %s4040 = smov 192
    %v4041 = vld [vmem:[%s4039] ss:$16 sm:%s4040]
    %vm4042 = vcmask 1047558
    %v4043 = vsel %vm4042, %v4041, %v4038
    %vm4044 = vcmask 64512
    %s4045 = scalar_lea.vmem [#allocation0], 72
    %4046 = vst.msk [vmem:[%s4045] sm:$0xff] %vm4044, %v4043
    %s4047 = scalar_lea.vmem [#allocation1], 1280
    %s4048 = smov 3
    %v4049 = vld [vmem:[%s4047] ss:$16 sm:%s4048]
    %s4050 = scalar_lea.vmem [#allocation1], 1280
    %s4051 = smov 12
    %v4052 = vld [vmem:[%s4050] ss:$16 sm:%s4051]
    %vm4053 = vcmask 1043458
    %v4054 = vsel %vm4053, %v4052, %v4049
    %s4055 = scalar_lea.vmem [#allocation1], 1280
    %s4056 = smov 48
    %v4057 = vld [vmem:[%s4055] ss:$16 sm:%s4056]
    %vm4058 = vcmask 1045508
    %v4059 = vsel %vm4058, %v4057, %v4054
    %s4060 = scalar_lea.vmem [#allocation1], 1280
    %s4061 = smov 192
    %v4062 = vld [vmem:[%s4060] ss:$16 sm:%s4061]
    %vm4063 = vcmask 1047558
    %v4064 = vsel %vm4063, %v4062, %v4059
    %vm4065 = vcmask 64512
    %s4066 = scalar_lea.vmem [#allocation0], 80
    %4067 = vst.msk [vmem:[%s4066] sm:$0xff] %vm4065, %v4064
    %s4068 = scalar_lea.vmem [#allocation1], 1408
    %s4069 = smov 3
    %v4070 = vld [vmem:[%s4068] ss:$16 sm:%s4069]
    %s4071 = scalar_lea.vmem [#allocation1], 1408
    %s4072 = smov 12
    %v4073 = vld [vmem:[%s4071] ss:$16 sm:%s4072]
    %vm4074 = vcmask 1043458
    %v4075 = vsel %vm4074, %v4073, %v4070
    %s4076 = scalar_lea.vmem [#allocation1], 1408
    %s4077 = smov 48
    %v4078 = vld [vmem:[%s4076] ss:$16 sm:%s4077]
    %vm4079 = vcmask 1045508
    %v4080 = vsel %vm4079, %v4078, %v4075
    %s4081 = scalar_lea.vmem [#allocation1], 1408
    %s4082 = smov 192
    %v4083 = vld [vmem:[%s4081] ss:$16 sm:%s4082]
    %vm4084 = vcmask 1047558
    %v4085 = vsel %vm4084, %v4083, %v4080
    %vm4086 = vcmask 64512
    %s4087 = scalar_lea.vmem [#allocation0], 88
    %4088 = vst.msk [vmem:[%s4087] sm:$0xff] %vm4086, %v4085
    %s4089 = scalar_lea.vmem [#allocation1], 1536
    %s4090 = smov 3
    %v4091 = vld [vmem:[%s4089] ss:$16 sm:%s4090]
    %s4092 = scalar_lea.vmem [#allocation1], 1536
    %s4093 = smov 12
    %v4094 = vld [vmem:[%s4092] ss:$16 sm:%s4093]
    %vm4095 = vcmask 1043458
    %v4096 = vsel %vm4095, %v4094, %v4091
    %s4097 = scalar_lea.vmem [#allocation1], 1536
    %s4098 = smov 48
    %v4099 = vld [vmem:[%s4097] ss:$16 sm:%s4098]
    %vm4100 = vcmask 1045508
    %v4101 = vsel %vm4100, %v4099, %v4096
    %s4102 = scalar_lea.vmem [#allocation1], 1536
    %s4103 = smov 192
    %v4104 = vld [vmem:[%s4102] ss:$16 sm:%s4103]
    %vm4105 = vcmask 1047558
    %v4106 = vsel %vm4105, %v4104, %v4101
    %vm4107 = vcmask 64512
    %s4108 = scalar_lea.vmem [#allocation0], 96
    %4109 = vst.msk [vmem:[%s4108] sm:$0xff] %vm4107, %v4106
    %s4110 = scalar_lea.vmem [#allocation1], 1664
    %s4111 = smov 3
    %v4112 = vld [vmem:[%s4110] ss:$16 sm:%s4111]
    %s4113 = scalar_lea.vmem [#allocation1], 1664
    %s4114 = smov 12
    %v4115 = vld [vmem:[%s4113] ss:$16 sm:%s4114]
    %vm4116 = vcmask 1043458
    %v4117 = vsel %vm4116, %v4115, %v4112
    %s4118 = scalar_lea.vmem [#allocation1], 1664
    %s4119 = smov 48
    %v4120 = vld [vmem:[%s4118] ss:$16 sm:%s4119]
    %vm4121 = vcmask 1045508
    %v4122 = vsel %vm4121, %v4120, %v4117
    %s4123 = scalar_lea.vmem [#allocation1], 1664
    %s4124 = smov 192
    %v4125 = vld [vmem:[%s4123] ss:$16 sm:%s4124]
    %vm4126 = vcmask 1047558
    %v4127 = vsel %vm4126, %v4125, %v4122
    %vm4128 = vcmask 64512
    %s4129 = scalar_lea.vmem [#allocation0], 104
    %4130 = vst.msk [vmem:[%s4129] sm:$0xff] %vm4128, %v4127
    %s4131 = scalar_lea.vmem [#allocation1], 1792
    %s4132 = smov 3
    %v4133 = vld [vmem:[%s4131] ss:$16 sm:%s4132]
    %s4134 = scalar_lea.vmem [#allocation1], 1792
    %s4135 = smov 12
    %v4136 = vld [vmem:[%s4134] ss:$16 sm:%s4135]
    %vm4137 = vcmask 1043458
    %v4138 = vsel %vm4137, %v4136, %v4133
    %s4139 = scalar_lea.vmem [#allocation1], 1792
    %s4140 = smov 48
    %v4141 = vld [vmem:[%s4139] ss:$16 sm:%s4140]
    %vm4142 = vcmask 1045508
    %v4143 = vsel %vm4142, %v4141, %v4138
    %s4144 = scalar_lea.vmem [#allocation1], 1792
    %s4145 = smov 192
    %v4146 = vld [vmem:[%s4144] ss:$16 sm:%s4145]
    %vm4147 = vcmask 1047558
    %v4148 = vsel %vm4147, %v4146, %v4143
    %vm4149 = vcmask 64512
    %s4150 = scalar_lea.vmem [#allocation0], 112
    %4151 = vst.msk [vmem:[%s4150] sm:$0xff] %vm4149, %v4148
    %s4152 = scalar_lea.vmem [#allocation1], 1920
    %s4153 = smov 3
    %v4154 = vld [vmem:[%s4152] ss:$16 sm:%s4153]
    %s4155 = scalar_lea.vmem [#allocation1], 1920
    %s4156 = smov 12
    %v4157 = vld [vmem:[%s4155] ss:$16 sm:%s4156]
    %vm4158 = vcmask 1043458
    %v4159 = vsel %vm4158, %v4157, %v4154
    %s4160 = scalar_lea.vmem [#allocation1], 1920
    %s4161 = smov 48
    %v4162 = vld [vmem:[%s4160] ss:$16 sm:%s4161]
    %vm4163 = vcmask 1045508
    %v4164 = vsel %vm4163, %v4162, %v4159
    %s4165 = scalar_lea.vmem [#allocation1], 1920
    %s4166 = smov 192
    %v4167 = vld [vmem:[%s4165] ss:$16 sm:%s4166]
    %vm4168 = vcmask 1047558
    %v4169 = vsel %vm4168, %v4167, %v4164
    %vm4170 = vcmask 64512
    %s4171 = scalar_lea.vmem [#allocation0], 120
    %4172 = vst.msk [vmem:[%s4171] sm:$0xff] %vm4170, %v4169
    %s4173 = scalar_lea.vmem [#allocation1], 15
    %s4174 = smov 3
    %v4175 = vld [vmem:[%s4173] ss:$16 sm:%s4174]
    %s4176 = scalar_lea.vmem [#allocation1], 15
    %s4177 = smov 12
    %v4178 = vld [vmem:[%s4176] ss:$16 sm:%s4177]
    %vm4179 = vcmask 1043458
    %v4180 = vsel %vm4179, %v4178, %v4175
    %s4181 = scalar_lea.vmem [#allocation1], 15
    %s4182 = smov 48
    %v4183 = vld [vmem:[%s4181] ss:$16 sm:%s4182]
    %vm4184 = vcmask 1045508
    %v4185 = vsel %vm4184, %v4183, %v4180
    %s4186 = scalar_lea.vmem [#allocation1], 15
    %s4187 = smov 192
    %v4188 = vld [vmem:[%s4186] ss:$16 sm:%s4187]
    %vm4189 = vcmask 1047558
    %v4190 = vsel %vm4189, %v4188, %v4185
    %4191 = vrot.lane.b32.xlu0 %v4190, 120
    %v4192 = vpop.permute.xlu0 %4191
    %vm4193 = vcmask 1048512
    %4194 = vst.msk [vmem:[#allocation0] sm:$0xff] %vm4193, %v4192
    %s4195 = scalar_lea.vmem [#allocation1], 527
    %s4196 = smov 3
    %v4197 = vld [vmem:[%s4195] ss:$16 sm:%s4196]
    %s4198 = scalar_lea.vmem [#allocation1], 527
    %s4199 = smov 12
    %v4200 = vld [vmem:[%s4198] ss:$16 sm:%s4199]
    %vm4201 = vcmask 1043458
    %v4202 = vsel %vm4201, %v4200, %v4197
    %s4203 = scalar_lea.vmem [#allocation1], 527
    %s4204 = smov 48
    %v4205 = vld [vmem:[%s4203] ss:$16 sm:%s4204]
    %vm4206 = vcmask 1045508
    %v4207 = vsel %vm4206, %v4205, %v4202
    %s4208 = scalar_lea.vmem [#allocation1], 527
    %s4209 = smov 192
    %v4210 = vld [vmem:[%s4208] ss:$16 sm:%s4209]
    %vm4211 = vcmask 1047558
    %v4212 = vsel %vm4211, %v4210, %v4207
    %4213 = vrot.lane.b32.xlu0 %v4212, 120
    %v4214 = vpop.permute.xlu0 %4213
    %vm4215 = vcmask 1048512
    %s4216 = scalar_lea.vmem [#allocation0], 32
    %4217 = vst.msk [vmem:[%s4216] sm:$0xff] %vm4215, %v4214
    %s4218 = scalar_lea.vmem [#allocation1], 1039
    %s4219 = smov 3
    %v4220 = vld [vmem:[%s4218] ss:$16 sm:%s4219]
    %s4221 = scalar_lea.vmem [#allocation1], 1039
    %s4222 = smov 12
    %v4223 = vld [vmem:[%s4221] ss:$16 sm:%s4222]
    %vm4224 = vcmask 1043458
    %v4225 = vsel %vm4224, %v4223, %v4220
    %s4226 = scalar_lea.vmem [#allocation1], 1039
    %s4227 = smov 48
    %v4228 = vld [vmem:[%s4226] ss:$16 sm:%s4227]
    %vm4229 = vcmask 1045508
    %v4230 = vsel %vm4229, %v4228, %v4225
    %s4231 = scalar_lea.vmem [#allocation1], 1039
    %s4232 = smov 192
    %v4233 = vld [vmem:[%s4231] ss:$16 sm:%s4232]
    %vm4234 = vcmask 1047558
    %v4235 = vsel %vm4234, %v4233, %v4230
    %4236 = vrot.lane.b32.xlu0 %v4235, 120
    %v4237 = vpop.permute.xlu0 %4236
    %vm4238 = vcmask 1048512
    %s4239 = scalar_lea.vmem [#allocation0], 64
    %4240 = vst.msk [vmem:[%s4239] sm:$0xff] %vm4238, %v4237
    %s4241 = scalar_lea.vmem [#allocation1], 1551
    %s4242 = smov 3
    %v4243 = vld [vmem:[%s4241] ss:$16 sm:%s4242]
    %s4244 = scalar_lea.vmem [#allocation1], 1551
    %s4245 = smov 12
    %v4246 = vld [vmem:[%s4244] ss:$16 sm:%s4245]
    %vm4247 = vcmask 1043458
    %v4248 = vsel %vm4247, %v4246, %v4243
    %s4249 = scalar_lea.vmem [#allocation1], 1551
    %s4250 = smov 48
    %v4251 = vld [vmem:[%s4249] ss:$16 sm:%s4250]
    %vm4252 = vcmask 1045508
    %v4253 = vsel %vm4252, %v4251, %v4248
    %s4254 = scalar_lea.vmem [#allocation1], 1551
    %s4255 = smov 192
    %v4256 = vld [vmem:[%s4254] ss:$16 sm:%s4255]
    %vm4257 = vcmask 1047558
    %v4258 = vsel %vm4257, %v4256, %v4253
    %4259 = vrot.lane.b32.xlu0 %v4258, 120
    %v4260 = vpop.permute.xlu0 %4259
    %vm4261 = vcmask 1048512
    %s4262 = scalar_lea.vmem [#allocation0], 96
    %4263 = vst.msk [vmem:[%s4262] sm:$0xff] %vm4261, %v4260
    %s4264 = scalar_lea.vmem [#allocation1], 143
    %s4265 = smov 3
    %v4266 = vld [vmem:[%s4264] ss:$16 sm:%s4265]
    %s4267 = scalar_lea.vmem [#allocation1], 143
    %s4268 = smov 12
    %v4269 = vld [vmem:[%s4267] ss:$16 sm:%s4268]
    %vm4270 = vcmask 1043458
    %v4271 = vsel %vm4270, %v4269, %v4266
    %s4272 = scalar_lea.vmem [#allocation1], 143
    %s4273 = smov 48
    %v4274 = vld [vmem:[%s4272] ss:$16 sm:%s4273]
    %vm4275 = vcmask 1045508
    %v4276 = vsel %vm4275, %v4274, %v4271
    %s4277 = scalar_lea.vmem [#allocation1], 143
    %s4278 = smov 192
    %v4279 = vld [vmem:[%s4277] ss:$16 sm:%s4278]
    %vm4280 = vcmask 1047558
    %v4281 = vsel %vm4280, %v4279, %v4276
    %4282 = vrot.lane.b32.xlu0 %v4281, 120
    %v4283 = vpop.permute.xlu0 %4282
    %vm4284 = vcmask 1048512
    %s4285 = scalar_lea.vmem [#allocation0], 8
    %4286 = vst.msk [vmem:[%s4285] sm:$0xff] %vm4284, %v4283
    %s4287 = scalar_lea.vmem [#allocation1], 655
    %s4288 = smov 3
    %v4289 = vld [vmem:[%s4287] ss:$16 sm:%s4288]
    %s4290 = scalar_lea.vmem [#allocation1], 655
    %s4291 = smov 12
    %v4292 = vld [vmem:[%s4290] ss:$16 sm:%s4291]
    %vm4293 = vcmask 1043458
    %v4294 = vsel %vm4293, %v4292, %v4289
    %s4295 = scalar_lea.vmem [#allocation1], 655
    %s4296 = smov 48
    %v4297 = vld [vmem:[%s4295] ss:$16 sm:%s4296]
    %vm4298 = vcmask 1045508
    %v4299 = vsel %vm4298, %v4297, %v4294
    %s4300 = scalar_lea.vmem [#allocation1], 655
    %s4301 = smov 192
    %v4302 = vld [vmem:[%s4300] ss:$16 sm:%s4301]
    %vm4303 = vcmask 1047558
    %v4304 = vsel %vm4303, %v4302, %v4299
    %4305 = vrot.lane.b32.xlu0 %v4304, 120
    %v4306 = vpop.permute.xlu0 %4305
    %vm4307 = vcmask 1048512
    %s4308 = scalar_lea.vmem [#allocation0], 40
    %4309 = vst.msk [vmem:[%s4308] sm:$0xff] %vm4307, %v4306
    %s4310 = scalar_lea.vmem [#allocation1], 1167
    %s4311 = smov 3
    %v4312 = vld [vmem:[%s4310] ss:$16 sm:%s4311]
    %s4313 = scalar_lea.vmem [#allocation1], 1167
    %s4314 = smov 12
    %v4315 = vld [vmem:[%s4313] ss:$16 sm:%s4314]
    %vm4316 = vcmask 1043458
    %v4317 = vsel %vm4316, %v4315, %v4312
    %s4318 = scalar_lea.vmem [#allocation1], 1167
    %s4319 = smov 48
    %v4320 = vld [vmem:[%s4318] ss:$16 sm:%s4319]
    %vm4321 = vcmask 1045508
    %v4322 = vsel %vm4321, %v4320, %v4317
    %s4323 = scalar_lea.vmem [#allocation1], 1167
    %s4324 = smov 192
    %v4325 = vld [vmem:[%s4323] ss:$16 sm:%s4324]
    %vm4326 = vcmask 1047558
    %v4327 = vsel %vm4326, %v4325, %v4322
    %4328 = vrot.lane.b32.xlu0 %v4327, 120
    %v4329 = vpop.permute.xlu0 %4328
    %vm4330 = vcmask 1048512
    %s4331 = scalar_lea.vmem [#allocation0], 72
    %4332 = vst.msk [vmem:[%s4331] sm:$0xff] %vm4330, %v4329
    %s4333 = scalar_lea.vmem [#allocation1], 1679
    %s4334 = smov 3
    %v4335 = vld [vmem:[%s4333] ss:$16 sm:%s4334]
    %s4336 = scalar_lea.vmem [#allocation1], 1679
    %s4337 = smov 12
    %v4338 = vld [vmem:[%s4336] ss:$16 sm:%s4337]
    %vm4339 = vcmask 1043458
    %v4340 = vsel %vm4339, %v4338, %v4335
    %s4341 = scalar_lea.vmem [#allocation1], 1679
    %s4342 = smov 48
    %v4343 = vld [vmem:[%s4341] ss:$16 sm:%s4342]
    %vm4344 = vcmask 1045508
    %v4345 = vsel %vm4344, %v4343, %v4340
    %s4346 = scalar_lea.vmem [#allocation1], 1679
    %s4347 = smov 192
    %v4348 = vld [vmem:[%s4346] ss:$16 sm:%s4347]
    %vm4349 = vcmask 1047558
    %v4350 = vsel %vm4349, %v4348, %v4345
    %4351 = vrot.lane.b32.xlu0 %v4350, 120
    %v4352 = vpop.permute.xlu0 %4351
    %vm4353 = vcmask 1048512
    %s4354 = scalar_lea.vmem [#allocation0], 104
    %4355 = vst.msk [vmem:[%s4354] sm:$0xff] %vm4353, %v4352
    %s4356 = scalar_lea.vmem [#allocation1], 271
    %s4357 = smov 3
    %v4358 = vld [vmem:[%s4356] ss:$16 sm:%s4357]
    %s4359 = scalar_lea.vmem [#allocation1], 271
    %s4360 = smov 12
    %v4361 = vld [vmem:[%s4359] ss:$16 sm:%s4360]
    %vm4362 = vcmask 1043458
    %v4363 = vsel %vm4362, %v4361, %v4358
    %s4364 = scalar_lea.vmem [#allocation1], 271
    %s4365 = smov 48
    %v4366 = vld [vmem:[%s4364] ss:$16 sm:%s4365]
    %vm4367 = vcmask 1045508
    %v4368 = vsel %vm4367, %v4366, %v4363
    %s4369 = scalar_lea.vmem [#allocation1], 271
    %s4370 = smov 192
    %v4371 = vld [vmem:[%s4369] ss:$16 sm:%s4370]
    %vm4372 = vcmask 1047558
    %v4373 = vsel %vm4372, %v4371, %v4368
    %4374 = vrot.lane.b32.xlu0 %v4373, 120
    %v4375 = vpop.permute.xlu0 %4374
    %vm4376 = vcmask 1048512
    %s4377 = scalar_lea.vmem [#allocation0], 16
    %4378 = vst.msk [vmem:[%s4377] sm:$0xff] %vm4376, %v4375
    %s4379 = scalar_lea.vmem [#allocation1], 783
    %s4380 = smov 3
    %v4381 = vld [vmem:[%s4379] ss:$16 sm:%s4380]
    %s4382 = scalar_lea.vmem [#allocation1], 783
    %s4383 = smov 12
    %v4384 = vld [vmem:[%s4382] ss:$16 sm:%s4383]
    %vm4385 = vcmask 1043458
    %v4386 = vsel %vm4385, %v4384, %v4381
    %s4387 = scalar_lea.vmem [#allocation1], 783
    %s4388 = smov 48
    %v4389 = vld [vmem:[%s4387] ss:$16 sm:%s4388]
    %vm4390 = vcmask 1045508
    %v4391 = vsel %vm4390, %v4389, %v4386
    %s4392 = scalar_lea.vmem [#allocation1], 783
    %s4393 = smov 192
    %v4394 = vld [vmem:[%s4392] ss:$16 sm:%s4393]
    %vm4395 = vcmask 1047558
    %v4396 = vsel %vm4395, %v4394, %v4391
    %4397 = vrot.lane.b32.xlu0 %v4396, 120
    %v4398 = vpop.permute.xlu0 %4397
    %vm4399 = vcmask 1048512
    %s4400 = scalar_lea.vmem [#allocation0], 48
    %4401 = vst.msk [vmem:[%s4400] sm:$0xff] %vm4399, %v4398
    %s4402 = scalar_lea.vmem [#allocation1], 1295
    %s4403 = smov 3
    %v4404 = vld [vmem:[%s4402] ss:$16 sm:%s4403]
    %s4405 = scalar_lea.vmem [#allocation1], 1295
    %s4406 = smov 12
    %v4407 = vld [vmem:[%s4405] ss:$16 sm:%s4406]
    %vm4408 = vcmask 1043458
    %v4409 = vsel %vm4408, %v4407, %v4404
    %s4410 = scalar_lea.vmem [#allocation1], 1295
    %s4411 = smov 48
    %v4412 = vld [vmem:[%s4410] ss:$16 sm:%s4411]
    %vm4413 = vcmask 1045508
    %v4414 = vsel %vm4413, %v4412, %v4409
    %s4415 = scalar_lea.vmem [#allocation1], 1295
    %s4416 = smov 192
    %v4417 = vld [vmem:[%s4415] ss:$16 sm:%s4416]
    %vm4418 = vcmask 1047558
    %v4419 = vsel %vm4418, %v4417, %v4414
    %4420 = vrot.lane.b32.xlu0 %v4419, 120
    %v4421 = vpop.permute.xlu0 %4420
    %vm4422 = vcmask 1048512
    %s4423 = scalar_lea.vmem [#allocation0], 80
    %4424 = vst.msk [vmem:[%s4423] sm:$0xff] %vm4422, %v4421
    %s4425 = scalar_lea.vmem [#allocation1], 1807
    %s4426 = smov 3
    %v4427 = vld [vmem:[%s4425] ss:$16 sm:%s4426]
    %s4428 = scalar_lea.vmem [#allocation1], 1807
    %s4429 = smov 12
    %v4430 = vld [vmem:[%s4428] ss:$16 sm:%s4429]
    %vm4431 = vcmask 1043458
    %v4432 = vsel %vm4431, %v4430, %v4427
    %s4433 = scalar_lea.vmem [#allocation1], 1807
    %s4434 = smov 48
    %v4435 = vld [vmem:[%s4433] ss:$16 sm:%s4434]
    %vm4436 = vcmask 1045508
    %v4437 = vsel %vm4436, %v4435, %v4432
    %s4438 = scalar_lea.vmem [#allocation1], 1807
    %s4439 = smov 192
    %v4440 = vld [vmem:[%s4438] ss:$16 sm:%s4439]
    %vm4441 = vcmask 1047558
    %v4442 = vsel %vm4441, %v4440, %v4437
    %4443 = vrot.lane.b32.xlu0 %v4442, 120
    %v4444 = vpop.permute.xlu0 %4443
    %vm4445 = vcmask 1048512
    %s4446 = scalar_lea.vmem [#allocation0], 112
    %4447 = vst.msk [vmem:[%s4446] sm:$0xff] %vm4445, %v4444
    %s4448 = scalar_lea.vmem [#allocation1], 399
    %s4449 = smov 3
    %v4450 = vld [vmem:[%s4448] ss:$16 sm:%s4449]
    %s4451 = scalar_lea.vmem [#allocation1], 399
    %s4452 = smov 12
    %v4453 = vld [vmem:[%s4451] ss:$16 sm:%s4452]
    %vm4454 = vcmask 1043458
    %v4455 = vsel %vm4454, %v4453, %v4450
    %s4456 = scalar_lea.vmem [#allocation1], 399
    %s4457 = smov 48
    %v4458 = vld [vmem:[%s4456] ss:$16 sm:%s4457]
    %vm4459 = vcmask 1045508
    %v4460 = vsel %vm4459, %v4458, %v4455
    %s4461 = scalar_lea.vmem [#allocation1], 399
    %s4462 = smov 192
    %v4463 = vld [vmem:[%s4461] ss:$16 sm:%s4462]
    %vm4464 = vcmask 1047558
    %v4465 = vsel %vm4464, %v4463, %v4460
    %4466 = vrot.lane.b32.xlu0 %v4465, 120
    %v4467 = vpop.permute.xlu0 %4466
    %vm4468 = vcmask 1048512
    %s4469 = scalar_lea.vmem [#allocation0], 24
    %4470 = vst.msk [vmem:[%s4469] sm:$0xff] %vm4468, %v4467
    %s4471 = scalar_lea.vmem [#allocation1], 911
    %s4472 = smov 3
    %v4473 = vld [vmem:[%s4471] ss:$16 sm:%s4472]
    %s4474 = scalar_lea.vmem [#allocation1], 911
    %s4475 = smov 12
    %v4476 = vld [vmem:[%s4474] ss:$16 sm:%s4475]
    %vm4477 = vcmask 1043458
    %v4478 = vsel %vm4477, %v4476, %v4473
    %s4479 = scalar_lea.vmem [#allocation1], 911
    %s4480 = smov 48
    %v4481 = vld [vmem:[%s4479] ss:$16 sm:%s4480]
    %vm4482 = vcmask 1045508
    %v4483 = vsel %vm4482, %v4481, %v4478
    %s4484 = scalar_lea.vmem [#allocation1], 911
    %s4485 = smov 192
    %v4486 = vld [vmem:[%s4484] ss:$16 sm:%s4485]
    %vm4487 = vcmask 1047558
    %v4488 = vsel %vm4487, %v4486, %v4483
    %4489 = vrot.lane.b32.xlu0 %v4488, 120
    %v4490 = vpop.permute.xlu0 %4489
    %vm4491 = vcmask 1048512
    %s4492 = scalar_lea.vmem [#allocation0], 56
    %4493 = vst.msk [vmem:[%s4492] sm:$0xff] %vm4491, %v4490
    %s4494 = scalar_lea.vmem [#allocation1], 1423
    %s4495 = smov 3
    %v4496 = vld [vmem:[%s4494] ss:$16 sm:%s4495]
    %s4497 = scalar_lea.vmem [#allocation1], 1423
    %s4498 = smov 12
    %v4499 = vld [vmem:[%s4497] ss:$16 sm:%s4498]
    %vm4500 = vcmask 1043458
    %v4501 = vsel %vm4500, %v4499, %v4496
    %s4502 = scalar_lea.vmem [#allocation1], 1423
    %s4503 = smov 48
    %v4504 = vld [vmem:[%s4502] ss:$16 sm:%s4503]
    %vm4505 = vcmask 1045508
    %v4506 = vsel %vm4505, %v4504, %v4501
    %s4507 = scalar_lea.vmem [#allocation1], 1423
    %s4508 = smov 192
    %v4509 = vld [vmem:[%s4507] ss:$16 sm:%s4508]
    %vm4510 = vcmask 1047558
    %v4511 = vsel %vm4510, %v4509, %v4506
    %4512 = vrot.lane.b32.xlu0 %v4511, 120
    %v4513 = vpop.permute.xlu0 %4512
    %vm4514 = vcmask 1048512
    %s4515 = scalar_lea.vmem [#allocation0], 88
    %4516 = vst.msk [vmem:[%s4515] sm:$0xff] %vm4514, %v4513
    %s4517 = scalar_lea.vmem [#allocation1], 1935
    %s4518 = smov 3
    %v4519 = vld [vmem:[%s4517] ss:$16 sm:%s4518]
    %s4520 = scalar_lea.vmem [#allocation1], 1935
    %s4521 = smov 12
    %v4522 = vld [vmem:[%s4520] ss:$16 sm:%s4521]
    %vm4523 = vcmask 1043458
    %v4524 = vsel %vm4523, %v4522, %v4519
    %s4525 = scalar_lea.vmem [#allocation1], 1935
    %s4526 = smov 48
    %v4527 = vld [vmem:[%s4525] ss:$16 sm:%s4526]
    %vm4528 = vcmask 1045508
    %v4529 = vsel %vm4528, %v4527, %v4524
    %s4530 = scalar_lea.vmem [#allocation1], 1935
    %s4531 = smov 192
    %v4532 = vld [vmem:[%s4530] ss:$16 sm:%s4531]
    %vm4533 = vcmask 1047558
    %v4534 = vsel %vm4533, %v4532, %v4529
    %4535 = vrot.lane.b32.xlu0 %v4534, 120
    %v4536 = vpop.permute.xlu0 %4535
    %vm4537 = vcmask 1048512
    %s4538 = scalar_lea.vmem [#allocation0], 120
    %4539 = vst.msk [vmem:[%s4538] sm:$0xff] %vm4537, %v4536
    %s4540 = scalar_lea.vmem [#allocation1], 14
    %s4541 = smov 3
    %v4542 = vld [vmem:[%s4540] ss:$16 sm:%s4541]
    %s4543 = scalar_lea.vmem [#allocation1], 14
    %s4544 = smov 12
    %v4545 = vld [vmem:[%s4543] ss:$16 sm:%s4544]
    %vm4546 = vcmask 1043458
    %v4547 = vsel %vm4546, %v4545, %v4542
    %s4548 = scalar_lea.vmem [#allocation1], 14
    %s4549 = smov 48
    %v4550 = vld [vmem:[%s4548] ss:$16 sm:%s4549]
    %vm4551 = vcmask 1045508
    %v4552 = vsel %vm4551, %v4550, %v4547
    %s4553 = scalar_lea.vmem [#allocation1], 14
    %s4554 = smov 192
    %v4555 = vld [vmem:[%s4553] ss:$16 sm:%s4554]
    %vm4556 = vcmask 1047558
    %v4557 = vsel %vm4556, %v4555, %v4552
    %4558 = vrot.lane.b32.xlu0 %v4557, 112
    %v4559 = vpop.permute.xlu0 %4558
    %vm4560 = vcmask 982912
    %4561 = vst.msk [vmem:[#allocation0] sm:$0xff] %vm4560, %v4559
    %s4562 = scalar_lea.vmem [#allocation1], 526
    %s4563 = smov 3
    %v4564 = vld [vmem:[%s4562] ss:$16 sm:%s4563]
    %s4565 = scalar_lea.vmem [#allocation1], 526
    %s4566 = smov 12
    %v4567 = vld [vmem:[%s4565] ss:$16 sm:%s4566]
    %vm4568 = vcmask 1043458
    %v4569 = vsel %vm4568, %v4567, %v4564
    %s4570 = scalar_lea.vmem [#allocation1], 526
    %s4571 = smov 48
    %v4572 = vld [vmem:[%s4570] ss:$16 sm:%s4571]
    %vm4573 = vcmask 1045508
    %v4574 = vsel %vm4573, %v4572, %v4569
    %s4575 = scalar_lea.vmem [#allocation1], 526
    %s4576 = smov 192
    %v4577 = vld [vmem:[%s4575] ss:$16 sm:%s4576]
    %vm4578 = vcmask 1047558
    %v4579 = vsel %vm4578, %v4577, %v4574
    %4580 = vrot.lane.b32.xlu0 %v4579, 112
    %v4581 = vpop.permute.xlu0 %4580
    %vm4582 = vcmask 982912
    %s4583 = scalar_lea.vmem [#allocation0], 32
    %4584 = vst.msk [vmem:[%s4583] sm:$0xff] %vm4582, %v4581
    %s4585 = scalar_lea.vmem [#allocation1], 1038
    %s4586 = smov 3
    %v4587 = vld [vmem:[%s4585] ss:$16 sm:%s4586]
    %s4588 = scalar_lea.vmem [#allocation1], 1038
    %s4589 = smov 12
    %v4590 = vld [vmem:[%s4588] ss:$16 sm:%s4589]
    %vm4591 = vcmask 1043458
    %v4592 = vsel %vm4591, %v4590, %v4587
    %s4593 = scalar_lea.vmem [#allocation1], 1038
    %s4594 = smov 48
    %v4595 = vld [vmem:[%s4593] ss:$16 sm:%s4594]
    %vm4596 = vcmask 1045508
    %v4597 = vsel %vm4596, %v4595, %v4592
    %s4598 = scalar_lea.vmem [#allocation1], 1038
    %s4599 = smov 192
    %v4600 = vld [vmem:[%s4598] ss:$16 sm:%s4599]
    %vm4601 = vcmask 1047558
    %v4602 = vsel %vm4601, %v4600, %v4597
    %4603 = vrot.lane.b32.xlu0 %v4602, 112
    %v4604 = vpop.permute.xlu0 %4603
    %vm4605 = vcmask 982912
    %s4606 = scalar_lea.vmem [#allocation0], 64
    %4607 = vst.msk [vmem:[%s4606] sm:$0xff] %vm4605, %v4604
    %s4608 = scalar_lea.vmem [#allocation1], 1550
    %s4609 = smov 3
    %v4610 = vld [vmem:[%s4608] ss:$16 sm:%s4609]
    %s4611 = scalar_lea.vmem [#allocation1], 1550
    %s4612 = smov 12
    %v4613 = vld [vmem:[%s4611] ss:$16 sm:%s4612]
    %vm4614 = vcmask 1043458
    %v4615 = vsel %vm4614, %v4613, %v4610
    %s4616 = scalar_lea.vmem [#allocation1], 1550
    %s4617 = smov 48
    %v4618 = vld [vmem:[%s4616] ss:$16 sm:%s4617]
    %vm4619 = vcmask 1045508
    %v4620 = vsel %vm4619, %v4618, %v4615
    %s4621 = scalar_lea.vmem [#allocation1], 1550
    %s4622 = smov 192
    %v4623 = vld [vmem:[%s4621] ss:$16 sm:%s4622]
    %vm4624 = vcmask 1047558
    %v4625 = vsel %vm4624, %v4623, %v4620
    %4626 = vrot.lane.b32.xlu0 %v4625, 112
    %v4627 = vpop.permute.xlu0 %4626
    %vm4628 = vcmask 982912
    %s4629 = scalar_lea.vmem [#allocation0], 96
    %4630 = vst.msk [vmem:[%s4629] sm:$0xff] %vm4628, %v4627
    %s4631 = scalar_lea.vmem [#allocation1], 142
    %s4632 = smov 3
    %v4633 = vld [vmem:[%s4631] ss:$16 sm:%s4632]
    %s4634 = scalar_lea.vmem [#allocation1], 142
    %s4635 = smov 12
    %v4636 = vld [vmem:[%s4634] ss:$16 sm:%s4635]
    %vm4637 = vcmask 1043458
    %v4638 = vsel %vm4637, %v4636, %v4633
    %s4639 = scalar_lea.vmem [#allocation1], 142
    %s4640 = smov 48
    %v4641 = vld [vmem:[%s4639] ss:$16 sm:%s4640]
    %vm4642 = vcmask 1045508
    %v4643 = vsel %vm4642, %v4641, %v4638
    %s4644 = scalar_lea.vmem [#allocation1], 142
    %s4645 = smov 192
    %v4646 = vld [vmem:[%s4644] ss:$16 sm:%s4645]
    %vm4647 = vcmask 1047558
    %v4648 = vsel %vm4647, %v4646, %v4643
    %4649 = vrot.lane.b32.xlu0 %v4648, 112
    %v4650 = vpop.permute.xlu0 %4649
    %vm4651 = vcmask 982912
    %s4652 = scalar_lea.vmem [#allocation0], 8
    %4653 = vst.msk [vmem:[%s4652] sm:$0xff] %vm4651, %v4650
    %s4654 = scalar_lea.vmem [#allocation1], 654
    %s4655 = smov 3
    %v4656 = vld [vmem:[%s4654] ss:$16 sm:%s4655]
    %s4657 = scalar_lea.vmem [#allocation1], 654
    %s4658 = smov 12
    %v4659 = vld [vmem:[%s4657] ss:$16 sm:%s4658]
    %vm4660 = vcmask 1043458
    %v4661 = vsel %vm4660, %v4659, %v4656
    %s4662 = scalar_lea.vmem [#allocation1], 654
    %s4663 = smov 48
    %v4664 = vld [vmem:[%s4662] ss:$16 sm:%s4663]
    %vm4665 = vcmask 1045508
    %v4666 = vsel %vm4665, %v4664, %v4661
    %s4667 = scalar_lea.vmem [#allocation1], 654
    %s4668 = smov 192
    %v4669 = vld [vmem:[%s4667] ss:$16 sm:%s4668]
    %vm4670 = vcmask 1047558
    %v4671 = vsel %vm4670, %v4669, %v4666
    %4672 = vrot.lane.b32.xlu0 %v4671, 112
    %v4673 = vpop.permute.xlu0 %4672
    %vm4674 = vcmask 982912
    %s4675 = scalar_lea.vmem [#allocation0], 40
    %4676 = vst.msk [vmem:[%s4675] sm:$0xff] %vm4674, %v4673
    %s4677 = scalar_lea.vmem [#allocation1], 1166
    %s4678 = smov 3
    %v4679 = vld [vmem:[%s4677] ss:$16 sm:%s4678]
    %s4680 = scalar_lea.vmem [#allocation1], 1166
    %s4681 = smov 12
    %v4682 = vld [vmem:[%s4680] ss:$16 sm:%s4681]
    %vm4683 = vcmask 1043458
    %v4684 = vsel %vm4683, %v4682, %v4679
    %s4685 = scalar_lea.vmem [#allocation1], 1166
    %s4686 = smov 48
    %v4687 = vld [vmem:[%s4685] ss:$16 sm:%s4686]
    %vm4688 = vcmask 1045508
    %v4689 = vsel %vm4688, %v4687, %v4684
    %s4690 = scalar_lea.vmem [#allocation1], 1166
    %s4691 = smov 192
    %v4692 = vld [vmem:[%s4690] ss:$16 sm:%s4691]
    %vm4693 = vcmask 1047558
    %v4694 = vsel %vm4693, %v4692, %v4689
    %4695 = vrot.lane.b32.xlu0 %v4694, 112
    %v4696 = vpop.permute.xlu0 %4695
    %vm4697 = vcmask 982912
    %s4698 = scalar_lea.vmem [#allocation0], 72
    %4699 = vst.msk [vmem:[%s4698] sm:$0xff] %vm4697, %v4696
    %s4700 = scalar_lea.vmem [#allocation1], 1678
    %s4701 = smov 3
    %v4702 = vld [vmem:[%s4700] ss:$16 sm:%s4701]
    %s4703 = scalar_lea.vmem [#allocation1], 1678
    %s4704 = smov 12
    %v4705 = vld [vmem:[%s4703] ss:$16 sm:%s4704]
    %vm4706 = vcmask 1043458
    %v4707 = vsel %vm4706, %v4705, %v4702
    %s4708 = scalar_lea.vmem [#allocation1], 1678
    %s4709 = smov 48
    %v4710 = vld [vmem:[%s4708] ss:$16 sm:%s4709]
    %vm4711 = vcmask 1045508
    %v4712 = vsel %vm4711, %v4710, %v4707
    %s4713 = scalar_lea.vmem [#allocation1], 1678
    %s4714 = smov 192
    %v4715 = vld [vmem:[%s4713] ss:$16 sm:%s4714]
    %vm4716 = vcmask 1047558
    %v4717 = vsel %vm4716, %v4715, %v4712
    %4718 = vrot.lane.b32.xlu0 %v4717, 112
    %v4719 = vpop.permute.xlu0 %4718
    %vm4720 = vcmask 982912
    %s4721 = scalar_lea.vmem [#allocation0], 104
    %4722 = vst.msk [vmem:[%s4721] sm:$0xff] %vm4720, %v4719
    %s4723 = scalar_lea.vmem [#allocation1], 270
    %s4724 = smov 3
    %v4725 = vld [vmem:[%s4723] ss:$16 sm:%s4724]
    %s4726 = scalar_lea.vmem [#allocation1], 270
    %s4727 = smov 12
    %v4728 = vld [vmem:[%s4726] ss:$16 sm:%s4727]
    %vm4729 = vcmask 1043458
    %v4730 = vsel %vm4729, %v4728, %v4725
    %s4731 = scalar_lea.vmem [#allocation1], 270
    %s4732 = smov 48
    %v4733 = vld [vmem:[%s4731] ss:$16 sm:%s4732]
    %vm4734 = vcmask 1045508
    %v4735 = vsel %vm4734, %v4733, %v4730
    %s4736 = scalar_lea.vmem [#allocation1], 270
    %s4737 = smov 192
    %v4738 = vld [vmem:[%s4736] ss:$16 sm:%s4737]
    %vm4739 = vcmask 1047558
    %v4740 = vsel %vm4739, %v4738, %v4735
    %4741 = vrot.lane.b32.xlu0 %v4740, 112
    %v4742 = vpop.permute.xlu0 %4741
    %vm4743 = vcmask 982912
    %s4744 = scalar_lea.vmem [#allocation0], 16
    %4745 = vst.msk [vmem:[%s4744] sm:$0xff] %vm4743, %v4742
    %s4746 = scalar_lea.vmem [#allocation1], 782
    %s4747 = smov 3
    %v4748 = vld [vmem:[%s4746] ss:$16 sm:%s4747]
    %s4749 = scalar_lea.vmem [#allocation1], 782
    %s4750 = smov 12
    %v4751 = vld [vmem:[%s4749] ss:$16 sm:%s4750]
    %vm4752 = vcmask 1043458
    %v4753 = vsel %vm4752, %v4751, %v4748
    %s4754 = scalar_lea.vmem [#allocation1], 782
    %s4755 = smov 48
    %v4756 = vld [vmem:[%s4754] ss:$16 sm:%s4755]
    %vm4757 = vcmask 1045508
    %v4758 = vsel %vm4757, %v4756, %v4753
    %s4759 = scalar_lea.vmem [#allocation1], 782
    %s4760 = smov 192
    %v4761 = vld [vmem:[%s4759] ss:$16 sm:%s4760]
    %vm4762 = vcmask 1047558
    %v4763 = vsel %vm4762, %v4761, %v4758
    %4764 = vrot.lane.b32.xlu0 %v4763, 112
    %v4765 = vpop.permute.xlu0 %4764
    %vm4766 = vcmask 982912
    %s4767 = scalar_lea.vmem [#allocation0], 48
    %4768 = vst.msk [vmem:[%s4767] sm:$0xff] %vm4766, %v4765
    %s4769 = scalar_lea.vmem [#allocation1], 1294
    %s4770 = smov 3
    %v4771 = vld [vmem:[%s4769] ss:$16 sm:%s4770]
    %s4772 = scalar_lea.vmem [#allocation1], 1294
    %s4773 = smov 12
    %v4774 = vld [vmem:[%s4772] ss:$16 sm:%s4773]
    %vm4775 = vcmask 1043458
    %v4776 = vsel %vm4775, %v4774, %v4771
    %s4777 = scalar_lea.vmem [#allocation1], 1294
    %s4778 = smov 48
    %v4779 = vld [vmem:[%s4777] ss:$16 sm:%s4778]
    %vm4780 = vcmask 1045508
    %v4781 = vsel %vm4780, %v4779, %v4776
    %s4782 = scalar_lea.vmem [#allocation1], 1294
    %s4783 = smov 192
    %v4784 = vld [vmem:[%s4782] ss:$16 sm:%s4783]
    %vm4785 = vcmask 1047558
    %v4786 = vsel %vm4785, %v4784, %v4781
    %4787 = vrot.lane.b32.xlu0 %v4786, 112
    %v4788 = vpop.permute.xlu0 %4787
    %vm4789 = vcmask 982912
    %s4790 = scalar_lea.vmem [#allocation0], 80
    %4791 = vst.msk [vmem:[%s4790] sm:$0xff] %vm4789, %v4788
    %s4792 = scalar_lea.vmem [#allocation1], 1806
    %s4793 = smov 3
    %v4794 = vld [vmem:[%s4792] ss:$16 sm:%s4793]
    %s4795 = scalar_lea.vmem [#allocation1], 1806
    %s4796 = smov 12
    %v4797 = vld [vmem:[%s4795] ss:$16 sm:%s4796]
    %vm4798 = vcmask 1043458
    %v4799 = vsel %vm4798, %v4797, %v4794
    %s4800 = scalar_lea.vmem [#allocation1], 1806
    %s4801 = smov 48
    %v4802 = vld [vmem:[%s4800] ss:$16 sm:%s4801]
    %vm4803 = vcmask 1045508
    %v4804 = vsel %vm4803, %v4802, %v4799
    %s4805 = scalar_lea.vmem [#allocation1], 1806
    %s4806 = smov 192
    %v4807 = vld [vmem:[%s4805] ss:$16 sm:%s4806]
    %vm4808 = vcmask 1047558
    %v4809 = vsel %vm4808, %v4807, %v4804
    %4810 = vrot.lane.b32.xlu0 %v4809, 112
    %v4811 = vpop.permute.xlu0 %4810
    %vm4812 = vcmask 982912
    %s4813 = scalar_lea.vmem [#allocation0], 112
    %4814 = vst.msk [vmem:[%s4813] sm:$0xff] %vm4812, %v4811
    %s4815 = scalar_lea.vmem [#allocation1], 398
    %s4816 = smov 3
    %v4817 = vld [vmem:[%s4815] ss:$16 sm:%s4816]
    %s4818 = scalar_lea.vmem [#allocation1], 398
    %s4819 = smov 12
    %v4820 = vld [vmem:[%s4818] ss:$16 sm:%s4819]
    %vm4821 = vcmask 1043458
    %v4822 = vsel %vm4821, %v4820, %v4817
    %s4823 = scalar_lea.vmem [#allocation1], 398
    %s4824 = smov 48
    %v4825 = vld [vmem:[%s4823] ss:$16 sm:%s4824]
    %vm4826 = vcmask 1045508
    %v4827 = vsel %vm4826, %v4825, %v4822
    %s4828 = scalar_lea.vmem [#allocation1], 398
    %s4829 = smov 192
    %v4830 = vld [vmem:[%s4828] ss:$16 sm:%s4829]
    %vm4831 = vcmask 1047558
    %v4832 = vsel %vm4831, %v4830, %v4827
    %4833 = vrot.lane.b32.xlu0 %v4832, 112
    %v4834 = vpop.permute.xlu0 %4833
    %vm4835 = vcmask 982912
    %s4836 = scalar_lea.vmem [#allocation0], 24
    %4837 = vst.msk [vmem:[%s4836] sm:$0xff] %vm4835, %v4834
    %s4838 = scalar_lea.vmem [#allocation1], 910
    %s4839 = smov 3
    %v4840 = vld [vmem:[%s4838] ss:$16 sm:%s4839]
    %s4841 = scalar_lea.vmem [#allocation1], 910
    %s4842 = smov 12
    %v4843 = vld [vmem:[%s4841] ss:$16 sm:%s4842]
    %vm4844 = vcmask 1043458
    %v4845 = vsel %vm4844, %v4843, %v4840
    %s4846 = scalar_lea.vmem [#allocation1], 910
    %s4847 = smov 48
    %v4848 = vld [vmem:[%s4846] ss:$16 sm:%s4847]
    %vm4849 = vcmask 1045508
    %v4850 = vsel %vm4849, %v4848, %v4845
    %s4851 = scalar_lea.vmem [#allocation1], 910
    %s4852 = smov 192
    %v4853 = vld [vmem:[%s4851] ss:$16 sm:%s4852]
    %vm4854 = vcmask 1047558
    %v4855 = vsel %vm4854, %v4853, %v4850
    %4856 = vrot.lane.b32.xlu0 %v4855, 112
    %v4857 = vpop.permute.xlu0 %4856
    %vm4858 = vcmask 982912
    %s4859 = scalar_lea.vmem [#allocation0], 56
    %4860 = vst.msk [vmem:[%s4859] sm:$0xff] %vm4858, %v4857
    %s4861 = scalar_lea.vmem [#allocation1], 1422
    %s4862 = smov 3
    %v4863 = vld [vmem:[%s4861] ss:$16 sm:%s4862]
    %s4864 = scalar_lea.vmem [#allocation1], 1422
    %s4865 = smov 12
    %v4866 = vld [vmem:[%s4864] ss:$16 sm:%s4865]
    %vm4867 = vcmask 1043458
    %v4868 = vsel %vm4867, %v4866, %v4863
    %s4869 = scalar_lea.vmem [#allocation1], 1422
    %s4870 = smov 48
    %v4871 = vld [vmem:[%s4869] ss:$16 sm:%s4870]
    %vm4872 = vcmask 1045508
    %v4873 = vsel %vm4872, %v4871, %v4868
    %s4874 = scalar_lea.vmem [#allocation1], 1422
    %s4875 = smov 192
    %v4876 = vld [vmem:[%s4874] ss:$16 sm:%s4875]
    %vm4877 = vcmask 1047558
    %v4878 = vsel %vm4877, %v4876, %v4873
    %4879 = vrot.lane.b32.xlu0 %v4878, 112
    %v4880 = vpop.permute.xlu0 %4879
    %vm4881 = vcmask 982912
    %s4882 = scalar_lea.vmem [#allocation0], 88
    %4883 = vst.msk [vmem:[%s4882] sm:$0xff] %vm4881, %v4880
    %s4884 = scalar_lea.vmem [#allocation1], 1934
    %s4885 = smov 3
    %v4886 = vld [vmem:[%s4884] ss:$16 sm:%s4885]
    %s4887 = scalar_lea.vmem [#allocation1], 1934
    %s4888 = smov 12
    %v4889 = vld [vmem:[%s4887] ss:$16 sm:%s4888]
    %vm4890 = vcmask 1043458
    %v4891 = vsel %vm4890, %v4889, %v4886
    %s4892 = scalar_lea.vmem [#allocation1], 1934
    %s4893 = smov 48
    %v4894 = vld [vmem:[%s4892] ss:$16 sm:%s4893]
    %vm4895 = vcmask 1045508
    %v4896 = vsel %vm4895, %v4894, %v4891
    %s4897 = scalar_lea.vmem [#allocation1], 1934
    %s4898 = smov 192
    %v4899 = vld [vmem:[%s4897] ss:$16 sm:%s4898]
    %vm4900 = vcmask 1047558
    %v4901 = vsel %vm4900, %v4899, %v4896
    %4902 = vrot.lane.b32.xlu0 %v4901, 112
    %v4903 = vpop.permute.xlu0 %4902
    %vm4904 = vcmask 982912
    %s4905 = scalar_lea.vmem [#allocation0], 120
    %4906 = vst.msk [vmem:[%s4905] sm:$0xff] %vm4904, %v4903
    %s4907 = scalar_lea.vmem [#allocation1], 13
    %s4908 = smov 3
    %v4909 = vld [vmem:[%s4907] ss:$16 sm:%s4908]
    %s4910 = scalar_lea.vmem [#allocation1], 13
    %s4911 = smov 12
    %v4912 = vld [vmem:[%s4910] ss:$16 sm:%s4911]
    %vm4913 = vcmask 1043458
    %v4914 = vsel %vm4913, %v4912, %v4909
    %s4915 = scalar_lea.vmem [#allocation1], 13
    %s4916 = smov 48
    %v4917 = vld [vmem:[%s4915] ss:$16 sm:%s4916]
    %vm4918 = vcmask 1045508
    %v4919 = vsel %vm4918, %v4917, %v4914
    %s4920 = scalar_lea.vmem [#allocation1], 13
    %s4921 = smov 192
    %v4922 = vld [vmem:[%s4920] ss:$16 sm:%s4921]
    %vm4923 = vcmask 1047558
    %v4924 = vsel %vm4923, %v4922, %v4919
    %4925 = vrot.lane.b32.xlu0 %v4924, 104
    %v4926 = vpop.permute.xlu0 %4925
    %vm4927 = vcmask 917312
    %4928 = vst.msk [vmem:[#allocation0] sm:$0xff] %vm4927, %v4926
    %s4929 = scalar_lea.vmem [#allocation1], 525
    %s4930 = smov 3
    %v4931 = vld [vmem:[%s4929] ss:$16 sm:%s4930]
    %s4932 = scalar_lea.vmem [#allocation1], 525
    %s4933 = smov 12
    %v4934 = vld [vmem:[%s4932] ss:$16 sm:%s4933]
    %vm4935 = vcmask 1043458
    %v4936 = vsel %vm4935, %v4934, %v4931
    %s4937 = scalar_lea.vmem [#allocation1], 525
    %s4938 = smov 48
    %v4939 = vld [vmem:[%s4937] ss:$16 sm:%s4938]
    %vm4940 = vcmask 1045508
    %v4941 = vsel %vm4940, %v4939, %v4936
    %s4942 = scalar_lea.vmem [#allocation1], 525
    %s4943 = smov 192
    %v4944 = vld [vmem:[%s4942] ss:$16 sm:%s4943]
    %vm4945 = vcmask 1047558
    %v4946 = vsel %vm4945, %v4944, %v4941
    %4947 = vrot.lane.b32.xlu0 %v4946, 104
    %v4948 = vpop.permute.xlu0 %4947
    %vm4949 = vcmask 917312
    %s4950 = scalar_lea.vmem [#allocation0], 32
    %4951 = vst.msk [vmem:[%s4950] sm:$0xff] %vm4949, %v4948
    %s4952 = scalar_lea.vmem [#allocation1], 1037
    %s4953 = smov 3
    %v4954 = vld [vmem:[%s4952] ss:$16 sm:%s4953]
    %s4955 = scalar_lea.vmem [#allocation1], 1037
    %s4956 = smov 12
    %v4957 = vld [vmem:[%s4955] ss:$16 sm:%s4956]
    %vm4958 = vcmask 1043458
    %v4959 = vsel %vm4958, %v4957, %v4954
    %s4960 = scalar_lea.vmem [#allocation1], 1037
    %s4961 = smov 48
    %v4962 = vld [vmem:[%s4960] ss:$16 sm:%s4961]
    %vm4963 = vcmask 1045508
    %v4964 = vsel %vm4963, %v4962, %v4959
    %s4965 = scalar_lea.vmem [#allocation1], 1037
    %s4966 = smov 192
    %v4967 = vld [vmem:[%s4965] ss:$16 sm:%s4966]
    %vm4968 = vcmask 1047558
    %v4969 = vsel %vm4968, %v4967, %v4964
    %4970 = vrot.lane.b32.xlu0 %v4969, 104
    %v4971 = vpop.permute.xlu0 %4970
    %vm4972 = vcmask 917312
    %s4973 = scalar_lea.vmem [#allocation0], 64
    %4974 = vst.msk [vmem:[%s4973] sm:$0xff] %vm4972, %v4971
    %s4975 = scalar_lea.vmem [#allocation1], 1549
    %s4976 = smov 3
    %v4977 = vld [vmem:[%s4975] ss:$16 sm:%s4976]
    %s4978 = scalar_lea.vmem [#allocation1], 1549
    %s4979 = smov 12
    %v4980 = vld [vmem:[%s4978] ss:$16 sm:%s4979]
    %vm4981 = vcmask 1043458
    %v4982 = vsel %vm4981, %v4980, %v4977
    %s4983 = scalar_lea.vmem [#allocation1], 1549
    %s4984 = smov 48
    %v4985 = vld [vmem:[%s4983] ss:$16 sm:%s4984]
    %vm4986 = vcmask 1045508
    %v4987 = vsel %vm4986, %v4985, %v4982
    %s4988 = scalar_lea.vmem [#allocation1], 1549
    %s4989 = smov 192
    %v4990 = vld [vmem:[%s4988] ss:$16 sm:%s4989]
    %vm4991 = vcmask 1047558
    %v4992 = vsel %vm4991, %v4990, %v4987
    %4993 = vrot.lane.b32.xlu0 %v4992, 104
    %v4994 = vpop.permute.xlu0 %4993
    %vm4995 = vcmask 917312
    %s4996 = scalar_lea.vmem [#allocation0], 96
    %4997 = vst.msk [vmem:[%s4996] sm:$0xff] %vm4995, %v4994
    %s4998 = scalar_lea.vmem [#allocation1], 141
    %s4999 = smov 3
    %v5000 = vld [vmem:[%s4998] ss:$16 sm:%s4999]
    %s5001 = scalar_lea.vmem [#allocation1], 141
    %s5002 = smov 12
    %v5003 = vld [vmem:[%s5001] ss:$16 sm:%s5002]
    %vm5004 = vcmask 1043458
    %v5005 = vsel %vm5004, %v5003, %v5000
    %s5006 = scalar_lea.vmem [#allocation1], 141
    %s5007 = smov 48
    %v5008 = vld [vmem:[%s5006] ss:$16 sm:%s5007]
    %vm5009 = vcmask 1045508
    %v5010 = vsel %vm5009, %v5008, %v5005
    %s5011 = scalar_lea.vmem [#allocation1], 141
    %s5012 = smov 192
    %v5013 = vld [vmem:[%s5011] ss:$16 sm:%s5012]
    %vm5014 = vcmask 1047558
    %v5015 = vsel %vm5014, %v5013, %v5010
    %5016 = vrot.lane.b32.xlu0 %v5015, 104
    %v5017 = vpop.permute.xlu0 %5016
    %vm5018 = vcmask 917312
    %s5019 = scalar_lea.vmem [#allocation0], 8
    %5020 = vst.msk [vmem:[%s5019] sm:$0xff] %vm5018, %v5017
    %s5021 = scalar_lea.vmem [#allocation1], 653
    %s5022 = smov 3
    %v5023 = vld [vmem:[%s5021] ss:$16 sm:%s5022]
    %s5024 = scalar_lea.vmem [#allocation1], 653
    %s5025 = smov 12
    %v5026 = vld [vmem:[%s5024] ss:$16 sm:%s5025]
    %vm5027 = vcmask 1043458
    %v5028 = vsel %vm5027, %v5026, %v5023
    %s5029 = scalar_lea.vmem [#allocation1], 653
    %s5030 = smov 48
    %v5031 = vld [vmem:[%s5029] ss:$16 sm:%s5030]
    %vm5032 = vcmask 1045508
    %v5033 = vsel %vm5032, %v5031, %v5028
    %s5034 = scalar_lea.vmem [#allocation1], 653
    %s5035 = smov 192
    %v5036 = vld [vmem:[%s5034] ss:$16 sm:%s5035]
    %vm5037 = vcmask 1047558
    %v5038 = vsel %vm5037, %v5036, %v5033
    %5039 = vrot.lane.b32.xlu0 %v5038, 104
    %v5040 = vpop.permute.xlu0 %5039
    %vm5041 = vcmask 917312
    %s5042 = scalar_lea.vmem [#allocation0], 40
    %5043 = vst.msk [vmem:[%s5042] sm:$0xff] %vm5041, %v5040
    %s5044 = scalar_lea.vmem [#allocation1], 1165
    %s5045 = smov 3
    %v5046 = vld [vmem:[%s5044] ss:$16 sm:%s5045]
    %s5047 = scalar_lea.vmem [#allocation1], 1165
    %s5048 = smov 12
    %v5049 = vld [vmem:[%s5047] ss:$16 sm:%s5048]
    %vm5050 = vcmask 1043458
    %v5051 = vsel %vm5050, %v5049, %v5046
    %s5052 = scalar_lea.vmem [#allocation1], 1165
    %s5053 = smov 48
    %v5054 = vld [vmem:[%s5052] ss:$16 sm:%s5053]
    %vm5055 = vcmask 1045508
    %v5056 = vsel %vm5055, %v5054, %v5051
    %s5057 = scalar_lea.vmem [#allocation1], 1165
    %s5058 = smov 192
    %v5059 = vld [vmem:[%s5057] ss:$16 sm:%s5058]
    %vm5060 = vcmask 1047558
    %v5061 = vsel %vm5060, %v5059, %v5056
    %5062 = vrot.lane.b32.xlu0 %v5061, 104
    %v5063 = vpop.permute.xlu0 %5062
    %vm5064 = vcmask 917312
    %s5065 = scalar_lea.vmem [#allocation0], 72
    %5066 = vst.msk [vmem:[%s5065] sm:$0xff] %vm5064, %v5063
    %s5067 = scalar_lea.vmem [#allocation1], 1677
    %s5068 = smov 3
    %v5069 = vld [vmem:[%s5067] ss:$16 sm:%s5068]
    %s5070 = scalar_lea.vmem [#allocation1], 1677
    %s5071 = smov 12
    %v5072 = vld [vmem:[%s5070] ss:$16 sm:%s5071]
    %vm5073 = vcmask 1043458
    %v5074 = vsel %vm5073, %v5072, %v5069
    %s5075 = scalar_lea.vmem [#allocation1], 1677
    %s5076 = smov 48
    %v5077 = vld [vmem:[%s5075] ss:$16 sm:%s5076]
    %vm5078 = vcmask 1045508
    %v5079 = vsel %vm5078, %v5077, %v5074
    %s5080 = scalar_lea.vmem [#allocation1], 1677
    %s5081 = smov 192
    %v5082 = vld [vmem:[%s5080] ss:$16 sm:%s5081]
    %vm5083 = vcmask 1047558
    %v5084 = vsel %vm5083, %v5082, %v5079
    %5085 = vrot.lane.b32.xlu0 %v5084, 104
    %v5086 = vpop.permute.xlu0 %5085
    %vm5087 = vcmask 917312
    %s5088 = scalar_lea.vmem [#allocation0], 104
    %5089 = vst.msk [vmem:[%s5088] sm:$0xff] %vm5087, %v5086
    %s5090 = scalar_lea.vmem [#allocation1], 269
    %s5091 = smov 3
    %v5092 = vld [vmem:[%s5090] ss:$16 sm:%s5091]
    %s5093 = scalar_lea.vmem [#allocation1], 269
    %s5094 = smov 12
    %v5095 = vld [vmem:[%s5093] ss:$16 sm:%s5094]
    %vm5096 = vcmask 1043458
    %v5097 = vsel %vm5096, %v5095, %v5092
    %s5098 = scalar_lea.vmem [#allocation1], 269
    %s5099 = smov 48
    %v5100 = vld [vmem:[%s5098] ss:$16 sm:%s5099]
    %vm5101 = vcmask 1045508
    %v5102 = vsel %vm5101, %v5100, %v5097
    %s5103 = scalar_lea.vmem [#allocation1], 269
    %s5104 = smov 192
    %v5105 = vld [vmem:[%s5103] ss:$16 sm:%s5104]
    %vm5106 = vcmask 1047558
    %v5107 = vsel %vm5106, %v5105, %v5102
    %5108 = vrot.lane.b32.xlu0 %v5107, 104
    %v5109 = vpop.permute.xlu0 %5108
    %vm5110 = vcmask 917312
    %s5111 = scalar_lea.vmem [#allocation0], 16
    %5112 = vst.msk [vmem:[%s5111] sm:$0xff] %vm5110, %v5109
    %s5113 = scalar_lea.vmem [#allocation1], 781
    %s5114 = smov 3
    %v5115 = vld [vmem:[%s5113] ss:$16 sm:%s5114]
    %s5116 = scalar_lea.vmem [#allocation1], 781
    %s5117 = smov 12
    %v5118 = vld [vmem:[%s5116] ss:$16 sm:%s5117]
    %vm5119 = vcmask 1043458
    %v5120 = vsel %vm5119, %v5118, %v5115
    %s5121 = scalar_lea.vmem [#allocation1], 781
    %s5122 = smov 48
    %v5123 = vld [vmem:[%s5121] ss:$16 sm:%s5122]
    %vm5124 = vcmask 1045508
    %v5125 = vsel %vm5124, %v5123, %v5120
    %s5126 = scalar_lea.vmem [#allocation1], 781
    %s5127 = smov 192
    %v5128 = vld [vmem:[%s5126] ss:$16 sm:%s5127]
    %vm5129 = vcmask 1047558
    %v5130 = vsel %vm5129, %v5128, %v5125
    %5131 = vrot.lane.b32.xlu0 %v5130, 104
    %v5132 = vpop.permute.xlu0 %5131
    %vm5133 = vcmask 917312
    %s5134 = scalar_lea.vmem [#allocation0], 48
    %5135 = vst.msk [vmem:[%s5134] sm:$0xff] %vm5133, %v5132
    %s5136 = scalar_lea.vmem [#allocation1], 1293
    %s5137 = smov 3
    %v5138 = vld [vmem:[%s5136] ss:$16 sm:%s5137]
    %s5139 = scalar_lea.vmem [#allocation1], 1293
    %s5140 = smov 12
    %v5141 = vld [vmem:[%s5139] ss:$16 sm:%s5140]
    %vm5142 = vcmask 1043458
    %v5143 = vsel %vm5142, %v5141, %v5138
    %s5144 = scalar_lea.vmem [#allocation1], 1293
    %s5145 = smov 48
    %v5146 = vld [vmem:[%s5144] ss:$16 sm:%s5145]
    %vm5147 = vcmask 1045508
    %v5148 = vsel %vm5147, %v5146, %v5143
    %s5149 = scalar_lea.vmem [#allocation1], 1293
    %s5150 = smov 192
    %v5151 = vld [vmem:[%s5149] ss:$16 sm:%s5150]
    %vm5152 = vcmask 1047558
    %v5153 = vsel %vm5152, %v5151, %v5148
    %5154 = vrot.lane.b32.xlu0 %v5153, 104
    %v5155 = vpop.permute.xlu0 %5154
    %vm5156 = vcmask 917312
    %s5157 = scalar_lea.vmem [#allocation0], 80
    %5158 = vst.msk [vmem:[%s5157] sm:$0xff] %vm5156, %v5155
    %s5159 = scalar_lea.vmem [#allocation1], 1805
    %s5160 = smov 3
    %v5161 = vld [vmem:[%s5159] ss:$16 sm:%s5160]
    %s5162 = scalar_lea.vmem [#allocation1], 1805
    %s5163 = smov 12
    %v5164 = vld [vmem:[%s5162] ss:$16 sm:%s5163]
    %vm5165 = vcmask 1043458
    %v5166 = vsel %vm5165, %v5164, %v5161
    %s5167 = scalar_lea.vmem [#allocation1], 1805
    %s5168 = smov 48
    %v5169 = vld [vmem:[%s5167] ss:$16 sm:%s5168]
    %vm5170 = vcmask 1045508
    %v5171 = vsel %vm5170, %v5169, %v5166
    %s5172 = scalar_lea.vmem [#allocation1], 1805
    %s5173 = smov 192
    %v5174 = vld [vmem:[%s5172] ss:$16 sm:%s5173]
    %vm5175 = vcmask 1047558
    %v5176 = vsel %vm5175, %v5174, %v5171
    %5177 = vrot.lane.b32.xlu0 %v5176, 104
    %v5178 = vpop.permute.xlu0 %5177
    %vm5179 = vcmask 917312
    %s5180 = scalar_lea.vmem [#allocation0], 112
    %5181 = vst.msk [vmem:[%s5180] sm:$0xff] %vm5179, %v5178
    %s5182 = scalar_lea.vmem [#allocation1], 397
    %s5183 = smov 3
    %v5184 = vld [vmem:[%s5182] ss:$16 sm:%s5183]
    %s5185 = scalar_lea.vmem [#allocation1], 397
    %s5186 = smov 12
    %v5187 = vld [vmem:[%s5185] ss:$16 sm:%s5186]
    %vm5188 = vcmask 1043458
    %v5189 = vsel %vm5188, %v5187, %v5184
    %s5190 = scalar_lea.vmem [#allocation1], 397
    %s5191 = smov 48
    %v5192 = vld [vmem:[%s5190] ss:$16 sm:%s5191]
    %vm5193 = vcmask 1045508
    %v5194 = vsel %vm5193, %v5192, %v5189
    %s5195 = scalar_lea.vmem [#allocation1], 397
    %s5196 = smov 192
    %v5197 = vld [vmem:[%s5195] ss:$16 sm:%s5196]
    %vm5198 = vcmask 1047558
    %v5199 = vsel %vm5198, %v5197, %v5194
    %5200 = vrot.lane.b32.xlu0 %v5199, 104
    %v5201 = vpop.permute.xlu0 %5200
    %vm5202 = vcmask 917312
    %s5203 = scalar_lea.vmem [#allocation0], 24
    %5204 = vst.msk [vmem:[%s5203] sm:$0xff] %vm5202, %v5201
    %s5205 = scalar_lea.vmem [#allocation1], 909
    %s5206 = smov 3
    %v5207 = vld [vmem:[%s5205] ss:$16 sm:%s5206]
    %s5208 = scalar_lea.vmem [#allocation1], 909
    %s5209 = smov 12
    %v5210 = vld [vmem:[%s5208] ss:$16 sm:%s5209]
    %vm5211 = vcmask 1043458
    %v5212 = vsel %vm5211, %v5210, %v5207
    %s5213 = scalar_lea.vmem [#allocation1], 909
    %s5214 = smov 48
    %v5215 = vld [vmem:[%s5213] ss:$16 sm:%s5214]
    %vm5216 = vcmask 1045508
    %v5217 = vsel %vm5216, %v5215, %v5212
    %s5218 = scalar_lea.vmem [#allocation1], 909
    %s5219 = smov 192
    %v5220 = vld [vmem:[%s5218] ss:$16 sm:%s5219]
    %vm5221 = vcmask 1047558
    %v5222 = vsel %vm5221, %v5220, %v5217
    %5223 = vrot.lane.b32.xlu0 %v5222, 104
    %v5224 = vpop.permute.xlu0 %5223
    %vm5225 = vcmask 917312
    %s5226 = scalar_lea.vmem [#allocation0], 56
    %5227 = vst.msk [vmem:[%s5226] sm:$0xff] %vm5225, %v5224
    %s5228 = scalar_lea.vmem [#allocation1], 1421
    %s5229 = smov 3
    %v5230 = vld [vmem:[%s5228] ss:$16 sm:%s5229]
    %s5231 = scalar_lea.vmem [#allocation1], 1421
    %s5232 = smov 12
    %v5233 = vld [vmem:[%s5231] ss:$16 sm:%s5232]
    %vm5234 = vcmask 1043458
    %v5235 = vsel %vm5234, %v5233, %v5230
    %s5236 = scalar_lea.vmem [#allocation1], 1421
    %s5237 = smov 48
    %v5238 = vld [vmem:[%s5236] ss:$16 sm:%s5237]
    %vm5239 = vcmask 1045508
    %v5240 = vsel %vm5239, %v5238, %v5235
    %s5241 = scalar_lea.vmem [#allocation1], 1421
    %s5242 = smov 192
    %v5243 = vld [vmem:[%s5241] ss:$16 sm:%s5242]
    %vm5244 = vcmask 1047558
    %v5245 = vsel %vm5244, %v5243, %v5240
    %5246 = vrot.lane.b32.xlu0 %v5245, 104
    %v5247 = vpop.permute.xlu0 %5246
    %vm5248 = vcmask 917312
    %s5249 = scalar_lea.vmem [#allocation0], 88
    %5250 = vst.msk [vmem:[%s5249] sm:$0xff] %vm5248, %v5247
    %s5251 = scalar_lea.vmem [#allocation1], 1933
    %s5252 = smov 3
    %v5253 = vld [vmem:[%s5251] ss:$16 sm:%s5252]
    %s5254 = scalar_lea.vmem [#allocation1], 1933
    %s5255 = smov 12
    %v5256 = vld [vmem:[%s5254] ss:$16 sm:%s5255]
    %vm5257 = vcmask 1043458
    %v5258 = vsel %vm5257, %v5256, %v5253
    %s5259 = scalar_lea.vmem [#allocation1], 1933
    %s5260 = smov 48
    %v5261 = vld [vmem:[%s5259] ss:$16 sm:%s5260]
    %vm5262 = vcmask 1045508
    %v5263 = vsel %vm5262, %v5261, %v5258
    %s5264 = scalar_lea.vmem [#allocation1], 1933
    %s5265 = smov 192
    %v5266 = vld [vmem:[%s5264] ss:$16 sm:%s5265]
    %vm5267 = vcmask 1047558
    %v5268 = vsel %vm5267, %v5266, %v5263
    %5269 = vrot.lane.b32.xlu0 %v5268, 104
    %v5270 = vpop.permute.xlu0 %5269
    %vm5271 = vcmask 917312
    %s5272 = scalar_lea.vmem [#allocation0], 120
    %5273 = vst.msk [vmem:[%s5272] sm:$0xff] %vm5271, %v5270
    %s5274 = scalar_lea.vmem [#allocation1], 12
    %s5275 = smov 3
    %v5276 = vld [vmem:[%s5274] ss:$16 sm:%s5275]
    %s5277 = scalar_lea.vmem [#allocation1], 12
    %s5278 = smov 12
    %v5279 = vld [vmem:[%s5277] ss:$16 sm:%s5278]
    %vm5280 = vcmask 1043458
    %v5281 = vsel %vm5280, %v5279, %v5276
    %s5282 = scalar_lea.vmem [#allocation1], 12
    %s5283 = smov 48
    %v5284 = vld [vmem:[%s5282] ss:$16 sm:%s5283]
    %vm5285 = vcmask 1045508
    %v5286 = vsel %vm5285, %v5284, %v5281
    %s5287 = scalar_lea.vmem [#allocation1], 12
    %s5288 = smov 192
    %v5289 = vld [vmem:[%s5287] ss:$16 sm:%s5288]
    %vm5290 = vcmask 1047558
    %v5291 = vsel %vm5290, %v5289, %v5286
    %5292 = vrot.lane.b32.xlu0 %v5291, 96
    %v5293 = vpop.permute.xlu0 %5292
    %vm5294 = vcmask 851712
    %5295 = vst.msk [vmem:[#allocation0] sm:$0xff] %vm5294, %v5293
    %s5296 = scalar_lea.vmem [#allocation1], 524
    %s5297 = smov 3
    %v5298 = vld [vmem:[%s5296] ss:$16 sm:%s5297]
    %s5299 = scalar_lea.vmem [#allocation1], 524
    %s5300 = smov 12
    %v5301 = vld [vmem:[%s5299] ss:$16 sm:%s5300]
    %vm5302 = vcmask 1043458
    %v5303 = vsel %vm5302, %v5301, %v5298
    %s5304 = scalar_lea.vmem [#allocation1], 524
    %s5305 = smov 48
    %v5306 = vld [vmem:[%s5304] ss:$16 sm:%s5305]
    %vm5307 = vcmask 1045508
    %v5308 = vsel %vm5307, %v5306, %v5303
    %s5309 = scalar_lea.vmem [#allocation1], 524
    %s5310 = smov 192
    %v5311 = vld [vmem:[%s5309] ss:$16 sm:%s5310]
    %vm5312 = vcmask 1047558
    %v5313 = vsel %vm5312, %v5311, %v5308
    %5314 = vrot.lane.b32.xlu0 %v5313, 96
    %v5315 = vpop.permute.xlu0 %5314
    %vm5316 = vcmask 851712
    %s5317 = scalar_lea.vmem [#allocation0], 32
    %5318 = vst.msk [vmem:[%s5317] sm:$0xff] %vm5316, %v5315
    %s5319 = scalar_lea.vmem [#allocation1], 1036
    %s5320 = smov 3
    %v5321 = vld [vmem:[%s5319] ss:$16 sm:%s5320]
    %s5322 = scalar_lea.vmem [#allocation1], 1036
    %s5323 = smov 12
    %v5324 = vld [vmem:[%s5322] ss:$16 sm:%s5323]
    %vm5325 = vcmask 1043458
    %v5326 = vsel %vm5325, %v5324, %v5321
    %s5327 = scalar_lea.vmem [#allocation1], 1036
    %s5328 = smov 48
    %v5329 = vld [vmem:[%s5327] ss:$16 sm:%s5328]
    %vm5330 = vcmask 1045508
    %v5331 = vsel %vm5330, %v5329, %v5326
    %s5332 = scalar_lea.vmem [#allocation1], 1036
    %s5333 = smov 192
    %v5334 = vld [vmem:[%s5332] ss:$16 sm:%s5333]
    %vm5335 = vcmask 1047558
    %v5336 = vsel %vm5335, %v5334, %v5331
    %5337 = vrot.lane.b32.xlu0 %v5336, 96
    %v5338 = vpop.permute.xlu0 %5337
    %vm5339 = vcmask 851712
    %s5340 = scalar_lea.vmem [#allocation0], 64
    %5341 = vst.msk [vmem:[%s5340] sm:$0xff] %vm5339, %v5338
    %s5342 = scalar_lea.vmem [#allocation1], 1548
    %s5343 = smov 3
    %v5344 = vld [vmem:[%s5342] ss:$16 sm:%s5343]
    %s5345 = scalar_lea.vmem [#allocation1], 1548
    %s5346 = smov 12
    %v5347 = vld [vmem:[%s5345] ss:$16 sm:%s5346]
    %vm5348 = vcmask 1043458
    %v5349 = vsel %vm5348, %v5347, %v5344
    %s5350 = scalar_lea.vmem [#allocation1], 1548
    %s5351 = smov 48
    %v5352 = vld [vmem:[%s5350] ss:$16 sm:%s5351]
    %vm5353 = vcmask 1045508
    %v5354 = vsel %vm5353, %v5352, %v5349
    %s5355 = scalar_lea.vmem [#allocation1], 1548
    %s5356 = smov 192
    %v5357 = vld [vmem:[%s5355] ss:$16 sm:%s5356]
    %vm5358 = vcmask 1047558
    %v5359 = vsel %vm5358, %v5357, %v5354
    %5360 = vrot.lane.b32.xlu0 %v5359, 96
    %v5361 = vpop.permute.xlu0 %5360
    %vm5362 = vcmask 851712
    %s5363 = scalar_lea.vmem [#allocation0], 96
    %5364 = vst.msk [vmem:[%s5363] sm:$0xff] %vm5362, %v5361
    %s5365 = scalar_lea.vmem [#allocation1], 140
    %s5366 = smov 3
    %v5367 = vld [vmem:[%s5365] ss:$16 sm:%s5366]
    %s5368 = scalar_lea.vmem [#allocation1], 140
    %s5369 = smov 12
    %v5370 = vld [vmem:[%s5368] ss:$16 sm:%s5369]
    %vm5371 = vcmask 1043458
    %v5372 = vsel %vm5371, %v5370, %v5367
    %s5373 = scalar_lea.vmem [#allocation1], 140
    %s5374 = smov 48
    %v5375 = vld [vmem:[%s5373] ss:$16 sm:%s5374]
    %vm5376 = vcmask 1045508
    %v5377 = vsel %vm5376, %v5375, %v5372
    %s5378 = scalar_lea.vmem [#allocation1], 140
    %s5379 = smov 192
    %v5380 = vld [vmem:[%s5378] ss:$16 sm:%s5379]
    %vm5381 = vcmask 1047558
    %v5382 = vsel %vm5381, %v5380, %v5377
    %5383 = vrot.lane.b32.xlu0 %v5382, 96
    %v5384 = vpop.permute.xlu0 %5383
    %vm5385 = vcmask 851712
    %s5386 = scalar_lea.vmem [#allocation0], 8
    %5387 = vst.msk [vmem:[%s5386] sm:$0xff] %vm5385, %v5384
    %s5388 = scalar_lea.vmem [#allocation1], 652
    %s5389 = smov 3
    %v5390 = vld [vmem:[%s5388] ss:$16 sm:%s5389]
    %s5391 = scalar_lea.vmem [#allocation1], 652
    %s5392 = smov 12
    %v5393 = vld [vmem:[%s5391] ss:$16 sm:%s5392]
    %vm5394 = vcmask 1043458
    %v5395 = vsel %vm5394, %v5393, %v5390
    %s5396 = scalar_lea.vmem [#allocation1], 652
    %s5397 = smov 48
    %v5398 = vld [vmem:[%s5396] ss:$16 sm:%s5397]
    %vm5399 = vcmask 1045508
    %v5400 = vsel %vm5399, %v5398, %v5395
    %s5401 = scalar_lea.vmem [#allocation1], 652
    %s5402 = smov 192
    %v5403 = vld [vmem:[%s5401] ss:$16 sm:%s5402]
    %vm5404 = vcmask 1047558
    %v5405 = vsel %vm5404, %v5403, %v5400
    %5406 = vrot.lane.b32.xlu0 %v5405, 96
    %v5407 = vpop.permute.xlu0 %5406
    %vm5408 = vcmask 851712
    %s5409 = scalar_lea.vmem [#allocation0], 40
    %5410 = vst.msk [vmem:[%s5409] sm:$0xff] %vm5408, %v5407
    %s5411 = scalar_lea.vmem [#allocation1], 1164
    %s5412 = smov 3
    %v5413 = vld [vmem:[%s5411] ss:$16 sm:%s5412]
    %s5414 = scalar_lea.vmem [#allocation1], 1164
    %s5415 = smov 12
    %v5416 = vld [vmem:[%s5414] ss:$16 sm:%s5415]
    %vm5417 = vcmask 1043458
    %v5418 = vsel %vm5417, %v5416, %v5413
    %s5419 = scalar_lea.vmem [#allocation1], 1164
    %s5420 = smov 48
    %v5421 = vld [vmem:[%s5419] ss:$16 sm:%s5420]
    %vm5422 = vcmask 1045508
    %v5423 = vsel %vm5422, %v5421, %v5418
    %s5424 = scalar_lea.vmem [#allocation1], 1164
    %s5425 = smov 192
    %v5426 = vld [vmem:[%s5424] ss:$16 sm:%s5425]
    %vm5427 = vcmask 1047558
    %v5428 = vsel %vm5427, %v5426, %v5423
    %5429 = vrot.lane.b32.xlu0 %v5428, 96
    %v5430 = vpop.permute.xlu0 %5429
    %vm5431 = vcmask 851712
    %s5432 = scalar_lea.vmem [#allocation0], 72
    %5433 = vst.msk [vmem:[%s5432] sm:$0xff] %vm5431, %v5430
    %s5434 = scalar_lea.vmem [#allocation1], 1676
    %s5435 = smov 3
    %v5436 = vld [vmem:[%s5434] ss:$16 sm:%s5435]
    %s5437 = scalar_lea.vmem [#allocation1], 1676
    %s5438 = smov 12
    %v5439 = vld [vmem:[%s5437] ss:$16 sm:%s5438]
    %vm5440 = vcmask 1043458
    %v5441 = vsel %vm5440, %v5439, %v5436
    %s5442 = scalar_lea.vmem [#allocation1], 1676
    %s5443 = smov 48
    %v5444 = vld [vmem:[%s5442] ss:$16 sm:%s5443]
    %vm5445 = vcmask 1045508
    %v5446 = vsel %vm5445, %v5444, %v5441
    %s5447 = scalar_lea.vmem [#allocation1], 1676
    %s5448 = smov 192
    %v5449 = vld [vmem:[%s5447] ss:$16 sm:%s5448]
    %vm5450 = vcmask 1047558
    %v5451 = vsel %vm5450, %v5449, %v5446
    %5452 = vrot.lane.b32.xlu0 %v5451, 96
    %v5453 = vpop.permute.xlu0 %5452
    %vm5454 = vcmask 851712
    %s5455 = scalar_lea.vmem [#allocation0], 104
    %5456 = vst.msk [vmem:[%s5455] sm:$0xff] %vm5454, %v5453
    %s5457 = scalar_lea.vmem [#allocation1], 268
    %s5458 = smov 3
    %v5459 = vld [vmem:[%s5457] ss:$16 sm:%s5458]
    %s5460 = scalar_lea.vmem [#allocation1], 268
    %s5461 = smov 12
    %v5462 = vld [vmem:[%s5460] ss:$16 sm:%s5461]
    %vm5463 = vcmask 1043458
    %v5464 = vsel %vm5463, %v5462, %v5459
    %s5465 = scalar_lea.vmem [#allocation1], 268
    %s5466 = smov 48
    %v5467 = vld [vmem:[%s5465] ss:$16 sm:%s5466]
    %vm5468 = vcmask 1045508
    %v5469 = vsel %vm5468, %v5467, %v5464
    %s5470 = scalar_lea.vmem [#allocation1], 268
    %s5471 = smov 192
    %v5472 = vld [vmem:[%s5470] ss:$16 sm:%s5471]
    %vm5473 = vcmask 1047558
    %v5474 = vsel %vm5473, %v5472, %v5469
    %5475 = vrot.lane.b32.xlu0 %v5474, 96
    %v5476 = vpop.permute.xlu0 %5475
    %vm5477 = vcmask 851712
    %s5478 = scalar_lea.vmem [#allocation0], 16
    %5479 = vst.msk [vmem:[%s5478] sm:$0xff] %vm5477, %v5476
    %s5480 = scalar_lea.vmem [#allocation1], 780
    %s5481 = smov 3
    %v5482 = vld [vmem:[%s5480] ss:$16 sm:%s5481]
    %s5483 = scalar_lea.vmem [#allocation1], 780
    %s5484 = smov 12
    %v5485 = vld [vmem:[%s5483] ss:$16 sm:%s5484]
    %vm5486 = vcmask 1043458
    %v5487 = vsel %vm5486, %v5485, %v5482
    %s5488 = scalar_lea.vmem [#allocation1], 780
    %s5489 = smov 48
    %v5490 = vld [vmem:[%s5488] ss:$16 sm:%s5489]
    %vm5491 = vcmask 1045508
    %v5492 = vsel %vm5491, %v5490, %v5487
    %s5493 = scalar_lea.vmem [#allocation1], 780
    %s5494 = smov 192
    %v5495 = vld [vmem:[%s5493] ss:$16 sm:%s5494]
    %vm5496 = vcmask 1047558
    %v5497 = vsel %vm5496, %v5495, %v5492
    %5498 = vrot.lane.b32.xlu0 %v5497, 96
    %v5499 = vpop.permute.xlu0 %5498
    %vm5500 = vcmask 851712
    %s5501 = scalar_lea.vmem [#allocation0], 48
    %5502 = vst.msk [vmem:[%s5501] sm:$0xff] %vm5500, %v5499
    %s5503 = scalar_lea.vmem [#allocation1], 1292
    %s5504 = smov 3
    %v5505 = vld [vmem:[%s5503] ss:$16 sm:%s5504]
    %s5506 = scalar_lea.vmem [#allocation1], 1292
    %s5507 = smov 12
    %v5508 = vld [vmem:[%s5506] ss:$16 sm:%s5507]
    %vm5509 = vcmask 1043458
    %v5510 = vsel %vm5509, %v5508, %v5505
    %s5511 = scalar_lea.vmem [#allocation1], 1292
    %s5512 = smov 48
    %v5513 = vld [vmem:[%s5511] ss:$16 sm:%s5512]
    %vm5514 = vcmask 1045508
    %v5515 = vsel %vm5514, %v5513, %v5510
    %s5516 = scalar_lea.vmem [#allocation1], 1292
    %s5517 = smov 192
    %v5518 = vld [vmem:[%s5516] ss:$16 sm:%s5517]
    %vm5519 = vcmask 1047558
    %v5520 = vsel %vm5519, %v5518, %v5515
    %5521 = vrot.lane.b32.xlu0 %v5520, 96
    %v5522 = vpop.permute.xlu0 %5521
    %vm5523 = vcmask 851712
    %s5524 = scalar_lea.vmem [#allocation0], 80
    %5525 = vst.msk [vmem:[%s5524] sm:$0xff] %vm5523, %v5522
    %s5526 = scalar_lea.vmem [#allocation1], 1804
    %s5527 = smov 3
    %v5528 = vld [vmem:[%s5526] ss:$16 sm:%s5527]
    %s5529 = scalar_lea.vmem [#allocation1], 1804
    %s5530 = smov 12
    %v5531 = vld [vmem:[%s5529] ss:$16 sm:%s5530]
    %vm5532 = vcmask 1043458
    %v5533 = vsel %vm5532, %v5531, %v5528
    %s5534 = scalar_lea.vmem [#allocation1], 1804
    %s5535 = smov 48
    %v5536 = vld [vmem:[%s5534] ss:$16 sm:%s5535]
    %vm5537 = vcmask 1045508
    %v5538 = vsel %vm5537, %v5536, %v5533
    %s5539 = scalar_lea.vmem [#allocation1], 1804
    %s5540 = smov 192
    %v5541 = vld [vmem:[%s5539] ss:$16 sm:%s5540]
    %vm5542 = vcmask 1047558
    %v5543 = vsel %vm5542, %v5541, %v5538
    %5544 = vrot.lane.b32.xlu0 %v5543, 96
    %v5545 = vpop.permute.xlu0 %5544
    %vm5546 = vcmask 851712
    %s5547 = scalar_lea.vmem [#allocation0], 112
    %5548 = vst.msk [vmem:[%s5547] sm:$0xff] %vm5546, %v5545
    %s5549 = scalar_lea.vmem [#allocation1], 396
    %s5550 = smov 3
    %v5551 = vld [vmem:[%s5549] ss:$16 sm:%s5550]
    %s5552 = scalar_lea.vmem [#allocation1], 396
    %s5553 = smov 12
    %v5554 = vld [vmem:[%s5552] ss:$16 sm:%s5553]
    %vm5555 = vcmask 1043458
    %v5556 = vsel %vm5555, %v5554, %v5551
    %s5557 = scalar_lea.vmem [#allocation1], 396
    %s5558 = smov 48
    %v5559 = vld [vmem:[%s5557] ss:$16 sm:%s5558]
    %vm5560 = vcmask 1045508
    %v5561 = vsel %vm5560, %v5559, %v5556
    %s5562 = scalar_lea.vmem [#allocation1], 396
    %s5563 = smov 192
    %v5564 = vld [vmem:[%s5562] ss:$16 sm:%s5563]
    %vm5565 = vcmask 1047558
    %v5566 = vsel %vm5565, %v5564, %v5561
    %5567 = vrot.lane.b32.xlu0 %v5566, 96
    %v5568 = vpop.permute.xlu0 %5567
    %vm5569 = vcmask 851712
    %s5570 = scalar_lea.vmem [#allocation0], 24
    %5571 = vst.msk [vmem:[%s5570] sm:$0xff] %vm5569, %v5568
    %s5572 = scalar_lea.vmem [#allocation1], 908
    %s5573 = smov 3
    %v5574 = vld [vmem:[%s5572] ss:$16 sm:%s5573]
    %s5575 = scalar_lea.vmem [#allocation1], 908
    %s5576 = smov 12
    %v5577 = vld [vmem:[%s5575] ss:$16 sm:%s5576]
    %vm5578 = vcmask 1043458
    %v5579 = vsel %vm5578, %v5577, %v5574
    %s5580 = scalar_lea.vmem [#allocation1], 908
    %s5581 = smov 48
    %v5582 = vld [vmem:[%s5580] ss:$16 sm:%s5581]
    %vm5583 = vcmask 1045508
    %v5584 = vsel %vm5583, %v5582, %v5579
    %s5585 = scalar_lea.vmem [#allocation1], 908
    %s5586 = smov 192
    %v5587 = vld [vmem:[%s5585] ss:$16 sm:%s5586]
    %vm5588 = vcmask 1047558
    %v5589 = vsel %vm5588, %v5587, %v5584
    %5590 = vrot.lane.b32.xlu0 %v5589, 96
    %v5591 = vpop.permute.xlu0 %5590
    %vm5592 = vcmask 851712
    %s5593 = scalar_lea.vmem [#allocation0], 56
    %5594 = vst.msk [vmem:[%s5593] sm:$0xff] %vm5592, %v5591
    %s5595 = scalar_lea.vmem [#allocation1], 1420
    %s5596 = smov 3
    %v5597 = vld [vmem:[%s5595] ss:$16 sm:%s5596]
    %s5598 = scalar_lea.vmem [#allocation1], 1420
    %s5599 = smov 12
    %v5600 = vld [vmem:[%s5598] ss:$16 sm:%s5599]
    %vm5601 = vcmask 1043458
    %v5602 = vsel %vm5601, %v5600, %v5597
    %s5603 = scalar_lea.vmem [#allocation1], 1420
    %s5604 = smov 48
    %v5605 = vld [vmem:[%s5603] ss:$16 sm:%s5604]
    %vm5606 = vcmask 1045508
    %v5607 = vsel %vm5606, %v5605, %v5602
    %s5608 = scalar_lea.vmem [#allocation1], 1420
    %s5609 = smov 192
    %v5610 = vld [vmem:[%s5608] ss:$16 sm:%s5609]
    %vm5611 = vcmask 1047558
    %v5612 = vsel %vm5611, %v5610, %v5607
    %5613 = vrot.lane.b32.xlu0 %v5612, 96
    %v5614 = vpop.permute.xlu0 %5613
    %vm5615 = vcmask 851712
    %s5616 = scalar_lea.vmem [#allocation0], 88
    %5617 = vst.msk [vmem:[%s5616] sm:$0xff] %vm5615, %v5614
    %s5618 = scalar_lea.vmem [#allocation1], 1932
    %s5619 = smov 3
    %v5620 = vld [vmem:[%s5618] ss:$16 sm:%s5619]
    %s5621 = scalar_lea.vmem [#allocation1], 1932
    %s5622 = smov 12
    %v5623 = vld [vmem:[%s5621] ss:$16 sm:%s5622]
    %vm5624 = vcmask 1043458
    %v5625 = vsel %vm5624, %v5623, %v5620
    %s5626 = scalar_lea.vmem [#allocation1], 1932
    %s5627 = smov 48
    %v5628 = vld [vmem:[%s5626] ss:$16 sm:%s5627]
    %vm5629 = vcmask 1045508
    %v5630 = vsel %vm5629, %v5628, %v5625
    %s5631 = scalar_lea.vmem [#allocation1], 1932
    %s5632 = smov 192
    %v5633 = vld [vmem:[%s5631] ss:$16 sm:%s5632]
    %vm5634 = vcmask 1047558
    %v5635 = vsel %vm5634, %v5633, %v5630
    %5636 = vrot.lane.b32.xlu0 %v5635, 96
    %v5637 = vpop.permute.xlu0 %5636
    %vm5638 = vcmask 851712
    %s5639 = scalar_lea.vmem [#allocation0], 120
    %5640 = vst.msk [vmem:[%s5639] sm:$0xff] %vm5638, %v5637
    %s5641 = scalar_lea.vmem [#allocation1], 11
    %s5642 = smov 3
    %v5643 = vld [vmem:[%s5641] ss:$16 sm:%s5642]
    %s5644 = scalar_lea.vmem [#allocation1], 11
    %s5645 = smov 12
    %v5646 = vld [vmem:[%s5644] ss:$16 sm:%s5645]
    %vm5647 = vcmask 1043458
    %v5648 = vsel %vm5647, %v5646, %v5643
    %s5649 = scalar_lea.vmem [#allocation1], 11
    %s5650 = smov 48
    %v5651 = vld [vmem:[%s5649] ss:$16 sm:%s5650]
    %vm5652 = vcmask 1045508
    %v5653 = vsel %vm5652, %v5651, %v5648
    %s5654 = scalar_lea.vmem [#allocation1], 11
    %s5655 = smov 192
    %v5656 = vld [vmem:[%s5654] ss:$16 sm:%s5655]
    %vm5657 = vcmask 1047558
    %v5658 = vsel %vm5657, %v5656, %v5653
    %5659 = vrot.lane.b32.xlu0 %v5658, 88
    %v5660 = vpop.permute.xlu0 %5659
    %vm5661 = vcmask 786112
    %5662 = vst.msk [vmem:[#allocation0] sm:$0xff] %vm5661, %v5660
    %s5663 = scalar_lea.vmem [#allocation1], 523
    %s5664 = smov 3
    %v5665 = vld [vmem:[%s5663] ss:$16 sm:%s5664]
    %s5666 = scalar_lea.vmem [#allocation1], 523
    %s5667 = smov 12
    %v5668 = vld [vmem:[%s5666] ss:$16 sm:%s5667]
    %vm5669 = vcmask 1043458
    %v5670 = vsel %vm5669, %v5668, %v5665
    %s5671 = scalar_lea.vmem [#allocation1], 523
    %s5672 = smov 48
    %v5673 = vld [vmem:[%s5671] ss:$16 sm:%s5672]
    %vm5674 = vcmask 1045508
    %v5675 = vsel %vm5674, %v5673, %v5670
    %s5676 = scalar_lea.vmem [#allocation1], 523
    %s5677 = smov 192
    %v5678 = vld [vmem:[%s5676] ss:$16 sm:%s5677]
    %vm5679 = vcmask 1047558
    %v5680 = vsel %vm5679, %v5678, %v5675
    %5681 = vrot.lane.b32.xlu0 %v5680, 88
    %v5682 = vpop.permute.xlu0 %5681
    %vm5683 = vcmask 786112
    %s5684 = scalar_lea.vmem [#allocation0], 32
    %5685 = vst.msk [vmem:[%s5684] sm:$0xff] %vm5683, %v5682
    %s5686 = scalar_lea.vmem [#allocation1], 1035
    %s5687 = smov 3
    %v5688 = vld [vmem:[%s5686] ss:$16 sm:%s5687]
    %s5689 = scalar_lea.vmem [#allocation1], 1035
    %s5690 = smov 12
    %v5691 = vld [vmem:[%s5689] ss:$16 sm:%s5690]
    %vm5692 = vcmask 1043458
    %v5693 = vsel %vm5692, %v5691, %v5688
    %s5694 = scalar_lea.vmem [#allocation1], 1035
    %s5695 = smov 48
    %v5696 = vld [vmem:[%s5694] ss:$16 sm:%s5695]
    %vm5697 = vcmask 1045508
    %v5698 = vsel %vm5697, %v5696, %v5693
    %s5699 = scalar_lea.vmem [#allocation1], 1035
    %s5700 = smov 192
    %v5701 = vld [vmem:[%s5699] ss:$16 sm:%s5700]
    %vm5702 = vcmask 1047558
    %v5703 = vsel %vm5702, %v5701, %v5698
    %5704 = vrot.lane.b32.xlu0 %v5703, 88
    %v5705 = vpop.permute.xlu0 %5704
    %vm5706 = vcmask 786112
    %s5707 = scalar_lea.vmem [#allocation0], 64
    %5708 = vst.msk [vmem:[%s5707] sm:$0xff] %vm5706, %v5705
    %s5709 = scalar_lea.vmem [#allocation1], 1547
    %s5710 = smov 3
    %v5711 = vld [vmem:[%s5709] ss:$16 sm:%s5710]
    %s5712 = scalar_lea.vmem [#allocation1], 1547
    %s5713 = smov 12
    %v5714 = vld [vmem:[%s5712] ss:$16 sm:%s5713]
    %vm5715 = vcmask 1043458
    %v5716 = vsel %vm5715, %v5714, %v5711
    %s5717 = scalar_lea.vmem [#allocation1], 1547
    %s5718 = smov 48
    %v5719 = vld [vmem:[%s5717] ss:$16 sm:%s5718]
    %vm5720 = vcmask 1045508
    %v5721 = vsel %vm5720, %v5719, %v5716
    %s5722 = scalar_lea.vmem [#allocation1], 1547
    %s5723 = smov 192
    %v5724 = vld [vmem:[%s5722] ss:$16 sm:%s5723]
    %vm5725 = vcmask 1047558
    %v5726 = vsel %vm5725, %v5724, %v5721
    %5727 = vrot.lane.b32.xlu0 %v5726, 88
    %v5728 = vpop.permute.xlu0 %5727
    %vm5729 = vcmask 786112
    %s5730 = scalar_lea.vmem [#allocation0], 96
    %5731 = vst.msk [vmem:[%s5730] sm:$0xff] %vm5729, %v5728
    %s5732 = scalar_lea.vmem [#allocation1], 139
    %s5733 = smov 3
    %v5734 = vld [vmem:[%s5732] ss:$16 sm:%s5733]
    %s5735 = scalar_lea.vmem [#allocation1], 139
    %s5736 = smov 12
    %v5737 = vld [vmem:[%s5735] ss:$16 sm:%s5736]
    %vm5738 = vcmask 1043458
    %v5739 = vsel %vm5738, %v5737, %v5734
    %s5740 = scalar_lea.vmem [#allocation1], 139
    %s5741 = smov 48
    %v5742 = vld [vmem:[%s5740] ss:$16 sm:%s5741]
    %vm5743 = vcmask 1045508
    %v5744 = vsel %vm5743, %v5742, %v5739
    %s5745 = scalar_lea.vmem [#allocation1], 139
    %s5746 = smov 192
    %v5747 = vld [vmem:[%s5745] ss:$16 sm:%s5746]
    %vm5748 = vcmask 1047558
    %v5749 = vsel %vm5748, %v5747, %v5744
    %5750 = vrot.lane.b32.xlu0 %v5749, 88
    %v5751 = vpop.permute.xlu0 %5750
    %vm5752 = vcmask 786112
    %s5753 = scalar_lea.vmem [#allocation0], 8
    %5754 = vst.msk [vmem:[%s5753] sm:$0xff] %vm5752, %v5751
    %s5755 = scalar_lea.vmem [#allocation1], 651
    %s5756 = smov 3
    %v5757 = vld [vmem:[%s5755] ss:$16 sm:%s5756]
    %s5758 = scalar_lea.vmem [#allocation1], 651
    %s5759 = smov 12
    %v5760 = vld [vmem:[%s5758] ss:$16 sm:%s5759]
    %vm5761 = vcmask 1043458
    %v5762 = vsel %vm5761, %v5760, %v5757
    %s5763 = scalar_lea.vmem [#allocation1], 651
    %s5764 = smov 48
    %v5765 = vld [vmem:[%s5763] ss:$16 sm:%s5764]
    %vm5766 = vcmask 1045508
    %v5767 = vsel %vm5766, %v5765, %v5762
    %s5768 = scalar_lea.vmem [#allocation1], 651
    %s5769 = smov 192
    %v5770 = vld [vmem:[%s5768] ss:$16 sm:%s5769]
    %vm5771 = vcmask 1047558
    %v5772 = vsel %vm5771, %v5770, %v5767
    %5773 = vrot.lane.b32.xlu0 %v5772, 88
    %v5774 = vpop.permute.xlu0 %5773
    %vm5775 = vcmask 786112
    %s5776 = scalar_lea.vmem [#allocation0], 40
    %5777 = vst.msk [vmem:[%s5776] sm:$0xff] %vm5775, %v5774
    %s5778 = scalar_lea.vmem [#allocation1], 1163
    %s5779 = smov 3
    %v5780 = vld [vmem:[%s5778] ss:$16 sm:%s5779]
    %s5781 = scalar_lea.vmem [#allocation1], 1163
    %s5782 = smov 12
    %v5783 = vld [vmem:[%s5781] ss:$16 sm:%s5782]
    %vm5784 = vcmask 1043458
    %v5785 = vsel %vm5784, %v5783, %v5780
    %s5786 = scalar_lea.vmem [#allocation1], 1163
    %s5787 = smov 48
    %v5788 = vld [vmem:[%s5786] ss:$16 sm:%s5787]
    %vm5789 = vcmask 1045508
    %v5790 = vsel %vm5789, %v5788, %v5785
    %s5791 = scalar_lea.vmem [#allocation1], 1163
    %s5792 = smov 192
    %v5793 = vld [vmem:[%s5791] ss:$16 sm:%s5792]
    %vm5794 = vcmask 1047558
    %v5795 = vsel %vm5794, %v5793, %v5790
    %5796 = vrot.lane.b32.xlu0 %v5795, 88
    %v5797 = vpop.permute.xlu0 %5796
    %vm5798 = vcmask 786112
    %s5799 = scalar_lea.vmem [#allocation0], 72
    %5800 = vst.msk [vmem:[%s5799] sm:$0xff] %vm5798, %v5797
    %s5801 = scalar_lea.vmem [#allocation1], 1675
    %s5802 = smov 3
    %v5803 = vld [vmem:[%s5801] ss:$16 sm:%s5802]
    %s5804 = scalar_lea.vmem [#allocation1], 1675
    %s5805 = smov 12
    %v5806 = vld [vmem:[%s5804] ss:$16 sm:%s5805]
    %vm5807 = vcmask 1043458
    %v5808 = vsel %vm5807, %v5806, %v5803
    %s5809 = scalar_lea.vmem [#allocation1], 1675
    %s5810 = smov 48
    %v5811 = vld [vmem:[%s5809] ss:$16 sm:%s5810]
    %vm5812 = vcmask 1045508
    %v5813 = vsel %vm5812, %v5811, %v5808
    %s5814 = scalar_lea.vmem [#allocation1], 1675
    %s5815 = smov 192
    %v5816 = vld [vmem:[%s5814] ss:$16 sm:%s5815]
    %vm5817 = vcmask 1047558
    %v5818 = vsel %vm5817, %v5816, %v5813
    %5819 = vrot.lane.b32.xlu0 %v5818, 88
    %v5820 = vpop.permute.xlu0 %5819
    %vm5821 = vcmask 786112
    %s5822 = scalar_lea.vmem [#allocation0], 104
    %5823 = vst.msk [vmem:[%s5822] sm:$0xff] %vm5821, %v5820
    %s5824 = scalar_lea.vmem [#allocation1], 267
    %s5825 = smov 3
    %v5826 = vld [vmem:[%s5824] ss:$16 sm:%s5825]
    %s5827 = scalar_lea.vmem [#allocation1], 267
    %s5828 = smov 12
    %v5829 = vld [vmem:[%s5827] ss:$16 sm:%s5828]
    %vm5830 = vcmask 1043458
    %v5831 = vsel %vm5830, %v5829, %v5826
    %s5832 = scalar_lea.vmem [#allocation1], 267
    %s5833 = smov 48
    %v5834 = vld [vmem:[%s5832] ss:$16 sm:%s5833]
    %vm5835 = vcmask 1045508
    %v5836 = vsel %vm5835, %v5834, %v5831
    %s5837 = scalar_lea.vmem [#allocation1], 267
    %s5838 = smov 192
    %v5839 = vld [vmem:[%s5837] ss:$16 sm:%s5838]
    %vm5840 = vcmask 1047558
    %v5841 = vsel %vm5840, %v5839, %v5836
    %5842 = vrot.lane.b32.xlu0 %v5841, 88
    %v5843 = vpop.permute.xlu0 %5842
    %vm5844 = vcmask 786112
    %s5845 = scalar_lea.vmem [#allocation0], 16
    %5846 = vst.msk [vmem:[%s5845] sm:$0xff] %vm5844, %v5843
    %s5847 = scalar_lea.vmem [#allocation1], 779
    %s5848 = smov 3
    %v5849 = vld [vmem:[%s5847] ss:$16 sm:%s5848]
    %s5850 = scalar_lea.vmem [#allocation1], 779
    %s5851 = smov 12
    %v5852 = vld [vmem:[%s5850] ss:$16 sm:%s5851]
    %vm5853 = vcmask 1043458
    %v5854 = vsel %vm5853, %v5852, %v5849
    %s5855 = scalar_lea.vmem [#allocation1], 779
    %s5856 = smov 48
    %v5857 = vld [vmem:[%s5855] ss:$16 sm:%s5856]
    %vm5858 = vcmask 1045508
    %v5859 = vsel %vm5858, %v5857, %v5854
    %s5860 = scalar_lea.vmem [#allocation1], 779
    %s5861 = smov 192
    %v5862 = vld [vmem:[%s5860] ss:$16 sm:%s5861]
    %vm5863 = vcmask 1047558
    %v5864 = vsel %vm5863, %v5862, %v5859
    %5865 = vrot.lane.b32.xlu0 %v5864, 88
    %v5866 = vpop.permute.xlu0 %5865
    %vm5867 = vcmask 786112
    %s5868 = scalar_lea.vmem [#allocation0], 48
    %5869 = vst.msk [vmem:[%s5868] sm:$0xff] %vm5867, %v5866
    %s5870 = scalar_lea.vmem [#allocation1], 1291
    %s5871 = smov 3
    %v5872 = vld [vmem:[%s5870] ss:$16 sm:%s5871]
    %s5873 = scalar_lea.vmem [#allocation1], 1291
    %s5874 = smov 12
    %v5875 = vld [vmem:[%s5873] ss:$16 sm:%s5874]
    %vm5876 = vcmask 1043458
    %v5877 = vsel %vm5876, %v5875, %v5872
    %s5878 = scalar_lea.vmem [#allocation1], 1291
    %s5879 = smov 48
    %v5880 = vld [vmem:[%s5878] ss:$16 sm:%s5879]
    %vm5881 = vcmask 1045508
    %v5882 = vsel %vm5881, %v5880, %v5877
    %s5883 = scalar_lea.vmem [#allocation1], 1291
    %s5884 = smov 192
    %v5885 = vld [vmem:[%s5883] ss:$16 sm:%s5884]
    %vm5886 = vcmask 1047558
    %v5887 = vsel %vm5886, %v5885, %v5882
    %5888 = vrot.lane.b32.xlu0 %v5887, 88
    %v5889 = vpop.permute.xlu0 %5888
    %vm5890 = vcmask 786112
    %s5891 = scalar_lea.vmem [#allocation0], 80
    %5892 = vst.msk [vmem:[%s5891] sm:$0xff] %vm5890, %v5889
    %s5893 = scalar_lea.vmem [#allocation1], 1803
    %s5894 = smov 3
    %v5895 = vld [vmem:[%s5893] ss:$16 sm:%s5894]
    %s5896 = scalar_lea.vmem [#allocation1], 1803
    %s5897 = smov 12
    %v5898 = vld [vmem:[%s5896] ss:$16 sm:%s5897]
    %vm5899 = vcmask 1043458
    %v5900 = vsel %vm5899, %v5898, %v5895
    %s5901 = scalar_lea.vmem [#allocation1], 1803
    %s5902 = smov 48
    %v5903 = vld [vmem:[%s5901] ss:$16 sm:%s5902]
    %vm5904 = vcmask 1045508
    %v5905 = vsel %vm5904, %v5903, %v5900
    %s5906 = scalar_lea.vmem [#allocation1], 1803
    %s5907 = smov 192
    %v5908 = vld [vmem:[%s5906] ss:$16 sm:%s5907]
    %vm5909 = vcmask 1047558
    %v5910 = vsel %vm5909, %v5908, %v5905
    %5911 = vrot.lane.b32.xlu0 %v5910, 88
    %v5912 = vpop.permute.xlu0 %5911
    %vm5913 = vcmask 786112
    %s5914 = scalar_lea.vmem [#allocation0], 112
    %5915 = vst.msk [vmem:[%s5914] sm:$0xff] %vm5913, %v5912
    %s5916 = scalar_lea.vmem [#allocation1], 395
    %s5917 = smov 3
    %v5918 = vld [vmem:[%s5916] ss:$16 sm:%s5917]
    %s5919 = scalar_lea.vmem [#allocation1], 395
    %s5920 = smov 12
    %v5921 = vld [vmem:[%s5919] ss:$16 sm:%s5920]
    %vm5922 = vcmask 1043458
    %v5923 = vsel %vm5922, %v5921, %v5918
    %s5924 = scalar_lea.vmem [#allocation1], 395
    %s5925 = smov 48
    %v5926 = vld [vmem:[%s5924] ss:$16 sm:%s5925]
    %vm5927 = vcmask 1045508
    %v5928 = vsel %vm5927, %v5926, %v5923
    %s5929 = scalar_lea.vmem [#allocation1], 395
    %s5930 = smov 192
    %v5931 = vld [vmem:[%s5929] ss:$16 sm:%s5930]
    %vm5932 = vcmask 1047558
    %v5933 = vsel %vm5932, %v5931, %v5928
    %5934 = vrot.lane.b32.xlu0 %v5933, 88
    %v5935 = vpop.permute.xlu0 %5934
    %vm5936 = vcmask 786112
    %s5937 = scalar_lea.vmem [#allocation0], 24
    %5938 = vst.msk [vmem:[%s5937] sm:$0xff] %vm5936, %v5935
    %s5939 = scalar_lea.vmem [#allocation1], 907
    %s5940 = smov 3
    %v5941 = vld [vmem:[%s5939] ss:$16 sm:%s5940]
    %s5942 = scalar_lea.vmem [#allocation1], 907
    %s5943 = smov 12
    %v5944 = vld [vmem:[%s5942] ss:$16 sm:%s5943]
    %vm5945 = vcmask 1043458
    %v5946 = vsel %vm5945, %v5944, %v5941
    %s5947 = scalar_lea.vmem [#allocation1], 907
    %s5948 = smov 48
    %v5949 = vld [vmem:[%s5947] ss:$16 sm:%s5948]
    %vm5950 = vcmask 1045508
    %v5951 = vsel %vm5950, %v5949, %v5946
    %s5952 = scalar_lea.vmem [#allocation1], 907
    %s5953 = smov 192
    %v5954 = vld [vmem:[%s5952] ss:$16 sm:%s5953]
    %vm5955 = vcmask 1047558
    %v5956 = vsel %vm5955, %v5954, %v5951
    %5957 = vrot.lane.b32.xlu0 %v5956, 88
    %v5958 = vpop.permute.xlu0 %5957
    %vm5959 = vcmask 786112
    %s5960 = scalar_lea.vmem [#allocation0], 56
    %5961 = vst.msk [vmem:[%s5960] sm:$0xff] %vm5959, %v5958
    %s5962 = scalar_lea.vmem [#allocation1], 1419
    %s5963 = smov 3
    %v5964 = vld [vmem:[%s5962] ss:$16 sm:%s5963]
    %s5965 = scalar_lea.vmem [#allocation1], 1419
    %s5966 = smov 12
    %v5967 = vld [vmem:[%s5965] ss:$16 sm:%s5966]
    %vm5968 = vcmask 1043458
    %v5969 = vsel %vm5968, %v5967, %v5964
    %s5970 = scalar_lea.vmem [#allocation1], 1419
    %s5971 = smov 48
    %v5972 = vld [vmem:[%s5970] ss:$16 sm:%s5971]
    %vm5973 = vcmask 1045508
    %v5974 = vsel %vm5973, %v5972, %v5969
    %s5975 = scalar_lea.vmem [#allocation1], 1419
    %s5976 = smov 192
    %v5977 = vld [vmem:[%s5975] ss:$16 sm:%s5976]
    %vm5978 = vcmask 1047558
    %v5979 = vsel %vm5978, %v5977, %v5974
    %5980 = vrot.lane.b32.xlu0 %v5979, 88
    %v5981 = vpop.permute.xlu0 %5980
    %vm5982 = vcmask 786112
    %s5983 = scalar_lea.vmem [#allocation0], 88
    %5984 = vst.msk [vmem:[%s5983] sm:$0xff] %vm5982, %v5981
    %s5985 = scalar_lea.vmem [#allocation1], 1931
    %s5986 = smov 3
    %v5987 = vld [vmem:[%s5985] ss:$16 sm:%s5986]
    %s5988 = scalar_lea.vmem [#allocation1], 1931
    %s5989 = smov 12
    %v5990 = vld [vmem:[%s5988] ss:$16 sm:%s5989]
    %vm5991 = vcmask 1043458
    %v5992 = vsel %vm5991, %v5990, %v5987
    %s5993 = scalar_lea.vmem [#allocation1], 1931
    %s5994 = smov 48
    %v5995 = vld [vmem:[%s5993] ss:$16 sm:%s5994]
    %vm5996 = vcmask 1045508
    %v5997 = vsel %vm5996, %v5995, %v5992
    %s5998 = scalar_lea.vmem [#allocation1], 1931
    %s5999 = smov 192
    %v6000 = vld [vmem:[%s5998] ss:$16 sm:%s5999]
    %vm6001 = vcmask 1047558
    %v6002 = vsel %vm6001, %v6000, %v5997
    %6003 = vrot.lane.b32.xlu0 %v6002, 88
    %v6004 = vpop.permute.xlu0 %6003
    %vm6005 = vcmask 786112
    %s6006 = scalar_lea.vmem [#allocation0], 120
    %6007 = vst.msk [vmem:[%s6006] sm:$0xff] %vm6005, %v6004
    %s6008 = scalar_lea.vmem [#allocation1], 10
    %s6009 = smov 3
    %v6010 = vld [vmem:[%s6008] ss:$16 sm:%s6009]
    %s6011 = scalar_lea.vmem [#allocation1], 10
    %s6012 = smov 12
    %v6013 = vld [vmem:[%s6011] ss:$16 sm:%s6012]
    %vm6014 = vcmask 1043458
    %v6015 = vsel %vm6014, %v6013, %v6010
    %s6016 = scalar_lea.vmem [#allocation1], 10
    %s6017 = smov 48
    %v6018 = vld [vmem:[%s6016] ss:$16 sm:%s6017]
    %vm6019 = vcmask 1045508
    %v6020 = vsel %vm6019, %v6018, %v6015
    %s6021 = scalar_lea.vmem [#allocation1], 10
    %s6022 = smov 192
    %v6023 = vld [vmem:[%s6021] ss:$16 sm:%s6022]
    %vm6024 = vcmask 1047558
    %v6025 = vsel %vm6024, %v6023, %v6020
    %6026 = vrot.lane.b32.xlu0 %v6025, 80
    %v6027 = vpop.permute.xlu0 %6026
    %vm6028 = vcmask 720512
    %6029 = vst.msk [vmem:[#allocation0] sm:$0xff] %vm6028, %v6027
    %s6030 = scalar_lea.vmem [#allocation1], 522
    %s6031 = smov 3
    %v6032 = vld [vmem:[%s6030] ss:$16 sm:%s6031]
    %s6033 = scalar_lea.vmem [#allocation1], 522
    %s6034 = smov 12
    %v6035 = vld [vmem:[%s6033] ss:$16 sm:%s6034]
    %vm6036 = vcmask 1043458
    %v6037 = vsel %vm6036, %v6035, %v6032
    %s6038 = scalar_lea.vmem [#allocation1], 522
    %s6039 = smov 48
    %v6040 = vld [vmem:[%s6038] ss:$16 sm:%s6039]
    %vm6041 = vcmask 1045508
    %v6042 = vsel %vm6041, %v6040, %v6037
    %s6043 = scalar_lea.vmem [#allocation1], 522
    %s6044 = smov 192
    %v6045 = vld [vmem:[%s6043] ss:$16 sm:%s6044]
    %vm6046 = vcmask 1047558
    %v6047 = vsel %vm6046, %v6045, %v6042
    %6048 = vrot.lane.b32.xlu0 %v6047, 80
    %v6049 = vpop.permute.xlu0 %6048
    %vm6050 = vcmask 720512
    %s6051 = scalar_lea.vmem [#allocation0], 32
    %6052 = vst.msk [vmem:[%s6051] sm:$0xff] %vm6050, %v6049
    %s6053 = scalar_lea.vmem [#allocation1], 1034
    %s6054 = smov 3
    %v6055 = vld [vmem:[%s6053] ss:$16 sm:%s6054]
    %s6056 = scalar_lea.vmem [#allocation1], 1034
    %s6057 = smov 12
    %v6058 = vld [vmem:[%s6056] ss:$16 sm:%s6057]
    %vm6059 = vcmask 1043458
    %v6060 = vsel %vm6059, %v6058, %v6055
    %s6061 = scalar_lea.vmem [#allocation1], 1034
    %s6062 = smov 48
    %v6063 = vld [vmem:[%s6061] ss:$16 sm:%s6062]
    %vm6064 = vcmask 1045508
    %v6065 = vsel %vm6064, %v6063, %v6060
    %s6066 = scalar_lea.vmem [#allocation1], 1034
    %s6067 = smov 192
    %v6068 = vld [vmem:[%s6066] ss:$16 sm:%s6067]
    %vm6069 = vcmask 1047558
    %v6070 = vsel %vm6069, %v6068, %v6065
    %6071 = vrot.lane.b32.xlu0 %v6070, 80
    %v6072 = vpop.permute.xlu0 %6071
    %vm6073 = vcmask 720512
    %s6074 = scalar_lea.vmem [#allocation0], 64
    %6075 = vst.msk [vmem:[%s6074] sm:$0xff] %vm6073, %v6072
    %s6076 = scalar_lea.vmem [#allocation1], 1546
    %s6077 = smov 3
    %v6078 = vld [vmem:[%s6076] ss:$16 sm:%s6077]
    %s6079 = scalar_lea.vmem [#allocation1], 1546
    %s6080 = smov 12
    %v6081 = vld [vmem:[%s6079] ss:$16 sm:%s6080]
    %vm6082 = vcmask 1043458
    %v6083 = vsel %vm6082, %v6081, %v6078
    %s6084 = scalar_lea.vmem [#allocation1], 1546
    %s6085 = smov 48
    %v6086 = vld [vmem:[%s6084] ss:$16 sm:%s6085]
    %vm6087 = vcmask 1045508
    %v6088 = vsel %vm6087, %v6086, %v6083
    %s6089 = scalar_lea.vmem [#allocation1], 1546
    %s6090 = smov 192
    %v6091 = vld [vmem:[%s6089] ss:$16 sm:%s6090]
    %vm6092 = vcmask 1047558
    %v6093 = vsel %vm6092, %v6091, %v6088
    %6094 = vrot.lane.b32.xlu0 %v6093, 80
    %v6095 = vpop.permute.xlu0 %6094
    %vm6096 = vcmask 720512
    %s6097 = scalar_lea.vmem [#allocation0], 96
    %6098 = vst.msk [vmem:[%s6097] sm:$0xff] %vm6096, %v6095
    %s6099 = scalar_lea.vmem [#allocation1], 138
    %s6100 = smov 3
    %v6101 = vld [vmem:[%s6099] ss:$16 sm:%s6100]
    %s6102 = scalar_lea.vmem [#allocation1], 138
    %s6103 = smov 12
    %v6104 = vld [vmem:[%s6102] ss:$16 sm:%s6103]
    %vm6105 = vcmask 1043458
    %v6106 = vsel %vm6105, %v6104, %v6101
    %s6107 = scalar_lea.vmem [#allocation1], 138
    %s6108 = smov 48
    %v6109 = vld [vmem:[%s6107] ss:$16 sm:%s6108]
    %vm6110 = vcmask 1045508
    %v6111 = vsel %vm6110, %v6109, %v6106
    %s6112 = scalar_lea.vmem [#allocation1], 138
    %s6113 = smov 192
    %v6114 = vld [vmem:[%s6112] ss:$16 sm:%s6113]
    %vm6115 = vcmask 1047558
    %v6116 = vsel %vm6115, %v6114, %v6111
    %6117 = vrot.lane.b32.xlu0 %v6116, 80
    %v6118 = vpop.permute.xlu0 %6117
    %vm6119 = vcmask 720512
    %s6120 = scalar_lea.vmem [#allocation0], 8
    %6121 = vst.msk [vmem:[%s6120] sm:$0xff] %vm6119, %v6118
    %s6122 = scalar_lea.vmem [#allocation1], 650
    %s6123 = smov 3
    %v6124 = vld [vmem:[%s6122] ss:$16 sm:%s6123]
    %s6125 = scalar_lea.vmem [#allocation1], 650
    %s6126 = smov 12
    %v6127 = vld [vmem:[%s6125] ss:$16 sm:%s6126]
    %vm6128 = vcmask 1043458
    %v6129 = vsel %vm6128, %v6127, %v6124
    %s6130 = scalar_lea.vmem [#allocation1], 650
    %s6131 = smov 48
    %v6132 = vld [vmem:[%s6130] ss:$16 sm:%s6131]
    %vm6133 = vcmask 1045508
    %v6134 = vsel %vm6133, %v6132, %v6129
    %s6135 = scalar_lea.vmem [#allocation1], 650
    %s6136 = smov 192
    %v6137 = vld [vmem:[%s6135] ss:$16 sm:%s6136]
    %vm6138 = vcmask 1047558
    %v6139 = vsel %vm6138, %v6137, %v6134
    %6140 = vrot.lane.b32.xlu0 %v6139, 80
    %v6141 = vpop.permute.xlu0 %6140
    %vm6142 = vcmask 720512
    %s6143 = scalar_lea.vmem [#allocation0], 40
    %6144 = vst.msk [vmem:[%s6143] sm:$0xff] %vm6142, %v6141
    %s6145 = scalar_lea.vmem [#allocation1], 1162
    %s6146 = smov 3
    %v6147 = vld [vmem:[%s6145] ss:$16 sm:%s6146]
    %s6148 = scalar_lea.vmem [#allocation1], 1162
    %s6149 = smov 12
    %v6150 = vld [vmem:[%s6148] ss:$16 sm:%s6149]
    %vm6151 = vcmask 1043458
    %v6152 = vsel %vm6151, %v6150, %v6147
    %s6153 = scalar_lea.vmem [#allocation1], 1162
    %s6154 = smov 48
    %v6155 = vld [vmem:[%s6153] ss:$16 sm:%s6154]
    %vm6156 = vcmask 1045508
    %v6157 = vsel %vm6156, %v6155, %v6152
    %s6158 = scalar_lea.vmem [#allocation1], 1162
    %s6159 = smov 192
    %v6160 = vld [vmem:[%s6158] ss:$16 sm:%s6159]
    %vm6161 = vcmask 1047558
    %v6162 = vsel %vm6161, %v6160, %v6157
    %6163 = vrot.lane.b32.xlu0 %v6162, 80
    %v6164 = vpop.permute.xlu0 %6163
    %vm6165 = vcmask 720512
    %s6166 = scalar_lea.vmem [#allocation0], 72
    %6167 = vst.msk [vmem:[%s6166] sm:$0xff] %vm6165, %v6164
    %s6168 = scalar_lea.vmem [#allocation1], 1674
    %s6169 = smov 3
    %v6170 = vld [vmem:[%s6168] ss:$16 sm:%s6169]
    %s6171 = scalar_lea.vmem [#allocation1], 1674
    %s6172 = smov 12
    %v6173 = vld [vmem:[%s6171] ss:$16 sm:%s6172]
    %vm6174 = vcmask 1043458
    %v6175 = vsel %vm6174, %v6173, %v6170
    %s6176 = scalar_lea.vmem [#allocation1], 1674
    %s6177 = smov 48
    %v6178 = vld [vmem:[%s6176] ss:$16 sm:%s6177]
    %vm6179 = vcmask 1045508
    %v6180 = vsel %vm6179, %v6178, %v6175
    %s6181 = scalar_lea.vmem [#allocation1], 1674
    %s6182 = smov 192
    %v6183 = vld [vmem:[%s6181] ss:$16 sm:%s6182]
    %vm6184 = vcmask 1047558
    %v6185 = vsel %vm6184, %v6183, %v6180
    %6186 = vrot.lane.b32.xlu0 %v6185, 80
    %v6187 = vpop.permute.xlu0 %6186
    %vm6188 = vcmask 720512
    %s6189 = scalar_lea.vmem [#allocation0], 104
    %6190 = vst.msk [vmem:[%s6189] sm:$0xff] %vm6188, %v6187
    %s6191 = scalar_lea.vmem [#allocation1], 266
    %s6192 = smov 3
    %v6193 = vld [vmem:[%s6191] ss:$16 sm:%s6192]
    %s6194 = scalar_lea.vmem [#allocation1], 266
    %s6195 = smov 12
    %v6196 = vld [vmem:[%s6194] ss:$16 sm:%s6195]
    %vm6197 = vcmask 1043458
    %v6198 = vsel %vm6197, %v6196, %v6193
    %s6199 = scalar_lea.vmem [#allocation1], 266
    %s6200 = smov 48
    %v6201 = vld [vmem:[%s6199] ss:$16 sm:%s6200]
    %vm6202 = vcmask 1045508
    %v6203 = vsel %vm6202, %v6201, %v6198
    %s6204 = scalar_lea.vmem [#allocation1], 266
    %s6205 = smov 192
    %v6206 = vld [vmem:[%s6204] ss:$16 sm:%s6205]
    %vm6207 = vcmask 1047558
    %v6208 = vsel %vm6207, %v6206, %v6203
    %6209 = vrot.lane.b32.xlu0 %v6208, 80
    %v6210 = vpop.permute.xlu0 %6209
    %vm6211 = vcmask 720512
    %s6212 = scalar_lea.vmem [#allocation0], 16
    %6213 = vst.msk [vmem:[%s6212] sm:$0xff] %vm6211, %v6210
    %s6214 = scalar_lea.vmem [#allocation1], 778
    %s6215 = smov 3
    %v6216 = vld [vmem:[%s6214] ss:$16 sm:%s6215]
    %s6217 = scalar_lea.vmem [#allocation1], 778
    %s6218 = smov 12
    %v6219 = vld [vmem:[%s6217] ss:$16 sm:%s6218]
    %vm6220 = vcmask 1043458
    %v6221 = vsel %vm6220, %v6219, %v6216
    %s6222 = scalar_lea.vmem [#allocation1], 778
    %s6223 = smov 48
    %v6224 = vld [vmem:[%s6222] ss:$16 sm:%s6223]
    %vm6225 = vcmask 1045508
    %v6226 = vsel %vm6225, %v6224, %v6221
    %s6227 = scalar_lea.vmem [#allocation1], 778
    %s6228 = smov 192
    %v6229 = vld [vmem:[%s6227] ss:$16 sm:%s6228]
    %vm6230 = vcmask 1047558
    %v6231 = vsel %vm6230, %v6229, %v6226
    %6232 = vrot.lane.b32.xlu0 %v6231, 80
    %v6233 = vpop.permute.xlu0 %6232
    %vm6234 = vcmask 720512
    %s6235 = scalar_lea.vmem [#allocation0], 48
    %6236 = vst.msk [vmem:[%s6235] sm:$0xff] %vm6234, %v6233
    %s6237 = scalar_lea.vmem [#allocation1], 1290
    %s6238 = smov 3
    %v6239 = vld [vmem:[%s6237] ss:$16 sm:%s6238]
    %s6240 = scalar_lea.vmem [#allocation1], 1290
    %s6241 = smov 12
    %v6242 = vld [vmem:[%s6240] ss:$16 sm:%s6241]
    %vm6243 = vcmask 1043458
    %v6244 = vsel %vm6243, %v6242, %v6239
    %s6245 = scalar_lea.vmem [#allocation1], 1290
    %s6246 = smov 48
    %v6247 = vld [vmem:[%s6245] ss:$16 sm:%s6246]
    %vm6248 = vcmask 1045508
    %v6249 = vsel %vm6248, %v6247, %v6244
    %s6250 = scalar_lea.vmem [#allocation1], 1290
    %s6251 = smov 192
    %v6252 = vld [vmem:[%s6250] ss:$16 sm:%s6251]
    %vm6253 = vcmask 1047558
    %v6254 = vsel %vm6253, %v6252, %v6249
    %6255 = vrot.lane.b32.xlu0 %v6254, 80
    %v6256 = vpop.permute.xlu0 %6255
    %vm6257 = vcmask 720512
    %s6258 = scalar_lea.vmem [#allocation0], 80
    %6259 = vst.msk [vmem:[%s6258] sm:$0xff] %vm6257, %v6256
    %s6260 = scalar_lea.vmem [#allocation1], 1802
    %s6261 = smov 3
    %v6262 = vld [vmem:[%s6260] ss:$16 sm:%s6261]
    %s6263 = scalar_lea.vmem [#allocation1], 1802
    %s6264 = smov 12
    %v6265 = vld [vmem:[%s6263] ss:$16 sm:%s6264]
    %vm6266 = vcmask 1043458
    %v6267 = vsel %vm6266, %v6265, %v6262
    %s6268 = scalar_lea.vmem [#allocation1], 1802
    %s6269 = smov 48
    %v6270 = vld [vmem:[%s6268] ss:$16 sm:%s6269]
    %vm6271 = vcmask 1045508
    %v6272 = vsel %vm6271, %v6270, %v6267
    %s6273 = scalar_lea.vmem [#allocation1], 1802
    %s6274 = smov 192
    %v6275 = vld [vmem:[%s6273] ss:$16 sm:%s6274]
    %vm6276 = vcmask 1047558
    %v6277 = vsel %vm6276, %v6275, %v6272
    %6278 = vrot.lane.b32.xlu0 %v6277, 80
    %v6279 = vpop.permute.xlu0 %6278
    %vm6280 = vcmask 720512
    %s6281 = scalar_lea.vmem [#allocation0], 112
    %6282 = vst.msk [vmem:[%s6281] sm:$0xff] %vm6280, %v6279
    %s6283 = scalar_lea.vmem [#allocation1], 394
    %s6284 = smov 3
    %v6285 = vld [vmem:[%s6283] ss:$16 sm:%s6284]
    %s6286 = scalar_lea.vmem [#allocation1], 394
    %s6287 = smov 12
    %v6288 = vld [vmem:[%s6286] ss:$16 sm:%s6287]
    %vm6289 = vcmask 1043458
    %v6290 = vsel %vm6289, %v6288, %v6285
    %s6291 = scalar_lea.vmem [#allocation1], 394
    %s6292 = smov 48
    %v6293 = vld [vmem:[%s6291] ss:$16 sm:%s6292]
    %vm6294 = vcmask 1045508
    %v6295 = vsel %vm6294, %v6293, %v6290
    %s6296 = scalar_lea.vmem [#allocation1], 394
    %s6297 = smov 192
    %v6298 = vld [vmem:[%s6296] ss:$16 sm:%s6297]
    %vm6299 = vcmask 1047558
    %v6300 = vsel %vm6299, %v6298, %v6295
    %6301 = vrot.lane.b32.xlu0 %v6300, 80
    %v6302 = vpop.permute.xlu0 %6301
    %vm6303 = vcmask 720512
    %s6304 = scalar_lea.vmem [#allocation0], 24
    %6305 = vst.msk [vmem:[%s6304] sm:$0xff] %vm6303, %v6302
    %s6306 = scalar_lea.vmem [#allocation1], 906
    %s6307 = smov 3
    %v6308 = vld [vmem:[%s6306] ss:$16 sm:%s6307]
    %s6309 = scalar_lea.vmem [#allocation1], 906
    %s6310 = smov 12
    %v6311 = vld [vmem:[%s6309] ss:$16 sm:%s6310]
    %vm6312 = vcmask 1043458
    %v6313 = vsel %vm6312, %v6311, %v6308
    %s6314 = scalar_lea.vmem [#allocation1], 906
    %s6315 = smov 48
    %v6316 = vld [vmem:[%s6314] ss:$16 sm:%s6315]
    %vm6317 = vcmask 1045508
    %v6318 = vsel %vm6317, %v6316, %v6313
    %s6319 = scalar_lea.vmem [#allocation1], 906
    %s6320 = smov 192
    %v6321 = vld [vmem:[%s6319] ss:$16 sm:%s6320]
    %vm6322 = vcmask 1047558
    %v6323 = vsel %vm6322, %v6321, %v6318
    %6324 = vrot.lane.b32.xlu0 %v6323, 80
    %v6325 = vpop.permute.xlu0 %6324
    %vm6326 = vcmask 720512
    %s6327 = scalar_lea.vmem [#allocation0], 56
    %6328 = vst.msk [vmem:[%s6327] sm:$0xff] %vm6326, %v6325
    %s6329 = scalar_lea.vmem [#allocation1], 1418
    %s6330 = smov 3
    %v6331 = vld [vmem:[%s6329] ss:$16 sm:%s6330]
    %s6332 = scalar_lea.vmem [#allocation1], 1418
    %s6333 = smov 12
    %v6334 = vld [vmem:[%s6332] ss:$16 sm:%s6333]
    %vm6335 = vcmask 1043458
    %v6336 = vsel %vm6335, %v6334, %v6331
    %s6337 = scalar_lea.vmem [#allocation1], 1418
    %s6338 = smov 48
    %v6339 = vld [vmem:[%s6337] ss:$16 sm:%s6338]
    %vm6340 = vcmask 1045508
    %v6341 = vsel %vm6340, %v6339, %v6336
    %s6342 = scalar_lea.vmem [#allocation1], 1418
    %s6343 = smov 192
    %v6344 = vld [vmem:[%s6342] ss:$16 sm:%s6343]
    %vm6345 = vcmask 1047558
    %v6346 = vsel %vm6345, %v6344, %v6341
    %6347 = vrot.lane.b32.xlu0 %v6346, 80
    %v6348 = vpop.permute.xlu0 %6347
    %vm6349 = vcmask 720512
    %s6350 = scalar_lea.vmem [#allocation0], 88
    %6351 = vst.msk [vmem:[%s6350] sm:$0xff] %vm6349, %v6348
    %s6352 = scalar_lea.vmem [#allocation1], 1930
    %s6353 = smov 3
    %v6354 = vld [vmem:[%s6352] ss:$16 sm:%s6353]
    %s6355 = scalar_lea.vmem [#allocation1], 1930
    %s6356 = smov 12
    %v6357 = vld [vmem:[%s6355] ss:$16 sm:%s6356]
    %vm6358 = vcmask 1043458
    %v6359 = vsel %vm6358, %v6357, %v6354
    %s6360 = scalar_lea.vmem [#allocation1], 1930
    %s6361 = smov 48
    %v6362 = vld [vmem:[%s6360] ss:$16 sm:%s6361]
    %vm6363 = vcmask 1045508
    %v6364 = vsel %vm6363, %v6362, %v6359
    %s6365 = scalar_lea.vmem [#allocation1], 1930
    %s6366 = smov 192
    %v6367 = vld [vmem:[%s6365] ss:$16 sm:%s6366]
    %vm6368 = vcmask 1047558
    %v6369 = vsel %vm6368, %v6367, %v6364
    %6370 = vrot.lane.b32.xlu0 %v6369, 80
    %v6371 = vpop.permute.xlu0 %6370
    %vm6372 = vcmask 720512
    %s6373 = scalar_lea.vmem [#allocation0], 120
    %6374 = vst.msk [vmem:[%s6373] sm:$0xff] %vm6372, %v6371
    %s6375 = scalar_lea.vmem [#allocation1], 9
    %s6376 = smov 3
    %v6377 = vld [vmem:[%s6375] ss:$16 sm:%s6376]
    %s6378 = scalar_lea.vmem [#allocation1], 9
    %s6379 = smov 12
    %v6380 = vld [vmem:[%s6378] ss:$16 sm:%s6379]
    %vm6381 = vcmask 1043458
    %v6382 = vsel %vm6381, %v6380, %v6377
    %s6383 = scalar_lea.vmem [#allocation1], 9
    %s6384 = smov 48
    %v6385 = vld [vmem:[%s6383] ss:$16 sm:%s6384]
    %vm6386 = vcmask 1045508
    %v6387 = vsel %vm6386, %v6385, %v6382
    %s6388 = scalar_lea.vmem [#allocation1], 9
    %s6389 = smov 192
    %v6390 = vld [vmem:[%s6388] ss:$16 sm:%s6389]
    %vm6391 = vcmask 1047558
    %v6392 = vsel %vm6391, %v6390, %v6387
    %6393 = vrot.lane.b32.xlu0 %v6392, 72
    %v6394 = vpop.permute.xlu0 %6393
    %vm6395 = vcmask 654912
    %6396 = vst.msk [vmem:[#allocation0] sm:$0xff] %vm6395, %v6394
    %s6397 = scalar_lea.vmem [#allocation1], 521
    %s6398 = smov 3
    %v6399 = vld [vmem:[%s6397] ss:$16 sm:%s6398]
    %s6400 = scalar_lea.vmem [#allocation1], 521
    %s6401 = smov 12
    %v6402 = vld [vmem:[%s6400] ss:$16 sm:%s6401]
    %vm6403 = vcmask 1043458
    %v6404 = vsel %vm6403, %v6402, %v6399
    %s6405 = scalar_lea.vmem [#allocation1], 521
    %s6406 = smov 48
    %v6407 = vld [vmem:[%s6405] ss:$16 sm:%s6406]
    %vm6408 = vcmask 1045508
    %v6409 = vsel %vm6408, %v6407, %v6404
    %s6410 = scalar_lea.vmem [#allocation1], 521
    %s6411 = smov 192
    %v6412 = vld [vmem:[%s6410] ss:$16 sm:%s6411]
    %vm6413 = vcmask 1047558
    %v6414 = vsel %vm6413, %v6412, %v6409
    %6415 = vrot.lane.b32.xlu0 %v6414, 72
    %v6416 = vpop.permute.xlu0 %6415
    %vm6417 = vcmask 654912
    %s6418 = scalar_lea.vmem [#allocation0], 32
    %6419 = vst.msk [vmem:[%s6418] sm:$0xff] %vm6417, %v6416
    %s6420 = scalar_lea.vmem [#allocation1], 1033
    %s6421 = smov 3
    %v6422 = vld [vmem:[%s6420] ss:$16 sm:%s6421]
    %s6423 = scalar_lea.vmem [#allocation1], 1033
    %s6424 = smov 12
    %v6425 = vld [vmem:[%s6423] ss:$16 sm:%s6424]
    %vm6426 = vcmask 1043458
    %v6427 = vsel %vm6426, %v6425, %v6422
    %s6428 = scalar_lea.vmem [#allocation1], 1033
    %s6429 = smov 48
    %v6430 = vld [vmem:[%s6428] ss:$16 sm:%s6429]
    %vm6431 = vcmask 1045508
    %v6432 = vsel %vm6431, %v6430, %v6427
    %s6433 = scalar_lea.vmem [#allocation1], 1033
    %s6434 = smov 192
    %v6435 = vld [vmem:[%s6433] ss:$16 sm:%s6434]
    %vm6436 = vcmask 1047558
    %v6437 = vsel %vm6436, %v6435, %v6432
    %6438 = vrot.lane.b32.xlu0 %v6437, 72
    %v6439 = vpop.permute.xlu0 %6438
    %vm6440 = vcmask 654912
    %s6441 = scalar_lea.vmem [#allocation0], 64
    %6442 = vst.msk [vmem:[%s6441] sm:$0xff] %vm6440, %v6439
    %s6443 = scalar_lea.vmem [#allocation1], 1545
    %s6444 = smov 3
    %v6445 = vld [vmem:[%s6443] ss:$16 sm:%s6444]
    %s6446 = scalar_lea.vmem [#allocation1], 1545
    %s6447 = smov 12
    %v6448 = vld [vmem:[%s6446] ss:$16 sm:%s6447]
    %vm6449 = vcmask 1043458
    %v6450 = vsel %vm6449, %v6448, %v6445
    %s6451 = scalar_lea.vmem [#allocation1], 1545
    %s6452 = smov 48
    %v6453 = vld [vmem:[%s6451] ss:$16 sm:%s6452]
    %vm6454 = vcmask 1045508
    %v6455 = vsel %vm6454, %v6453, %v6450
    %s6456 = scalar_lea.vmem [#allocation1], 1545
    %s6457 = smov 192
    %v6458 = vld [vmem:[%s6456] ss:$16 sm:%s6457]
    %vm6459 = vcmask 1047558
    %v6460 = vsel %vm6459, %v6458, %v6455
    %6461 = vrot.lane.b32.xlu0 %v6460, 72
    %v6462 = vpop.permute.xlu0 %6461
    %vm6463 = vcmask 654912
    %s6464 = scalar_lea.vmem [#allocation0], 96
    %6465 = vst.msk [vmem:[%s6464] sm:$0xff] %vm6463, %v6462
    %s6466 = scalar_lea.vmem [#allocation1], 137
    %s6467 = smov 3
    %v6468 = vld [vmem:[%s6466] ss:$16 sm:%s6467]
    %s6469 = scalar_lea.vmem [#allocation1], 137
    %s6470 = smov 12
    %v6471 = vld [vmem:[%s6469] ss:$16 sm:%s6470]
    %vm6472 = vcmask 1043458
    %v6473 = vsel %vm6472, %v6471, %v6468
    %s6474 = scalar_lea.vmem [#allocation1], 137
    %s6475 = smov 48
    %v6476 = vld [vmem:[%s6474] ss:$16 sm:%s6475]
    %vm6477 = vcmask 1045508
    %v6478 = vsel %vm6477, %v6476, %v6473
    %s6479 = scalar_lea.vmem [#allocation1], 137
    %s6480 = smov 192
    %v6481 = vld [vmem:[%s6479] ss:$16 sm:%s6480]
    %vm6482 = vcmask 1047558
    %v6483 = vsel %vm6482, %v6481, %v6478
    %6484 = vrot.lane.b32.xlu0 %v6483, 72
    %v6485 = vpop.permute.xlu0 %6484
    %vm6486 = vcmask 654912
    %s6487 = scalar_lea.vmem [#allocation0], 8
    %6488 = vst.msk [vmem:[%s6487] sm:$0xff] %vm6486, %v6485
    %s6489 = scalar_lea.vmem [#allocation1], 649
    %s6490 = smov 3
    %v6491 = vld [vmem:[%s6489] ss:$16 sm:%s6490]
    %s6492 = scalar_lea.vmem [#allocation1], 649
    %s6493 = smov 12
    %v6494 = vld [vmem:[%s6492] ss:$16 sm:%s6493]
    %vm6495 = vcmask 1043458
    %v6496 = vsel %vm6495, %v6494, %v6491
    %s6497 = scalar_lea.vmem [#allocation1], 649
    %s6498 = smov 48
    %v6499 = vld [vmem:[%s6497] ss:$16 sm:%s6498]
    %vm6500 = vcmask 1045508
    %v6501 = vsel %vm6500, %v6499, %v6496
    %s6502 = scalar_lea.vmem [#allocation1], 649
    %s6503 = smov 192
    %v6504 = vld [vmem:[%s6502] ss:$16 sm:%s6503]
    %vm6505 = vcmask 1047558
    %v6506 = vsel %vm6505, %v6504, %v6501
    %6507 = vrot.lane.b32.xlu0 %v6506, 72
    %v6508 = vpop.permute.xlu0 %6507
    %vm6509 = vcmask 654912
    %s6510 = scalar_lea.vmem [#allocation0], 40
    %6511 = vst.msk [vmem:[%s6510] sm:$0xff] %vm6509, %v6508
    %s6512 = scalar_lea.vmem [#allocation1], 1161
    %s6513 = smov 3
    %v6514 = vld [vmem:[%s6512] ss:$16 sm:%s6513]
    %s6515 = scalar_lea.vmem [#allocation1], 1161
    %s6516 = smov 12
    %v6517 = vld [vmem:[%s6515] ss:$16 sm:%s6516]
    %vm6518 = vcmask 1043458
    %v6519 = vsel %vm6518, %v6517, %v6514
    %s6520 = scalar_lea.vmem [#allocation1], 1161
    %s6521 = smov 48
    %v6522 = vld [vmem:[%s6520] ss:$16 sm:%s6521]
    %vm6523 = vcmask 1045508
    %v6524 = vsel %vm6523, %v6522, %v6519
    %s6525 = scalar_lea.vmem [#allocation1], 1161
    %s6526 = smov 192
    %v6527 = vld [vmem:[%s6525] ss:$16 sm:%s6526]
    %vm6528 = vcmask 1047558
    %v6529 = vsel %vm6528, %v6527, %v6524
    %6530 = vrot.lane.b32.xlu0 %v6529, 72
    %v6531 = vpop.permute.xlu0 %6530
    %vm6532 = vcmask 654912
    %s6533 = scalar_lea.vmem [#allocation0], 72
    %6534 = vst.msk [vmem:[%s6533] sm:$0xff] %vm6532, %v6531
    %s6535 = scalar_lea.vmem [#allocation1], 1673
    %s6536 = smov 3
    %v6537 = vld [vmem:[%s6535] ss:$16 sm:%s6536]
    %s6538 = scalar_lea.vmem [#allocation1], 1673
    %s6539 = smov 12
    %v6540 = vld [vmem:[%s6538] ss:$16 sm:%s6539]
    %vm6541 = vcmask 1043458
    %v6542 = vsel %vm6541, %v6540, %v6537
    %s6543 = scalar_lea.vmem [#allocation1], 1673
    %s6544 = smov 48
    %v6545 = vld [vmem:[%s6543] ss:$16 sm:%s6544]
    %vm6546 = vcmask 1045508
    %v6547 = vsel %vm6546, %v6545, %v6542
    %s6548 = scalar_lea.vmem [#allocation1], 1673
    %s6549 = smov 192
    %v6550 = vld [vmem:[%s6548] ss:$16 sm:%s6549]
    %vm6551 = vcmask 1047558
    %v6552 = vsel %vm6551, %v6550, %v6547
    %6553 = vrot.lane.b32.xlu0 %v6552, 72
    %v6554 = vpop.permute.xlu0 %6553
    %vm6555 = vcmask 654912
    %s6556 = scalar_lea.vmem [#allocation0], 104
    %6557 = vst.msk [vmem:[%s6556] sm:$0xff] %vm6555, %v6554
    %s6558 = scalar_lea.vmem [#allocation1], 265
    %s6559 = smov 3
    %v6560 = vld [vmem:[%s6558] ss:$16 sm:%s6559]
    %s6561 = scalar_lea.vmem [#allocation1], 265
    %s6562 = smov 12
    %v6563 = vld [vmem:[%s6561] ss:$16 sm:%s6562]
    %vm6564 = vcmask 1043458
    %v6565 = vsel %vm6564, %v6563, %v6560
    %s6566 = scalar_lea.vmem [#allocation1], 265
    %s6567 = smov 48
    %v6568 = vld [vmem:[%s6566] ss:$16 sm:%s6567]
    %vm6569 = vcmask 1045508
    %v6570 = vsel %vm6569, %v6568, %v6565
    %s6571 = scalar_lea.vmem [#allocation1], 265
    %s6572 = smov 192
    %v6573 = vld [vmem:[%s6571] ss:$16 sm:%s6572]
    %vm6574 = vcmask 1047558
    %v6575 = vsel %vm6574, %v6573, %v6570
    %6576 = vrot.lane.b32.xlu0 %v6575, 72
    %v6577 = vpop.permute.xlu0 %6576
    %vm6578 = vcmask 654912
    %s6579 = scalar_lea.vmem [#allocation0], 16
    %6580 = vst.msk [vmem:[%s6579] sm:$0xff] %vm6578, %v6577
    %s6581 = scalar_lea.vmem [#allocation1], 777
    %s6582 = smov 3
    %v6583 = vld [vmem:[%s6581] ss:$16 sm:%s6582]
    %s6584 = scalar_lea.vmem [#allocation1], 777
    %s6585 = smov 12
    %v6586 = vld [vmem:[%s6584] ss:$16 sm:%s6585]
    %vm6587 = vcmask 1043458
    %v6588 = vsel %vm6587, %v6586, %v6583
    %s6589 = scalar_lea.vmem [#allocation1], 777
    %s6590 = smov 48
    %v6591 = vld [vmem:[%s6589] ss:$16 sm:%s6590]
    %vm6592 = vcmask 1045508
    %v6593 = vsel %vm6592, %v6591, %v6588
    %s6594 = scalar_lea.vmem [#allocation1], 777
    %s6595 = smov 192
    %v6596 = vld [vmem:[%s6594] ss:$16 sm:%s6595]
    %vm6597 = vcmask 1047558
    %v6598 = vsel %vm6597, %v6596, %v6593
    %6599 = vrot.lane.b32.xlu0 %v6598, 72
    %v6600 = vpop.permute.xlu0 %6599
    %vm6601 = vcmask 654912
    %s6602 = scalar_lea.vmem [#allocation0], 48
    %6603 = vst.msk [vmem:[%s6602] sm:$0xff] %vm6601, %v6600
    %s6604 = scalar_lea.vmem [#allocation1], 1289
    %s6605 = smov 3
    %v6606 = vld [vmem:[%s6604] ss:$16 sm:%s6605]
    %s6607 = scalar_lea.vmem [#allocation1], 1289
    %s6608 = smov 12
    %v6609 = vld [vmem:[%s6607] ss:$16 sm:%s6608]
    %vm6610 = vcmask 1043458
    %v6611 = vsel %vm6610, %v6609, %v6606
    %s6612 = scalar_lea.vmem [#allocation1], 1289
    %s6613 = smov 48
    %v6614 = vld [vmem:[%s6612] ss:$16 sm:%s6613]
    %vm6615 = vcmask 1045508
    %v6616 = vsel %vm6615, %v6614, %v6611
    %s6617 = scalar_lea.vmem [#allocation1], 1289
    %s6618 = smov 192
    %v6619 = vld [vmem:[%s6617] ss:$16 sm:%s6618]
    %vm6620 = vcmask 1047558
    %v6621 = vsel %vm6620, %v6619, %v6616
    %6622 = vrot.lane.b32.xlu0 %v6621, 72
    %v6623 = vpop.permute.xlu0 %6622
    %vm6624 = vcmask 654912
    %s6625 = scalar_lea.vmem [#allocation0], 80
    %6626 = vst.msk [vmem:[%s6625] sm:$0xff] %vm6624, %v6623
    %s6627 = scalar_lea.vmem [#allocation1], 1801
    %s6628 = smov 3
    %v6629 = vld [vmem:[%s6627] ss:$16 sm:%s6628]
    %s6630 = scalar_lea.vmem [#allocation1], 1801
    %s6631 = smov 12
    %v6632 = vld [vmem:[%s6630] ss:$16 sm:%s6631]
    %vm6633 = vcmask 1043458
    %v6634 = vsel %vm6633, %v6632, %v6629
    %s6635 = scalar_lea.vmem [#allocation1], 1801
    %s6636 = smov 48
    %v6637 = vld [vmem:[%s6635] ss:$16 sm:%s6636]
    %vm6638 = vcmask 1045508
    %v6639 = vsel %vm6638, %v6637, %v6634
    %s6640 = scalar_lea.vmem [#allocation1], 1801
    %s6641 = smov 192
    %v6642 = vld [vmem:[%s6640] ss:$16 sm:%s6641]
    %vm6643 = vcmask 1047558
    %v6644 = vsel %vm6643, %v6642, %v6639
    %6645 = vrot.lane.b32.xlu0 %v6644, 72
    %v6646 = vpop.permute.xlu0 %6645
    %vm6647 = vcmask 654912
    %s6648 = scalar_lea.vmem [#allocation0], 112
    %6649 = vst.msk [vmem:[%s6648] sm:$0xff] %vm6647, %v6646
    %s6650 = scalar_lea.vmem [#allocation1], 393
    %s6651 = smov 3
    %v6652 = vld [vmem:[%s6650] ss:$16 sm:%s6651]
    %s6653 = scalar_lea.vmem [#allocation1], 393
    %s6654 = smov 12
    %v6655 = vld [vmem:[%s6653] ss:$16 sm:%s6654]
    %vm6656 = vcmask 1043458
    %v6657 = vsel %vm6656, %v6655, %v6652
    %s6658 = scalar_lea.vmem [#allocation1], 393
    %s6659 = smov 48
    %v6660 = vld [vmem:[%s6658] ss:$16 sm:%s6659]
    %vm6661 = vcmask 1045508
    %v6662 = vsel %vm6661, %v6660, %v6657
    %s6663 = scalar_lea.vmem [#allocation1], 393
    %s6664 = smov 192
    %v6665 = vld [vmem:[%s6663] ss:$16 sm:%s6664]
    %vm6666 = vcmask 1047558
    %v6667 = vsel %vm6666, %v6665, %v6662
    %6668 = vrot.lane.b32.xlu0 %v6667, 72
    %v6669 = vpop.permute.xlu0 %6668
    %vm6670 = vcmask 654912
    %s6671 = scalar_lea.vmem [#allocation0], 24
    %6672 = vst.msk [vmem:[%s6671] sm:$0xff] %vm6670, %v6669
    %s6673 = scalar_lea.vmem [#allocation1], 905
    %s6674 = smov 3
    %v6675 = vld [vmem:[%s6673] ss:$16 sm:%s6674]
    %s6676 = scalar_lea.vmem [#allocation1], 905
    %s6677 = smov 12
    %v6678 = vld [vmem:[%s6676] ss:$16 sm:%s6677]
    %vm6679 = vcmask 1043458
    %v6680 = vsel %vm6679, %v6678, %v6675
    %s6681 = scalar_lea.vmem [#allocation1], 905
    %s6682 = smov 48
    %v6683 = vld [vmem:[%s6681] ss:$16 sm:%s6682]
    %vm6684 = vcmask 1045508
    %v6685 = vsel %vm6684, %v6683, %v6680
    %s6686 = scalar_lea.vmem [#allocation1], 905
    %s6687 = smov 192
    %v6688 = vld [vmem:[%s6686] ss:$16 sm:%s6687]
    %vm6689 = vcmask 1047558
    %v6690 = vsel %vm6689, %v6688, %v6685
    %6691 = vrot.lane.b32.xlu0 %v6690, 72
    %v6692 = vpop.permute.xlu0 %6691
    %vm6693 = vcmask 654912
    %s6694 = scalar_lea.vmem [#allocation0], 56
    %6695 = vst.msk [vmem:[%s6694] sm:$0xff] %vm6693, %v6692
    %s6696 = scalar_lea.vmem [#allocation1], 1417
    %s6697 = smov 3
    %v6698 = vld [vmem:[%s6696] ss:$16 sm:%s6697]
    %s6699 = scalar_lea.vmem [#allocation1], 1417
    %s6700 = smov 12
    %v6701 = vld [vmem:[%s6699] ss:$16 sm:%s6700]
    %vm6702 = vcmask 1043458
    %v6703 = vsel %vm6702, %v6701, %v6698
    %s6704 = scalar_lea.vmem [#allocation1], 1417
    %s6705 = smov 48
    %v6706 = vld [vmem:[%s6704] ss:$16 sm:%s6705]
    %vm6707 = vcmask 1045508
    %v6708 = vsel %vm6707, %v6706, %v6703
    %s6709 = scalar_lea.vmem [#allocation1], 1417
    %s6710 = smov 192
    %v6711 = vld [vmem:[%s6709] ss:$16 sm:%s6710]
    %vm6712 = vcmask 1047558
    %v6713 = vsel %vm6712, %v6711, %v6708
    %6714 = vrot.lane.b32.xlu0 %v6713, 72
    %v6715 = vpop.permute.xlu0 %6714
    %vm6716 = vcmask 654912
    %s6717 = scalar_lea.vmem [#allocation0], 88
    %6718 = vst.msk [vmem:[%s6717] sm:$0xff] %vm6716, %v6715
    %s6719 = scalar_lea.vmem [#allocation1], 1929
    %s6720 = smov 3
    %v6721 = vld [vmem:[%s6719] ss:$16 sm:%s6720]
    %s6722 = scalar_lea.vmem [#allocation1], 1929
    %s6723 = smov 12
    %v6724 = vld [vmem:[%s6722] ss:$16 sm:%s6723]
    %vm6725 = vcmask 1043458
    %v6726 = vsel %vm6725, %v6724, %v6721
    %s6727 = scalar_lea.vmem [#allocation1], 1929
    %s6728 = smov 48
    %v6729 = vld [vmem:[%s6727] ss:$16 sm:%s6728]
    %vm6730 = vcmask 1045508
    %v6731 = vsel %vm6730, %v6729, %v6726
    %s6732 = scalar_lea.vmem [#allocation1], 1929
    %s6733 = smov 192
    %v6734 = vld [vmem:[%s6732] ss:$16 sm:%s6733]
    %vm6735 = vcmask 1047558
    %v6736 = vsel %vm6735, %v6734, %v6731
    %6737 = vrot.lane.b32.xlu0 %v6736, 72
    %v6738 = vpop.permute.xlu0 %6737
    %vm6739 = vcmask 654912
    %s6740 = scalar_lea.vmem [#allocation0], 120
    %6741 = vst.msk [vmem:[%s6740] sm:$0xff] %vm6739, %v6738
    %s6742 = scalar_lea.vmem [#allocation1], 8
    %s6743 = smov 3
    %v6744 = vld [vmem:[%s6742] ss:$16 sm:%s6743]
    %s6745 = scalar_lea.vmem [#allocation1], 8
    %s6746 = smov 12
    %v6747 = vld [vmem:[%s6745] ss:$16 sm:%s6746]
    %vm6748 = vcmask 1043458
    %v6749 = vsel %vm6748, %v6747, %v6744
    %s6750 = scalar_lea.vmem [#allocation1], 8
    %s6751 = smov 48
    %v6752 = vld [vmem:[%s6750] ss:$16 sm:%s6751]
    %vm6753 = vcmask 1045508
    %v6754 = vsel %vm6753, %v6752, %v6749
    %s6755 = scalar_lea.vmem [#allocation1], 8
    %s6756 = smov 192
    %v6757 = vld [vmem:[%s6755] ss:$16 sm:%s6756]
    %vm6758 = vcmask 1047558
    %v6759 = vsel %vm6758, %v6757, %v6754
    %6760 = vrot.lane.b32.xlu0 %v6759, 64
    %v6761 = vpop.permute.xlu0 %6760
    %vm6762 = vcmask 589312
    %6763 = vst.msk [vmem:[#allocation0] sm:$0xff] %vm6762, %v6761
    %s6764 = scalar_lea.vmem [#allocation1], 520
    %s6765 = smov 3
    %v6766 = vld [vmem:[%s6764] ss:$16 sm:%s6765]
    %s6767 = scalar_lea.vmem [#allocation1], 520
    %s6768 = smov 12
    %v6769 = vld [vmem:[%s6767] ss:$16 sm:%s6768]
    %vm6770 = vcmask 1043458
    %v6771 = vsel %vm6770, %v6769, %v6766
    %s6772 = scalar_lea.vmem [#allocation1], 520
    %s6773 = smov 48
    %v6774 = vld [vmem:[%s6772] ss:$16 sm:%s6773]
    %vm6775 = vcmask 1045508
    %v6776 = vsel %vm6775, %v6774, %v6771
    %s6777 = scalar_lea.vmem [#allocation1], 520
    %s6778 = smov 192
    %v6779 = vld [vmem:[%s6777] ss:$16 sm:%s6778]
    %vm6780 = vcmask 1047558
    %v6781 = vsel %vm6780, %v6779, %v6776
    %6782 = vrot.lane.b32.xlu0 %v6781, 64
    %v6783 = vpop.permute.xlu0 %6782
    %vm6784 = vcmask 589312
    %s6785 = scalar_lea.vmem [#allocation0], 32
    %6786 = vst.msk [vmem:[%s6785] sm:$0xff] %vm6784, %v6783
    %s6787 = scalar_lea.vmem [#allocation1], 1032
    %s6788 = smov 3
    %v6789 = vld [vmem:[%s6787] ss:$16 sm:%s6788]
    %s6790 = scalar_lea.vmem [#allocation1], 1032
    %s6791 = smov 12
    %v6792 = vld [vmem:[%s6790] ss:$16 sm:%s6791]
    %vm6793 = vcmask 1043458
    %v6794 = vsel %vm6793, %v6792, %v6789
    %s6795 = scalar_lea.vmem [#allocation1], 1032
    %s6796 = smov 48
    %v6797 = vld [vmem:[%s6795] ss:$16 sm:%s6796]
    %vm6798 = vcmask 1045508
    %v6799 = vsel %vm6798, %v6797, %v6794
    %s6800 = scalar_lea.vmem [#allocation1], 1032
    %s6801 = smov 192
    %v6802 = vld [vmem:[%s6800] ss:$16 sm:%s6801]
    %vm6803 = vcmask 1047558
    %v6804 = vsel %vm6803, %v6802, %v6799
    %6805 = vrot.lane.b32.xlu0 %v6804, 64
    %v6806 = vpop.permute.xlu0 %6805
    %vm6807 = vcmask 589312
    %s6808 = scalar_lea.vmem [#allocation0], 64
    %6809 = vst.msk [vmem:[%s6808] sm:$0xff] %vm6807, %v6806
    %s6810 = scalar_lea.vmem [#allocation1], 1544
    %s6811 = smov 3
    %v6812 = vld [vmem:[%s6810] ss:$16 sm:%s6811]
    %s6813 = scalar_lea.vmem [#allocation1], 1544
    %s6814 = smov 12
    %v6815 = vld [vmem:[%s6813] ss:$16 sm:%s6814]
    %vm6816 = vcmask 1043458
    %v6817 = vsel %vm6816, %v6815, %v6812
    %s6818 = scalar_lea.vmem [#allocation1], 1544
    %s6819 = smov 48
    %v6820 = vld [vmem:[%s6818] ss:$16 sm:%s6819]
    %vm6821 = vcmask 1045508
    %v6822 = vsel %vm6821, %v6820, %v6817
    %s6823 = scalar_lea.vmem [#allocation1], 1544
    %s6824 = smov 192
    %v6825 = vld [vmem:[%s6823] ss:$16 sm:%s6824]
    %vm6826 = vcmask 1047558
    %v6827 = vsel %vm6826, %v6825, %v6822
    %6828 = vrot.lane.b32.xlu0 %v6827, 64
    %v6829 = vpop.permute.xlu0 %6828
    %vm6830 = vcmask 589312
    %s6831 = scalar_lea.vmem [#allocation0], 96
    %6832 = vst.msk [vmem:[%s6831] sm:$0xff] %vm6830, %v6829
    %s6833 = scalar_lea.vmem [#allocation1], 136
    %s6834 = smov 3
    %v6835 = vld [vmem:[%s6833] ss:$16 sm:%s6834]
    %s6836 = scalar_lea.vmem [#allocation1], 136
    %s6837 = smov 12
    %v6838 = vld [vmem:[%s6836] ss:$16 sm:%s6837]
    %vm6839 = vcmask 1043458
    %v6840 = vsel %vm6839, %v6838, %v6835
    %s6841 = scalar_lea.vmem [#allocation1], 136
    %s6842 = smov 48
    %v6843 = vld [vmem:[%s6841] ss:$16 sm:%s6842]
    %vm6844 = vcmask 1045508
    %v6845 = vsel %vm6844, %v6843, %v6840
    %s6846 = scalar_lea.vmem [#allocation1], 136
    %s6847 = smov 192
    %v6848 = vld [vmem:[%s6846] ss:$16 sm:%s6847]
    %vm6849 = vcmask 1047558
    %v6850 = vsel %vm6849, %v6848, %v6845
    %6851 = vrot.lane.b32.xlu0 %v6850, 64
    %v6852 = vpop.permute.xlu0 %6851
    %vm6853 = vcmask 589312
    %s6854 = scalar_lea.vmem [#allocation0], 8
    %6855 = vst.msk [vmem:[%s6854] sm:$0xff] %vm6853, %v6852
    %s6856 = scalar_lea.vmem [#allocation1], 648
    %s6857 = smov 3
    %v6858 = vld [vmem:[%s6856] ss:$16 sm:%s6857]
    %s6859 = scalar_lea.vmem [#allocation1], 648
    %s6860 = smov 12
    %v6861 = vld [vmem:[%s6859] ss:$16 sm:%s6860]
    %vm6862 = vcmask 1043458
    %v6863 = vsel %vm6862, %v6861, %v6858
    %s6864 = scalar_lea.vmem [#allocation1], 648
    %s6865 = smov 48
    %v6866 = vld [vmem:[%s6864] ss:$16 sm:%s6865]
    %vm6867 = vcmask 1045508
    %v6868 = vsel %vm6867, %v6866, %v6863
    %s6869 = scalar_lea.vmem [#allocation1], 648
    %s6870 = smov 192
    %v6871 = vld [vmem:[%s6869] ss:$16 sm:%s6870]
    %vm6872 = vcmask 1047558
    %v6873 = vsel %vm6872, %v6871, %v6868
    %6874 = vrot.lane.b32.xlu0 %v6873, 64
    %v6875 = vpop.permute.xlu0 %6874
    %vm6876 = vcmask 589312
    %s6877 = scalar_lea.vmem [#allocation0], 40
    %6878 = vst.msk [vmem:[%s6877] sm:$0xff] %vm6876, %v6875
    %s6879 = scalar_lea.vmem [#allocation1], 1160
    %s6880 = smov 3
    %v6881 = vld [vmem:[%s6879] ss:$16 sm:%s6880]
    %s6882 = scalar_lea.vmem [#allocation1], 1160
    %s6883 = smov 12
    %v6884 = vld [vmem:[%s6882] ss:$16 sm:%s6883]
    %vm6885 = vcmask 1043458
    %v6886 = vsel %vm6885, %v6884, %v6881
    %s6887 = scalar_lea.vmem [#allocation1], 1160
    %s6888 = smov 48
    %v6889 = vld [vmem:[%s6887] ss:$16 sm:%s6888]
    %vm6890 = vcmask 1045508
    %v6891 = vsel %vm6890, %v6889, %v6886
    %s6892 = scalar_lea.vmem [#allocation1], 1160
    %s6893 = smov 192
    %v6894 = vld [vmem:[%s6892] ss:$16 sm:%s6893]
    %vm6895 = vcmask 1047558
    %v6896 = vsel %vm6895, %v6894, %v6891
    %6897 = vrot.lane.b32.xlu0 %v6896, 64
    %v6898 = vpop.permute.xlu0 %6897
    %vm6899 = vcmask 589312
    %s6900 = scalar_lea.vmem [#allocation0], 72
    %6901 = vst.msk [vmem:[%s6900] sm:$0xff] %vm6899, %v6898
    %s6902 = scalar_lea.vmem [#allocation1], 1672
    %s6903 = smov 3
    %v6904 = vld [vmem:[%s6902] ss:$16 sm:%s6903]
    %s6905 = scalar_lea.vmem [#allocation1], 1672
    %s6906 = smov 12
    %v6907 = vld [vmem:[%s6905] ss:$16 sm:%s6906]
    %vm6908 = vcmask 1043458
    %v6909 = vsel %vm6908, %v6907, %v6904
    %s6910 = scalar_lea.vmem [#allocation1], 1672
    %s6911 = smov 48
    %v6912 = vld [vmem:[%s6910] ss:$16 sm:%s6911]
    %vm6913 = vcmask 1045508
    %v6914 = vsel %vm6913, %v6912, %v6909
    %s6915 = scalar_lea.vmem [#allocation1], 1672
    %s6916 = smov 192
    %v6917 = vld [vmem:[%s6915] ss:$16 sm:%s6916]
    %vm6918 = vcmask 1047558
    %v6919 = vsel %vm6918, %v6917, %v6914
    %6920 = vrot.lane.b32.xlu0 %v6919, 64
    %v6921 = vpop.permute.xlu0 %6920
    %vm6922 = vcmask 589312
    %s6923 = scalar_lea.vmem [#allocation0], 104
    %6924 = vst.msk [vmem:[%s6923] sm:$0xff] %vm6922, %v6921
    %s6925 = scalar_lea.vmem [#allocation1], 264
    %s6926 = smov 3
    %v6927 = vld [vmem:[%s6925] ss:$16 sm:%s6926]
    %s6928 = scalar_lea.vmem [#allocation1], 264
    %s6929 = smov 12
    %v6930 = vld [vmem:[%s6928] ss:$16 sm:%s6929]
    %vm6931 = vcmask 1043458
    %v6932 = vsel %vm6931, %v6930, %v6927
    %s6933 = scalar_lea.vmem [#allocation1], 264
    %s6934 = smov 48
    %v6935 = vld [vmem:[%s6933] ss:$16 sm:%s6934]
    %vm6936 = vcmask 1045508
    %v6937 = vsel %vm6936, %v6935, %v6932
    %s6938 = scalar_lea.vmem [#allocation1], 264
    %s6939 = smov 192
    %v6940 = vld [vmem:[%s6938] ss:$16 sm:%s6939]
    %vm6941 = vcmask 1047558
    %v6942 = vsel %vm6941, %v6940, %v6937
    %6943 = vrot.lane.b32.xlu0 %v6942, 64
    %v6944 = vpop.permute.xlu0 %6943
    %vm6945 = vcmask 589312
    %s6946 = scalar_lea.vmem [#allocation0], 16
    %6947 = vst.msk [vmem:[%s6946] sm:$0xff] %vm6945, %v6944
    %s6948 = scalar_lea.vmem [#allocation1], 776
    %s6949 = smov 3
    %v6950 = vld [vmem:[%s6948] ss:$16 sm:%s6949]
    %s6951 = scalar_lea.vmem [#allocation1], 776
    %s6952 = smov 12
    %v6953 = vld [vmem:[%s6951] ss:$16 sm:%s6952]
    %vm6954 = vcmask 1043458
    %v6955 = vsel %vm6954, %v6953, %v6950
    %s6956 = scalar_lea.vmem [#allocation1], 776
    %s6957 = smov 48
    %v6958 = vld [vmem:[%s6956] ss:$16 sm:%s6957]
    %vm6959 = vcmask 1045508
    %v6960 = vsel %vm6959, %v6958, %v6955
    %s6961 = scalar_lea.vmem [#allocation1], 776
    %s6962 = smov 192
    %v6963 = vld [vmem:[%s6961] ss:$16 sm:%s6962]
    %vm6964 = vcmask 1047558
    %v6965 = vsel %vm6964, %v6963, %v6960
    %6966 = vrot.lane.b32.xlu0 %v6965, 64
    %v6967 = vpop.permute.xlu0 %6966
    %vm6968 = vcmask 589312
    %s6969 = scalar_lea.vmem [#allocation0], 48
    %6970 = vst.msk [vmem:[%s6969] sm:$0xff] %vm6968, %v6967
    %s6971 = scalar_lea.vmem [#allocation1], 1288
    %s6972 = smov 3
    %v6973 = vld [vmem:[%s6971] ss:$16 sm:%s6972]
    %s6974 = scalar_lea.vmem [#allocation1], 1288
    %s6975 = smov 12
    %v6976 = vld [vmem:[%s6974] ss:$16 sm:%s6975]
    %vm6977 = vcmask 1043458
    %v6978 = vsel %vm6977, %v6976, %v6973
    %s6979 = scalar_lea.vmem [#allocation1], 1288
    %s6980 = smov 48
    %v6981 = vld [vmem:[%s6979] ss:$16 sm:%s6980]
    %vm6982 = vcmask 1045508
    %v6983 = vsel %vm6982, %v6981, %v6978
    %s6984 = scalar_lea.vmem [#allocation1], 1288
    %s6985 = smov 192
    %v6986 = vld [vmem:[%s6984] ss:$16 sm:%s6985]
    %vm6987 = vcmask 1047558
    %v6988 = vsel %vm6987, %v6986, %v6983
    %6989 = vrot.lane.b32.xlu0 %v6988, 64
    %v6990 = vpop.permute.xlu0 %6989
    %vm6991 = vcmask 589312
    %s6992 = scalar_lea.vmem [#allocation0], 80
    %6993 = vst.msk [vmem:[%s6992] sm:$0xff] %vm6991, %v6990
    %s6994 = scalar_lea.vmem [#allocation1], 1800
    %s6995 = smov 3
    %v6996 = vld [vmem:[%s6994] ss:$16 sm:%s6995]
    %s6997 = scalar_lea.vmem [#allocation1], 1800
    %s6998 = smov 12
    %v6999 = vld [vmem:[%s6997] ss:$16 sm:%s6998]
    %vm7000 = vcmask 1043458
    %v7001 = vsel %vm7000, %v6999, %v6996
    %s7002 = scalar_lea.vmem [#allocation1], 1800
    %s7003 = smov 48
    %v7004 = vld [vmem:[%s7002] ss:$16 sm:%s7003]
    %vm7005 = vcmask 1045508
    %v7006 = vsel %vm7005, %v7004, %v7001
    %s7007 = scalar_lea.vmem [#allocation1], 1800
    %s7008 = smov 192
    %v7009 = vld [vmem:[%s7007] ss:$16 sm:%s7008]
    %vm7010 = vcmask 1047558
    %v7011 = vsel %vm7010, %v7009, %v7006
    %7012 = vrot.lane.b32.xlu0 %v7011, 64
    %v7013 = vpop.permute.xlu0 %7012
    %vm7014 = vcmask 589312
    %s7015 = scalar_lea.vmem [#allocation0], 112
    %7016 = vst.msk [vmem:[%s7015] sm:$0xff] %vm7014, %v7013
    %s7017 = scalar_lea.vmem [#allocation1], 392
    %s7018 = smov 3
    %v7019 = vld [vmem:[%s7017] ss:$16 sm:%s7018]
    %s7020 = scalar_lea.vmem [#allocation1], 392
    %s7021 = smov 12
    %v7022 = vld [vmem:[%s7020] ss:$16 sm:%s7021]
    %vm7023 = vcmask 1043458
    %v7024 = vsel %vm7023, %v7022, %v7019
    %s7025 = scalar_lea.vmem [#allocation1], 392
    %s7026 = smov 48
    %v7027 = vld [vmem:[%s7025] ss:$16 sm:%s7026]
    %vm7028 = vcmask 1045508
    %v7029 = vsel %vm7028, %v7027, %v7024
    %s7030 = scalar_lea.vmem [#allocation1], 392
    %s7031 = smov 192
    %v7032 = vld [vmem:[%s7030] ss:$16 sm:%s7031]
    %vm7033 = vcmask 1047558
    %v7034 = vsel %vm7033, %v7032, %v7029
    %7035 = vrot.lane.b32.xlu0 %v7034, 64
    %v7036 = vpop.permute.xlu0 %7035
    %vm7037 = vcmask 589312
    %s7038 = scalar_lea.vmem [#allocation0], 24
    %7039 = vst.msk [vmem:[%s7038] sm:$0xff] %vm7037, %v7036
    %s7040 = scalar_lea.vmem [#allocation1], 904
    %s7041 = smov 3
    %v7042 = vld [vmem:[%s7040] ss:$16 sm:%s7041]
    %s7043 = scalar_lea.vmem [#allocation1], 904
    %s7044 = smov 12
    %v7045 = vld [vmem:[%s7043] ss:$16 sm:%s7044]
    %vm7046 = vcmask 1043458
    %v7047 = vsel %vm7046, %v7045, %v7042
    %s7048 = scalar_lea.vmem [#allocation1], 904
    %s7049 = smov 48
    %v7050 = vld [vmem:[%s7048] ss:$16 sm:%s7049]
    %vm7051 = vcmask 1045508
    %v7052 = vsel %vm7051, %v7050, %v7047
    %s7053 = scalar_lea.vmem [#allocation1], 904
    %s7054 = smov 192
    %v7055 = vld [vmem:[%s7053] ss:$16 sm:%s7054]
    %vm7056 = vcmask 1047558
    %v7057 = vsel %vm7056, %v7055, %v7052
    %7058 = vrot.lane.b32.xlu0 %v7057, 64
    %v7059 = vpop.permute.xlu0 %7058
    %vm7060 = vcmask 589312
    %s7061 = scalar_lea.vmem [#allocation0], 56
    %7062 = vst.msk [vmem:[%s7061] sm:$0xff] %vm7060, %v7059
    %s7063 = scalar_lea.vmem [#allocation1], 1416
    %s7064 = smov 3
    %v7065 = vld [vmem:[%s7063] ss:$16 sm:%s7064]
    %s7066 = scalar_lea.vmem [#allocation1], 1416
    %s7067 = smov 12
    %v7068 = vld [vmem:[%s7066] ss:$16 sm:%s7067]
    %vm7069 = vcmask 1043458
    %v7070 = vsel %vm7069, %v7068, %v7065
    %s7071 = scalar_lea.vmem [#allocation1], 1416
    %s7072 = smov 48
    %v7073 = vld [vmem:[%s7071] ss:$16 sm:%s7072]
    %vm7074 = vcmask 1045508
    %v7075 = vsel %vm7074, %v7073, %v7070
    %s7076 = scalar_lea.vmem [#allocation1], 1416
    %s7077 = smov 192
    %v7078 = vld [vmem:[%s7076] ss:$16 sm:%s7077]
    %vm7079 = vcmask 1047558
    %v7080 = vsel %vm7079, %v7078, %v7075
    %7081 = vrot.lane.b32.xlu0 %v7080, 64
    %v7082 = vpop.permute.xlu0 %7081
    %vm7083 = vcmask 589312
    %s7084 = scalar_lea.vmem [#allocation0], 88
    %7085 = vst.msk [vmem:[%s7084] sm:$0xff] %vm7083, %v7082
    %s7086 = scalar_lea.vmem [#allocation1], 1928
    %s7087 = smov 3
    %v7088 = vld [vmem:[%s7086] ss:$16 sm:%s7087]
    %s7089 = scalar_lea.vmem [#allocation1], 1928
    %s7090 = smov 12
    %v7091 = vld [vmem:[%s7089] ss:$16 sm:%s7090]
    %vm7092 = vcmask 1043458
    %v7093 = vsel %vm7092, %v7091, %v7088
    %s7094 = scalar_lea.vmem [#allocation1], 1928
    %s7095 = smov 48
    %v7096 = vld [vmem:[%s7094] ss:$16 sm:%s7095]
    %vm7097 = vcmask 1045508
    %v7098 = vsel %vm7097, %v7096, %v7093
    %s7099 = scalar_lea.vmem [#allocation1], 1928
    %s7100 = smov 192
    %v7101 = vld [vmem:[%s7099] ss:$16 sm:%s7100]
    %vm7102 = vcmask 1047558
    %v7103 = vsel %vm7102, %v7101, %v7098
    %7104 = vrot.lane.b32.xlu0 %v7103, 64
    %v7105 = vpop.permute.xlu0 %7104
    %vm7106 = vcmask 589312
    %s7107 = scalar_lea.vmem [#allocation0], 120
    %7108 = vst.msk [vmem:[%s7107] sm:$0xff] %vm7106, %v7105
    %s7109 = scalar_lea.vmem [#allocation1], 7
    %s7110 = smov 3
    %v7111 = vld [vmem:[%s7109] ss:$16 sm:%s7110]
    %s7112 = scalar_lea.vmem [#allocation1], 7
    %s7113 = smov 12
    %v7114 = vld [vmem:[%s7112] ss:$16 sm:%s7113]
    %vm7115 = vcmask 1043458
    %v7116 = vsel %vm7115, %v7114, %v7111
    %s7117 = scalar_lea.vmem [#allocation1], 7
    %s7118 = smov 48
    %v7119 = vld [vmem:[%s7117] ss:$16 sm:%s7118]
    %vm7120 = vcmask 1045508
    %v7121 = vsel %vm7120, %v7119, %v7116
    %s7122 = scalar_lea.vmem [#allocation1], 7
    %s7123 = smov 192
    %v7124 = vld [vmem:[%s7122] ss:$16 sm:%s7123]
    %vm7125 = vcmask 1047558
    %v7126 = vsel %vm7125, %v7124, %v7121
    %7127 = vrot.lane.b32.xlu0 %v7126, 56
    %v7128 = vpop.permute.xlu0 %7127
    %vm7129 = vcmask 523712
    %7130 = vst.msk [vmem:[#allocation0] sm:$0xff] %vm7129, %v7128
    %s7131 = scalar_lea.vmem [#allocation1], 519
    %s7132 = smov 3
    %v7133 = vld [vmem:[%s7131] ss:$16 sm:%s7132]
    %s7134 = scalar_lea.vmem [#allocation1], 519
    %s7135 = smov 12
    %v7136 = vld [vmem:[%s7134] ss:$16 sm:%s7135]
    %vm7137 = vcmask 1043458
    %v7138 = vsel %vm7137, %v7136, %v7133
    %s7139 = scalar_lea.vmem [#allocation1], 519
    %s7140 = smov 48
    %v7141 = vld [vmem:[%s7139] ss:$16 sm:%s7140]
    %vm7142 = vcmask 1045508
    %v7143 = vsel %vm7142, %v7141, %v7138
    %s7144 = scalar_lea.vmem [#allocation1], 519
    %s7145 = smov 192
    %v7146 = vld [vmem:[%s7144] ss:$16 sm:%s7145]
    %vm7147 = vcmask 1047558
    %v7148 = vsel %vm7147, %v7146, %v7143
    %7149 = vrot.lane.b32.xlu0 %v7148, 56
    %v7150 = vpop.permute.xlu0 %7149
    %vm7151 = vcmask 523712
    %s7152 = scalar_lea.vmem [#allocation0], 32
    %7153 = vst.msk [vmem:[%s7152] sm:$0xff] %vm7151, %v7150
    %s7154 = scalar_lea.vmem [#allocation1], 1031
    %s7155 = smov 3
    %v7156 = vld [vmem:[%s7154] ss:$16 sm:%s7155]
    %s7157 = scalar_lea.vmem [#allocation1], 1031
    %s7158 = smov 12
    %v7159 = vld [vmem:[%s7157] ss:$16 sm:%s7158]
    %vm7160 = vcmask 1043458
    %v7161 = vsel %vm7160, %v7159, %v7156
    %s7162 = scalar_lea.vmem [#allocation1], 1031
    %s7163 = smov 48
    %v7164 = vld [vmem:[%s7162] ss:$16 sm:%s7163]
    %vm7165 = vcmask 1045508
    %v7166 = vsel %vm7165, %v7164, %v7161
    %s7167 = scalar_lea.vmem [#allocation1], 1031
    %s7168 = smov 192
    %v7169 = vld [vmem:[%s7167] ss:$16 sm:%s7168]
    %vm7170 = vcmask 1047558
    %v7171 = vsel %vm7170, %v7169, %v7166
    %7172 = vrot.lane.b32.xlu0 %v7171, 56
    %v7173 = vpop.permute.xlu0 %7172
    %vm7174 = vcmask 523712
    %s7175 = scalar_lea.vmem [#allocation0], 64
    %7176 = vst.msk [vmem:[%s7175] sm:$0xff] %vm7174, %v7173
    %s7177 = scalar_lea.vmem [#allocation1], 1543
    %s7178 = smov 3
    %v7179 = vld [vmem:[%s7177] ss:$16 sm:%s7178]
    %s7180 = scalar_lea.vmem [#allocation1], 1543
    %s7181 = smov 12
    %v7182 = vld [vmem:[%s7180] ss:$16 sm:%s7181]
    %vm7183 = vcmask 1043458
    %v7184 = vsel %vm7183, %v7182, %v7179
    %s7185 = scalar_lea.vmem [#allocation1], 1543
    %s7186 = smov 48
    %v7187 = vld [vmem:[%s7185] ss:$16 sm:%s7186]
    %vm7188 = vcmask 1045508
    %v7189 = vsel %vm7188, %v7187, %v7184
    %s7190 = scalar_lea.vmem [#allocation1], 1543
    %s7191 = smov 192
    %v7192 = vld [vmem:[%s7190] ss:$16 sm:%s7191]
    %vm7193 = vcmask 1047558
    %v7194 = vsel %vm7193, %v7192, %v7189
    %7195 = vrot.lane.b32.xlu0 %v7194, 56
    %v7196 = vpop.permute.xlu0 %7195
    %vm7197 = vcmask 523712
    %s7198 = scalar_lea.vmem [#allocation0], 96
    %7199 = vst.msk [vmem:[%s7198] sm:$0xff] %vm7197, %v7196
    %s7200 = scalar_lea.vmem [#allocation1], 135
    %s7201 = smov 3
    %v7202 = vld [vmem:[%s7200] ss:$16 sm:%s7201]
    %s7203 = scalar_lea.vmem [#allocation1], 135
    %s7204 = smov 12
    %v7205 = vld [vmem:[%s7203] ss:$16 sm:%s7204]
    %vm7206 = vcmask 1043458
    %v7207 = vsel %vm7206, %v7205, %v7202
    %s7208 = scalar_lea.vmem [#allocation1], 135
    %s7209 = smov 48
    %v7210 = vld [vmem:[%s7208] ss:$16 sm:%s7209]
    %vm7211 = vcmask 1045508
    %v7212 = vsel %vm7211, %v7210, %v7207
    %s7213 = scalar_lea.vmem [#allocation1], 135
    %s7214 = smov 192
    %v7215 = vld [vmem:[%s7213] ss:$16 sm:%s7214]
    %vm7216 = vcmask 1047558
    %v7217 = vsel %vm7216, %v7215, %v7212
    %7218 = vrot.lane.b32.xlu0 %v7217, 56
    %v7219 = vpop.permute.xlu0 %7218
    %vm7220 = vcmask 523712
    %s7221 = scalar_lea.vmem [#allocation0], 8
    %7222 = vst.msk [vmem:[%s7221] sm:$0xff] %vm7220, %v7219
    %s7223 = scalar_lea.vmem [#allocation1], 647
    %s7224 = smov 3
    %v7225 = vld [vmem:[%s7223] ss:$16 sm:%s7224]
    %s7226 = scalar_lea.vmem [#allocation1], 647
    %s7227 = smov 12
    %v7228 = vld [vmem:[%s7226] ss:$16 sm:%s7227]
    %vm7229 = vcmask 1043458
    %v7230 = vsel %vm7229, %v7228, %v7225
    %s7231 = scalar_lea.vmem [#allocation1], 647
    %s7232 = smov 48
    %v7233 = vld [vmem:[%s7231] ss:$16 sm:%s7232]
    %vm7234 = vcmask 1045508
    %v7235 = vsel %vm7234, %v7233, %v7230
    %s7236 = scalar_lea.vmem [#allocation1], 647
    %s7237 = smov 192
    %v7238 = vld [vmem:[%s7236] ss:$16 sm:%s7237]
    %vm7239 = vcmask 1047558
    %v7240 = vsel %vm7239, %v7238, %v7235
    %7241 = vrot.lane.b32.xlu0 %v7240, 56
    %v7242 = vpop.permute.xlu0 %7241
    %vm7243 = vcmask 523712
    %s7244 = scalar_lea.vmem [#allocation0], 40
    %7245 = vst.msk [vmem:[%s7244] sm:$0xff] %vm7243, %v7242
    %s7246 = scalar_lea.vmem [#allocation1], 1159
    %s7247 = smov 3
    %v7248 = vld [vmem:[%s7246] ss:$16 sm:%s7247]
    %s7249 = scalar_lea.vmem [#allocation1], 1159
    %s7250 = smov 12
    %v7251 = vld [vmem:[%s7249] ss:$16 sm:%s7250]
    %vm7252 = vcmask 1043458
    %v7253 = vsel %vm7252, %v7251, %v7248
    %s7254 = scalar_lea.vmem [#allocation1], 1159
    %s7255 = smov 48
    %v7256 = vld [vmem:[%s7254] ss:$16 sm:%s7255]
    %vm7257 = vcmask 1045508
    %v7258 = vsel %vm7257, %v7256, %v7253
    %s7259 = scalar_lea.vmem [#allocation1], 1159
    %s7260 = smov 192
    %v7261 = vld [vmem:[%s7259] ss:$16 sm:%s7260]
    %vm7262 = vcmask 1047558
    %v7263 = vsel %vm7262, %v7261, %v7258
    %7264 = vrot.lane.b32.xlu0 %v7263, 56
    %v7265 = vpop.permute.xlu0 %7264
    %vm7266 = vcmask 523712
    %s7267 = scalar_lea.vmem [#allocation0], 72
    %7268 = vst.msk [vmem:[%s7267] sm:$0xff] %vm7266, %v7265
    %s7269 = scalar_lea.vmem [#allocation1], 1671
    %s7270 = smov 3
    %v7271 = vld [vmem:[%s7269] ss:$16 sm:%s7270]
    %s7272 = scalar_lea.vmem [#allocation1], 1671
    %s7273 = smov 12
    %v7274 = vld [vmem:[%s7272] ss:$16 sm:%s7273]
    %vm7275 = vcmask 1043458
    %v7276 = vsel %vm7275, %v7274, %v7271
    %s7277 = scalar_lea.vmem [#allocation1], 1671
    %s7278 = smov 48
    %v7279 = vld [vmem:[%s7277] ss:$16 sm:%s7278]
    %vm7280 = vcmask 1045508
    %v7281 = vsel %vm7280, %v7279, %v7276
    %s7282 = scalar_lea.vmem [#allocation1], 1671
    %s7283 = smov 192
    %v7284 = vld [vmem:[%s7282] ss:$16 sm:%s7283]
    %vm7285 = vcmask 1047558
    %v7286 = vsel %vm7285, %v7284, %v7281
    %7287 = vrot.lane.b32.xlu0 %v7286, 56
    %v7288 = vpop.permute.xlu0 %7287
    %vm7289 = vcmask 523712
    %s7290 = scalar_lea.vmem [#allocation0], 104
    %7291 = vst.msk [vmem:[%s7290] sm:$0xff] %vm7289, %v7288
    %s7292 = scalar_lea.vmem [#allocation1], 263
    %s7293 = smov 3
    %v7294 = vld [vmem:[%s7292] ss:$16 sm:%s7293]
    %s7295 = scalar_lea.vmem [#allocation1], 263
    %s7296 = smov 12
    %v7297 = vld [vmem:[%s7295] ss:$16 sm:%s7296]
    %vm7298 = vcmask 1043458
    %v7299 = vsel %vm7298, %v7297, %v7294
    %s7300 = scalar_lea.vmem [#allocation1], 263
    %s7301 = smov 48
    %v7302 = vld [vmem:[%s7300] ss:$16 sm:%s7301]
    %vm7303 = vcmask 1045508
    %v7304 = vsel %vm7303, %v7302, %v7299
    %s7305 = scalar_lea.vmem [#allocation1], 263
    %s7306 = smov 192
    %v7307 = vld [vmem:[%s7305] ss:$16 sm:%s7306]
    %vm7308 = vcmask 1047558
    %v7309 = vsel %vm7308, %v7307, %v7304
    %7310 = vrot.lane.b32.xlu0 %v7309, 56
    %v7311 = vpop.permute.xlu0 %7310
    %vm7312 = vcmask 523712
    %s7313 = scalar_lea.vmem [#allocation0], 16
    %7314 = vst.msk [vmem:[%s7313] sm:$0xff] %vm7312, %v7311
    %s7315 = scalar_lea.vmem [#allocation1], 775
    %s7316 = smov 3
    %v7317 = vld [vmem:[%s7315] ss:$16 sm:%s7316]
    %s7318 = scalar_lea.vmem [#allocation1], 775
    %s7319 = smov 12
    %v7320 = vld [vmem:[%s7318] ss:$16 sm:%s7319]
    %vm7321 = vcmask 1043458
    %v7322 = vsel %vm7321, %v7320, %v7317
    %s7323 = scalar_lea.vmem [#allocation1], 775
    %s7324 = smov 48
    %v7325 = vld [vmem:[%s7323] ss:$16 sm:%s7324]
    %vm7326 = vcmask 1045508
    %v7327 = vsel %vm7326, %v7325, %v7322
    %s7328 = scalar_lea.vmem [#allocation1], 775
    %s7329 = smov 192
    %v7330 = vld [vmem:[%s7328] ss:$16 sm:%s7329]
    %vm7331 = vcmask 1047558
    %v7332 = vsel %vm7331, %v7330, %v7327
    %7333 = vrot.lane.b32.xlu0 %v7332, 56
    %v7334 = vpop.permute.xlu0 %7333
    %vm7335 = vcmask 523712
    %s7336 = scalar_lea.vmem [#allocation0], 48
    %7337 = vst.msk [vmem:[%s7336] sm:$0xff] %vm7335, %v7334
    %s7338 = scalar_lea.vmem [#allocation1], 1287
    %s7339 = smov 3
    %v7340 = vld [vmem:[%s7338] ss:$16 sm:%s7339]
    %s7341 = scalar_lea.vmem [#allocation1], 1287
    %s7342 = smov 12
    %v7343 = vld [vmem:[%s7341] ss:$16 sm:%s7342]
    %vm7344 = vcmask 1043458
    %v7345 = vsel %vm7344, %v7343, %v7340
    %s7346 = scalar_lea.vmem [#allocation1], 1287
    %s7347 = smov 48
    %v7348 = vld [vmem:[%s7346] ss:$16 sm:%s7347]
    %vm7349 = vcmask 1045508
    %v7350 = vsel %vm7349, %v7348, %v7345
    %s7351 = scalar_lea.vmem [#allocation1], 1287
    %s7352 = smov 192
    %v7353 = vld [vmem:[%s7351] ss:$16 sm:%s7352]
    %vm7354 = vcmask 1047558
    %v7355 = vsel %vm7354, %v7353, %v7350
    %7356 = vrot.lane.b32.xlu0 %v7355, 56
    %v7357 = vpop.permute.xlu0 %7356
    %vm7358 = vcmask 523712
    %s7359 = scalar_lea.vmem [#allocation0], 80
    %7360 = vst.msk [vmem:[%s7359] sm:$0xff] %vm7358, %v7357
    %s7361 = scalar_lea.vmem [#allocation1], 1799
    %s7362 = smov 3
    %v7363 = vld [vmem:[%s7361] ss:$16 sm:%s7362]
    %s7364 = scalar_lea.vmem [#allocation1], 1799
    %s7365 = smov 12
    %v7366 = vld [vmem:[%s7364] ss:$16 sm:%s7365]
    %vm7367 = vcmask 1043458
    %v7368 = vsel %vm7367, %v7366, %v7363
    %s7369 = scalar_lea.vmem [#allocation1], 1799
    %s7370 = smov 48
    %v7371 = vld [vmem:[%s7369] ss:$16 sm:%s7370]
    %vm7372 = vcmask 1045508
    %v7373 = vsel %vm7372, %v7371, %v7368
    %s7374 = scalar_lea.vmem [#allocation1], 1799
    %s7375 = smov 192
    %v7376 = vld [vmem:[%s7374] ss:$16 sm:%s7375]
    %vm7377 = vcmask 1047558
    %v7378 = vsel %vm7377, %v7376, %v7373
    %7379 = vrot.lane.b32.xlu0 %v7378, 56
    %v7380 = vpop.permute.xlu0 %7379
    %vm7381 = vcmask 523712
    %s7382 = scalar_lea.vmem [#allocation0], 112
    %7383 = vst.msk [vmem:[%s7382] sm:$0xff] %vm7381, %v7380
    %s7384 = scalar_lea.vmem [#allocation1], 391
    %s7385 = smov 3
    %v7386 = vld [vmem:[%s7384] ss:$16 sm:%s7385]
    %s7387 = scalar_lea.vmem [#allocation1], 391
    %s7388 = smov 12
    %v7389 = vld [vmem:[%s7387] ss:$16 sm:%s7388]
    %vm7390 = vcmask 1043458
    %v7391 = vsel %vm7390, %v7389, %v7386
    %s7392 = scalar_lea.vmem [#allocation1], 391
    %s7393 = smov 48
    %v7394 = vld [vmem:[%s7392] ss:$16 sm:%s7393]
    %vm7395 = vcmask 1045508
    %v7396 = vsel %vm7395, %v7394, %v7391
    %s7397 = scalar_lea.vmem [#allocation1], 391
    %s7398 = smov 192
    %v7399 = vld [vmem:[%s7397] ss:$16 sm:%s7398]
    %vm7400 = vcmask 1047558
    %v7401 = vsel %vm7400, %v7399, %v7396
    %7402 = vrot.lane.b32.xlu0 %v7401, 56
    %v7403 = vpop.permute.xlu0 %7402
    %vm7404 = vcmask 523712
    %s7405 = scalar_lea.vmem [#allocation0], 24
    %7406 = vst.msk [vmem:[%s7405] sm:$0xff] %vm7404, %v7403
    %s7407 = scalar_lea.vmem [#allocation1], 903
    %s7408 = smov 3
    %v7409 = vld [vmem:[%s7407] ss:$16 sm:%s7408]
    %s7410 = scalar_lea.vmem [#allocation1], 903
    %s7411 = smov 12
    %v7412 = vld [vmem:[%s7410] ss:$16 sm:%s7411]
    %vm7413 = vcmask 1043458
    %v7414 = vsel %vm7413, %v7412, %v7409
    %s7415 = scalar_lea.vmem [#allocation1], 903
    %s7416 = smov 48
    %v7417 = vld [vmem:[%s7415] ss:$16 sm:%s7416]
    %vm7418 = vcmask 1045508
    %v7419 = vsel %vm7418, %v7417, %v7414
    %s7420 = scalar_lea.vmem [#allocation1], 903
    %s7421 = smov 192
    %v7422 = vld [vmem:[%s7420] ss:$16 sm:%s7421]
    %vm7423 = vcmask 1047558
    %v7424 = vsel %vm7423, %v7422, %v7419
    %7425 = vrot.lane.b32.xlu0 %v7424, 56
    %v7426 = vpop.permute.xlu0 %7425
    %vm7427 = vcmask 523712
    %s7428 = scalar_lea.vmem [#allocation0], 56
    %7429 = vst.msk [vmem:[%s7428] sm:$0xff] %vm7427, %v7426
    %s7430 = scalar_lea.vmem [#allocation1], 1415
    %s7431 = smov 3
    %v7432 = vld [vmem:[%s7430] ss:$16 sm:%s7431]
    %s7433 = scalar_lea.vmem [#allocation1], 1415
    %s7434 = smov 12
    %v7435 = vld [vmem:[%s7433] ss:$16 sm:%s7434]
    %vm7436 = vcmask 1043458
    %v7437 = vsel %vm7436, %v7435, %v7432
    %s7438 = scalar_lea.vmem [#allocation1], 1415
    %s7439 = smov 48
    %v7440 = vld [vmem:[%s7438] ss:$16 sm:%s7439]
    %vm7441 = vcmask 1045508
    %v7442 = vsel %vm7441, %v7440, %v7437
    %s7443 = scalar_lea.vmem [#allocation1], 1415
    %s7444 = smov 192
    %v7445 = vld [vmem:[%s7443] ss:$16 sm:%s7444]
    %vm7446 = vcmask 1047558
    %v7447 = vsel %vm7446, %v7445, %v7442
    %7448 = vrot.lane.b32.xlu0 %v7447, 56
    %v7449 = vpop.permute.xlu0 %7448
    %vm7450 = vcmask 523712
    %s7451 = scalar_lea.vmem [#allocation0], 88
    %7452 = vst.msk [vmem:[%s7451] sm:$0xff] %vm7450, %v7449
    %s7453 = scalar_lea.vmem [#allocation1], 1927
    %s7454 = smov 3
    %v7455 = vld [vmem:[%s7453] ss:$16 sm:%s7454]
    %s7456 = scalar_lea.vmem [#allocation1], 1927
    %s7457 = smov 12
    %v7458 = vld [vmem:[%s7456] ss:$16 sm:%s7457]
    %vm7459 = vcmask 1043458
    %v7460 = vsel %vm7459, %v7458, %v7455
    %s7461 = scalar_lea.vmem [#allocation1], 1927
    %s7462 = smov 48
    %v7463 = vld [vmem:[%s7461] ss:$16 sm:%s7462]
    %vm7464 = vcmask 1045508
    %v7465 = vsel %vm7464, %v7463, %v7460
    %s7466 = scalar_lea.vmem [#allocation1], 1927
    %s7467 = smov 192
    %v7468 = vld [vmem:[%s7466] ss:$16 sm:%s7467]
    %vm7469 = vcmask 1047558
    %v7470 = vsel %vm7469, %v7468, %v7465
    %7471 = vrot.lane.b32.xlu0 %v7470, 56
    %v7472 = vpop.permute.xlu0 %7471
    %vm7473 = vcmask 523712
    %s7474 = scalar_lea.vmem [#allocation0], 120
    %7475 = vst.msk [vmem:[%s7474] sm:$0xff] %vm7473, %v7472
    %s7476 = scalar_lea.vmem [#allocation1], 6
    %s7477 = smov 3
    %v7478 = vld [vmem:[%s7476] ss:$16 sm:%s7477]
    %s7479 = scalar_lea.vmem [#allocation1], 6
    %s7480 = smov 12
    %v7481 = vld [vmem:[%s7479] ss:$16 sm:%s7480]
    %vm7482 = vcmask 1043458
    %v7483 = vsel %vm7482, %v7481, %v7478
    %s7484 = scalar_lea.vmem [#allocation1], 6
    %s7485 = smov 48
    %v7486 = vld [vmem:[%s7484] ss:$16 sm:%s7485]
    %vm7487 = vcmask 1045508
    %v7488 = vsel %vm7487, %v7486, %v7483
    %s7489 = scalar_lea.vmem [#allocation1], 6
    %s7490 = smov 192
    %v7491 = vld [vmem:[%s7489] ss:$16 sm:%s7490]
    %vm7492 = vcmask 1047558
    %v7493 = vsel %vm7492, %v7491, %v7488
    %7494 = vrot.lane.b32.xlu0 %v7493, 48
    %v7495 = vpop.permute.xlu0 %7494
    %vm7496 = vcmask 458112
    %7497 = vst.msk [vmem:[#allocation0] sm:$0xff] %vm7496, %v7495
    %s7498 = scalar_lea.vmem [#allocation1], 518
    %s7499 = smov 3
    %v7500 = vld [vmem:[%s7498] ss:$16 sm:%s7499]
    %s7501 = scalar_lea.vmem [#allocation1], 518
    %s7502 = smov 12
    %v7503 = vld [vmem:[%s7501] ss:$16 sm:%s7502]
    %vm7504 = vcmask 1043458
    %v7505 = vsel %vm7504, %v7503, %v7500
    %s7506 = scalar_lea.vmem [#allocation1], 518
    %s7507 = smov 48
    %v7508 = vld [vmem:[%s7506] ss:$16 sm:%s7507]
    %vm7509 = vcmask 1045508
    %v7510 = vsel %vm7509, %v7508, %v7505
    %s7511 = scalar_lea.vmem [#allocation1], 518
    %s7512 = smov 192
    %v7513 = vld [vmem:[%s7511] ss:$16 sm:%s7512]
    %vm7514 = vcmask 1047558
    %v7515 = vsel %vm7514, %v7513, %v7510
    %7516 = vrot.lane.b32.xlu0 %v7515, 48
    %v7517 = vpop.permute.xlu0 %7516
    %vm7518 = vcmask 458112
    %s7519 = scalar_lea.vmem [#allocation0], 32
    %7520 = vst.msk [vmem:[%s7519] sm:$0xff] %vm7518, %v7517
    %s7521 = scalar_lea.vmem [#allocation1], 1030
    %s7522 = smov 3
    %v7523 = vld [vmem:[%s7521] ss:$16 sm:%s7522]
    %s7524 = scalar_lea.vmem [#allocation1], 1030
    %s7525 = smov 12
    %v7526 = vld [vmem:[%s7524] ss:$16 sm:%s7525]
    %vm7527 = vcmask 1043458
    %v7528 = vsel %vm7527, %v7526, %v7523
    %s7529 = scalar_lea.vmem [#allocation1], 1030
    %s7530 = smov 48
    %v7531 = vld [vmem:[%s7529] ss:$16 sm:%s7530]
    %vm7532 = vcmask 1045508
    %v7533 = vsel %vm7532, %v7531, %v7528
    %s7534 = scalar_lea.vmem [#allocation1], 1030
    %s7535 = smov 192
    %v7536 = vld [vmem:[%s7534] ss:$16 sm:%s7535]
    %vm7537 = vcmask 1047558
    %v7538 = vsel %vm7537, %v7536, %v7533
    %7539 = vrot.lane.b32.xlu0 %v7538, 48
    %v7540 = vpop.permute.xlu0 %7539
    %vm7541 = vcmask 458112
    %s7542 = scalar_lea.vmem [#allocation0], 64
    %7543 = vst.msk [vmem:[%s7542] sm:$0xff] %vm7541, %v7540
    %s7544 = scalar_lea.vmem [#allocation1], 1542
    %s7545 = smov 3
    %v7546 = vld [vmem:[%s7544] ss:$16 sm:%s7545]
    %s7547 = scalar_lea.vmem [#allocation1], 1542
    %s7548 = smov 12
    %v7549 = vld [vmem:[%s7547] ss:$16 sm:%s7548]
    %vm7550 = vcmask 1043458
    %v7551 = vsel %vm7550, %v7549, %v7546
    %s7552 = scalar_lea.vmem [#allocation1], 1542
    %s7553 = smov 48
    %v7554 = vld [vmem:[%s7552] ss:$16 sm:%s7553]
    %vm7555 = vcmask 1045508
    %v7556 = vsel %vm7555, %v7554, %v7551
    %s7557 = scalar_lea.vmem [#allocation1], 1542
    %s7558 = smov 192
    %v7559 = vld [vmem:[%s7557] ss:$16 sm:%s7558]
    %vm7560 = vcmask 1047558
    %v7561 = vsel %vm7560, %v7559, %v7556
    %7562 = vrot.lane.b32.xlu0 %v7561, 48
    %v7563 = vpop.permute.xlu0 %7562
    %vm7564 = vcmask 458112
    %s7565 = scalar_lea.vmem [#allocation0], 96
    %7566 = vst.msk [vmem:[%s7565] sm:$0xff] %vm7564, %v7563
    %s7567 = scalar_lea.vmem [#allocation1], 134
    %s7568 = smov 3
    %v7569 = vld [vmem:[%s7567] ss:$16 sm:%s7568]
    %s7570 = scalar_lea.vmem [#allocation1], 134
    %s7571 = smov 12
    %v7572 = vld [vmem:[%s7570] ss:$16 sm:%s7571]
    %vm7573 = vcmask 1043458
    %v7574 = vsel %vm7573, %v7572, %v7569
    %s7575 = scalar_lea.vmem [#allocation1], 134
    %s7576 = smov 48
    %v7577 = vld [vmem:[%s7575] ss:$16 sm:%s7576]
    %vm7578 = vcmask 1045508
    %v7579 = vsel %vm7578, %v7577, %v7574
    %s7580 = scalar_lea.vmem [#allocation1], 134
    %s7581 = smov 192
    %v7582 = vld [vmem:[%s7580] ss:$16 sm:%s7581]
    %vm7583 = vcmask 1047558
    %v7584 = vsel %vm7583, %v7582, %v7579
    %7585 = vrot.lane.b32.xlu0 %v7584, 48
    %v7586 = vpop.permute.xlu0 %7585
    %vm7587 = vcmask 458112
    %s7588 = scalar_lea.vmem [#allocation0], 8
    %7589 = vst.msk [vmem:[%s7588] sm:$0xff] %vm7587, %v7586
    %s7590 = scalar_lea.vmem [#allocation1], 646
    %s7591 = smov 3
    %v7592 = vld [vmem:[%s7590] ss:$16 sm:%s7591]
    %s7593 = scalar_lea.vmem [#allocation1], 646
    %s7594 = smov 12
    %v7595 = vld [vmem:[%s7593] ss:$16 sm:%s7594]
    %vm7596 = vcmask 1043458
    %v7597 = vsel %vm7596, %v7595, %v7592
    %s7598 = scalar_lea.vmem [#allocation1], 646
    %s7599 = smov 48
    %v7600 = vld [vmem:[%s7598] ss:$16 sm:%s7599]
    %vm7601 = vcmask 1045508
    %v7602 = vsel %vm7601, %v7600, %v7597
    %s7603 = scalar_lea.vmem [#allocation1], 646
    %s7604 = smov 192
    %v7605 = vld [vmem:[%s7603] ss:$16 sm:%s7604]
    %vm7606 = vcmask 1047558
    %v7607 = vsel %vm7606, %v7605, %v7602
    %7608 = vrot.lane.b32.xlu0 %v7607, 48
    %v7609 = vpop.permute.xlu0 %7608
    %vm7610 = vcmask 458112
    %s7611 = scalar_lea.vmem [#allocation0], 40
    %7612 = vst.msk [vmem:[%s7611] sm:$0xff] %vm7610, %v7609
    %s7613 = scalar_lea.vmem [#allocation1], 1158
    %s7614 = smov 3
    %v7615 = vld [vmem:[%s7613] ss:$16 sm:%s7614]
    %s7616 = scalar_lea.vmem [#allocation1], 1158
    %s7617 = smov 12
    %v7618 = vld [vmem:[%s7616] ss:$16 sm:%s7617]
    %vm7619 = vcmask 1043458
    %v7620 = vsel %vm7619, %v7618, %v7615
    %s7621 = scalar_lea.vmem [#allocation1], 1158
    %s7622 = smov 48
    %v7623 = vld [vmem:[%s7621] ss:$16 sm:%s7622]
    %vm7624 = vcmask 1045508
    %v7625 = vsel %vm7624, %v7623, %v7620
    %s7626 = scalar_lea.vmem [#allocation1], 1158
    %s7627 = smov 192
    %v7628 = vld [vmem:[%s7626] ss:$16 sm:%s7627]
    %vm7629 = vcmask 1047558
    %v7630 = vsel %vm7629, %v7628, %v7625
    %7631 = vrot.lane.b32.xlu0 %v7630, 48
    %v7632 = vpop.permute.xlu0 %7631
    %vm7633 = vcmask 458112
    %s7634 = scalar_lea.vmem [#allocation0], 72
    %7635 = vst.msk [vmem:[%s7634] sm:$0xff] %vm7633, %v7632
    %s7636 = scalar_lea.vmem [#allocation1], 1670
    %s7637 = smov 3
    %v7638 = vld [vmem:[%s7636] ss:$16 sm:%s7637]
    %s7639 = scalar_lea.vmem [#allocation1], 1670
    %s7640 = smov 12
    %v7641 = vld [vmem:[%s7639] ss:$16 sm:%s7640]
    %vm7642 = vcmask 1043458
    %v7643 = vsel %vm7642, %v7641, %v7638
    %s7644 = scalar_lea.vmem [#allocation1], 1670
    %s7645 = smov 48
    %v7646 = vld [vmem:[%s7644] ss:$16 sm:%s7645]
    %vm7647 = vcmask 1045508
    %v7648 = vsel %vm7647, %v7646, %v7643
    %s7649 = scalar_lea.vmem [#allocation1], 1670
    %s7650 = smov 192
    %v7651 = vld [vmem:[%s7649] ss:$16 sm:%s7650]
    %vm7652 = vcmask 1047558
    %v7653 = vsel %vm7652, %v7651, %v7648
    %7654 = vrot.lane.b32.xlu0 %v7653, 48
    %v7655 = vpop.permute.xlu0 %7654
    %vm7656 = vcmask 458112
    %s7657 = scalar_lea.vmem [#allocation0], 104
    %7658 = vst.msk [vmem:[%s7657] sm:$0xff] %vm7656, %v7655
    %s7659 = scalar_lea.vmem [#allocation1], 262
    %s7660 = smov 3
    %v7661 = vld [vmem:[%s7659] ss:$16 sm:%s7660]
    %s7662 = scalar_lea.vmem [#allocation1], 262
    %s7663 = smov 12
    %v7664 = vld [vmem:[%s7662] ss:$16 sm:%s7663]
    %vm7665 = vcmask 1043458
    %v7666 = vsel %vm7665, %v7664, %v7661
    %s7667 = scalar_lea.vmem [#allocation1], 262
    %s7668 = smov 48
    %v7669 = vld [vmem:[%s7667] ss:$16 sm:%s7668]
    %vm7670 = vcmask 1045508
    %v7671 = vsel %vm7670, %v7669, %v7666
    %s7672 = scalar_lea.vmem [#allocation1], 262
    %s7673 = smov 192
    %v7674 = vld [vmem:[%s7672] ss:$16 sm:%s7673]
    %vm7675 = vcmask 1047558
    %v7676 = vsel %vm7675, %v7674, %v7671
    %7677 = vrot.lane.b32.xlu0 %v7676, 48
    %v7678 = vpop.permute.xlu0 %7677
    %vm7679 = vcmask 458112
    %s7680 = scalar_lea.vmem [#allocation0], 16
    %7681 = vst.msk [vmem:[%s7680] sm:$0xff] %vm7679, %v7678
    %s7682 = scalar_lea.vmem [#allocation1], 774
    %s7683 = smov 3
    %v7684 = vld [vmem:[%s7682] ss:$16 sm:%s7683]
    %s7685 = scalar_lea.vmem [#allocation1], 774
    %s7686 = smov 12
    %v7687 = vld [vmem:[%s7685] ss:$16 sm:%s7686]
    %vm7688 = vcmask 1043458
    %v7689 = vsel %vm7688, %v7687, %v7684
    %s7690 = scalar_lea.vmem [#allocation1], 774
    %s7691 = smov 48
    %v7692 = vld [vmem:[%s7690] ss:$16 sm:%s7691]
    %vm7693 = vcmask 1045508
    %v7694 = vsel %vm7693, %v7692, %v7689
    %s7695 = scalar_lea.vmem [#allocation1], 774
    %s7696 = smov 192
    %v7697 = vld [vmem:[%s7695] ss:$16 sm:%s7696]
    %vm7698 = vcmask 1047558
    %v7699 = vsel %vm7698, %v7697, %v7694
    %7700 = vrot.lane.b32.xlu0 %v7699, 48
    %v7701 = vpop.permute.xlu0 %7700
    %vm7702 = vcmask 458112
    %s7703 = scalar_lea.vmem [#allocation0], 48
    %7704 = vst.msk [vmem:[%s7703] sm:$0xff] %vm7702, %v7701
    %s7705 = scalar_lea.vmem [#allocation1], 1286
    %s7706 = smov 3
    %v7707 = vld [vmem:[%s7705] ss:$16 sm:%s7706]
    %s7708 = scalar_lea.vmem [#allocation1], 1286
    %s7709 = smov 12
    %v7710 = vld [vmem:[%s7708] ss:$16 sm:%s7709]
    %vm7711 = vcmask 1043458
    %v7712 = vsel %vm7711, %v7710, %v7707
    %s7713 = scalar_lea.vmem [#allocation1], 1286
    %s7714 = smov 48
    %v7715 = vld [vmem:[%s7713] ss:$16 sm:%s7714]
    %vm7716 = vcmask 1045508
    %v7717 = vsel %vm7716, %v7715, %v7712
    %s7718 = scalar_lea.vmem [#allocation1], 1286
    %s7719 = smov 192
    %v7720 = vld [vmem:[%s7718] ss:$16 sm:%s7719]
    %vm7721 = vcmask 1047558
    %v7722 = vsel %vm7721, %v7720, %v7717
    %7723 = vrot.lane.b32.xlu0 %v7722, 48
    %v7724 = vpop.permute.xlu0 %7723
    %vm7725 = vcmask 458112
    %s7726 = scalar_lea.vmem [#allocation0], 80
    %7727 = vst.msk [vmem:[%s7726] sm:$0xff] %vm7725, %v7724
    %s7728 = scalar_lea.vmem [#allocation1], 1798
    %s7729 = smov 3
    %v7730 = vld [vmem:[%s7728] ss:$16 sm:%s7729]
    %s7731 = scalar_lea.vmem [#allocation1], 1798
    %s7732 = smov 12
    %v7733 = vld [vmem:[%s7731] ss:$16 sm:%s7732]
    %vm7734 = vcmask 1043458
    %v7735 = vsel %vm7734, %v7733, %v7730
    %s7736 = scalar_lea.vmem [#allocation1], 1798
    %s7737 = smov 48
    %v7738 = vld [vmem:[%s7736] ss:$16 sm:%s7737]
    %vm7739 = vcmask 1045508
    %v7740 = vsel %vm7739, %v7738, %v7735
    %s7741 = scalar_lea.vmem [#allocation1], 1798
    %s7742 = smov 192
    %v7743 = vld [vmem:[%s7741] ss:$16 sm:%s7742]
    %vm7744 = vcmask 1047558
    %v7745 = vsel %vm7744, %v7743, %v7740
    %7746 = vrot.lane.b32.xlu0 %v7745, 48
    %v7747 = vpop.permute.xlu0 %7746
    %vm7748 = vcmask 458112
    %s7749 = scalar_lea.vmem [#allocation0], 112
    %7750 = vst.msk [vmem:[%s7749] sm:$0xff] %vm7748, %v7747
    %s7751 = scalar_lea.vmem [#allocation1], 390
    %s7752 = smov 3
    %v7753 = vld [vmem:[%s7751] ss:$16 sm:%s7752]
    %s7754 = scalar_lea.vmem [#allocation1], 390
    %s7755 = smov 12
    %v7756 = vld [vmem:[%s7754] ss:$16 sm:%s7755]
    %vm7757 = vcmask 1043458
    %v7758 = vsel %vm7757, %v7756, %v7753
    %s7759 = scalar_lea.vmem [#allocation1], 390
    %s7760 = smov 48
    %v7761 = vld [vmem:[%s7759] ss:$16 sm:%s7760]
    %vm7762 = vcmask 1045508
    %v7763 = vsel %vm7762, %v7761, %v7758
    %s7764 = scalar_lea.vmem [#allocation1], 390
    %s7765 = smov 192
    %v7766 = vld [vmem:[%s7764] ss:$16 sm:%s7765]
    %vm7767 = vcmask 1047558
    %v7768 = vsel %vm7767, %v7766, %v7763
    %7769 = vrot.lane.b32.xlu0 %v7768, 48
    %v7770 = vpop.permute.xlu0 %7769
    %vm7771 = vcmask 458112
    %s7772 = scalar_lea.vmem [#allocation0], 24
    %7773 = vst.msk [vmem:[%s7772] sm:$0xff] %vm7771, %v7770
    %s7774 = scalar_lea.vmem [#allocation1], 902
    %s7775 = smov 3
    %v7776 = vld [vmem:[%s7774] ss:$16 sm:%s7775]
    %s7777 = scalar_lea.vmem [#allocation1], 902
    %s7778 = smov 12
    %v7779 = vld [vmem:[%s7777] ss:$16 sm:%s7778]
    %vm7780 = vcmask 1043458
    %v7781 = vsel %vm7780, %v7779, %v7776
    %s7782 = scalar_lea.vmem [#allocation1], 902
    %s7783 = smov 48
    %v7784 = vld [vmem:[%s7782] ss:$16 sm:%s7783]
    %vm7785 = vcmask 1045508
    %v7786 = vsel %vm7785, %v7784, %v7781
    %s7787 = scalar_lea.vmem [#allocation1], 902
    %s7788 = smov 192
    %v7789 = vld [vmem:[%s7787] ss:$16 sm:%s7788]
    %vm7790 = vcmask 1047558
    %v7791 = vsel %vm7790, %v7789, %v7786
    %7792 = vrot.lane.b32.xlu0 %v7791, 48
    %v7793 = vpop.permute.xlu0 %7792
    %vm7794 = vcmask 458112
    %s7795 = scalar_lea.vmem [#allocation0], 56
    %7796 = vst.msk [vmem:[%s7795] sm:$0xff] %vm7794, %v7793
    %s7797 = scalar_lea.vmem [#allocation1], 1414
    %s7798 = smov 3
    %v7799 = vld [vmem:[%s7797] ss:$16 sm:%s7798]
    %s7800 = scalar_lea.vmem [#allocation1], 1414
    %s7801 = smov 12
    %v7802 = vld [vmem:[%s7800] ss:$16 sm:%s7801]
    %vm7803 = vcmask 1043458
    %v7804 = vsel %vm7803, %v7802, %v7799
    %s7805 = scalar_lea.vmem [#allocation1], 1414
    %s7806 = smov 48
    %v7807 = vld [vmem:[%s7805] ss:$16 sm:%s7806]
    %vm7808 = vcmask 1045508
    %v7809 = vsel %vm7808, %v7807, %v7804
    %s7810 = scalar_lea.vmem [#allocation1], 1414
    %s7811 = smov 192
    %v7812 = vld [vmem:[%s7810] ss:$16 sm:%s7811]
    %vm7813 = vcmask 1047558
    %v7814 = vsel %vm7813, %v7812, %v7809
    %7815 = vrot.lane.b32.xlu0 %v7814, 48
    %v7816 = vpop.permute.xlu0 %7815
    %vm7817 = vcmask 458112
    %s7818 = scalar_lea.vmem [#allocation0], 88
    %7819 = vst.msk [vmem:[%s7818] sm:$0xff] %vm7817, %v7816
    %s7820 = scalar_lea.vmem [#allocation1], 1926
    %s7821 = smov 3
    %v7822 = vld [vmem:[%s7820] ss:$16 sm:%s7821]
    %s7823 = scalar_lea.vmem [#allocation1], 1926
    %s7824 = smov 12
    %v7825 = vld [vmem:[%s7823] ss:$16 sm:%s7824]
    %vm7826 = vcmask 1043458
    %v7827 = vsel %vm7826, %v7825, %v7822
    %s7828 = scalar_lea.vmem [#allocation1], 1926
    %s7829 = smov 48
    %v7830 = vld [vmem:[%s7828] ss:$16 sm:%s7829]
    %vm7831 = vcmask 1045508
    %v7832 = vsel %vm7831, %v7830, %v7827
    %s7833 = scalar_lea.vmem [#allocation1], 1926
    %s7834 = smov 192
    %v7835 = vld [vmem:[%s7833] ss:$16 sm:%s7834]
    %vm7836 = vcmask 1047558
    %v7837 = vsel %vm7836, %v7835, %v7832
    %7838 = vrot.lane.b32.xlu0 %v7837, 48
    %v7839 = vpop.permute.xlu0 %7838
    %vm7840 = vcmask 458112
    %s7841 = scalar_lea.vmem [#allocation0], 120
    %7842 = vst.msk [vmem:[%s7841] sm:$0xff] %vm7840, %v7839
    %s7843 = scalar_lea.vmem [#allocation1], 5
    %s7844 = smov 3
    %v7845 = vld [vmem:[%s7843] ss:$16 sm:%s7844]
    %s7846 = scalar_lea.vmem [#allocation1], 5
    %s7847 = smov 12
    %v7848 = vld [vmem:[%s7846] ss:$16 sm:%s7847]
    %vm7849 = vcmask 1043458
    %v7850 = vsel %vm7849, %v7848, %v7845
    %s7851 = scalar_lea.vmem [#allocation1], 5
    %s7852 = smov 48
    %v7853 = vld [vmem:[%s7851] ss:$16 sm:%s7852]
    %vm7854 = vcmask 1045508
    %v7855 = vsel %vm7854, %v7853, %v7850
    %s7856 = scalar_lea.vmem [#allocation1], 5
    %s7857 = smov 192
    %v7858 = vld [vmem:[%s7856] ss:$16 sm:%s7857]
    %vm7859 = vcmask 1047558
    %v7860 = vsel %vm7859, %v7858, %v7855
    %7861 = vrot.lane.b32.xlu0 %v7860, 40
    %v7862 = vpop.permute.xlu0 %7861
    %vm7863 = vcmask 392512
    %7864 = vst.msk [vmem:[#allocation0] sm:$0xff] %vm7863, %v7862
    %s7865 = scalar_lea.vmem [#allocation1], 517
    %s7866 = smov 3
    %v7867 = vld [vmem:[%s7865] ss:$16 sm:%s7866]
    %s7868 = scalar_lea.vmem [#allocation1], 517
    %s7869 = smov 12
    %v7870 = vld [vmem:[%s7868] ss:$16 sm:%s7869]
    %vm7871 = vcmask 1043458
    %v7872 = vsel %vm7871, %v7870, %v7867
    %s7873 = scalar_lea.vmem [#allocation1], 517
    %s7874 = smov 48
    %v7875 = vld [vmem:[%s7873] ss:$16 sm:%s7874]
    %vm7876 = vcmask 1045508
    %v7877 = vsel %vm7876, %v7875, %v7872
    %s7878 = scalar_lea.vmem [#allocation1], 517
    %s7879 = smov 192
    %v7880 = vld [vmem:[%s7878] ss:$16 sm:%s7879]
    %vm7881 = vcmask 1047558
    %v7882 = vsel %vm7881, %v7880, %v7877
    %7883 = vrot.lane.b32.xlu0 %v7882, 40
    %v7884 = vpop.permute.xlu0 %7883
    %vm7885 = vcmask 392512
    %s7886 = scalar_lea.vmem [#allocation0], 32
    %7887 = vst.msk [vmem:[%s7886] sm:$0xff] %vm7885, %v7884
    %s7888 = scalar_lea.vmem [#allocation1], 1029
    %s7889 = smov 3
    %v7890 = vld [vmem:[%s7888] ss:$16 sm:%s7889]
    %s7891 = scalar_lea.vmem [#allocation1], 1029
    %s7892 = smov 12
    %v7893 = vld [vmem:[%s7891] ss:$16 sm:%s7892]
    %vm7894 = vcmask 1043458
    %v7895 = vsel %vm7894, %v7893, %v7890
    %s7896 = scalar_lea.vmem [#allocation1], 1029
    %s7897 = smov 48
    %v7898 = vld [vmem:[%s7896] ss:$16 sm:%s7897]
    %vm7899 = vcmask 1045508
    %v7900 = vsel %vm7899, %v7898, %v7895
    %s7901 = scalar_lea.vmem [#allocation1], 1029
    %s7902 = smov 192
    %v7903 = vld [vmem:[%s7901] ss:$16 sm:%s7902]
    %vm7904 = vcmask 1047558
    %v7905 = vsel %vm7904, %v7903, %v7900
    %7906 = vrot.lane.b32.xlu0 %v7905, 40
    %v7907 = vpop.permute.xlu0 %7906
    %vm7908 = vcmask 392512
    %s7909 = scalar_lea.vmem [#allocation0], 64
    %7910 = vst.msk [vmem:[%s7909] sm:$0xff] %vm7908, %v7907
    %s7911 = scalar_lea.vmem [#allocation1], 1541
    %s7912 = smov 3
    %v7913 = vld [vmem:[%s7911] ss:$16 sm:%s7912]
    %s7914 = scalar_lea.vmem [#allocation1], 1541
    %s7915 = smov 12
    %v7916 = vld [vmem:[%s7914] ss:$16 sm:%s7915]
    %vm7917 = vcmask 1043458
    %v7918 = vsel %vm7917, %v7916, %v7913
    %s7919 = scalar_lea.vmem [#allocation1], 1541
    %s7920 = smov 48
    %v7921 = vld [vmem:[%s7919] ss:$16 sm:%s7920]
    %vm7922 = vcmask 1045508
    %v7923 = vsel %vm7922, %v7921, %v7918
    %s7924 = scalar_lea.vmem [#allocation1], 1541
    %s7925 = smov 192
    %v7926 = vld [vmem:[%s7924] ss:$16 sm:%s7925]
    %vm7927 = vcmask 1047558
    %v7928 = vsel %vm7927, %v7926, %v7923
    %7929 = vrot.lane.b32.xlu0 %v7928, 40
    %v7930 = vpop.permute.xlu0 %7929
    %vm7931 = vcmask 392512
    %s7932 = scalar_lea.vmem [#allocation0], 96
    %7933 = vst.msk [vmem:[%s7932] sm:$0xff] %vm7931, %v7930
    %s7934 = scalar_lea.vmem [#allocation1], 133
    %s7935 = smov 3
    %v7936 = vld [vmem:[%s7934] ss:$16 sm:%s7935]
    %s7937 = scalar_lea.vmem [#allocation1], 133
    %s7938 = smov 12
    %v7939 = vld [vmem:[%s7937] ss:$16 sm:%s7938]
    %vm7940 = vcmask 1043458
    %v7941 = vsel %vm7940, %v7939, %v7936
    %s7942 = scalar_lea.vmem [#allocation1], 133
    %s7943 = smov 48
    %v7944 = vld [vmem:[%s7942] ss:$16 sm:%s7943]
    %vm7945 = vcmask 1045508
    %v7946 = vsel %vm7945, %v7944, %v7941
    %s7947 = scalar_lea.vmem [#allocation1], 133
    %s7948 = smov 192
    %v7949 = vld [vmem:[%s7947] ss:$16 sm:%s7948]
    %vm7950 = vcmask 1047558
    %v7951 = vsel %vm7950, %v7949, %v7946
    %7952 = vrot.lane.b32.xlu0 %v7951, 40
    %v7953 = vpop.permute.xlu0 %7952
    %vm7954 = vcmask 392512
    %s7955 = scalar_lea.vmem [#allocation0], 8
    %7956 = vst.msk [vmem:[%s7955] sm:$0xff] %vm7954, %v7953
    %s7957 = scalar_lea.vmem [#allocation1], 645
    %s7958 = smov 3
    %v7959 = vld [vmem:[%s7957] ss:$16 sm:%s7958]
    %s7960 = scalar_lea.vmem [#allocation1], 645
    %s7961 = smov 12
    %v7962 = vld [vmem:[%s7960] ss:$16 sm:%s7961]
    %vm7963 = vcmask 1043458
    %v7964 = vsel %vm7963, %v7962, %v7959
    %s7965 = scalar_lea.vmem [#allocation1], 645
    %s7966 = smov 48
    %v7967 = vld [vmem:[%s7965] ss:$16 sm:%s7966]
    %vm7968 = vcmask 1045508
    %v7969 = vsel %vm7968, %v7967, %v7964
    %s7970 = scalar_lea.vmem [#allocation1], 645
    %s7971 = smov 192
    %v7972 = vld [vmem:[%s7970] ss:$16 sm:%s7971]
    %vm7973 = vcmask 1047558
    %v7974 = vsel %vm7973, %v7972, %v7969
    %7975 = vrot.lane.b32.xlu0 %v7974, 40
    %v7976 = vpop.permute.xlu0 %7975
    %vm7977 = vcmask 392512
    %s7978 = scalar_lea.vmem [#allocation0], 40
    %7979 = vst.msk [vmem:[%s7978] sm:$0xff] %vm7977, %v7976
    %s7980 = scalar_lea.vmem [#allocation1], 1157
    %s7981 = smov 3
    %v7982 = vld [vmem:[%s7980] ss:$16 sm:%s7981]
    %s7983 = scalar_lea.vmem [#allocation1], 1157
    %s7984 = smov 12
    %v7985 = vld [vmem:[%s7983] ss:$16 sm:%s7984]
    %vm7986 = vcmask 1043458
    %v7987 = vsel %vm7986, %v7985, %v7982
    %s7988 = scalar_lea.vmem [#allocation1], 1157
    %s7989 = smov 48
    %v7990 = vld [vmem:[%s7988] ss:$16 sm:%s7989]
    %vm7991 = vcmask 1045508
    %v7992 = vsel %vm7991, %v7990, %v7987
    %s7993 = scalar_lea.vmem [#allocation1], 1157
    %s7994 = smov 192
    %v7995 = vld [vmem:[%s7993] ss:$16 sm:%s7994]
    %vm7996 = vcmask 1047558
    %v7997 = vsel %vm7996, %v7995, %v7992
    %7998 = vrot.lane.b32.xlu0 %v7997, 40
    %v7999 = vpop.permute.xlu0 %7998
    %vm8000 = vcmask 392512
    %s8001 = scalar_lea.vmem [#allocation0], 72
    %8002 = vst.msk [vmem:[%s8001] sm:$0xff] %vm8000, %v7999
    %s8003 = scalar_lea.vmem [#allocation1], 1669
    %s8004 = smov 3
    %v8005 = vld [vmem:[%s8003] ss:$16 sm:%s8004]
    %s8006 = scalar_lea.vmem [#allocation1], 1669
    %s8007 = smov 12
    %v8008 = vld [vmem:[%s8006] ss:$16 sm:%s8007]
    %vm8009 = vcmask 1043458
    %v8010 = vsel %vm8009, %v8008, %v8005
    %s8011 = scalar_lea.vmem [#allocation1], 1669
    %s8012 = smov 48
    %v8013 = vld [vmem:[%s8011] ss:$16 sm:%s8012]
    %vm8014 = vcmask 1045508
    %v8015 = vsel %vm8014, %v8013, %v8010
    %s8016 = scalar_lea.vmem [#allocation1], 1669
    %s8017 = smov 192
    %v8018 = vld [vmem:[%s8016] ss:$16 sm:%s8017]
    %vm8019 = vcmask 1047558
    %v8020 = vsel %vm8019, %v8018, %v8015
    %8021 = vrot.lane.b32.xlu0 %v8020, 40
    %v8022 = vpop.permute.xlu0 %8021
    %vm8023 = vcmask 392512
    %s8024 = scalar_lea.vmem [#allocation0], 104
    %8025 = vst.msk [vmem:[%s8024] sm:$0xff] %vm8023, %v8022
    %s8026 = scalar_lea.vmem [#allocation1], 261
    %s8027 = smov 3
    %v8028 = vld [vmem:[%s8026] ss:$16 sm:%s8027]
    %s8029 = scalar_lea.vmem [#allocation1], 261
    %s8030 = smov 12
    %v8031 = vld [vmem:[%s8029] ss:$16 sm:%s8030]
    %vm8032 = vcmask 1043458
    %v8033 = vsel %vm8032, %v8031, %v8028
    %s8034 = scalar_lea.vmem [#allocation1], 261
    %s8035 = smov 48
    %v8036 = vld [vmem:[%s8034] ss:$16 sm:%s8035]
    %vm8037 = vcmask 1045508
    %v8038 = vsel %vm8037, %v8036, %v8033
    %s8039 = scalar_lea.vmem [#allocation1], 261
    %s8040 = smov 192
    %v8041 = vld [vmem:[%s8039] ss:$16 sm:%s8040]
    %vm8042 = vcmask 1047558
    %v8043 = vsel %vm8042, %v8041, %v8038
    %8044 = vrot.lane.b32.xlu0 %v8043, 40
    %v8045 = vpop.permute.xlu0 %8044
    %vm8046 = vcmask 392512
    %s8047 = scalar_lea.vmem [#allocation0], 16
    %8048 = vst.msk [vmem:[%s8047] sm:$0xff] %vm8046, %v8045
    %s8049 = scalar_lea.vmem [#allocation1], 773
    %s8050 = smov 3
    %v8051 = vld [vmem:[%s8049] ss:$16 sm:%s8050]
    %s8052 = scalar_lea.vmem [#allocation1], 773
    %s8053 = smov 12
    %v8054 = vld [vmem:[%s8052] ss:$16 sm:%s8053]
    %vm8055 = vcmask 1043458
    %v8056 = vsel %vm8055, %v8054, %v8051
    %s8057 = scalar_lea.vmem [#allocation1], 773
    %s8058 = smov 48
    %v8059 = vld [vmem:[%s8057] ss:$16 sm:%s8058]
    %vm8060 = vcmask 1045508
    %v8061 = vsel %vm8060, %v8059, %v8056
    %s8062 = scalar_lea.vmem [#allocation1], 773
    %s8063 = smov 192
    %v8064 = vld [vmem:[%s8062] ss:$16 sm:%s8063]
    %vm8065 = vcmask 1047558
    %v8066 = vsel %vm8065, %v8064, %v8061
    %8067 = vrot.lane.b32.xlu0 %v8066, 40
    %v8068 = vpop.permute.xlu0 %8067
    %vm8069 = vcmask 392512
    %s8070 = scalar_lea.vmem [#allocation0], 48
    %8071 = vst.msk [vmem:[%s8070] sm:$0xff] %vm8069, %v8068
    %s8072 = scalar_lea.vmem [#allocation1], 1285
    %s8073 = smov 3
    %v8074 = vld [vmem:[%s8072] ss:$16 sm:%s8073]
    %s8075 = scalar_lea.vmem [#allocation1], 1285
    %s8076 = smov 12
    %v8077 = vld [vmem:[%s8075] ss:$16 sm:%s8076]
    %vm8078 = vcmask 1043458
    %v8079 = vsel %vm8078, %v8077, %v8074
    %s8080 = scalar_lea.vmem [#allocation1], 1285
    %s8081 = smov 48
    %v8082 = vld [vmem:[%s8080] ss:$16 sm:%s8081]
    %vm8083 = vcmask 1045508
    %v8084 = vsel %vm8083, %v8082, %v8079
    %s8085 = scalar_lea.vmem [#allocation1], 1285
    %s8086 = smov 192
    %v8087 = vld [vmem:[%s8085] ss:$16 sm:%s8086]
    %vm8088 = vcmask 1047558
    %v8089 = vsel %vm8088, %v8087, %v8084
    %8090 = vrot.lane.b32.xlu0 %v8089, 40
    %v8091 = vpop.permute.xlu0 %8090
    %vm8092 = vcmask 392512
    %s8093 = scalar_lea.vmem [#allocation0], 80
    %8094 = vst.msk [vmem:[%s8093] sm:$0xff] %vm8092, %v8091
    %s8095 = scalar_lea.vmem [#allocation1], 1797
    %s8096 = smov 3
    %v8097 = vld [vmem:[%s8095] ss:$16 sm:%s8096]
    %s8098 = scalar_lea.vmem [#allocation1], 1797
    %s8099 = smov 12
    %v8100 = vld [vmem:[%s8098] ss:$16 sm:%s8099]
    %vm8101 = vcmask 1043458
    %v8102 = vsel %vm8101, %v8100, %v8097
    %s8103 = scalar_lea.vmem [#allocation1], 1797
    %s8104 = smov 48
    %v8105 = vld [vmem:[%s8103] ss:$16 sm:%s8104]
    %vm8106 = vcmask 1045508
    %v8107 = vsel %vm8106, %v8105, %v8102
    %s8108 = scalar_lea.vmem [#allocation1], 1797
    %s8109 = smov 192
    %v8110 = vld [vmem:[%s8108] ss:$16 sm:%s8109]
    %vm8111 = vcmask 1047558
    %v8112 = vsel %vm8111, %v8110, %v8107
    %8113 = vrot.lane.b32.xlu0 %v8112, 40
    %v8114 = vpop.permute.xlu0 %8113
    %vm8115 = vcmask 392512
    %s8116 = scalar_lea.vmem [#allocation0], 112
    %8117 = vst.msk [vmem:[%s8116] sm:$0xff] %vm8115, %v8114
    %s8118 = scalar_lea.vmem [#allocation1], 389
    %s8119 = smov 3
    %v8120 = vld [vmem:[%s8118] ss:$16 sm:%s8119]
    %s8121 = scalar_lea.vmem [#allocation1], 389
    %s8122 = smov 12
    %v8123 = vld [vmem:[%s8121] ss:$16 sm:%s8122]
    %vm8124 = vcmask 1043458
    %v8125 = vsel %vm8124, %v8123, %v8120
    %s8126 = scalar_lea.vmem [#allocation1], 389
    %s8127 = smov 48
    %v8128 = vld [vmem:[%s8126] ss:$16 sm:%s8127]
    %vm8129 = vcmask 1045508
    %v8130 = vsel %vm8129, %v8128, %v8125
    %s8131 = scalar_lea.vmem [#allocation1], 389
    %s8132 = smov 192
    %v8133 = vld [vmem:[%s8131] ss:$16 sm:%s8132]
    %vm8134 = vcmask 1047558
    %v8135 = vsel %vm8134, %v8133, %v8130
    %8136 = vrot.lane.b32.xlu0 %v8135, 40
    %v8137 = vpop.permute.xlu0 %8136
    %vm8138 = vcmask 392512
    %s8139 = scalar_lea.vmem [#allocation0], 24
    %8140 = vst.msk [vmem:[%s8139] sm:$0xff] %vm8138, %v8137
    %s8141 = scalar_lea.vmem [#allocation1], 901
    %s8142 = smov 3
    %v8143 = vld [vmem:[%s8141] ss:$16 sm:%s8142]
    %s8144 = scalar_lea.vmem [#allocation1], 901
    %s8145 = smov 12
    %v8146 = vld [vmem:[%s8144] ss:$16 sm:%s8145]
    %vm8147 = vcmask 1043458
    %v8148 = vsel %vm8147, %v8146, %v8143
    %s8149 = scalar_lea.vmem [#allocation1], 901
    %s8150 = smov 48
    %v8151 = vld [vmem:[%s8149] ss:$16 sm:%s8150]
    %vm8152 = vcmask 1045508
    %v8153 = vsel %vm8152, %v8151, %v8148
    %s8154 = scalar_lea.vmem [#allocation1], 901
    %s8155 = smov 192
    %v8156 = vld [vmem:[%s8154] ss:$16 sm:%s8155]
    %vm8157 = vcmask 1047558
    %v8158 = vsel %vm8157, %v8156, %v8153
    %8159 = vrot.lane.b32.xlu0 %v8158, 40
    %v8160 = vpop.permute.xlu0 %8159
    %vm8161 = vcmask 392512
    %s8162 = scalar_lea.vmem [#allocation0], 56
    %8163 = vst.msk [vmem:[%s8162] sm:$0xff] %vm8161, %v8160
    %s8164 = scalar_lea.vmem [#allocation1], 1413
    %s8165 = smov 3
    %v8166 = vld [vmem:[%s8164] ss:$16 sm:%s8165]
    %s8167 = scalar_lea.vmem [#allocation1], 1413
    %s8168 = smov 12
    %v8169 = vld [vmem:[%s8167] ss:$16 sm:%s8168]
    %vm8170 = vcmask 1043458
    %v8171 = vsel %vm8170, %v8169, %v8166
    %s8172 = scalar_lea.vmem [#allocation1], 1413
    %s8173 = smov 48
    %v8174 = vld [vmem:[%s8172] ss:$16 sm:%s8173]
    %vm8175 = vcmask 1045508
    %v8176 = vsel %vm8175, %v8174, %v8171
    %s8177 = scalar_lea.vmem [#allocation1], 1413
    %s8178 = smov 192
    %v8179 = vld [vmem:[%s8177] ss:$16 sm:%s8178]
    %vm8180 = vcmask 1047558
    %v8181 = vsel %vm8180, %v8179, %v8176
    %8182 = vrot.lane.b32.xlu0 %v8181, 40
    %v8183 = vpop.permute.xlu0 %8182
    %vm8184 = vcmask 392512
    %s8185 = scalar_lea.vmem [#allocation0], 88
    %8186 = vst.msk [vmem:[%s8185] sm:$0xff] %vm8184, %v8183
    %s8187 = scalar_lea.vmem [#allocation1], 1925
    %s8188 = smov 3
    %v8189 = vld [vmem:[%s8187] ss:$16 sm:%s8188]
    %s8190 = scalar_lea.vmem [#allocation1], 1925
    %s8191 = smov 12
    %v8192 = vld [vmem:[%s8190] ss:$16 sm:%s8191]
    %vm8193 = vcmask 1043458
    %v8194 = vsel %vm8193, %v8192, %v8189
    %s8195 = scalar_lea.vmem [#allocation1], 1925
    %s8196 = smov 48
    %v8197 = vld [vmem:[%s8195] ss:$16 sm:%s8196]
    %vm8198 = vcmask 1045508
    %v8199 = vsel %vm8198, %v8197, %v8194
    %s8200 = scalar_lea.vmem [#allocation1], 1925
    %s8201 = smov 192
    %v8202 = vld [vmem:[%s8200] ss:$16 sm:%s8201]
    %vm8203 = vcmask 1047558
    %v8204 = vsel %vm8203, %v8202, %v8199
    %8205 = vrot.lane.b32.xlu0 %v8204, 40
    %v8206 = vpop.permute.xlu0 %8205
    %vm8207 = vcmask 392512
    %s8208 = scalar_lea.vmem [#allocation0], 120
    %8209 = vst.msk [vmem:[%s8208] sm:$0xff] %vm8207, %v8206
    %s8210 = scalar_lea.vmem [#allocation1], 4
    %s8211 = smov 3
    %v8212 = vld [vmem:[%s8210] ss:$16 sm:%s8211]
    %s8213 = scalar_lea.vmem [#allocation1], 4
    %s8214 = smov 12
    %v8215 = vld [vmem:[%s8213] ss:$16 sm:%s8214]
    %vm8216 = vcmask 1043458
    %v8217 = vsel %vm8216, %v8215, %v8212
    %s8218 = scalar_lea.vmem [#allocation1], 4
    %s8219 = smov 48
    %v8220 = vld [vmem:[%s8218] ss:$16 sm:%s8219]
    %vm8221 = vcmask 1045508
    %v8222 = vsel %vm8221, %v8220, %v8217
    %s8223 = scalar_lea.vmem [#allocation1], 4
    %s8224 = smov 192
    %v8225 = vld [vmem:[%s8223] ss:$16 sm:%s8224]
    %vm8226 = vcmask 1047558
    %v8227 = vsel %vm8226, %v8225, %v8222
    %8228 = vrot.lane.b32.xlu0 %v8227, 32
    %v8229 = vpop.permute.xlu0 %8228
    %vm8230 = vcmask 326912
    %8231 = vst.msk [vmem:[#allocation0] sm:$0xff] %vm8230, %v8229
    %s8232 = scalar_lea.vmem [#allocation1], 516
    %s8233 = smov 3
    %v8234 = vld [vmem:[%s8232] ss:$16 sm:%s8233]
    %s8235 = scalar_lea.vmem [#allocation1], 516
    %s8236 = smov 12
    %v8237 = vld [vmem:[%s8235] ss:$16 sm:%s8236]
    %vm8238 = vcmask 1043458
    %v8239 = vsel %vm8238, %v8237, %v8234
    %s8240 = scalar_lea.vmem [#allocation1], 516
    %s8241 = smov 48
    %v8242 = vld [vmem:[%s8240] ss:$16 sm:%s8241]
    %vm8243 = vcmask 1045508
    %v8244 = vsel %vm8243, %v8242, %v8239
    %s8245 = scalar_lea.vmem [#allocation1], 516
    %s8246 = smov 192
    %v8247 = vld [vmem:[%s8245] ss:$16 sm:%s8246]
    %vm8248 = vcmask 1047558
    %v8249 = vsel %vm8248, %v8247, %v8244
    %8250 = vrot.lane.b32.xlu0 %v8249, 32
    %v8251 = vpop.permute.xlu0 %8250
    %vm8252 = vcmask 326912
    %s8253 = scalar_lea.vmem [#allocation0], 32
    %8254 = vst.msk [vmem:[%s8253] sm:$0xff] %vm8252, %v8251
    %s8255 = scalar_lea.vmem [#allocation1], 1028
    %s8256 = smov 3
    %v8257 = vld [vmem:[%s8255] ss:$16 sm:%s8256]
    %s8258 = scalar_lea.vmem [#allocation1], 1028
    %s8259 = smov 12
    %v8260 = vld [vmem:[%s8258] ss:$16 sm:%s8259]
    %vm8261 = vcmask 1043458
    %v8262 = vsel %vm8261, %v8260, %v8257
    %s8263 = scalar_lea.vmem [#allocation1], 1028
    %s8264 = smov 48
    %v8265 = vld [vmem:[%s8263] ss:$16 sm:%s8264]
    %vm8266 = vcmask 1045508
    %v8267 = vsel %vm8266, %v8265, %v8262
    %s8268 = scalar_lea.vmem [#allocation1], 1028
    %s8269 = smov 192
    %v8270 = vld [vmem:[%s8268] ss:$16 sm:%s8269]
    %vm8271 = vcmask 1047558
    %v8272 = vsel %vm8271, %v8270, %v8267
    %8273 = vrot.lane.b32.xlu0 %v8272, 32
    %v8274 = vpop.permute.xlu0 %8273
    %vm8275 = vcmask 326912
    %s8276 = scalar_lea.vmem [#allocation0], 64
    %8277 = vst.msk [vmem:[%s8276] sm:$0xff] %vm8275, %v8274
    %s8278 = scalar_lea.vmem [#allocation1], 1540
    %s8279 = smov 3
    %v8280 = vld [vmem:[%s8278] ss:$16 sm:%s8279]
    %s8281 = scalar_lea.vmem [#allocation1], 1540
    %s8282 = smov 12
    %v8283 = vld [vmem:[%s8281] ss:$16 sm:%s8282]
    %vm8284 = vcmask 1043458
    %v8285 = vsel %vm8284, %v8283, %v8280
    %s8286 = scalar_lea.vmem [#allocation1], 1540
    %s8287 = smov 48
    %v8288 = vld [vmem:[%s8286] ss:$16 sm:%s8287]
    %vm8289 = vcmask 1045508
    %v8290 = vsel %vm8289, %v8288, %v8285
    %s8291 = scalar_lea.vmem [#allocation1], 1540
    %s8292 = smov 192
    %v8293 = vld [vmem:[%s8291] ss:$16 sm:%s8292]
    %vm8294 = vcmask 1047558
    %v8295 = vsel %vm8294, %v8293, %v8290
    %8296 = vrot.lane.b32.xlu0 %v8295, 32
    %v8297 = vpop.permute.xlu0 %8296
    %vm8298 = vcmask 326912
    %s8299 = scalar_lea.vmem [#allocation0], 96
    %8300 = vst.msk [vmem:[%s8299] sm:$0xff] %vm8298, %v8297
    %s8301 = scalar_lea.vmem [#allocation1], 132
    %s8302 = smov 3
    %v8303 = vld [vmem:[%s8301] ss:$16 sm:%s8302]
    %s8304 = scalar_lea.vmem [#allocation1], 132
    %s8305 = smov 12
    %v8306 = vld [vmem:[%s8304] ss:$16 sm:%s8305]
    %vm8307 = vcmask 1043458
    %v8308 = vsel %vm8307, %v8306, %v8303
    %s8309 = scalar_lea.vmem [#allocation1], 132
    %s8310 = smov 48
    %v8311 = vld [vmem:[%s8309] ss:$16 sm:%s8310]
    %vm8312 = vcmask 1045508
    %v8313 = vsel %vm8312, %v8311, %v8308
    %s8314 = scalar_lea.vmem [#allocation1], 132
    %s8315 = smov 192
    %v8316 = vld [vmem:[%s8314] ss:$16 sm:%s8315]
    %vm8317 = vcmask 1047558
    %v8318 = vsel %vm8317, %v8316, %v8313
    %8319 = vrot.lane.b32.xlu0 %v8318, 32
    %v8320 = vpop.permute.xlu0 %8319
    %vm8321 = vcmask 326912
    %s8322 = scalar_lea.vmem [#allocation0], 8
    %8323 = vst.msk [vmem:[%s8322] sm:$0xff] %vm8321, %v8320
    %s8324 = scalar_lea.vmem [#allocation1], 644
    %s8325 = smov 3
    %v8326 = vld [vmem:[%s8324] ss:$16 sm:%s8325]
    %s8327 = scalar_lea.vmem [#allocation1], 644
    %s8328 = smov 12
    %v8329 = vld [vmem:[%s8327] ss:$16 sm:%s8328]
    %vm8330 = vcmask 1043458
    %v8331 = vsel %vm8330, %v8329, %v8326
    %s8332 = scalar_lea.vmem [#allocation1], 644
    %s8333 = smov 48
    %v8334 = vld [vmem:[%s8332] ss:$16 sm:%s8333]
    %vm8335 = vcmask 1045508
    %v8336 = vsel %vm8335, %v8334, %v8331
    %s8337 = scalar_lea.vmem [#allocation1], 644
    %s8338 = smov 192
    %v8339 = vld [vmem:[%s8337] ss:$16 sm:%s8338]
    %vm8340 = vcmask 1047558
    %v8341 = vsel %vm8340, %v8339, %v8336
    %8342 = vrot.lane.b32.xlu0 %v8341, 32
    %v8343 = vpop.permute.xlu0 %8342
    %vm8344 = vcmask 326912
    %s8345 = scalar_lea.vmem [#allocation0], 40
    %8346 = vst.msk [vmem:[%s8345] sm:$0xff] %vm8344, %v8343
    %s8347 = scalar_lea.vmem [#allocation1], 1156
    %s8348 = smov 3
    %v8349 = vld [vmem:[%s8347] ss:$16 sm:%s8348]
    %s8350 = scalar_lea.vmem [#allocation1], 1156
    %s8351 = smov 12
    %v8352 = vld [vmem:[%s8350] ss:$16 sm:%s8351]
    %vm8353 = vcmask 1043458
    %v8354 = vsel %vm8353, %v8352, %v8349
    %s8355 = scalar_lea.vmem [#allocation1], 1156
    %s8356 = smov 48
    %v8357 = vld [vmem:[%s8355] ss:$16 sm:%s8356]
    %vm8358 = vcmask 1045508
    %v8359 = vsel %vm8358, %v8357, %v8354
    %s8360 = scalar_lea.vmem [#allocation1], 1156
    %s8361 = smov 192
    %v8362 = vld [vmem:[%s8360] ss:$16 sm:%s8361]
    %vm8363 = vcmask 1047558
    %v8364 = vsel %vm8363, %v8362, %v8359
    %8365 = vrot.lane.b32.xlu0 %v8364, 32
    %v8366 = vpop.permute.xlu0 %8365
    %vm8367 = vcmask 326912
    %s8368 = scalar_lea.vmem [#allocation0], 72
    %8369 = vst.msk [vmem:[%s8368] sm:$0xff] %vm8367, %v8366
    %s8370 = scalar_lea.vmem [#allocation1], 1668
    %s8371 = smov 3
    %v8372 = vld [vmem:[%s8370] ss:$16 sm:%s8371]
    %s8373 = scalar_lea.vmem [#allocation1], 1668
    %s8374 = smov 12
    %v8375 = vld [vmem:[%s8373] ss:$16 sm:%s8374]
    %vm8376 = vcmask 1043458
    %v8377 = vsel %vm8376, %v8375, %v8372
    %s8378 = scalar_lea.vmem [#allocation1], 1668
    %s8379 = smov 48
    %v8380 = vld [vmem:[%s8378] ss:$16 sm:%s8379]
    %vm8381 = vcmask 1045508
    %v8382 = vsel %vm8381, %v8380, %v8377
    %s8383 = scalar_lea.vmem [#allocation1], 1668
    %s8384 = smov 192
    %v8385 = vld [vmem:[%s8383] ss:$16 sm:%s8384]
    %vm8386 = vcmask 1047558
    %v8387 = vsel %vm8386, %v8385, %v8382
    %8388 = vrot.lane.b32.xlu0 %v8387, 32
    %v8389 = vpop.permute.xlu0 %8388
    %vm8390 = vcmask 326912
    %s8391 = scalar_lea.vmem [#allocation0], 104
    %8392 = vst.msk [vmem:[%s8391] sm:$0xff] %vm8390, %v8389
    %s8393 = scalar_lea.vmem [#allocation1], 260
    %s8394 = smov 3
    %v8395 = vld [vmem:[%s8393] ss:$16 sm:%s8394]
    %s8396 = scalar_lea.vmem [#allocation1], 260
    %s8397 = smov 12
    %v8398 = vld [vmem:[%s8396] ss:$16 sm:%s8397]
    %vm8399 = vcmask 1043458
    %v8400 = vsel %vm8399, %v8398, %v8395
    %s8401 = scalar_lea.vmem [#allocation1], 260
    %s8402 = smov 48
    %v8403 = vld [vmem:[%s8401] ss:$16 sm:%s8402]
    %vm8404 = vcmask 1045508
    %v8405 = vsel %vm8404, %v8403, %v8400
    %s8406 = scalar_lea.vmem [#allocation1], 260
    %s8407 = smov 192
    %v8408 = vld [vmem:[%s8406] ss:$16 sm:%s8407]
    %vm8409 = vcmask 1047558
    %v8410 = vsel %vm8409, %v8408, %v8405
    %8411 = vrot.lane.b32.xlu0 %v8410, 32
    %v8412 = vpop.permute.xlu0 %8411
    %vm8413 = vcmask 326912
    %s8414 = scalar_lea.vmem [#allocation0], 16
    %8415 = vst.msk [vmem:[%s8414] sm:$0xff] %vm8413, %v8412
    %s8416 = scalar_lea.vmem [#allocation1], 772
    %s8417 = smov 3
    %v8418 = vld [vmem:[%s8416] ss:$16 sm:%s8417]
    %s8419 = scalar_lea.vmem [#allocation1], 772
    %s8420 = smov 12
    %v8421 = vld [vmem:[%s8419] ss:$16 sm:%s8420]
    %vm8422 = vcmask 1043458
    %v8423 = vsel %vm8422, %v8421, %v8418
    %s8424 = scalar_lea.vmem [#allocation1], 772
    %s8425 = smov 48
    %v8426 = vld [vmem:[%s8424] ss:$16 sm:%s8425]
    %vm8427 = vcmask 1045508
    %v8428 = vsel %vm8427, %v8426, %v8423
    %s8429 = scalar_lea.vmem [#allocation1], 772
    %s8430 = smov 192
    %v8431 = vld [vmem:[%s8429] ss:$16 sm:%s8430]
    %vm8432 = vcmask 1047558
    %v8433 = vsel %vm8432, %v8431, %v8428
    %8434 = vrot.lane.b32.xlu0 %v8433, 32
    %v8435 = vpop.permute.xlu0 %8434
    %vm8436 = vcmask 326912
    %s8437 = scalar_lea.vmem [#allocation0], 48
    %8438 = vst.msk [vmem:[%s8437] sm:$0xff] %vm8436, %v8435
    %s8439 = scalar_lea.vmem [#allocation1], 1284
    %s8440 = smov 3
    %v8441 = vld [vmem:[%s8439] ss:$16 sm:%s8440]
    %s8442 = scalar_lea.vmem [#allocation1], 1284
    %s8443 = smov 12
    %v8444 = vld [vmem:[%s8442] ss:$16 sm:%s8443]
    %vm8445 = vcmask 1043458
    %v8446 = vsel %vm8445, %v8444, %v8441
    %s8447 = scalar_lea.vmem [#allocation1], 1284
    %s8448 = smov 48
    %v8449 = vld [vmem:[%s8447] ss:$16 sm:%s8448]
    %vm8450 = vcmask 1045508
    %v8451 = vsel %vm8450, %v8449, %v8446
    %s8452 = scalar_lea.vmem [#allocation1], 1284
    %s8453 = smov 192
    %v8454 = vld [vmem:[%s8452] ss:$16 sm:%s8453]
    %vm8455 = vcmask 1047558
    %v8456 = vsel %vm8455, %v8454, %v8451
    %8457 = vrot.lane.b32.xlu0 %v8456, 32
    %v8458 = vpop.permute.xlu0 %8457
    %vm8459 = vcmask 326912
    %s8460 = scalar_lea.vmem [#allocation0], 80
    %8461 = vst.msk [vmem:[%s8460] sm:$0xff] %vm8459, %v8458
    %s8462 = scalar_lea.vmem [#allocation1], 1796
    %s8463 = smov 3
    %v8464 = vld [vmem:[%s8462] ss:$16 sm:%s8463]
    %s8465 = scalar_lea.vmem [#allocation1], 1796
    %s8466 = smov 12
    %v8467 = vld [vmem:[%s8465] ss:$16 sm:%s8466]
    %vm8468 = vcmask 1043458
    %v8469 = vsel %vm8468, %v8467, %v8464
    %s8470 = scalar_lea.vmem [#allocation1], 1796
    %s8471 = smov 48
    %v8472 = vld [vmem:[%s8470] ss:$16 sm:%s8471]
    %vm8473 = vcmask 1045508
    %v8474 = vsel %vm8473, %v8472, %v8469
    %s8475 = scalar_lea.vmem [#allocation1], 1796
    %s8476 = smov 192
    %v8477 = vld [vmem:[%s8475] ss:$16 sm:%s8476]
    %vm8478 = vcmask 1047558
    %v8479 = vsel %vm8478, %v8477, %v8474
    %8480 = vrot.lane.b32.xlu0 %v8479, 32
    %v8481 = vpop.permute.xlu0 %8480
    %vm8482 = vcmask 326912
    %s8483 = scalar_lea.vmem [#allocation0], 112
    %8484 = vst.msk [vmem:[%s8483] sm:$0xff] %vm8482, %v8481
    %s8485 = scalar_lea.vmem [#allocation1], 388
    %s8486 = smov 3
    %v8487 = vld [vmem:[%s8485] ss:$16 sm:%s8486]
    %s8488 = scalar_lea.vmem [#allocation1], 388
    %s8489 = smov 12
    %v8490 = vld [vmem:[%s8488] ss:$16 sm:%s8489]
    %vm8491 = vcmask 1043458
    %v8492 = vsel %vm8491, %v8490, %v8487
    %s8493 = scalar_lea.vmem [#allocation1], 388
    %s8494 = smov 48
    %v8495 = vld [vmem:[%s8493] ss:$16 sm:%s8494]
    %vm8496 = vcmask 1045508
    %v8497 = vsel %vm8496, %v8495, %v8492
    %s8498 = scalar_lea.vmem [#allocation1], 388
    %s8499 = smov 192
    %v8500 = vld [vmem:[%s8498] ss:$16 sm:%s8499]
    %vm8501 = vcmask 1047558
    %v8502 = vsel %vm8501, %v8500, %v8497
    %8503 = vrot.lane.b32.xlu0 %v8502, 32
    %v8504 = vpop.permute.xlu0 %8503
    %vm8505 = vcmask 326912
    %s8506 = scalar_lea.vmem [#allocation0], 24
    %8507 = vst.msk [vmem:[%s8506] sm:$0xff] %vm8505, %v8504
    %s8508 = scalar_lea.vmem [#allocation1], 900
    %s8509 = smov 3
    %v8510 = vld [vmem:[%s8508] ss:$16 sm:%s8509]
    %s8511 = scalar_lea.vmem [#allocation1], 900
    %s8512 = smov 12
    %v8513 = vld [vmem:[%s8511] ss:$16 sm:%s8512]
    %vm8514 = vcmask 1043458
    %v8515 = vsel %vm8514, %v8513, %v8510
    %s8516 = scalar_lea.vmem [#allocation1], 900
    %s8517 = smov 48
    %v8518 = vld [vmem:[%s8516] ss:$16 sm:%s8517]
    %vm8519 = vcmask 1045508
    %v8520 = vsel %vm8519, %v8518, %v8515
    %s8521 = scalar_lea.vmem [#allocation1], 900
    %s8522 = smov 192
    %v8523 = vld [vmem:[%s8521] ss:$16 sm:%s8522]
    %vm8524 = vcmask 1047558
    %v8525 = vsel %vm8524, %v8523, %v8520
    %8526 = vrot.lane.b32.xlu0 %v8525, 32
    %v8527 = vpop.permute.xlu0 %8526
    %vm8528 = vcmask 326912
    %s8529 = scalar_lea.vmem [#allocation0], 56
    %8530 = vst.msk [vmem:[%s8529] sm:$0xff] %vm8528, %v8527
    %s8531 = scalar_lea.vmem [#allocation1], 1412
    %s8532 = smov 3
    %v8533 = vld [vmem:[%s8531] ss:$16 sm:%s8532]
    %s8534 = scalar_lea.vmem [#allocation1], 1412
    %s8535 = smov 12
    %v8536 = vld [vmem:[%s8534] ss:$16 sm:%s8535]
    %vm8537 = vcmask 1043458
    %v8538 = vsel %vm8537, %v8536, %v8533
    %s8539 = scalar_lea.vmem [#allocation1], 1412
    %s8540 = smov 48
    %v8541 = vld [vmem:[%s8539] ss:$16 sm:%s8540]
    %vm8542 = vcmask 1045508
    %v8543 = vsel %vm8542, %v8541, %v8538
    %s8544 = scalar_lea.vmem [#allocation1], 1412
    %s8545 = smov 192
    %v8546 = vld [vmem:[%s8544] ss:$16 sm:%s8545]
    %vm8547 = vcmask 1047558
    %v8548 = vsel %vm8547, %v8546, %v8543
    %8549 = vrot.lane.b32.xlu0 %v8548, 32
    %v8550 = vpop.permute.xlu0 %8549
    %vm8551 = vcmask 326912
    %s8552 = scalar_lea.vmem [#allocation0], 88
    %8553 = vst.msk [vmem:[%s8552] sm:$0xff] %vm8551, %v8550
    %s8554 = scalar_lea.vmem [#allocation1], 1924
    %s8555 = smov 3
    %v8556 = vld [vmem:[%s8554] ss:$16 sm:%s8555]
    %s8557 = scalar_lea.vmem [#allocation1], 1924
    %s8558 = smov 12
    %v8559 = vld [vmem:[%s8557] ss:$16 sm:%s8558]
    %vm8560 = vcmask 1043458
    %v8561 = vsel %vm8560, %v8559, %v8556
    %s8562 = scalar_lea.vmem [#allocation1], 1924
    %s8563 = smov 48
    %v8564 = vld [vmem:[%s8562] ss:$16 sm:%s8563]
    %vm8565 = vcmask 1045508
    %v8566 = vsel %vm8565, %v8564, %v8561
    %s8567 = scalar_lea.vmem [#allocation1], 1924
    %s8568 = smov 192
    %v8569 = vld [vmem:[%s8567] ss:$16 sm:%s8568]
    %vm8570 = vcmask 1047558
    %v8571 = vsel %vm8570, %v8569, %v8566
    %8572 = vrot.lane.b32.xlu0 %v8571, 32
    %v8573 = vpop.permute.xlu0 %8572
    %vm8574 = vcmask 326912
    %s8575 = scalar_lea.vmem [#allocation0], 120
    %8576 = vst.msk [vmem:[%s8575] sm:$0xff] %vm8574, %v8573
    %s8577 = scalar_lea.vmem [#allocation1], 3
    %s8578 = smov 3
    %v8579 = vld [vmem:[%s8577] ss:$16 sm:%s8578]
    %s8580 = scalar_lea.vmem [#allocation1], 3
    %s8581 = smov 12
    %v8582 = vld [vmem:[%s8580] ss:$16 sm:%s8581]
    %vm8583 = vcmask 1043458
    %v8584 = vsel %vm8583, %v8582, %v8579
    %s8585 = scalar_lea.vmem [#allocation1], 3
    %s8586 = smov 48
    %v8587 = vld [vmem:[%s8585] ss:$16 sm:%s8586]
    %vm8588 = vcmask 1045508
    %v8589 = vsel %vm8588, %v8587, %v8584
    %s8590 = scalar_lea.vmem [#allocation1], 3
    %s8591 = smov 192
    %v8592 = vld [vmem:[%s8590] ss:$16 sm:%s8591]
    %vm8593 = vcmask 1047558
    %v8594 = vsel %vm8593, %v8592, %v8589
    %8595 = vrot.lane.b32.xlu0 %v8594, 24
    %v8596 = vpop.permute.xlu0 %8595
    %vm8597 = vcmask 261312
    %8598 = vst.msk [vmem:[#allocation0] sm:$0xff] %vm8597, %v8596
    %s8599 = scalar_lea.vmem [#allocation1], 515
    %s8600 = smov 3
    %v8601 = vld [vmem:[%s8599] ss:$16 sm:%s8600]
    %s8602 = scalar_lea.vmem [#allocation1], 515
    %s8603 = smov 12
    %v8604 = vld [vmem:[%s8602] ss:$16 sm:%s8603]
    %vm8605 = vcmask 1043458
    %v8606 = vsel %vm8605, %v8604, %v8601
    %s8607 = scalar_lea.vmem [#allocation1], 515
    %s8608 = smov 48
    %v8609 = vld [vmem:[%s8607] ss:$16 sm:%s8608]
    %vm8610 = vcmask 1045508
    %v8611 = vsel %vm8610, %v8609, %v8606
    %s8612 = scalar_lea.vmem [#allocation1], 515
    %s8613 = smov 192
    %v8614 = vld [vmem:[%s8612] ss:$16 sm:%s8613]
    %vm8615 = vcmask 1047558
    %v8616 = vsel %vm8615, %v8614, %v8611
    %8617 = vrot.lane.b32.xlu0 %v8616, 24
    %v8618 = vpop.permute.xlu0 %8617
    %vm8619 = vcmask 261312
    %s8620 = scalar_lea.vmem [#allocation0], 32
    %8621 = vst.msk [vmem:[%s8620] sm:$0xff] %vm8619, %v8618
    %s8622 = scalar_lea.vmem [#allocation1], 1027
    %s8623 = smov 3
    %v8624 = vld [vmem:[%s8622] ss:$16 sm:%s8623]
    %s8625 = scalar_lea.vmem [#allocation1], 1027
    %s8626 = smov 12
    %v8627 = vld [vmem:[%s8625] ss:$16 sm:%s8626]
    %vm8628 = vcmask 1043458
    %v8629 = vsel %vm8628, %v8627, %v8624
    %s8630 = scalar_lea.vmem [#allocation1], 1027
    %s8631 = smov 48
    %v8632 = vld [vmem:[%s8630] ss:$16 sm:%s8631]
    %vm8633 = vcmask 1045508
    %v8634 = vsel %vm8633, %v8632, %v8629
    %s8635 = scalar_lea.vmem [#allocation1], 1027
    %s8636 = smov 192
    %v8637 = vld [vmem:[%s8635] ss:$16 sm:%s8636]
    %vm8638 = vcmask 1047558
    %v8639 = vsel %vm8638, %v8637, %v8634
    %8640 = vrot.lane.b32.xlu0 %v8639, 24
    %v8641 = vpop.permute.xlu0 %8640
    %vm8642 = vcmask 261312
    %s8643 = scalar_lea.vmem [#allocation0], 64
    %8644 = vst.msk [vmem:[%s8643] sm:$0xff] %vm8642, %v8641
    %s8645 = scalar_lea.vmem [#allocation1], 1539
    %s8646 = smov 3
    %v8647 = vld [vmem:[%s8645] ss:$16 sm:%s8646]
    %s8648 = scalar_lea.vmem [#allocation1], 1539
    %s8649 = smov 12
    %v8650 = vld [vmem:[%s8648] ss:$16 sm:%s8649]
    %vm8651 = vcmask 1043458
    %v8652 = vsel %vm8651, %v8650, %v8647
    %s8653 = scalar_lea.vmem [#allocation1], 1539
    %s8654 = smov 48
    %v8655 = vld [vmem:[%s8653] ss:$16 sm:%s8654]
    %vm8656 = vcmask 1045508
    %v8657 = vsel %vm8656, %v8655, %v8652
    %s8658 = scalar_lea.vmem [#allocation1], 1539
    %s8659 = smov 192
    %v8660 = vld [vmem:[%s8658] ss:$16 sm:%s8659]
    %vm8661 = vcmask 1047558
    %v8662 = vsel %vm8661, %v8660, %v8657
    %8663 = vrot.lane.b32.xlu0 %v8662, 24
    %v8664 = vpop.permute.xlu0 %8663
    %vm8665 = vcmask 261312
    %s8666 = scalar_lea.vmem [#allocation0], 96
    %8667 = vst.msk [vmem:[%s8666] sm:$0xff] %vm8665, %v8664
    %s8668 = scalar_lea.vmem [#allocation1], 131
    %s8669 = smov 3
    %v8670 = vld [vmem:[%s8668] ss:$16 sm:%s8669]
    %s8671 = scalar_lea.vmem [#allocation1], 131
    %s8672 = smov 12
    %v8673 = vld [vmem:[%s8671] ss:$16 sm:%s8672]
    %vm8674 = vcmask 1043458
    %v8675 = vsel %vm8674, %v8673, %v8670
    %s8676 = scalar_lea.vmem [#allocation1], 131
    %s8677 = smov 48
    %v8678 = vld [vmem:[%s8676] ss:$16 sm:%s8677]
    %vm8679 = vcmask 1045508
    %v8680 = vsel %vm8679, %v8678, %v8675
    %s8681 = scalar_lea.vmem [#allocation1], 131
    %s8682 = smov 192
    %v8683 = vld [vmem:[%s8681] ss:$16 sm:%s8682]
    %vm8684 = vcmask 1047558
    %v8685 = vsel %vm8684, %v8683, %v8680
    %8686 = vrot.lane.b32.xlu0 %v8685, 24
    %v8687 = vpop.permute.xlu0 %8686
    %vm8688 = vcmask 261312
    %s8689 = scalar_lea.vmem [#allocation0], 8
    %8690 = vst.msk [vmem:[%s8689] sm:$0xff] %vm8688, %v8687
    %s8691 = scalar_lea.vmem [#allocation1], 643
    %s8692 = smov 3
    %v8693 = vld [vmem:[%s8691] ss:$16 sm:%s8692]
    %s8694 = scalar_lea.vmem [#allocation1], 643
    %s8695 = smov 12
    %v8696 = vld [vmem:[%s8694] ss:$16 sm:%s8695]
    %vm8697 = vcmask 1043458
    %v8698 = vsel %vm8697, %v8696, %v8693
    %s8699 = scalar_lea.vmem [#allocation1], 643
    %s8700 = smov 48
    %v8701 = vld [vmem:[%s8699] ss:$16 sm:%s8700]
    %vm8702 = vcmask 1045508
    %v8703 = vsel %vm8702, %v8701, %v8698
    %s8704 = scalar_lea.vmem [#allocation1], 643
    %s8705 = smov 192
    %v8706 = vld [vmem:[%s8704] ss:$16 sm:%s8705]
    %vm8707 = vcmask 1047558
    %v8708 = vsel %vm8707, %v8706, %v8703
    %8709 = vrot.lane.b32.xlu0 %v8708, 24
    %v8710 = vpop.permute.xlu0 %8709
    %vm8711 = vcmask 261312
    %s8712 = scalar_lea.vmem [#allocation0], 40
    %8713 = vst.msk [vmem:[%s8712] sm:$0xff] %vm8711, %v8710
    %s8714 = scalar_lea.vmem [#allocation1], 1155
    %s8715 = smov 3
    %v8716 = vld [vmem:[%s8714] ss:$16 sm:%s8715]
    %s8717 = scalar_lea.vmem [#allocation1], 1155
    %s8718 = smov 12
    %v8719 = vld [vmem:[%s8717] ss:$16 sm:%s8718]
    %vm8720 = vcmask 1043458
    %v8721 = vsel %vm8720, %v8719, %v8716
    %s8722 = scalar_lea.vmem [#allocation1], 1155
    %s8723 = smov 48
    %v8724 = vld [vmem:[%s8722] ss:$16 sm:%s8723]
    %vm8725 = vcmask 1045508
    %v8726 = vsel %vm8725, %v8724, %v8721
    %s8727 = scalar_lea.vmem [#allocation1], 1155
    %s8728 = smov 192
    %v8729 = vld [vmem:[%s8727] ss:$16 sm:%s8728]
    %vm8730 = vcmask 1047558
    %v8731 = vsel %vm8730, %v8729, %v8726
    %8732 = vrot.lane.b32.xlu0 %v8731, 24
    %v8733 = vpop.permute.xlu0 %8732
    %vm8734 = vcmask 261312
    %s8735 = scalar_lea.vmem [#allocation0], 72
    %8736 = vst.msk [vmem:[%s8735] sm:$0xff] %vm8734, %v8733
    %s8737 = scalar_lea.vmem [#allocation1], 1667
    %s8738 = smov 3
    %v8739 = vld [vmem:[%s8737] ss:$16 sm:%s8738]
    %s8740 = scalar_lea.vmem [#allocation1], 1667
    %s8741 = smov 12
    %v8742 = vld [vmem:[%s8740] ss:$16 sm:%s8741]
    %vm8743 = vcmask 1043458
    %v8744 = vsel %vm8743, %v8742, %v8739
    %s8745 = scalar_lea.vmem [#allocation1], 1667
    %s8746 = smov 48
    %v8747 = vld [vmem:[%s8745] ss:$16 sm:%s8746]
    %vm8748 = vcmask 1045508
    %v8749 = vsel %vm8748, %v8747, %v8744
    %s8750 = scalar_lea.vmem [#allocation1], 1667
    %s8751 = smov 192
    %v8752 = vld [vmem:[%s8750] ss:$16 sm:%s8751]
    %vm8753 = vcmask 1047558
    %v8754 = vsel %vm8753, %v8752, %v8749
    %8755 = vrot.lane.b32.xlu0 %v8754, 24
    %v8756 = vpop.permute.xlu0 %8755
    %vm8757 = vcmask 261312
    %s8758 = scalar_lea.vmem [#allocation0], 104
    %8759 = vst.msk [vmem:[%s8758] sm:$0xff] %vm8757, %v8756
    %s8760 = scalar_lea.vmem [#allocation1], 259
    %s8761 = smov 3
    %v8762 = vld [vmem:[%s8760] ss:$16 sm:%s8761]
    %s8763 = scalar_lea.vmem [#allocation1], 259
    %s8764 = smov 12
    %v8765 = vld [vmem:[%s8763] ss:$16 sm:%s8764]
    %vm8766 = vcmask 1043458
    %v8767 = vsel %vm8766, %v8765, %v8762
    %s8768 = scalar_lea.vmem [#allocation1], 259
    %s8769 = smov 48
    %v8770 = vld [vmem:[%s8768] ss:$16 sm:%s8769]
    %vm8771 = vcmask 1045508
    %v8772 = vsel %vm8771, %v8770, %v8767
    %s8773 = scalar_lea.vmem [#allocation1], 259
    %s8774 = smov 192
    %v8775 = vld [vmem:[%s8773] ss:$16 sm:%s8774]
    %vm8776 = vcmask 1047558
    %v8777 = vsel %vm8776, %v8775, %v8772
    %8778 = vrot.lane.b32.xlu0 %v8777, 24
    %v8779 = vpop.permute.xlu0 %8778
    %vm8780 = vcmask 261312
    %s8781 = scalar_lea.vmem [#allocation0], 16
    %8782 = vst.msk [vmem:[%s8781] sm:$0xff] %vm8780, %v8779
    %s8783 = scalar_lea.vmem [#allocation1], 771
    %s8784 = smov 3
    %v8785 = vld [vmem:[%s8783] ss:$16 sm:%s8784]
    %s8786 = scalar_lea.vmem [#allocation1], 771
    %s8787 = smov 12
    %v8788 = vld [vmem:[%s8786] ss:$16 sm:%s8787]
    %vm8789 = vcmask 1043458
    %v8790 = vsel %vm8789, %v8788, %v8785
    %s8791 = scalar_lea.vmem [#allocation1], 771
    %s8792 = smov 48
    %v8793 = vld [vmem:[%s8791] ss:$16 sm:%s8792]
    %vm8794 = vcmask 1045508
    %v8795 = vsel %vm8794, %v8793, %v8790
    %s8796 = scalar_lea.vmem [#allocation1], 771
    %s8797 = smov 192
    %v8798 = vld [vmem:[%s8796] ss:$16 sm:%s8797]
    %vm8799 = vcmask 1047558
    %v8800 = vsel %vm8799, %v8798, %v8795
    %8801 = vrot.lane.b32.xlu0 %v8800, 24
    %v8802 = vpop.permute.xlu0 %8801
    %vm8803 = vcmask 261312
    %s8804 = scalar_lea.vmem [#allocation0], 48
    %8805 = vst.msk [vmem:[%s8804] sm:$0xff] %vm8803, %v8802
    %s8806 = scalar_lea.vmem [#allocation1], 1283
    %s8807 = smov 3
    %v8808 = vld [vmem:[%s8806] ss:$16 sm:%s8807]
    %s8809 = scalar_lea.vmem [#allocation1], 1283
    %s8810 = smov 12
    %v8811 = vld [vmem:[%s8809] ss:$16 sm:%s8810]
    %vm8812 = vcmask 1043458
    %v8813 = vsel %vm8812, %v8811, %v8808
    %s8814 = scalar_lea.vmem [#allocation1], 1283
    %s8815 = smov 48
    %v8816 = vld [vmem:[%s8814] ss:$16 sm:%s8815]
    %vm8817 = vcmask 1045508
    %v8818 = vsel %vm8817, %v8816, %v8813
    %s8819 = scalar_lea.vmem [#allocation1], 1283
    %s8820 = smov 192
    %v8821 = vld [vmem:[%s8819] ss:$16 sm:%s8820]
    %vm8822 = vcmask 1047558
    %v8823 = vsel %vm8822, %v8821, %v8818
    %8824 = vrot.lane.b32.xlu0 %v8823, 24
    %v8825 = vpop.permute.xlu0 %8824
    %vm8826 = vcmask 261312
    %s8827 = scalar_lea.vmem [#allocation0], 80
    %8828 = vst.msk [vmem:[%s8827] sm:$0xff] %vm8826, %v8825
    %s8829 = scalar_lea.vmem [#allocation1], 1795
    %s8830 = smov 3
    %v8831 = vld [vmem:[%s8829] ss:$16 sm:%s8830]
    %s8832 = scalar_lea.vmem [#allocation1], 1795
    %s8833 = smov 12
    %v8834 = vld [vmem:[%s8832] ss:$16 sm:%s8833]
    %vm8835 = vcmask 1043458
    %v8836 = vsel %vm8835, %v8834, %v8831
    %s8837 = scalar_lea.vmem [#allocation1], 1795
    %s8838 = smov 48
    %v8839 = vld [vmem:[%s8837] ss:$16 sm:%s8838]
    %vm8840 = vcmask 1045508
    %v8841 = vsel %vm8840, %v8839, %v8836
    %s8842 = scalar_lea.vmem [#allocation1], 1795
    %s8843 = smov 192
    %v8844 = vld [vmem:[%s8842] ss:$16 sm:%s8843]
    %vm8845 = vcmask 1047558
    %v8846 = vsel %vm8845, %v8844, %v8841
    %8847 = vrot.lane.b32.xlu0 %v8846, 24
    %v8848 = vpop.permute.xlu0 %8847
    %vm8849 = vcmask 261312
    %s8850 = scalar_lea.vmem [#allocation0], 112
    %8851 = vst.msk [vmem:[%s8850] sm:$0xff] %vm8849, %v8848
    %s8852 = scalar_lea.vmem [#allocation1], 387
    %s8853 = smov 3
    %v8854 = vld [vmem:[%s8852] ss:$16 sm:%s8853]
    %s8855 = scalar_lea.vmem [#allocation1], 387
    %s8856 = smov 12
    %v8857 = vld [vmem:[%s8855] ss:$16 sm:%s8856]
    %vm8858 = vcmask 1043458
    %v8859 = vsel %vm8858, %v8857, %v8854
    %s8860 = scalar_lea.vmem [#allocation1], 387
    %s8861 = smov 48
    %v8862 = vld [vmem:[%s8860] ss:$16 sm:%s8861]
    %vm8863 = vcmask 1045508
    %v8864 = vsel %vm8863, %v8862, %v8859
    %s8865 = scalar_lea.vmem [#allocation1], 387
    %s8866 = smov 192
    %v8867 = vld [vmem:[%s8865] ss:$16 sm:%s8866]
    %vm8868 = vcmask 1047558
    %v8869 = vsel %vm8868, %v8867, %v8864
    %8870 = vrot.lane.b32.xlu0 %v8869, 24
    %v8871 = vpop.permute.xlu0 %8870
    %vm8872 = vcmask 261312
    %s8873 = scalar_lea.vmem [#allocation0], 24
    %8874 = vst.msk [vmem:[%s8873] sm:$0xff] %vm8872, %v8871
    %s8875 = scalar_lea.vmem [#allocation1], 899
    %s8876 = smov 3
    %v8877 = vld [vmem:[%s8875] ss:$16 sm:%s8876]
    %s8878 = scalar_lea.vmem [#allocation1], 899
    %s8879 = smov 12
    %v8880 = vld [vmem:[%s8878] ss:$16 sm:%s8879]
    %vm8881 = vcmask 1043458
    %v8882 = vsel %vm8881, %v8880, %v8877
    %s8883 = scalar_lea.vmem [#allocation1], 899
    %s8884 = smov 48
    %v8885 = vld [vmem:[%s8883] ss:$16 sm:%s8884]
    %vm8886 = vcmask 1045508
    %v8887 = vsel %vm8886, %v8885, %v8882
    %s8888 = scalar_lea.vmem [#allocation1], 899
    %s8889 = smov 192
    %v8890 = vld [vmem:[%s8888] ss:$16 sm:%s8889]
    %vm8891 = vcmask 1047558
    %v8892 = vsel %vm8891, %v8890, %v8887
    %8893 = vrot.lane.b32.xlu0 %v8892, 24
    %v8894 = vpop.permute.xlu0 %8893
    %vm8895 = vcmask 261312
    %s8896 = scalar_lea.vmem [#allocation0], 56
    %8897 = vst.msk [vmem:[%s8896] sm:$0xff] %vm8895, %v8894
    %s8898 = scalar_lea.vmem [#allocation1], 1411
    %s8899 = smov 3
    %v8900 = vld [vmem:[%s8898] ss:$16 sm:%s8899]
    %s8901 = scalar_lea.vmem [#allocation1], 1411
    %s8902 = smov 12
    %v8903 = vld [vmem:[%s8901] ss:$16 sm:%s8902]
    %vm8904 = vcmask 1043458
    %v8905 = vsel %vm8904, %v8903, %v8900
    %s8906 = scalar_lea.vmem [#allocation1], 1411
    %s8907 = smov 48
    %v8908 = vld [vmem:[%s8906] ss:$16 sm:%s8907]
    %vm8909 = vcmask 1045508
    %v8910 = vsel %vm8909, %v8908, %v8905
    %s8911 = scalar_lea.vmem [#allocation1], 1411
    %s8912 = smov 192
    %v8913 = vld [vmem:[%s8911] ss:$16 sm:%s8912]
    %vm8914 = vcmask 1047558
    %v8915 = vsel %vm8914, %v8913, %v8910
    %8916 = vrot.lane.b32.xlu0 %v8915, 24
    %v8917 = vpop.permute.xlu0 %8916
    %vm8918 = vcmask 261312
    %s8919 = scalar_lea.vmem [#allocation0], 88
    %8920 = vst.msk [vmem:[%s8919] sm:$0xff] %vm8918, %v8917
    %s8921 = scalar_lea.vmem [#allocation1], 1923
    %s8922 = smov 3
    %v8923 = vld [vmem:[%s8921] ss:$16 sm:%s8922]
    %s8924 = scalar_lea.vmem [#allocation1], 1923
    %s8925 = smov 12
    %v8926 = vld [vmem:[%s8924] ss:$16 sm:%s8925]
    %vm8927 = vcmask 1043458
    %v8928 = vsel %vm8927, %v8926, %v8923
    %s8929 = scalar_lea.vmem [#allocation1], 1923
    %s8930 = smov 48
    %v8931 = vld [vmem:[%s8929] ss:$16 sm:%s8930]
    %vm8932 = vcmask 1045508
    %v8933 = vsel %vm8932, %v8931, %v8928
    %s8934 = scalar_lea.vmem [#allocation1], 1923
    %s8935 = smov 192
    %v8936 = vld [vmem:[%s8934] ss:$16 sm:%s8935]
    %vm8937 = vcmask 1047558
    %v8938 = vsel %vm8937, %v8936, %v8933
    %8939 = vrot.lane.b32.xlu0 %v8938, 24
    %v8940 = vpop.permute.xlu0 %8939
    %vm8941 = vcmask 261312
    %s8942 = scalar_lea.vmem [#allocation0], 120
    %8943 = vst.msk [vmem:[%s8942] sm:$0xff] %vm8941, %v8940
    %s8944 = scalar_lea.vmem [#allocation1], 2
    %s8945 = smov 3
    %v8946 = vld [vmem:[%s8944] ss:$16 sm:%s8945]
    %s8947 = scalar_lea.vmem [#allocation1], 2
    %s8948 = smov 12
    %v8949 = vld [vmem:[%s8947] ss:$16 sm:%s8948]
    %vm8950 = vcmask 1043458
    %v8951 = vsel %vm8950, %v8949, %v8946
    %s8952 = scalar_lea.vmem [#allocation1], 2
    %s8953 = smov 48
    %v8954 = vld [vmem:[%s8952] ss:$16 sm:%s8953]
    %vm8955 = vcmask 1045508
    %v8956 = vsel %vm8955, %v8954, %v8951
    %s8957 = scalar_lea.vmem [#allocation1], 2
    %s8958 = smov 192
    %v8959 = vld [vmem:[%s8957] ss:$16 sm:%s8958]
    %vm8960 = vcmask 1047558
    %v8961 = vsel %vm8960, %v8959, %v8956
    %8962 = vrot.lane.b32.xlu0 %v8961, 16
    %v8963 = vpop.permute.xlu0 %8962
    %vm8964 = vcmask 195712
    %8965 = vst.msk [vmem:[#allocation0] sm:$0xff] %vm8964, %v8963
    %s8966 = scalar_lea.vmem [#allocation1], 514
    %s8967 = smov 3
    %v8968 = vld [vmem:[%s8966] ss:$16 sm:%s8967]
    %s8969 = scalar_lea.vmem [#allocation1], 514
    %s8970 = smov 12
    %v8971 = vld [vmem:[%s8969] ss:$16 sm:%s8970]
    %vm8972 = vcmask 1043458
    %v8973 = vsel %vm8972, %v8971, %v8968
    %s8974 = scalar_lea.vmem [#allocation1], 514
    %s8975 = smov 48
    %v8976 = vld [vmem:[%s8974] ss:$16 sm:%s8975]
    %vm8977 = vcmask 1045508
    %v8978 = vsel %vm8977, %v8976, %v8973
    %s8979 = scalar_lea.vmem [#allocation1], 514
    %s8980 = smov 192
    %v8981 = vld [vmem:[%s8979] ss:$16 sm:%s8980]
    %vm8982 = vcmask 1047558
    %v8983 = vsel %vm8982, %v8981, %v8978
    %8984 = vrot.lane.b32.xlu0 %v8983, 16
    %v8985 = vpop.permute.xlu0 %8984
    %vm8986 = vcmask 195712
    %s8987 = scalar_lea.vmem [#allocation0], 32
    %8988 = vst.msk [vmem:[%s8987] sm:$0xff] %vm8986, %v8985
    %s8989 = scalar_lea.vmem [#allocation1], 1026
    %s8990 = smov 3
    %v8991 = vld [vmem:[%s8989] ss:$16 sm:%s8990]
    %s8992 = scalar_lea.vmem [#allocation1], 1026
    %s8993 = smov 12
    %v8994 = vld [vmem:[%s8992] ss:$16 sm:%s8993]
    %vm8995 = vcmask 1043458
    %v8996 = vsel %vm8995, %v8994, %v8991
    %s8997 = scalar_lea.vmem [#allocation1], 1026
    %s8998 = smov 48
    %v8999 = vld [vmem:[%s8997] ss:$16 sm:%s8998]
    %vm9000 = vcmask 1045508
    %v9001 = vsel %vm9000, %v8999, %v8996
    %s9002 = scalar_lea.vmem [#allocation1], 1026
    %s9003 = smov 192
    %v9004 = vld [vmem:[%s9002] ss:$16 sm:%s9003]
    %vm9005 = vcmask 1047558
    %v9006 = vsel %vm9005, %v9004, %v9001
    %9007 = vrot.lane.b32.xlu0 %v9006, 16
    %v9008 = vpop.permute.xlu0 %9007
    %vm9009 = vcmask 195712
    %s9010 = scalar_lea.vmem [#allocation0], 64
    %9011 = vst.msk [vmem:[%s9010] sm:$0xff] %vm9009, %v9008
    %s9012 = scalar_lea.vmem [#allocation1], 1538
    %s9013 = smov 3
    %v9014 = vld [vmem:[%s9012] ss:$16 sm:%s9013]
    %s9015 = scalar_lea.vmem [#allocation1], 1538
    %s9016 = smov 12
    %v9017 = vld [vmem:[%s9015] ss:$16 sm:%s9016]
    %vm9018 = vcmask 1043458
    %v9019 = vsel %vm9018, %v9017, %v9014
    %s9020 = scalar_lea.vmem [#allocation1], 1538
    %s9021 = smov 48
    %v9022 = vld [vmem:[%s9020] ss:$16 sm:%s9021]
    %vm9023 = vcmask 1045508
    %v9024 = vsel %vm9023, %v9022, %v9019
    %s9025 = scalar_lea.vmem [#allocation1], 1538
    %s9026 = smov 192
    %v9027 = vld [vmem:[%s9025] ss:$16 sm:%s9026]
    %vm9028 = vcmask 1047558
    %v9029 = vsel %vm9028, %v9027, %v9024
    %9030 = vrot.lane.b32.xlu0 %v9029, 16
    %v9031 = vpop.permute.xlu0 %9030
    %vm9032 = vcmask 195712
    %s9033 = scalar_lea.vmem [#allocation0], 96
    %9034 = vst.msk [vmem:[%s9033] sm:$0xff] %vm9032, %v9031
    %s9035 = scalar_lea.vmem [#allocation1], 130
    %s9036 = smov 3
    %v9037 = vld [vmem:[%s9035] ss:$16 sm:%s9036]
    %s9038 = scalar_lea.vmem [#allocation1], 130
    %s9039 = smov 12
    %v9040 = vld [vmem:[%s9038] ss:$16 sm:%s9039]
    %vm9041 = vcmask 1043458
    %v9042 = vsel %vm9041, %v9040, %v9037
    %s9043 = scalar_lea.vmem [#allocation1], 130
    %s9044 = smov 48
    %v9045 = vld [vmem:[%s9043] ss:$16 sm:%s9044]
    %vm9046 = vcmask 1045508
    %v9047 = vsel %vm9046, %v9045, %v9042
    %s9048 = scalar_lea.vmem [#allocation1], 130
    %s9049 = smov 192
    %v9050 = vld [vmem:[%s9048] ss:$16 sm:%s9049]
    %vm9051 = vcmask 1047558
    %v9052 = vsel %vm9051, %v9050, %v9047
    %9053 = vrot.lane.b32.xlu0 %v9052, 16
    %v9054 = vpop.permute.xlu0 %9053
    %vm9055 = vcmask 195712
    %s9056 = scalar_lea.vmem [#allocation0], 8
    %9057 = vst.msk [vmem:[%s9056] sm:$0xff] %vm9055, %v9054
    %s9058 = scalar_lea.vmem [#allocation1], 642
    %s9059 = smov 3
    %v9060 = vld [vmem:[%s9058] ss:$16 sm:%s9059]
    %s9061 = scalar_lea.vmem [#allocation1], 642
    %s9062 = smov 12
    %v9063 = vld [vmem:[%s9061] ss:$16 sm:%s9062]
    %vm9064 = vcmask 1043458
    %v9065 = vsel %vm9064, %v9063, %v9060
    %s9066 = scalar_lea.vmem [#allocation1], 642
    %s9067 = smov 48
    %v9068 = vld [vmem:[%s9066] ss:$16 sm:%s9067]
    %vm9069 = vcmask 1045508
    %v9070 = vsel %vm9069, %v9068, %v9065
    %s9071 = scalar_lea.vmem [#allocation1], 642
    %s9072 = smov 192
    %v9073 = vld [vmem:[%s9071] ss:$16 sm:%s9072]
    %vm9074 = vcmask 1047558
    %v9075 = vsel %vm9074, %v9073, %v9070
    %9076 = vrot.lane.b32.xlu0 %v9075, 16
    %v9077 = vpop.permute.xlu0 %9076
    %vm9078 = vcmask 195712
    %s9079 = scalar_lea.vmem [#allocation0], 40
    %9080 = vst.msk [vmem:[%s9079] sm:$0xff] %vm9078, %v9077
    %s9081 = scalar_lea.vmem [#allocation1], 1154
    %s9082 = smov 3
    %v9083 = vld [vmem:[%s9081] ss:$16 sm:%s9082]
    %s9084 = scalar_lea.vmem [#allocation1], 1154
    %s9085 = smov 12
    %v9086 = vld [vmem:[%s9084] ss:$16 sm:%s9085]
    %vm9087 = vcmask 1043458
    %v9088 = vsel %vm9087, %v9086, %v9083
    %s9089 = scalar_lea.vmem [#allocation1], 1154
    %s9090 = smov 48
    %v9091 = vld [vmem:[%s9089] ss:$16 sm:%s9090]
    %vm9092 = vcmask 1045508
    %v9093 = vsel %vm9092, %v9091, %v9088
    %s9094 = scalar_lea.vmem [#allocation1], 1154
    %s9095 = smov 192
    %v9096 = vld [vmem:[%s9094] ss:$16 sm:%s9095]
    %vm9097 = vcmask 1047558
    %v9098 = vsel %vm9097, %v9096, %v9093
    %9099 = vrot.lane.b32.xlu0 %v9098, 16
    %v9100 = vpop.permute.xlu0 %9099
    %vm9101 = vcmask 195712
    %s9102 = scalar_lea.vmem [#allocation0], 72
    %9103 = vst.msk [vmem:[%s9102] sm:$0xff] %vm9101, %v9100
    %s9104 = scalar_lea.vmem [#allocation1], 1666
    %s9105 = smov 3
    %v9106 = vld [vmem:[%s9104] ss:$16 sm:%s9105]
    %s9107 = scalar_lea.vmem [#allocation1], 1666
    %s9108 = smov 12
    %v9109 = vld [vmem:[%s9107] ss:$16 sm:%s9108]
    %vm9110 = vcmask 1043458
    %v9111 = vsel %vm9110, %v9109, %v9106
    %s9112 = scalar_lea.vmem [#allocation1], 1666
    %s9113 = smov 48
    %v9114 = vld [vmem:[%s9112] ss:$16 sm:%s9113]
    %vm9115 = vcmask 1045508
    %v9116 = vsel %vm9115, %v9114, %v9111
    %s9117 = scalar_lea.vmem [#allocation1], 1666
    %s9118 = smov 192
    %v9119 = vld [vmem:[%s9117] ss:$16 sm:%s9118]
    %vm9120 = vcmask 1047558
    %v9121 = vsel %vm9120, %v9119, %v9116
    %9122 = vrot.lane.b32.xlu0 %v9121, 16
    %v9123 = vpop.permute.xlu0 %9122
    %vm9124 = vcmask 195712
    %s9125 = scalar_lea.vmem [#allocation0], 104
    %9126 = vst.msk [vmem:[%s9125] sm:$0xff] %vm9124, %v9123
    %s9127 = scalar_lea.vmem [#allocation1], 258
    %s9128 = smov 3
    %v9129 = vld [vmem:[%s9127] ss:$16 sm:%s9128]
    %s9130 = scalar_lea.vmem [#allocation1], 258
    %s9131 = smov 12
    %v9132 = vld [vmem:[%s9130] ss:$16 sm:%s9131]
    %vm9133 = vcmask 1043458
    %v9134 = vsel %vm9133, %v9132, %v9129
    %s9135 = scalar_lea.vmem [#allocation1], 258
    %s9136 = smov 48
    %v9137 = vld [vmem:[%s9135] ss:$16 sm:%s9136]
    %vm9138 = vcmask 1045508
    %v9139 = vsel %vm9138, %v9137, %v9134
    %s9140 = scalar_lea.vmem [#allocation1], 258
    %s9141 = smov 192
    %v9142 = vld [vmem:[%s9140] ss:$16 sm:%s9141]
    %vm9143 = vcmask 1047558
    %v9144 = vsel %vm9143, %v9142, %v9139
    %9145 = vrot.lane.b32.xlu0 %v9144, 16
    %v9146 = vpop.permute.xlu0 %9145
    %vm9147 = vcmask 195712
    %s9148 = scalar_lea.vmem [#allocation0], 16
    %9149 = vst.msk [vmem:[%s9148] sm:$0xff] %vm9147, %v9146
    %s9150 = scalar_lea.vmem [#allocation1], 770
    %s9151 = smov 3
    %v9152 = vld [vmem:[%s9150] ss:$16 sm:%s9151]
    %s9153 = scalar_lea.vmem [#allocation1], 770
    %s9154 = smov 12
    %v9155 = vld [vmem:[%s9153] ss:$16 sm:%s9154]
    %vm9156 = vcmask 1043458
    %v9157 = vsel %vm9156, %v9155, %v9152
    %s9158 = scalar_lea.vmem [#allocation1], 770
    %s9159 = smov 48
    %v9160 = vld [vmem:[%s9158] ss:$16 sm:%s9159]
    %vm9161 = vcmask 1045508
    %v9162 = vsel %vm9161, %v9160, %v9157
    %s9163 = scalar_lea.vmem [#allocation1], 770
    %s9164 = smov 192
    %v9165 = vld [vmem:[%s9163] ss:$16 sm:%s9164]
    %vm9166 = vcmask 1047558
    %v9167 = vsel %vm9166, %v9165, %v9162
    %9168 = vrot.lane.b32.xlu0 %v9167, 16
    %v9169 = vpop.permute.xlu0 %9168
    %vm9170 = vcmask 195712
    %s9171 = scalar_lea.vmem [#allocation0], 48
    %9172 = vst.msk [vmem:[%s9171] sm:$0xff] %vm9170, %v9169
    %s9173 = scalar_lea.vmem [#allocation1], 1282
    %s9174 = smov 3
    %v9175 = vld [vmem:[%s9173] ss:$16 sm:%s9174]
    %s9176 = scalar_lea.vmem [#allocation1], 1282
    %s9177 = smov 12
    %v9178 = vld [vmem:[%s9176] ss:$16 sm:%s9177]
    %vm9179 = vcmask 1043458
    %v9180 = vsel %vm9179, %v9178, %v9175
    %s9181 = scalar_lea.vmem [#allocation1], 1282
    %s9182 = smov 48
    %v9183 = vld [vmem:[%s9181] ss:$16 sm:%s9182]
    %vm9184 = vcmask 1045508
    %v9185 = vsel %vm9184, %v9183, %v9180
    %s9186 = scalar_lea.vmem [#allocation1], 1282
    %s9187 = smov 192
    %v9188 = vld [vmem:[%s9186] ss:$16 sm:%s9187]
    %vm9189 = vcmask 1047558
    %v9190 = vsel %vm9189, %v9188, %v9185
    %9191 = vrot.lane.b32.xlu0 %v9190, 16
    %v9192 = vpop.permute.xlu0 %9191
    %vm9193 = vcmask 195712
    %s9194 = scalar_lea.vmem [#allocation0], 80
    %9195 = vst.msk [vmem:[%s9194] sm:$0xff] %vm9193, %v9192
    %s9196 = scalar_lea.vmem [#allocation1], 1794
    %s9197 = smov 3
    %v9198 = vld [vmem:[%s9196] ss:$16 sm:%s9197]
    %s9199 = scalar_lea.vmem [#allocation1], 1794
    %s9200 = smov 12
    %v9201 = vld [vmem:[%s9199] ss:$16 sm:%s9200]
    %vm9202 = vcmask 1043458
    %v9203 = vsel %vm9202, %v9201, %v9198
    %s9204 = scalar_lea.vmem [#allocation1], 1794
    %s9205 = smov 48
    %v9206 = vld [vmem:[%s9204] ss:$16 sm:%s9205]
    %vm9207 = vcmask 1045508
    %v9208 = vsel %vm9207, %v9206, %v9203
    %s9209 = scalar_lea.vmem [#allocation1], 1794
    %s9210 = smov 192
    %v9211 = vld [vmem:[%s9209] ss:$16 sm:%s9210]
    %vm9212 = vcmask 1047558
    %v9213 = vsel %vm9212, %v9211, %v9208
    %9214 = vrot.lane.b32.xlu0 %v9213, 16
    %v9215 = vpop.permute.xlu0 %9214
    %vm9216 = vcmask 195712
    %s9217 = scalar_lea.vmem [#allocation0], 112
    %9218 = vst.msk [vmem:[%s9217] sm:$0xff] %vm9216, %v9215
    %s9219 = scalar_lea.vmem [#allocation1], 386
    %s9220 = smov 3
    %v9221 = vld [vmem:[%s9219] ss:$16 sm:%s9220]
    %s9222 = scalar_lea.vmem [#allocation1], 386
    %s9223 = smov 12
    %v9224 = vld [vmem:[%s9222] ss:$16 sm:%s9223]
    %vm9225 = vcmask 1043458
    %v9226 = vsel %vm9225, %v9224, %v9221
    %s9227 = scalar_lea.vmem [#allocation1], 386
    %s9228 = smov 48
    %v9229 = vld [vmem:[%s9227] ss:$16 sm:%s9228]
    %vm9230 = vcmask 1045508
    %v9231 = vsel %vm9230, %v9229, %v9226
    %s9232 = scalar_lea.vmem [#allocation1], 386
    %s9233 = smov 192
    %v9234 = vld [vmem:[%s9232] ss:$16 sm:%s9233]
    %vm9235 = vcmask 1047558
    %v9236 = vsel %vm9235, %v9234, %v9231
    %9237 = vrot.lane.b32.xlu0 %v9236, 16
    %v9238 = vpop.permute.xlu0 %9237
    %vm9239 = vcmask 195712
    %s9240 = scalar_lea.vmem [#allocation0], 24
    %9241 = vst.msk [vmem:[%s9240] sm:$0xff] %vm9239, %v9238
    %s9242 = scalar_lea.vmem [#allocation1], 898
    %s9243 = smov 3
    %v9244 = vld [vmem:[%s9242] ss:$16 sm:%s9243]
    %s9245 = scalar_lea.vmem [#allocation1], 898
    %s9246 = smov 12
    %v9247 = vld [vmem:[%s9245] ss:$16 sm:%s9246]
    %vm9248 = vcmask 1043458
    %v9249 = vsel %vm9248, %v9247, %v9244
    %s9250 = scalar_lea.vmem [#allocation1], 898
    %s9251 = smov 48
    %v9252 = vld [vmem:[%s9250] ss:$16 sm:%s9251]
    %vm9253 = vcmask 1045508
    %v9254 = vsel %vm9253, %v9252, %v9249
    %s9255 = scalar_lea.vmem [#allocation1], 898
    %s9256 = smov 192
    %v9257 = vld [vmem:[%s9255] ss:$16 sm:%s9256]
    %vm9258 = vcmask 1047558
    %v9259 = vsel %vm9258, %v9257, %v9254
    %9260 = vrot.lane.b32.xlu0 %v9259, 16
    %v9261 = vpop.permute.xlu0 %9260
    %vm9262 = vcmask 195712
    %s9263 = scalar_lea.vmem [#allocation0], 56
    %9264 = vst.msk [vmem:[%s9263] sm:$0xff] %vm9262, %v9261
    %s9265 = scalar_lea.vmem [#allocation1], 1410
    %s9266 = smov 3
    %v9267 = vld [vmem:[%s9265] ss:$16 sm:%s9266]
    %s9268 = scalar_lea.vmem [#allocation1], 1410
    %s9269 = smov 12
    %v9270 = vld [vmem:[%s9268] ss:$16 sm:%s9269]
    %vm9271 = vcmask 1043458
    %v9272 = vsel %vm9271, %v9270, %v9267
    %s9273 = scalar_lea.vmem [#allocation1], 1410
    %s9274 = smov 48
    %v9275 = vld [vmem:[%s9273] ss:$16 sm:%s9274]
    %vm9276 = vcmask 1045508
    %v9277 = vsel %vm9276, %v9275, %v9272
    %s9278 = scalar_lea.vmem [#allocation1], 1410
    %s9279 = smov 192
    %v9280 = vld [vmem:[%s9278] ss:$16 sm:%s9279]
    %vm9281 = vcmask 1047558
    %v9282 = vsel %vm9281, %v9280, %v9277
    %9283 = vrot.lane.b32.xlu0 %v9282, 16
    %v9284 = vpop.permute.xlu0 %9283
    %vm9285 = vcmask 195712
    %s9286 = scalar_lea.vmem [#allocation0], 88
    %9287 = vst.msk [vmem:[%s9286] sm:$0xff] %vm9285, %v9284
    %s9288 = scalar_lea.vmem [#allocation1], 1922
    %s9289 = smov 3
    %v9290 = vld [vmem:[%s9288] ss:$16 sm:%s9289]
    %s9291 = scalar_lea.vmem [#allocation1], 1922
    %s9292 = smov 12
    %v9293 = vld [vmem:[%s9291] ss:$16 sm:%s9292]
    %vm9294 = vcmask 1043458
    %v9295 = vsel %vm9294, %v9293, %v9290
    %s9296 = scalar_lea.vmem [#allocation1], 1922
    %s9297 = smov 48
    %v9298 = vld [vmem:[%s9296] ss:$16 sm:%s9297]
    %vm9299 = vcmask 1045508
    %v9300 = vsel %vm9299, %v9298, %v9295
    %s9301 = scalar_lea.vmem [#allocation1], 1922
    %s9302 = smov 192
    %v9303 = vld [vmem:[%s9301] ss:$16 sm:%s9302]
    %vm9304 = vcmask 1047558
    %v9305 = vsel %vm9304, %v9303, %v9300
    %9306 = vrot.lane.b32.xlu0 %v9305, 16
    %v9307 = vpop.permute.xlu0 %9306
    %vm9308 = vcmask 195712
    %s9309 = scalar_lea.vmem [#allocation0], 120
    %9310 = vst.msk [vmem:[%s9309] sm:$0xff] %vm9308, %v9307
    %s9311 = scalar_lea.vmem [#allocation1], 1
    %s9312 = smov 3
    %v9313 = vld [vmem:[%s9311] ss:$16 sm:%s9312]
    %s9314 = scalar_lea.vmem [#allocation1], 1
    %s9315 = smov 12
    %v9316 = vld [vmem:[%s9314] ss:$16 sm:%s9315]
    %vm9317 = vcmask 1043458
    %v9318 = vsel %vm9317, %v9316, %v9313
    %s9319 = scalar_lea.vmem [#allocation1], 1
    %s9320 = smov 48
    %v9321 = vld [vmem:[%s9319] ss:$16 sm:%s9320]
    %vm9322 = vcmask 1045508
    %v9323 = vsel %vm9322, %v9321, %v9318
    %s9324 = scalar_lea.vmem [#allocation1], 1
    %s9325 = smov 192
    %v9326 = vld [vmem:[%s9324] ss:$16 sm:%s9325]
    %vm9327 = vcmask 1047558
    %v9328 = vsel %vm9327, %v9326, %v9323
    %9329 = vrot.lane.b32.xlu0 %v9328, 8
    %v9330 = vpop.permute.xlu0 %9329
    %vm9331 = vcmask 130112
    %9332 = vst.msk [vmem:[#allocation0] sm:$0xff] %vm9331, %v9330
    %s9333 = scalar_lea.vmem [#allocation1], 513
    %s9334 = smov 3
    %v9335 = vld [vmem:[%s9333] ss:$16 sm:%s9334]
    %s9336 = scalar_lea.vmem [#allocation1], 513
    %s9337 = smov 12
    %v9338 = vld [vmem:[%s9336] ss:$16 sm:%s9337]
    %vm9339 = vcmask 1043458
    %v9340 = vsel %vm9339, %v9338, %v9335
    %s9341 = scalar_lea.vmem [#allocation1], 513
    %s9342 = smov 48
    %v9343 = vld [vmem:[%s9341] ss:$16 sm:%s9342]
    %vm9344 = vcmask 1045508
    %v9345 = vsel %vm9344, %v9343, %v9340
    %s9346 = scalar_lea.vmem [#allocation1], 513
    %s9347 = smov 192
    %v9348 = vld [vmem:[%s9346] ss:$16 sm:%s9347]
    %vm9349 = vcmask 1047558
    %v9350 = vsel %vm9349, %v9348, %v9345
    %9351 = vrot.lane.b32.xlu0 %v9350, 8
    %v9352 = vpop.permute.xlu0 %9351
    %vm9353 = vcmask 130112
    %s9354 = scalar_lea.vmem [#allocation0], 32
    %9355 = vst.msk [vmem:[%s9354] sm:$0xff] %vm9353, %v9352
    %s9356 = scalar_lea.vmem [#allocation1], 1025
    %s9357 = smov 3
    %v9358 = vld [vmem:[%s9356] ss:$16 sm:%s9357]
    %s9359 = scalar_lea.vmem [#allocation1], 1025
    %s9360 = smov 12
    %v9361 = vld [vmem:[%s9359] ss:$16 sm:%s9360]
    %vm9362 = vcmask 1043458
    %v9363 = vsel %vm9362, %v9361, %v9358
    %s9364 = scalar_lea.vmem [#allocation1], 1025
    %s9365 = smov 48
    %v9366 = vld [vmem:[%s9364] ss:$16 sm:%s9365]
    %vm9367 = vcmask 1045508
    %v9368 = vsel %vm9367, %v9366, %v9363
    %s9369 = scalar_lea.vmem [#allocation1], 1025
    %s9370 = smov 192
    %v9371 = vld [vmem:[%s9369] ss:$16 sm:%s9370]
    %vm9372 = vcmask 1047558
    %v9373 = vsel %vm9372, %v9371, %v9368
    %9374 = vrot.lane.b32.xlu0 %v9373, 8
    %v9375 = vpop.permute.xlu0 %9374
    %vm9376 = vcmask 130112
    %s9377 = scalar_lea.vmem [#allocation0], 64
    %9378 = vst.msk [vmem:[%s9377] sm:$0xff] %vm9376, %v9375
    %s9379 = scalar_lea.vmem [#allocation1], 1537
    %s9380 = smov 3
    %v9381 = vld [vmem:[%s9379] ss:$16 sm:%s9380]
    %s9382 = scalar_lea.vmem [#allocation1], 1537
    %s9383 = smov 12
    %v9384 = vld [vmem:[%s9382] ss:$16 sm:%s9383]
    %vm9385 = vcmask 1043458
    %v9386 = vsel %vm9385, %v9384, %v9381
    %s9387 = scalar_lea.vmem [#allocation1], 1537
    %s9388 = smov 48
    %v9389 = vld [vmem:[%s9387] ss:$16 sm:%s9388]
    %vm9390 = vcmask 1045508
    %v9391 = vsel %vm9390, %v9389, %v9386
    %s9392 = scalar_lea.vmem [#allocation1], 1537
    %s9393 = smov 192
    %v9394 = vld [vmem:[%s9392] ss:$16 sm:%s9393]
    %vm9395 = vcmask 1047558
    %v9396 = vsel %vm9395, %v9394, %v9391
    %9397 = vrot.lane.b32.xlu0 %v9396, 8
    %v9398 = vpop.permute.xlu0 %9397
    %vm9399 = vcmask 130112
    %s9400 = scalar_lea.vmem [#allocation0], 96
    %9401 = vst.msk [vmem:[%s9400] sm:$0xff] %vm9399, %v9398
    %s9402 = scalar_lea.vmem [#allocation1], 129
    %s9403 = smov 3
    %v9404 = vld [vmem:[%s9402] ss:$16 sm:%s9403]
    %s9405 = scalar_lea.vmem [#allocation1], 129
    %s9406 = smov 12
    %v9407 = vld [vmem:[%s9405] ss:$16 sm:%s9406]
    %vm9408 = vcmask 1043458
    %v9409 = vsel %vm9408, %v9407, %v9404
    %s9410 = scalar_lea.vmem [#allocation1], 129
    %s9411 = smov 48
    %v9412 = vld [vmem:[%s9410] ss:$16 sm:%s9411]
    %vm9413 = vcmask 1045508
    %v9414 = vsel %vm9413, %v9412, %v9409
    %s9415 = scalar_lea.vmem [#allocation1], 129
    %s9416 = smov 192
    %v9417 = vld [vmem:[%s9415] ss:$16 sm:%s9416]
    %vm9418 = vcmask 1047558
    %v9419 = vsel %vm9418, %v9417, %v9414
    %9420 = vrot.lane.b32.xlu0 %v9419, 8
    %v9421 = vpop.permute.xlu0 %9420
    %vm9422 = vcmask 130112
    %s9423 = scalar_lea.vmem [#allocation0], 8
    %9424 = vst.msk [vmem:[%s9423] sm:$0xff] %vm9422, %v9421
    %s9425 = scalar_lea.vmem [#allocation1], 641
    %s9426 = smov 3
    %v9427 = vld [vmem:[%s9425] ss:$16 sm:%s9426]
    %s9428 = scalar_lea.vmem [#allocation1], 641
    %s9429 = smov 12
    %v9430 = vld [vmem:[%s9428] ss:$16 sm:%s9429]
    %vm9431 = vcmask 1043458
    %v9432 = vsel %vm9431, %v9430, %v9427
    %s9433 = scalar_lea.vmem [#allocation1], 641
    %s9434 = smov 48
    %v9435 = vld [vmem:[%s9433] ss:$16 sm:%s9434]
    %vm9436 = vcmask 1045508
    %v9437 = vsel %vm9436, %v9435, %v9432
    %s9438 = scalar_lea.vmem [#allocation1], 641
    %s9439 = smov 192
    %v9440 = vld [vmem:[%s9438] ss:$16 sm:%s9439]
    %vm9441 = vcmask 1047558
    %v9442 = vsel %vm9441, %v9440, %v9437
    %9443 = vrot.lane.b32.xlu0 %v9442, 8
    %v9444 = vpop.permute.xlu0 %9443
    %vm9445 = vcmask 130112
    %s9446 = scalar_lea.vmem [#allocation0], 40
    %9447 = vst.msk [vmem:[%s9446] sm:$0xff] %vm9445, %v9444
    %s9448 = scalar_lea.vmem [#allocation1], 1153
    %s9449 = smov 3
    %v9450 = vld [vmem:[%s9448] ss:$16 sm:%s9449]
    %s9451 = scalar_lea.vmem [#allocation1], 1153
    %s9452 = smov 12
    %v9453 = vld [vmem:[%s9451] ss:$16 sm:%s9452]
    %vm9454 = vcmask 1043458
    %v9455 = vsel %vm9454, %v9453, %v9450
    %s9456 = scalar_lea.vmem [#allocation1], 1153
    %s9457 = smov 48
    %v9458 = vld [vmem:[%s9456] ss:$16 sm:%s9457]
    %vm9459 = vcmask 1045508
    %v9460 = vsel %vm9459, %v9458, %v9455
    %s9461 = scalar_lea.vmem [#allocation1], 1153
    %s9462 = smov 192
    %v9463 = vld [vmem:[%s9461] ss:$16 sm:%s9462]
    %vm9464 = vcmask 1047558
    %v9465 = vsel %vm9464, %v9463, %v9460
    %9466 = vrot.lane.b32.xlu0 %v9465, 8
    %v9467 = vpop.permute.xlu0 %9466
    %vm9468 = vcmask 130112
    %s9469 = scalar_lea.vmem [#allocation0], 72
    %9470 = vst.msk [vmem:[%s9469] sm:$0xff] %vm9468, %v9467
    %s9471 = scalar_lea.vmem [#allocation1], 1665
    %s9472 = smov 3
    %v9473 = vld [vmem:[%s9471] ss:$16 sm:%s9472]
    %s9474 = scalar_lea.vmem [#allocation1], 1665
    %s9475 = smov 12
    %v9476 = vld [vmem:[%s9474] ss:$16 sm:%s9475]
    %vm9477 = vcmask 1043458
    %v9478 = vsel %vm9477, %v9476, %v9473
    %s9479 = scalar_lea.vmem [#allocation1], 1665
    %s9480 = smov 48
    %v9481 = vld [vmem:[%s9479] ss:$16 sm:%s9480]
    %vm9482 = vcmask 1045508
    %v9483 = vsel %vm9482, %v9481, %v9478
    %s9484 = scalar_lea.vmem [#allocation1], 1665
    %s9485 = smov 192
    %v9486 = vld [vmem:[%s9484] ss:$16 sm:%s9485]
    %vm9487 = vcmask 1047558
    %v9488 = vsel %vm9487, %v9486, %v9483
    %9489 = vrot.lane.b32.xlu0 %v9488, 8
    %v9490 = vpop.permute.xlu0 %9489
    %vm9491 = vcmask 130112
    %s9492 = scalar_lea.vmem [#allocation0], 104
    %9493 = vst.msk [vmem:[%s9492] sm:$0xff] %vm9491, %v9490
    %s9494 = scalar_lea.vmem [#allocation1], 257
    %s9495 = smov 3
    %v9496 = vld [vmem:[%s9494] ss:$16 sm:%s9495]
    %s9497 = scalar_lea.vmem [#allocation1], 257
    %s9498 = smov 12
    %v9499 = vld [vmem:[%s9497] ss:$16 sm:%s9498]
    %vm9500 = vcmask 1043458
    %v9501 = vsel %vm9500, %v9499, %v9496
    %s9502 = scalar_lea.vmem [#allocation1], 257
    %s9503 = smov 48
    %v9504 = vld [vmem:[%s9502] ss:$16 sm:%s9503]
    %vm9505 = vcmask 1045508
    %v9506 = vsel %vm9505, %v9504, %v9501
    %s9507 = scalar_lea.vmem [#allocation1], 257
    %s9508 = smov 192
    %v9509 = vld [vmem:[%s9507] ss:$16 sm:%s9508]
    %vm9510 = vcmask 1047558
    %v9511 = vsel %vm9510, %v9509, %v9506
    %9512 = vrot.lane.b32.xlu0 %v9511, 8
    %v9513 = vpop.permute.xlu0 %9512
    %vm9514 = vcmask 130112
    %s9515 = scalar_lea.vmem [#allocation0], 16
    %9516 = vst.msk [vmem:[%s9515] sm:$0xff] %vm9514, %v9513
    %s9517 = scalar_lea.vmem [#allocation1], 769
    %s9518 = smov 3
    %v9519 = vld [vmem:[%s9517] ss:$16 sm:%s9518]
    %s9520 = scalar_lea.vmem [#allocation1], 769
    %s9521 = smov 12
    %v9522 = vld [vmem:[%s9520] ss:$16 sm:%s9521]
    %vm9523 = vcmask 1043458
    %v9524 = vsel %vm9523, %v9522, %v9519
    %s9525 = scalar_lea.vmem [#allocation1], 769
    %s9526 = smov 48
    %v9527 = vld [vmem:[%s9525] ss:$16 sm:%s9526]
    %vm9528 = vcmask 1045508
    %v9529 = vsel %vm9528, %v9527, %v9524
    %s9530 = scalar_lea.vmem [#allocation1], 769
    %s9531 = smov 192
    %v9532 = vld [vmem:[%s9530] ss:$16 sm:%s9531]
    %vm9533 = vcmask 1047558
    %v9534 = vsel %vm9533, %v9532, %v9529
    %9535 = vrot.lane.b32.xlu0 %v9534, 8
    %v9536 = vpop.permute.xlu0 %9535
    %vm9537 = vcmask 130112
    %s9538 = scalar_lea.vmem [#allocation0], 48
    %9539 = vst.msk [vmem:[%s9538] sm:$0xff] %vm9537, %v9536
    %s9540 = scalar_lea.vmem [#allocation1], 1281
    %s9541 = smov 3
    %v9542 = vld [vmem:[%s9540] ss:$16 sm:%s9541]
    %s9543 = scalar_lea.vmem [#allocation1], 1281
    %s9544 = smov 12
    %v9545 = vld [vmem:[%s9543] ss:$16 sm:%s9544]
    %vm9546 = vcmask 1043458
    %v9547 = vsel %vm9546, %v9545, %v9542
    %s9548 = scalar_lea.vmem [#allocation1], 1281
    %s9549 = smov 48
    %v9550 = vld [vmem:[%s9548] ss:$16 sm:%s9549]
    %vm9551 = vcmask 1045508
    %v9552 = vsel %vm9551, %v9550, %v9547
    %s9553 = scalar_lea.vmem [#allocation1], 1281
    %s9554 = smov 192
    %v9555 = vld [vmem:[%s9553] ss:$16 sm:%s9554]
    %vm9556 = vcmask 1047558
    %v9557 = vsel %vm9556, %v9555, %v9552
    %9558 = vrot.lane.b32.xlu0 %v9557, 8
    %v9559 = vpop.permute.xlu0 %9558
    %vm9560 = vcmask 130112
    %s9561 = scalar_lea.vmem [#allocation0], 80
    %9562 = vst.msk [vmem:[%s9561] sm:$0xff] %vm9560, %v9559
    %s9563 = scalar_lea.vmem [#allocation1], 1793
    %s9564 = smov 3
    %v9565 = vld [vmem:[%s9563] ss:$16 sm:%s9564]
    %s9566 = scalar_lea.vmem [#allocation1], 1793
    %s9567 = smov 12
    %v9568 = vld [vmem:[%s9566] ss:$16 sm:%s9567]
    %vm9569 = vcmask 1043458
    %v9570 = vsel %vm9569, %v9568, %v9565
    %s9571 = scalar_lea.vmem [#allocation1], 1793
    %s9572 = smov 48
    %v9573 = vld [vmem:[%s9571] ss:$16 sm:%s9572]
    %vm9574 = vcmask 1045508
    %v9575 = vsel %vm9574, %v9573, %v9570
    %s9576 = scalar_lea.vmem [#allocation1], 1793
    %s9577 = smov 192
    %v9578 = vld [vmem:[%s9576] ss:$16 sm:%s9577]
    %vm9579 = vcmask 1047558
    %v9580 = vsel %vm9579, %v9578, %v9575
    %9581 = vrot.lane.b32.xlu0 %v9580, 8
    %v9582 = vpop.permute.xlu0 %9581
    %vm9583 = vcmask 130112
    %s9584 = scalar_lea.vmem [#allocation0], 112
    %9585 = vst.msk [vmem:[%s9584] sm:$0xff] %vm9583, %v9582
    %s9586 = scalar_lea.vmem [#allocation1], 385
    %s9587 = smov 3
    %v9588 = vld [vmem:[%s9586] ss:$16 sm:%s9587]
    %s9589 = scalar_lea.vmem [#allocation1], 385
    %s9590 = smov 12
    %v9591 = vld [vmem:[%s9589] ss:$16 sm:%s9590]
    %vm9592 = vcmask 1043458
    %v9593 = vsel %vm9592, %v9591, %v9588
    %s9594 = scalar_lea.vmem [#allocation1], 385
    %s9595 = smov 48
    %v9596 = vld [vmem:[%s9594] ss:$16 sm:%s9595]
    %vm9597 = vcmask 1045508
    %v9598 = vsel %vm9597, %v9596, %v9593
    %s9599 = scalar_lea.vmem [#allocation1], 385
    %s9600 = smov 192
    %v9601 = vld [vmem:[%s9599] ss:$16 sm:%s9600]
    %vm9602 = vcmask 1047558
    %v9603 = vsel %vm9602, %v9601, %v9598
    %9604 = vrot.lane.b32.xlu0 %v9603, 8
    %v9605 = vpop.permute.xlu0 %9604
    %vm9606 = vcmask 130112
    %s9607 = scalar_lea.vmem [#allocation0], 24
    %9608 = vst.msk [vmem:[%s9607] sm:$0xff] %vm9606, %v9605
    %s9609 = scalar_lea.vmem [#allocation1], 897
    %s9610 = smov 3
    %v9611 = vld [vmem:[%s9609] ss:$16 sm:%s9610]
    %s9612 = scalar_lea.vmem [#allocation1], 897
    %s9613 = smov 12
    %v9614 = vld [vmem:[%s9612] ss:$16 sm:%s9613]
    %vm9615 = vcmask 1043458
    %v9616 = vsel %vm9615, %v9614, %v9611
    %s9617 = scalar_lea.vmem [#allocation1], 897
    %s9618 = smov 48
    %v9619 = vld [vmem:[%s9617] ss:$16 sm:%s9618]
    %vm9620 = vcmask 1045508
    %v9621 = vsel %vm9620, %v9619, %v9616
    %s9622 = scalar_lea.vmem [#allocation1], 897
    %s9623 = smov 192
    %v9624 = vld [vmem:[%s9622] ss:$16 sm:%s9623]
    %vm9625 = vcmask 1047558
    %v9626 = vsel %vm9625, %v9624, %v9621
    %9627 = vrot.lane.b32.xlu0 %v9626, 8
    %v9628 = vpop.permute.xlu0 %9627
    %vm9629 = vcmask 130112
    %s9630 = scalar_lea.vmem [#allocation0], 56
    %9631 = vst.msk [vmem:[%s9630] sm:$0xff] %vm9629, %v9628
    %s9632 = scalar_lea.vmem [#allocation1], 1409
    %s9633 = smov 3
    %v9634 = vld [vmem:[%s9632] ss:$16 sm:%s9633]
    %s9635 = scalar_lea.vmem [#allocation1], 1409
    %s9636 = smov 12
    %v9637 = vld [vmem:[%s9635] ss:$16 sm:%s9636]
    %vm9638 = vcmask 1043458
    %v9639 = vsel %vm9638, %v9637, %v9634
    %s9640 = scalar_lea.vmem [#allocation1], 1409
    %s9641 = smov 48
    %v9642 = vld [vmem:[%s9640] ss:$16 sm:%s9641]
    %vm9643 = vcmask 1045508
    %v9644 = vsel %vm9643, %v9642, %v9639
    %s9645 = scalar_lea.vmem [#allocation1], 1409
    %s9646 = smov 192
    %v9647 = vld [vmem:[%s9645] ss:$16 sm:%s9646]
    %vm9648 = vcmask 1047558
    %v9649 = vsel %vm9648, %v9647, %v9644
    %9650 = vrot.lane.b32.xlu0 %v9649, 8
    %v9651 = vpop.permute.xlu0 %9650
    %vm9652 = vcmask 130112
    %s9653 = scalar_lea.vmem [#allocation0], 88
    %9654 = vst.msk [vmem:[%s9653] sm:$0xff] %vm9652, %v9651
    %s9655 = scalar_lea.vmem [#allocation1], 1921
    %s9656 = smov 3
    %v9657 = vld [vmem:[%s9655] ss:$16 sm:%s9656]
    %s9658 = scalar_lea.vmem [#allocation1], 1921
    %s9659 = smov 12
    %v9660 = vld [vmem:[%s9658] ss:$16 sm:%s9659]
    %vm9661 = vcmask 1043458
    %v9662 = vsel %vm9661, %v9660, %v9657
    %s9663 = scalar_lea.vmem [#allocation1], 1921
    %s9664 = smov 48
    %v9665 = vld [vmem:[%s9663] ss:$16 sm:%s9664]
    %vm9666 = vcmask 1045508
    %v9667 = vsel %vm9666, %v9665, %v9662
    %s9668 = scalar_lea.vmem [#allocation1], 1921
    %s9669 = smov 192
    %v9670 = vld [vmem:[%s9668] ss:$16 sm:%s9669]
    %vm9671 = vcmask 1047558
    %v9672 = vsel %vm9671, %v9670, %v9667
    %9673 = vrot.lane.b32.xlu0 %v9672, 8
    %v9674 = vpop.permute.xlu0 %9673
    %vm9675 = vcmask 130112
    %s9676 = scalar_lea.vmem [#allocation0], 120
    %9677 = vst.msk [vmem:[%s9676] sm:$0xff] %vm9675, %v9674
    %s9679 = ssub.s32 256, 1
    %v9680 = vld [vmem:[#allocation0] sm:%s9679]
    %v9681 = vpack.c.bf16 0.0, %v9680
    %s9683 = ssub.s32 16, 1
    %9684 = vst [vmem:[%s1] sm:%s9683] %v9681
    %s9685 = scalar_lea.vmem [#allocation0], 8
    %v9686 = vld [vmem:[%s9685] sm:%s9679]
    %v9687 = vpack.c.bf16 0.0, %v9686
    %s9689 = ssub.s32 16, 1
    %s9690 = scalar_lea.vmem %s1, 4
    %9691 = vst [vmem:[%s9690] sm:%s9689] %v9687
    %s9692 = scalar_lea.vmem [#allocation0], 16
    %v9693 = vld [vmem:[%s9692] sm:%s9679]
    %v9694 = vpack.c.bf16 0.0, %v9693
    %s9696 = ssub.s32 16, 1
    %s9697 = scalar_lea.vmem %s1, 8
    %9698 = vst [vmem:[%s9697] sm:%s9696] %v9694
    %s9699 = scalar_lea.vmem [#allocation0], 24
    %v9700 = vld [vmem:[%s9699] sm:%s9679]
    %v9701 = vpack.c.bf16 0.0, %v9700
    %s9703 = ssub.s32 16, 1
    %s9704 = scalar_lea.vmem %s1, 12
    %9705 = vst [vmem:[%s9704] sm:%s9703] %v9701
    %s9706 = scalar_lea.vmem [#allocation0], 32
    %v9707 = vld [vmem:[%s9706] sm:%s9679]
    %v9708 = vpack.c.bf16 0.0, %v9707
    %s9710 = ssub.s32 16, 1
    %s9711 = scalar_lea.vmem %s1, 16
    %9712 = vst [vmem:[%s9711] sm:%s9710] %v9708
    %s9713 = scalar_lea.vmem [#allocation0], 40
    %v9714 = vld [vmem:[%s9713] sm:%s9679]
    %v9715 = vpack.c.bf16 0.0, %v9714
    %s9717 = ssub.s32 16, 1
    %s9718 = scalar_lea.vmem %s1, 20
    %9719 = vst [vmem:[%s9718] sm:%s9717] %v9715
    %s9720 = scalar_lea.vmem [#allocation0], 48
    %v9721 = vld [vmem:[%s9720] sm:%s9679]
    %v9722 = vpack.c.bf16 0.0, %v9721
    %s9724 = ssub.s32 16, 1
    %s9725 = scalar_lea.vmem %s1, 24
    %9726 = vst [vmem:[%s9725] sm:%s9724] %v9722
    %s9727 = scalar_lea.vmem [#allocation0], 56
    %v9728 = vld [vmem:[%s9727] sm:%s9679]
    %v9729 = vpack.c.bf16 0.0, %v9728
    %s9731 = ssub.s32 16, 1
    %s9732 = scalar_lea.vmem %s1, 28
    %9733 = vst [vmem:[%s9732] sm:%s9731] %v9729
    %s9734 = scalar_lea.vmem [#allocation0], 64
    %v9735 = vld [vmem:[%s9734] sm:%s9679]
    %v9736 = vpack.c.bf16 0.0, %v9735
    %s9738 = ssub.s32 16, 1
    %s9739 = scalar_lea.vmem %s1, 32
    %9740 = vst [vmem:[%s9739] sm:%s9738] %v9736
    %s9741 = scalar_lea.vmem [#allocation0], 72
    %v9742 = vld [vmem:[%s9741] sm:%s9679]
    %v9743 = vpack.c.bf16 0.0, %v9742
    %s9745 = ssub.s32 16, 1
    %s9746 = scalar_lea.vmem %s1, 36
    %9747 = vst [vmem:[%s9746] sm:%s9745] %v9743
    %s9748 = scalar_lea.vmem [#allocation0], 80
    %v9749 = vld [vmem:[%s9748] sm:%s9679]
    %v9750 = vpack.c.bf16 0.0, %v9749
    %s9752 = ssub.s32 16, 1
    %s9753 = scalar_lea.vmem %s1, 40
    %9754 = vst [vmem:[%s9753] sm:%s9752] %v9750
    %s9755 = scalar_lea.vmem [#allocation0], 88
    %v9756 = vld [vmem:[%s9755] sm:%s9679]
    %v9757 = vpack.c.bf16 0.0, %v9756
    %s9759 = ssub.s32 16, 1
    %s9760 = scalar_lea.vmem %s1, 44
    %9761 = vst [vmem:[%s9760] sm:%s9759] %v9757
    %s9762 = scalar_lea.vmem [#allocation0], 96
    %v9763 = vld [vmem:[%s9762] sm:%s9679]
    %v9764 = vpack.c.bf16 0.0, %v9763
    %s9766 = ssub.s32 16, 1
    %s9767 = scalar_lea.vmem %s1, 48
    %9768 = vst [vmem:[%s9767] sm:%s9766] %v9764
    %s9769 = scalar_lea.vmem [#allocation0], 104
    %v9770 = vld [vmem:[%s9769] sm:%s9679]
    %v9771 = vpack.c.bf16 0.0, %v9770
    %s9773 = ssub.s32 16, 1
    %s9774 = scalar_lea.vmem %s1, 52
    %9775 = vst [vmem:[%s9774] sm:%s9773] %v9771
    %s9776 = scalar_lea.vmem [#allocation0], 112
    %v9777 = vld [vmem:[%s9776] sm:%s9679]
    %v9778 = vpack.c.bf16 0.0, %v9777
    %s9780 = ssub.s32 16, 1
    %s9781 = scalar_lea.vmem %s1, 56
    %9782 = vst [vmem:[%s9781] sm:%s9780] %v9778
    %s9783 = scalar_lea.vmem [#allocation0], 120
    %v9784 = vld [vmem:[%s9783] sm:%s9679]
    %v9785 = vpack.c.bf16 0.0, %v9784
    %s9787 = ssub.s32 16, 1
    %s9788 = scalar_lea.vmem %s1, 60
    %9789 = vst [vmem:[%s9788] sm:%s9787] %v9785

// kernel: tile.33
$region0: #{tile.33}
  #allocation0 [shape = 's32[1]{0}', space=sflag, size = 0x4, scoped, tag = 'scoped memory for tile.33']
  %s0 = inlined_call_operand.vmem [shape: f32[8], index: 0, kind: input, shape index: {}]
  %s1 = inlined_call_operand.vmem [shape: f32[16,8], index: 1, kind: output, shape index: {}]
  // Predicated region
  $region2: #{tile.33} parent=0 // pred_check
    _
  $region3: #{tile.33} parent=0 // pred_check_branch
    %3 = sbr.rel (0) target = $region5
  $region4: #{tile.33} parent=0 // pred_region
    _
  $region5: #{tile.33} parent=0 // pred_fallthru
    _
  %v4 = vld [vmem:[%s0] ss:$0 sm:$0xff]
  %5 = vst [vmem:[%s1] sm:$0xff] %v4
  %s6 = scalar_lea.vmem %s1, 8
  %7 = vst [vmem:[%s6] sm:$0xff] %v4

// kernel: leaky_residual_block.1
$region0: #{leaky_residual_block.1}
  #allocation0 [shape = 'u32[]', space=smem, size = 0x4, offset = 0x4, fixed_abs, tag = 'smem constant byte address 0x4 - core index']
  #allocation1 [shape = 'u32[72,128]{1,0:T(1,128)}', space=vmem, size = 0x9000, scoped, tag = 'internal scratch']
  %s0 = inlined_call_operand.vmem [shape: f32[2,16,128], index: 0, kind: input, shape index: {}]
  %s1 = inlined_call_operand.vmem [shape: bf16[128,384], index: 1, kind: input, shape index: {}]
  %s2 = inlined_call_operand.vmem [shape: bf16[128,384], index: 2, kind: input, shape index: {}]
  %s3 = inlined_call_operand.vmem [shape: f32[1,128], index: 3, kind: input, shape index: {}]
  %s4 = inlined_call_operand.vmem [shape: f32[1,128], index: 4, kind: input, shape index: {}]
  %s5 = inlined_call_operand.vmem [shape: f32[1,128], index: 5, kind: input, shape index: {}]
  %s6 = inlined_call_operand.vmem [shape: f32[1,128], index: 6, kind: input, shape index: {}]
  %s7 = inlined_call_operand.vmem [shape: f32[2,16,128], index: 7, kind: output, shape index: {0}]
  %s8 = inlined_call_operand.vmem [shape: f32[2,2,16,128], index: 8, kind: output, shape index: {1}]
  %9 = xla_tuple %s7, %s8
  %s10 = sld [smem:[#allocation0]]
  $region46: #{leaky_residual_block.1} parent=0
    _
  %s12 = ssub.s32 1, %s10
  %s13 = scalar_select 0, %s12, %s10
  // Predicated region
  $region2: #{leaky_residual_block.1} parent=0 // pred_check
    _
  $region3: #{leaky_residual_block.1} parent=0 // pred_check_branch
    %15 = sbr.rel (0) target = $region5
  $region4: #{leaky_residual_block.1} parent=0 // pred_region
    _
  $region5: #{leaky_residual_block.1} parent=0 // pred_fallthru
    _
  // Predicated region
  $region6: #{leaky_residual_block.1} parent=0 // pred_check
    _
  $region7: #{leaky_residual_block.1} parent=0 // pred_check_branch
    %17 = sbr.rel (0) target = $region9
  $region8: #{leaky_residual_block.1} parent=0 // pred_region
    _
  $region9: #{leaky_residual_block.1} parent=0 // pred_fallthru
    _
  // Predicated region
  $region10: #{leaky_residual_block.1} parent=0 // pred_check
    _
  $region11: #{leaky_residual_block.1} parent=0 // pred_check_branch
    %19 = sbr.rel (0) target = $region13
  $region12: #{leaky_residual_block.1} parent=0 // pred_region
    _
  $region13: #{leaky_residual_block.1} parent=0 // pred_fallthru
    _
  // Predicated region
  $region14: #{leaky_residual_block.1} parent=0 // pred_check
    _
  $region15: #{leaky_residual_block.1} parent=0 // pred_check_branch
    %21 = sbr.rel (0) target = $region17
  $region16: #{leaky_residual_block.1} parent=0 // pred_region
    _
  $region17: #{leaky_residual_block.1} parent=0 // pred_fallthru
    _
  // Predicated region
  $region18: #{leaky_residual_block.1} parent=0 // pred_check
    _
  $region19: #{leaky_residual_block.1} parent=0 // pred_check_branch
    %23 = sbr.rel (0) target = $region21
  $region20: #{leaky_residual_block.1} parent=0 // pred_region
    _
  $region21: #{leaky_residual_block.1} parent=0 // pred_fallthru
    _
  // Predicated region
  $region22: #{leaky_residual_block.1} parent=0 // pred_check
    _
  $region23: #{leaky_residual_block.1} parent=0 // pred_check_branch
    %25 = sbr.rel (0) target = $region25
  $region24: #{leaky_residual_block.1} parent=0 // pred_region
    _
  $region25: #{leaky_residual_block.1} parent=0 // pred_fallthru
    _
  // Predicated region
  $region26: #{leaky_residual_block.1} parent=0 // pred_check
    _
  $region27: #{leaky_residual_block.1} parent=0 // pred_check_branch
    %27 = sbr.rel (0) target = $region29
  $region28: #{leaky_residual_block.1} parent=0 // pred_region
    _
  $region29: #{leaky_residual_block.1} parent=0 // pred_fallthru
    _
  %v28 = vld [vmem:[%s0] sm:$0xff]
  %v29 = vld [vmem:[%s0 + $0x8] sm:$0xff]
  %v30 = vld [vmem:[%s0 + $0x10] sm:$0xff]
  %v31 = vld [vmem:[%s0 + $0x18] sm:$0xff]
  %v32 = vlaneseq
  %v33 = vshrl.u32 %v32, 7
  %v34 = vadd.s32 %v33, 8
  %v35 = vadd.s32 %v33, 16
  %v36 = vadd.s32 %v33, 24
  %vm37 = vcmp.lt.s32.totalorder %v33, 0
  %v38 = vsub.s32 0, %v33
  %v39 = vsel %vm37, %v38, %v33
  %v40 = vshrl.u32 %v39, 4
  %v41 = vand.u32 %v39, 15
  %v42 = vsub.s32 0, %v41
  %v43 = vsel %vm37, %v42, %v41
  %vm44 = vcmp.lt.s32.totalorder %v34, 0
  %v45 = vsub.s32 0, %v34
  %v46 = vsel %vm44, %v45, %v34
  %v47 = vshrl.u32 %v46, 4
  %v48 = vand.u32 %v46, 15
  %v49 = vsub.s32 0, %v48
  %v50 = vsel %vm44, %v49, %v48
  %vm51 = vcmp.lt.s32.totalorder %v35, 0
  %v52 = vsub.s32 0, %v35
  %v53 = vsel %vm51, %v52, %v35
  %v54 = vshrl.u32 %v53, 4
  %v55 = vand.u32 %v53, 15
  %v56 = vsub.s32 0, %v55
  %v57 = vsel %vm51, %v56, %v55
  %vm58 = vcmp.lt.s32.totalorder %v36, 0
  %v59 = vsub.s32 0, %v36
  %v60 = vsel %vm58, %v59, %v36
  %v61 = vshrl.u32 %v60, 4
  %v62 = vand.u32 %v60, 15
  %v63 = vsub.s32 0, %v62
  %v64 = vsel %vm58, %v63, %v62
  %vm65 = vcmp.ne.s32.totalorder %v43, 0
  %vm66 = vcmp.ne.s32.totalorder %v50, 0
  %vm67 = vcmp.ne.s32.totalorder %v57, 0
  %vm68 = vcmp.ne.s32.totalorder %v64, 0
  %vm69 = vcmp.lt.s32.totalorder %v43, 0
  %vm70 = vcmp.lt.s32.totalorder %v50, 0
  %vm71 = vcmp.lt.s32.totalorder %v57, 0
  %vm72 = vcmp.lt.s32.totalorder %v64, 0
  %vm73 = vmand %vm69, %vm65
  %vm74 = vmand %vm70, %vm66
  %vm75 = vmand %vm71, %vm67
  %vm76 = vmand %vm72, %vm68
  %v77 = vadd.s32 %v43, 16
  %v78 = vadd.s32 %v50, 16
  %v79 = vadd.s32 %v57, 16
  %v80 = vadd.s32 %v64, 16
  %v81 = vsel %vm73, %v77, %v43
  %v82 = vsel %vm74, %v78, %v50
  %v83 = vsel %vm75, %v79, %v57
  %v84 = vsel %vm76, %v80, %v64
  %vm85 = vcmp.ne.s32.totalorder %v81, 0
  %vm86 = vcmp.ne.s32.totalorder %v82, 0
  %vm87 = vcmp.ne.s32.totalorder %v83, 0
  %vm88 = vcmp.ne.s32.totalorder %v84, 0
  %vm89 = vcmp.ne.s32.totalorder %v81, 15
  %vm90 = vcmp.ne.s32.totalorder %v82, 15
  %vm91 = vcmp.ne.s32.totalorder %v83, 15
  %vm92 = vcmp.ne.s32.totalorder %v84, 15
  %v93 = vpack.c.bf16 %v29, %v28
  %v94 = vpack.c.bf16 %v31, %v30
  %v95 = vld [vmem:[%s1] sm:$0xff]
  %v96 = vld [vmem:[%s1 + $0x8] sm:$0xf]
  %v97 = vld [vmem:[%s1 + $0xc] sm:$0xff]
  %v98 = vld [vmem:[%s1 + $0x14] sm:$0xf]
  %v99 = vld [vmem:[%s1 + $0x18] sm:$0xff]
  %v100 = vld [vmem:[%s1 + $0x20] sm:$0xf]
  %v101 = vld [vmem:[%s1 + $0x24] sm:$0xff]
  %v102 = vld [vmem:[%s1 + $0x2c] sm:$0xf]
  %v103 = vld [vmem:[%s1 + $0x30] sm:$0xff]
  %v104 = vld [vmem:[%s1 + $0x38] sm:$0xf]
  %v105 = vld [vmem:[%s1 + $0x3c] sm:$0xff]
  %v106 = vld [vmem:[%s1 + $0x44] sm:$0xf]
  %v107 = vld [vmem:[%s1 + $0x48] sm:$0xff]
  %v108 = vld [vmem:[%s1 + $0x50] sm:$0xf]
  %v109 = vld [vmem:[%s1 + $0x54] sm:$0xff]
  %v110 = vld [vmem:[%s1 + $0x5c] sm:$0xf]
  %v111 = vld [vmem:[%s1 + $0x60] sm:$0xff]
  %v112 = vld [vmem:[%s1 + $0x68] sm:$0xf]
  %v113 = vld [vmem:[%s1 + $0x6c] sm:$0xff]
  %v114 = vld [vmem:[%s1 + $0x74] sm:$0xf]
  %v115 = vld [vmem:[%s1 + $0x78] sm:$0xff]
  %v116 = vld [vmem:[%s1 + $0x80] sm:$0xf]
  %v117 = vld [vmem:[%s1 + $0x84] sm:$0xff]
  %v118 = vld [vmem:[%s1 + $0x8c] sm:$0xf]
  %v119 = vld [vmem:[%s1 + $0x90] sm:$0xff]
  %v120 = vld [vmem:[%s1 + $0x98] sm:$0xf]
  %v121 = vld [vmem:[%s1 + $0x9c] sm:$0xff]
  %v122 = vld [vmem:[%s1 + $0xa4] sm:$0xf]
  %v123 = vld [vmem:[%s1 + $0xa8] sm:$0xff]
  %v124 = vld [vmem:[%s1 + $0xb0] sm:$0xf]
  %v125 = vld [vmem:[%s1 + $0xb4] sm:$0xff]
  %v126 = vld [vmem:[%s1 + $0xbc] sm:$0xf]
  %v159 = vunpack.c.l.b16 %v95
  %v160 = vunpack.c.h.b16 %v95
  %v161 = vunpack.c.l.b16 %v96
  %v162 = vunpack.c.l.b16 %v97
  %v163 = vunpack.c.h.b16 %v97
  %v164 = vunpack.c.l.b16 %v98
  %v165 = vunpack.c.l.b16 %v99
  %v166 = vunpack.c.h.b16 %v99
  %v167 = vunpack.c.l.b16 %v100
  %v168 = vunpack.c.l.b16 %v101
  %v169 = vunpack.c.h.b16 %v101
  %v170 = vunpack.c.l.b16 %v102
  %v171 = vunpack.c.l.b16 %v103
  %v172 = vunpack.c.h.b16 %v103
  %v173 = vunpack.c.l.b16 %v104
  %v174 = vunpack.c.l.b16 %v105
  %v175 = vunpack.c.h.b16 %v105
  %v176 = vunpack.c.l.b16 %v106
  %v177 = vunpack.c.l.b16 %v107
  %v178 = vunpack.c.h.b16 %v107
  %v179 = vunpack.c.l.b16 %v108
  %v180 = vunpack.c.l.b16 %v109
  %v181 = vunpack.c.h.b16 %v109
  %v182 = vunpack.c.l.b16 %v110
  %v183 = vunpack.c.l.b16 %v111
  %v184 = vunpack.c.h.b16 %v111
  %v185 = vunpack.c.l.b16 %v112
  %v186 = vunpack.c.l.b16 %v113
  %v187 = vunpack.c.h.b16 %v113
  %v188 = vunpack.c.l.b16 %v114
  %v189 = vunpack.c.l.b16 %v115
  %v190 = vunpack.c.h.b16 %v115
  %v191 = vunpack.c.l.b16 %v116
  %v192 = vunpack.c.l.b16 %v117
  %v193 = vunpack.c.h.b16 %v117
  %v194 = vunpack.c.l.b16 %v118
  %v195 = vunpack.c.l.b16 %v119
  %v196 = vunpack.c.h.b16 %v119
  %v197 = vunpack.c.l.b16 %v120
  %v198 = vunpack.c.l.b16 %v121
  %v199 = vunpack.c.h.b16 %v121
  %v200 = vunpack.c.l.b16 %v122
  %v201 = vunpack.c.l.b16 %v123
  %v202 = vunpack.c.h.b16 %v123
  %v203 = vunpack.c.l.b16 %v124
  %v204 = vunpack.c.l.b16 %v125
  %v205 = vunpack.c.h.b16 %v125
  %v206 = vunpack.c.l.b16 %v126
  %v207 = vpack.c.b16 %v162, %v159
  %v208 = vpack.c.b16 %v163, %v160
  %v209 = vpack.c.b16 %v164, %v161
  %v210 = vpack.c.b16 %v168, %v165
  %v211 = vpack.c.b16 %v169, %v166
  %v212 = vpack.c.b16 %v170, %v167
  %v213 = vpack.c.b16 %v174, %v171
  %v214 = vpack.c.b16 %v175, %v172
  %v215 = vpack.c.b16 %v176, %v173
  %v216 = vpack.c.b16 %v180, %v177
  %v217 = vpack.c.b16 %v181, %v178
  %v218 = vpack.c.b16 %v182, %v179
  %v219 = vpack.c.b16 %v186, %v183
  %v220 = vpack.c.b16 %v187, %v184
  %v221 = vpack.c.b16 %v188, %v185
  %v222 = vpack.c.b16 %v192, %v189
  %v223 = vpack.c.b16 %v193, %v190
  %v224 = vpack.c.b16 %v194, %v191
  %v225 = vpack.c.b16 %v198, %v195
  %v226 = vpack.c.b16 %v199, %v196
  %v227 = vpack.c.b16 %v200, %v197
  %v228 = vpack.c.b16 %v204, %v201
  %v229 = vpack.c.b16 %v205, %v202
  %v230 = vpack.c.b16 %v206, %v203
  %255 = vmatpush.bf16.msra.mxu0 %v228
  %256 = vmatpush.bf16.msra.mxu0 %v225
  %257 = vmatpush.bf16.msra.mxu0 %v222
  %258 = vmatpush.bf16.msra.mxu0 %v219
  %259 = vmatpush.bf16.msra.mxu0 %v216
  %260 = vmatpush.bf16.msra.mxu0 %v213
  %261 = vmatpush.bf16.msra.mxu0 %v210
  %262 = vmatpush.bf16.msra.mxu0 %v207
  %263 = vmatmul.bf16.gmra.mxu0 %v93
  %v264 = vpop.f32.mrf.mxu0
  %v265 = vadd.f32 0.0, %v264
  %v266 = vpop.f32.mrf.mxu0
  %v267 = vadd.f32 0.0, %v266
  %268 = vmatmul.bf16.gmra.mxu0 %v94
  %v269 = vpop.f32.mrf.mxu0
  %v270 = vadd.f32 0.0, %v269
  %v271 = vpop.f32.mrf.mxu0
  %v272 = vadd.f32 0.0, %v271
  %273 = vdwg.mxu0
  %274 = vmatpush.bf16.msra.mxu0 %v229
  %275 = vmatpush.bf16.msra.mxu0 %v226
  %276 = vmatpush.bf16.msra.mxu0 %v223
  %277 = vmatpush.bf16.msra.mxu0 %v220
  %278 = vmatpush.bf16.msra.mxu0 %v217
  %279 = vmatpush.bf16.msra.mxu0 %v214
  %280 = vmatpush.bf16.msra.mxu0 %v211
  %281 = vmatpush.bf16.msra.mxu0 %v208
  %282 = vmatmul.bf16.gmra.mxu0 %v93
  %v283 = vpop.f32.mrf.mxu0
  %v284 = vadd.f32 0.0, %v283
  %v285 = vpop.f32.mrf.mxu0
  %v286 = vadd.f32 0.0, %v285
  %287 = vmatmul.bf16.gmra.mxu0 %v94
  %v288 = vpop.f32.mrf.mxu0
  %v289 = vadd.f32 0.0, %v288
  %v290 = vpop.f32.mrf.mxu0
  %v291 = vadd.f32 0.0, %v290
  %292 = vdwg.mxu0
  %293 = vmatpush.bf16.msra.mxu0 %v230
  %294 = vmatpush.bf16.msra.mxu0 %v227
  %295 = vmatpush.bf16.msra.mxu0 %v224
  %296 = vmatpush.bf16.msra.mxu0 %v221
  %297 = vmatpush.bf16.msra.mxu0 %v218
  %298 = vmatpush.bf16.msra.mxu0 %v215
  %299 = vmatpush.bf16.msra.mxu0 %v212
  %300 = vmatpush.bf16.msra.mxu0 %v209
  %301 = vmatmul.bf16.gmra.mxu0 %v93
  %v302 = vpop.f32.mrf.mxu0
  %v303 = vadd.f32 0.0, %v302
  %v304 = vpop.f32.mrf.mxu0
  %v305 = vadd.f32 0.0, %v304
  %306 = vmatmul.bf16.gmra.mxu0 %v94
  %v307 = vpop.f32.mrf.mxu0
  %v308 = vadd.f32 0.0, %v307
  %v309 = vpop.f32.mrf.mxu0
  %v310 = vadd.f32 0.0, %v309
  %311 = vdwg.mxu0
  %v312 = vrot.slane %v265, 7
  %v313 = vrot.slane %v267, 7
  %v314 = vrot.slane %v270, 7
  %v315 = vrot.slane %v272, 7
  %vm316 = vcmp.lt.s32.totalorder %v33, 1
  %v317 = vsel %vm316, %v314, %v315
  %v318 = vsel %vm316, %v313, %v314
  %v319 = vsel %vm316, %v312, %v313
  %v320 = vsel %vm316, %v315, %v312
  %v321 = vsel %vm85, %v320, 0.0
  %v322 = vsel %vm86, %v319, 0.0
  %v323 = vsel %vm87, %v318, 0.0
  %v324 = vsel %vm88, %v317, 0.0
  %v325 = vrot.slane %v303, 1
  %v326 = vrot.slane %v305, 1
  %v327 = vrot.slane %v308, 1
  %v328 = vrot.slane %v310, 1
  %vm329 = vcmp.lt.s32.totalorder %v33, 7
  %v330 = vsel %vm329, %v327, %v328
  %v331 = vsel %vm329, %v326, %v327
  %v332 = vsel %vm329, %v325, %v326
  %v333 = vsel %vm329, %v328, %v325
  %v334 = vsel %vm89, %v332, 0.0
  %v335 = vsel %vm90, %v331, 0.0
  %v336 = vsel %vm91, %v330, 0.0
  %v337 = vsel %vm92, %v333, 0.0
  %v338 = vadd.f32 %v321, %v284
  %v339 = vadd.f32 %v322, %v286
  %v340 = vadd.f32 %v323, %v289
  %v341 = vadd.f32 %v324, %v291
  %v342 = vadd.f32 %v338, %v334
  %v343 = vadd.f32 %v339, %v335
  %v344 = vadd.f32 %v340, %v336
  %v345 = vadd.f32 %v341, %v337
  %v346 = vld [vmem:[%s3] sm:$0x1]
  %v348 = vperm.slane %v346, 0
  %v350 = vadd.f32 %v342, %v348
  %v351 = vadd.f32 %v343, %v348
  %v352 = vadd.f32 %v344, %v348
  %v353 = vadd.f32 %v345, %v348
  %v354 = vld [vmem:[%s4] sm:$0x1]
  %v355 = vadd.f32 %v350, 0.0
  %v356 = vadd.f32 %v351, 0.0
  %v357 = vadd.f32 %v352, 0.0
  %v358 = vadd.f32 %v353, 0.0
  %v360 = vperm.slane %v354, 0
  %v362 = vmul.f32 %v360, %v355
  %v363 = vmul.f32 %v360, %v356
  %v364 = vmul.f32 %v360, %v357
  %v365 = vmul.f32 %v360, %v358
  %v366 = vmax.f32 %v362, 0.0
  %v367 = vmax.f32 %v363, 0.0
  %v368 = vmax.f32 %v364, 0.0
  %v369 = vmax.f32 %v365, 0.0
  %v370 = vpack.c.bf16 %v367, %v366
  %v371 = vpack.c.bf16 %v369, %v368
  %v372 = vld [vmem:[%s2] sm:$0xff]
  %v373 = vld [vmem:[%s2 + $0x8] sm:$0xf]
  %v374 = vld [vmem:[%s2 + $0xc] sm:$0xff]
  %v375 = vld [vmem:[%s2 + $0x14] sm:$0xf]
  %v376 = vld [vmem:[%s2 + $0x18] sm:$0xff]
  %v377 = vld [vmem:[%s2 + $0x20] sm:$0xf]
  %v378 = vld [vmem:[%s2 + $0x24] sm:$0xff]
  %v379 = vld [vmem:[%s2 + $0x2c] sm:$0xf]
  %v380 = vld [vmem:[%s2 + $0x30] sm:$0xff]
  %v381 = vld [vmem:[%s2 + $0x38] sm:$0xf]
  %v382 = vld [vmem:[%s2 + $0x3c] sm:$0xff]
  %v383 = vld [vmem:[%s2 + $0x44] sm:$0xf]
  %v384 = vld [vmem:[%s2 + $0x48] sm:$0xff]
  %v385 = vld [vmem:[%s2 + $0x50] sm:$0xf]
  %v386 = vld [vmem:[%s2 + $0x54] sm:$0xff]
  %v387 = vld [vmem:[%s2 + $0x5c] sm:$0xf]
  %v388 = vld [vmem:[%s2 + $0x60] sm:$0xff]
  %v389 = vld [vmem:[%s2 + $0x68] sm:$0xf]
  %v390 = vld [vmem:[%s2 + $0x6c] sm:$0xff]
  %v391 = vld [vmem:[%s2 + $0x74] sm:$0xf]
  %v392 = vld [vmem:[%s2 + $0x78] sm:$0xff]
  %v393 = vld [vmem:[%s2 + $0x80] sm:$0xf]
  %v394 = vld [vmem:[%s2 + $0x84] sm:$0xff]
  %v395 = vld [vmem:[%s2 + $0x8c] sm:$0xf]
  %v396 = vld [vmem:[%s2 + $0x90] sm:$0xff]
  %v397 = vld [vmem:[%s2 + $0x98] sm:$0xf]
  %v398 = vld [vmem:[%s2 + $0x9c] sm:$0xff]
  %v399 = vld [vmem:[%s2 + $0xa4] sm:$0xf]
  %v400 = vld [vmem:[%s2 + $0xa8] sm:$0xff]
  %v401 = vld [vmem:[%s2 + $0xb0] sm:$0xf]
  %v402 = vld [vmem:[%s2 + $0xb4] sm:$0xff]
  %v403 = vld [vmem:[%s2 + $0xbc] sm:$0xf]
  %v436 = vunpack.c.l.b16 %v372
  %v437 = vunpack.c.h.b16 %v372
  %v438 = vunpack.c.l.b16 %v373
  %v439 = vunpack.c.l.b16 %v374
  %v440 = vunpack.c.h.b16 %v374
  %v441 = vunpack.c.l.b16 %v375
  %v442 = vunpack.c.l.b16 %v376
  %v443 = vunpack.c.h.b16 %v376
  %v444 = vunpack.c.l.b16 %v377
  %v445 = vunpack.c.l.b16 %v378
  %v446 = vunpack.c.h.b16 %v378
  %v447 = vunpack.c.l.b16 %v379
  %v448 = vunpack.c.l.b16 %v380
  %v449 = vunpack.c.h.b16 %v380
  %v450 = vunpack.c.l.b16 %v381
  %v451 = vunpack.c.l.b16 %v382
  %v452 = vunpack.c.h.b16 %v382
  %v453 = vunpack.c.l.b16 %v383
  %v454 = vunpack.c.l.b16 %v384
  %v455 = vunpack.c.h.b16 %v384
  %v456 = vunpack.c.l.b16 %v385
  %v457 = vunpack.c.l.b16 %v386
  %v458 = vunpack.c.h.b16 %v386
  %v459 = vunpack.c.l.b16 %v387
  %v460 = vunpack.c.l.b16 %v388
  %v461 = vunpack.c.h.b16 %v388
  %v462 = vunpack.c.l.b16 %v389
  %v463 = vunpack.c.l.b16 %v390
  %v464 = vunpack.c.h.b16 %v390
  %v465 = vunpack.c.l.b16 %v391
  %v466 = vunpack.c.l.b16 %v392
  %v467 = vunpack.c.h.b16 %v392
  %v468 = vunpack.c.l.b16 %v393
  %v469 = vunpack.c.l.b16 %v394
  %v470 = vunpack.c.h.b16 %v394
  %v471 = vunpack.c.l.b16 %v395
  %v472 = vunpack.c.l.b16 %v396
  %v473 = vunpack.c.h.b16 %v396
  %v474 = vunpack.c.l.b16 %v397
  %v475 = vunpack.c.l.b16 %v398
  %v476 = vunpack.c.h.b16 %v398
  %v477 = vunpack.c.l.b16 %v399
  %v478 = vunpack.c.l.b16 %v400
  %v479 = vunpack.c.h.b16 %v400
  %v480 = vunpack.c.l.b16 %v401
  %v481 = vunpack.c.l.b16 %v402
  %v482 = vunpack.c.h.b16 %v402
  %v483 = vunpack.c.l.b16 %v403
  %v484 = vpack.c.b16 %v439, %v436
  %v485 = vpack.c.b16 %v440, %v437
  %v486 = vpack.c.b16 %v441, %v438
  %v487 = vpack.c.b16 %v445, %v442
  %v488 = vpack.c.b16 %v446, %v443
  %v489 = vpack.c.b16 %v447, %v444
  %v490 = vpack.c.b16 %v451, %v448
  %v491 = vpack.c.b16 %v452, %v449
  %v492 = vpack.c.b16 %v453, %v450
  %v493 = vpack.c.b16 %v457, %v454
  %v494 = vpack.c.b16 %v458, %v455
  %v495 = vpack.c.b16 %v459, %v456
  %v496 = vpack.c.b16 %v463, %v460
  %v497 = vpack.c.b16 %v464, %v461
  %v498 = vpack.c.b16 %v465, %v462
  %v499 = vpack.c.b16 %v469, %v466
  %v500 = vpack.c.b16 %v470, %v467
  %v501 = vpack.c.b16 %v471, %v468
  %v502 = vpack.c.b16 %v475, %v472
  %v503 = vpack.c.b16 %v476, %v473
  %v504 = vpack.c.b16 %v477, %v474
  %v505 = vpack.c.b16 %v481, %v478
  %v506 = vpack.c.b16 %v482, %v479
  %v507 = vpack.c.b16 %v483, %v480
  %532 = vmatpush.bf16.msra.mxu0 %v505
  %533 = vmatpush.bf16.msra.mxu0 %v502
  %534 = vmatpush.bf16.msra.mxu0 %v499
  %535 = vmatpush.bf16.msra.mxu0 %v496
  %536 = vmatpush.bf16.msra.mxu0 %v493
  %537 = vmatpush.bf16.msra.mxu0 %v490
  %538 = vmatpush.bf16.msra.mxu0 %v487
  %539 = vmatpush.bf16.msra.mxu0 %v484
  %540 = vmatmul.bf16.gmra.mxu0 %v370
  %v541 = vpop.f32.mrf.mxu0
  %v542 = vadd.f32 0.0, %v541
  %v543 = vpop.f32.mrf.mxu0
  %v544 = vadd.f32 0.0, %v543
  %545 = vmatmul.bf16.gmra.mxu0 %v371
  %v546 = vpop.f32.mrf.mxu0
  %v547 = vadd.f32 0.0, %v546
  %v548 = vpop.f32.mrf.mxu0
  %v549 = vadd.f32 0.0, %v548
  %550 = vdwg.mxu0
  %551 = vmatpush.bf16.msra.mxu0 %v506
  %552 = vmatpush.bf16.msra.mxu0 %v503
  %553 = vmatpush.bf16.msra.mxu0 %v500
  %554 = vmatpush.bf16.msra.mxu0 %v497
  %555 = vmatpush.bf16.msra.mxu0 %v494
  %556 = vmatpush.bf16.msra.mxu0 %v491
  %557 = vmatpush.bf16.msra.mxu0 %v488
  %558 = vmatpush.bf16.msra.mxu0 %v485
  %559 = vmatmul.bf16.gmra.mxu0 %v370
  %v560 = vpop.f32.mrf.mxu0
  %v561 = vadd.f32 0.0, %v560
  %v562 = vpop.f32.mrf.mxu0
  %v563 = vadd.f32 0.0, %v562
  %564 = vmatmul.bf16.gmra.mxu0 %v371
  %v565 = vpop.f32.mrf.mxu0
  %v566 = vadd.f32 0.0, %v565
  %v567 = vpop.f32.mrf.mxu0
  %v568 = vadd.f32 0.0, %v567
  %569 = vdwg.mxu0
  %570 = vmatpush.bf16.msra.mxu0 %v507
  %571 = vmatpush.bf16.msra.mxu0 %v504
  %572 = vmatpush.bf16.msra.mxu0 %v501
  %573 = vmatpush.bf16.msra.mxu0 %v498
  %574 = vmatpush.bf16.msra.mxu0 %v495
  %575 = vmatpush.bf16.msra.mxu0 %v492
  %576 = vmatpush.bf16.msra.mxu0 %v489
  %577 = vmatpush.bf16.msra.mxu0 %v486
  %578 = vmatmul.bf16.gmra.mxu0 %v370
  %v579 = vpop.f32.mrf.mxu0
  %v580 = vadd.f32 0.0, %v579
  %v581 = vpop.f32.mrf.mxu0
  %v582 = vadd.f32 0.0, %v581
  %583 = vmatmul.bf16.gmra.mxu0 %v371
  %v584 = vpop.f32.mrf.mxu0
  %v585 = vadd.f32 0.0, %v584
  %v586 = vpop.f32.mrf.mxu0
  %v587 = vadd.f32 0.0, %v586
  %588 = vdwg.mxu0
  %v589 = vrot.slane %v542, 7
  %v590 = vrot.slane %v544, 7
  %v591 = vrot.slane %v547, 7
  %v592 = vrot.slane %v549, 7
  %v593 = vsel %vm316, %v591, %v592
  %v594 = vsel %vm316, %v590, %v591
  %v595 = vsel %vm316, %v589, %v590
  %v596 = vsel %vm316, %v592, %v589
  %v597 = vsel %vm85, %v596, 0.0
  %v598 = vsel %vm86, %v595, 0.0
  %v599 = vsel %vm87, %v594, 0.0
  %v600 = vsel %vm88, %v593, 0.0
  %v601 = vrot.slane %v580, 1
  %v602 = vrot.slane %v582, 1
  %v603 = vrot.slane %v585, 1
  %v604 = vrot.slane %v587, 1
  %v605 = vsel %vm329, %v603, %v604
  %v606 = vsel %vm329, %v602, %v603
  %v607 = vsel %vm329, %v601, %v602
  %v608 = vsel %vm329, %v604, %v601
  %v609 = vsel %vm89, %v607, 0.0
  %v610 = vsel %vm90, %v606, 0.0
  %v611 = vsel %vm91, %v605, 0.0
  %v612 = vsel %vm92, %v608, 0.0
  %v613 = vadd.f32 %v597, %v561
  %v614 = vadd.f32 %v598, %v563
  %v615 = vadd.f32 %v599, %v566
  %v616 = vadd.f32 %v600, %v568
  %v617 = vadd.f32 %v613, %v609
  %v618 = vadd.f32 %v614, %v610
  %v619 = vadd.f32 %v615, %v611
  %v620 = vadd.f32 %v616, %v612
  %v621 = vld [vmem:[%s5] sm:$0x1]
  %v623 = vperm.slane %v621, 0
  %v625 = vadd.f32 %v617, %v623
  %v626 = vadd.f32 %v618, %v623
  %v627 = vadd.f32 %v619, %v623
  %v628 = vadd.f32 %v620, %v623
  %v629 = vld [vmem:[%s6] sm:$0x1]
  %v630 = vadd.f32 %v625, %v28
  %v631 = vadd.f32 %v626, %v29
  %v632 = vadd.f32 %v627, %v30
  %v633 = vadd.f32 %v628, %v31
  %v635 = vperm.slane %v629, 0
  %v637 = vmul.f32 %v635, %v630
  %v638 = vmul.f32 %v635, %v631
  %v639 = vmul.f32 %v635, %v632
  %v640 = vmul.f32 %v635, %v633
  %v641 = vmax.f32 %v637, 0.0
  %v642 = vmax.f32 %v638, 0.0
  %v643 = vmax.f32 %v639, 0.0
  %v644 = vmax.f32 %v640, 0.0
  %645 = vst [vmem:[%s7] sm:$0xff] %v641
  %646 = vst [vmem:[%s7 + $0x8] sm:$0xff] %v642
  %647 = vst [vmem:[%s7 + $0x10] sm:$0xff] %v643
  %648 = vst [vmem:[%s7 + $0x18] sm:$0xff] %v644
  %649 = vst [vmem:[%s8] sm:$0xff] %v362
  %650 = vst [vmem:[%s8 + $0x8] sm:$0xff] %v363
  %651 = vst [vmem:[%s8 + $0x10] sm:$0xff] %v364
  %652 = vst [vmem:[%s8 + $0x18] sm:$0xff] %v365
  %s653 = scalar_lea.vmem %s8, 32
  %654 = vst [vmem:[%s653] sm:$0xff] %v637
  %655 = vst [vmem:[%s653 + $0x8] sm:$0xff] %v638
  %656 = vst [vmem:[%s653 + $0x10] sm:$0xff] %v639
  %657 = vst [vmem:[%s653 + $0x18] sm:$0xff] %v640
  // Predicated region
  $region30: #{leaky_residual_block.1} parent=0 // pred_check
    _
  $region31: #{leaky_residual_block.1} parent=0 // pred_check_branch
    %659 = sbr.rel (0) target = $region33
  $region32: #{leaky_residual_block.1} parent=0 // pred_region
    _
  $region33: #{leaky_residual_block.1} parent=0 // pred_fallthru
    _
  // Predicated region
  $region34: #{leaky_residual_block.1} parent=0 // pred_check
    _
  $region35: #{leaky_residual_block.1} parent=0 // pred_check_branch
    %661 = sbr.rel (0) target = $region37
  $region36: #{leaky_residual_block.1} parent=0 // pred_region
    _
  $region37: #{leaky_residual_block.1} parent=0 // pred_fallthru
    _
  // Predicated region
  $region38: #{leaky_residual_block.1} parent=0 // pred_check
    _
  $region39: #{leaky_residual_block.1} parent=0 // pred_check_branch
    %663 = sbr.rel (0) target = $region41
  $region40: #{leaky_residual_block.1} parent=0 // pred_region
    _
  $region41: #{leaky_residual_block.1} parent=0 // pred_fallthru
    _
  // Predicated region
  $region42: #{leaky_residual_block.1} parent=0 // pred_check
    _
  $region43: #{leaky_residual_block.1} parent=0 // pred_check_branch
    %665 = sbr.rel (0) target = $region45
  $region44: #{leaky_residual_block.1} parent=0 // pred_region
    _
  $region45: #{leaky_residual_block.1} parent=0 // pred_fallthru
    _

</llo_original>
